<compile_context>
chip_gen: v5e
topology: v5e:2x2
jax: 0.10.0
libtpu: 0.0.40
codegen_flags: <defaults>
</compile_context>

<pallas_src>
import math
import numpy as np
import jax
import jax.numpy as jnp
from jax.experimental import pallas as pl
from jax.experimental.pallas import tpu as pltpu

_VMEM_LIMIT = 48 * 1024 * 1024   # explicit scoped-VMEM limit (safe on v5e/v6e/v7x)
_DEF_TM = 256                    # row-tile for linear/MLP kernels (multiple of 8/256)
_SQRT_2_OVER_PI = 0.7978845608028654


def _round_up(x, m):
    return ((x + m - 1) // m) * m


def _compiler_params(n_parallel=1):
    return pltpu.CompilerParams(
        dimension_semantics=("parallel",) * n_parallel,
        vmem_limit_bytes=_VMEM_LIMIT)


# ----------------------------- Pallas kernels ------------------------------

def _linear_kernel(x_ref, w_ref, b_ref, o_ref):
    o_ref[...] = jnp.dot(x_ref[...], w_ref[...],
                         preferred_element_type=jnp.float32) + b_ref[...]


def pallas_linear(x, w, b, tm=_DEF_TM):
    """(M, K) @ (K, N) + b, tiled over M; bf16 operands, f32 accumulate."""
    M, K = x.shape
    N = w.shape[1]
    TM = min(_round_up(M, 8), tm)
    return pl.pallas_call(
        _linear_kernel,
        out_shape=jax.ShapeDtypeStruct((M, N), jnp.float32),
        grid=(pl.cdiv(M, TM),),
        in_specs=[
            pl.BlockSpec((TM, K), lambda i: (i, 0)),
            pl.BlockSpec((K, N), lambda i: (0, 0)),
            pl.BlockSpec((1, N), lambda i: (0, 0)),
        ],
        out_specs=pl.BlockSpec((TM, N), lambda i: (i, 0)),
        compiler_params=_compiler_params(1),
    )(x.astype(jnp.bfloat16), w.astype(jnp.bfloat16), b)


def _make_linear_ln_kernel(eps):
    def kern(x_ref, w_ref, b_ref, g_ref, beta_ref, o_ref):
        y = jnp.dot(x_ref[...], w_ref[...],
                    preferred_element_type=jnp.float32) + b_ref[...]
        mu = jnp.mean(y, axis=-1, keepdims=True)
        var = jnp.mean((y - mu) ** 2, axis=-1, keepdims=True)
        o_ref[...] = (y - mu) * jax.lax.rsqrt(var + eps) * g_ref[...] + beta_ref[...]
    return kern


def pallas_linear_ln(x, w, b, g, beta, eps=1e-5, tm=_DEF_TM):
    """layernorm(x @ w + b) * g + beta, fused, tiled over M."""
    M, K = x.shape
    N = w.shape[1]
    TM = min(_round_up(M, 8), tm)
    return pl.pallas_call(
        _make_linear_ln_kernel(eps),
        out_shape=jax.ShapeDtypeStruct((M, N), jnp.float32),
        grid=(pl.cdiv(M, TM),),
        in_specs=[
            pl.BlockSpec((TM, K), lambda i: (i, 0)),
            pl.BlockSpec((K, N), lambda i: (0, 0)),
            pl.BlockSpec((1, N), lambda i: (0, 0)),
            pl.BlockSpec((1, N), lambda i: (0, 0)),
            pl.BlockSpec((1, N), lambda i: (0, 0)),
        ],
        out_specs=pl.BlockSpec((TM, N), lambda i: (i, 0)),
        compiler_params=_compiler_params(1),
    )(x.astype(jnp.bfloat16), w.astype(jnp.bfloat16), b, g, beta)


def _make_mlp_block_kernel(eps):
    def kern(x_ref, w1_ref, b1_ref, w2_ref, b2_ref, g_ref, beta_ref, o_ref):
        x = x_ref[...]                                             # (TM, C) f32
        h = jnp.dot(x.astype(jnp.bfloat16), w1_ref[...],
                    preferred_element_type=jnp.float32) + b1_ref[...]
        # tanh-approx GELU (TODO(synk): exact erf GELU -> small drift)
        h = 0.5 * h * (1.0 + jnp.tanh(_SQRT_2_OVER_PI * (h + 0.044715 * h * h * h)))
        y = jnp.dot(h.astype(jnp.bfloat16), w2_ref[...],
                    preferred_element_type=jnp.float32) + b2_ref[...]
        mu = jnp.mean(y, axis=-1, keepdims=True)
        var = jnp.mean((y - mu) ** 2, axis=-1, keepdims=True)
        y = (y - mu) * jax.lax.rsqrt(var + eps) * g_ref[...] + beta_ref[...]
        o_ref[...] = x + y                                         # residual
    return kern


def pallas_mlp_block(x, w1, b1, w2, b2, g, beta, eps=1e-5, tm=_DEF_TM):
    """x + layernorm(fc2(gelu(fc1(x)))); hidden never leaves VMEM."""
    M, C = x.shape
    Hd = w1.shape[1]
    TM = min(_round_up(M, 8), tm)
    return pl.pallas_call(
        _make_mlp_block_kernel(eps),
        out_shape=jax.ShapeDtypeStruct((M, C), jnp.float32),
        grid=(pl.cdiv(M, TM),),
        in_specs=[
            pl.BlockSpec((TM, C), lambda i: (i, 0)),
            pl.BlockSpec((C, Hd), lambda i: (0, 0)),
            pl.BlockSpec((1, Hd), lambda i: (0, 0)),
            pl.BlockSpec((Hd, C), lambda i: (0, 0)),
            pl.BlockSpec((1, C), lambda i: (0, 0)),
            pl.BlockSpec((1, C), lambda i: (0, 0)),
            pl.BlockSpec((1, C), lambda i: (0, 0)),
        ],
        out_specs=pl.BlockSpec((TM, C), lambda i: (i, 0)),
        compiler_params=_compiler_params(1),
    )(x, w1.astype(jnp.bfloat16), b1, w2.astype(jnp.bfloat16), b2, g, beta)


def _make_window_attn_kernel(num_heads, has_mask):
    def kern(*refs):
        if has_mask:
            q_ref, k_ref, v_ref, bias_ref, scale_ref, mask_ref, o_ref = refs
        else:
            q_ref, k_ref, v_ref, bias_ref, scale_ref, o_ref = refs
        q = q_ref[...]            # (Wb, H, N, D) bf16
        k = k_ref[...]
        v = v_ref[...]
        bias = bias_ref[...]      # (H, N, N) f32
        scale = scale_ref[...]    # (H, 1)  f32
        mask = mask_ref[...] if has_mask else None
        for h in range(num_heads):
            qh = q[:, h].astype(jnp.float32)                       # (Wb, N, D)
            kh = k[:, h].astype(jnp.float32)
            # cosine attention (F.normalize, eps=1e-12) via rsqrt
            qh = qh * jax.lax.rsqrt(
                jnp.maximum(jnp.sum(qh * qh, axis=-1, keepdims=True), 1e-24))
            kh = kh * jax.lax.rsqrt(
                jnp.maximum(jnp.sum(kh * kh, axis=-1, keepdims=True), 1e-24))
            # fold exp(clamp(logit_scale)) into q before QK^T
            qh = qh * scale[h:h + 1, :]
            a = jnp.einsum("wnd,wmd->wnm",
                           qh.astype(jnp.bfloat16), kh.astype(jnp.bfloat16),
                           preferred_element_type=jnp.float32)     # (Wb, N, N)
            a = a + bias[h]
            if has_mask:
                a = a + mask
            a = a - jnp.max(a, axis=-1, keepdims=True)
            e = jnp.exp(a)
            p = e * pl.reciprocal(jnp.sum(e, axis=-1, keepdims=True), approx=True)
            o = jnp.einsum("wnm,wmd->wnd",
                           p.astype(jnp.bfloat16), v[:, h],
                           preferred_element_type=jnp.float32)
            o_ref[:, h] = o.astype(o_ref.dtype)
    return kern


def _pick_window_block(num_windows, n_tokens, target_rows=512):
    """Largest divisor of num_windows with Wb * N <= target (batch windows per step)."""
    wb = 1
    for cand in range(1, num_windows + 1):
        if num_windows % cand == 0 and cand * n_tokens <= max(target_rows, n_tokens):
            wb = cand
    return wb


def window_attention(q, k, v, bias, scale, mask, num_windows):
    BW, nh, N, D = q.shape
    Wb = _pick_window_block(num_windows, N)
    nmb = num_windows // Wb
    in_specs = [
        pl.BlockSpec((Wb, nh, N, D), lambda i: (i, 0, 0, 0)),
        pl.BlockSpec((Wb, nh, N, D), lambda i: (i, 0, 0, 0)),
        pl.BlockSpec((Wb, nh, N, D), lambda i: (i, 0, 0, 0)),
        pl.BlockSpec((nh, N, N), lambda i: (0, 0, 0)),
        pl.BlockSpec((nh, 1), lambda i: (0, 0)),
    ]
    args = [q, k, v, bias, scale]
    if mask is not None:
        mask_idx = (lambda i: (0, 0, 0)) if nmb == 1 else (lambda i: (i % nmb, 0, 0))
        in_specs.append(pl.BlockSpec((Wb, N, N), mask_idx))
        args.append(mask)
    return pl.pallas_call(
        _make_window_attn_kernel(nh, mask is not None),
        out_shape=jax.ShapeDtypeStruct((BW, nh, N, D), jnp.float32),
        grid=(BW // Wb,),
        in_specs=in_specs,
        out_specs=pl.BlockSpec((Wb, nh, N, D), lambda i: (i, 0, 0, 0)),
        compiler_params=_compiler_params(1),
    )(*args)


# ------------------------- static buffers (numpy) ---------------------------

def make_rel_coords_table(window_size):
    ws0, ws1 = window_size
    h = np.arange(-(ws0 - 1), ws0, dtype=np.float32)
    w = np.arange(-(ws1 - 1), ws1, dtype=np.float32)
    t = np.stack(np.meshgrid(h, w, indexing="ij")).transpose(1, 2, 0)
    t[:, :, 0] /= (ws0 - 1)
    t[:, :, 1] /= (ws1 - 1)
    t *= 8.0
    t = np.sign(t) * np.log2(np.abs(t) + 1.0) / 3.0
    return jnp.asarray(t.reshape(-1, 2), jnp.float32)


def make_rel_pos_index(window_size):
    ws0, ws1 = window_size
    coords = np.stack(np.meshgrid(np.arange(ws0), np.arange(ws1), indexing="ij"))
    cf = coords.reshape(2, -1)
    rel = (cf[:, :, None] - cf[:, None, :]).transpose(1, 2, 0)
    rel[:, :, 0] += ws0 - 1
    rel[:, :, 1] += ws1 - 1
    rel[:, :, 0] *= 2 * ws1 - 1
    return jnp.asarray(rel.sum(-1).reshape(-1), jnp.int32)


def make_attn_mask(pad_H, pad_W, window_size, shift_size):
    ws0, ws1 = window_size
    m = np.zeros((pad_H, pad_W), np.float32)
    h_slices = ((0, -ws0), (-ws0, -shift_size[0]), (-shift_size[0], None))
    w_slices = ((0, -ws1), (-ws1, -shift_size[1]), (-shift_size[1], None))
    cnt = 0
    for hs in h_slices:
        for wsl in w_slices:
            m[hs[0]:hs[1], wsl[0]:wsl[1]] = cnt
            cnt += 1
    m = m.reshape(pad_H // ws0, ws0, pad_W // ws1, ws1).transpose(0, 2, 1, 3)
    m = m.reshape(-1, ws0 * ws1)
    diff = m[:, None, :] - m[:, :, None]
    mask = np.where(diff != 0, -100.0, 0.0).astype(np.float32)
    return jnp.asarray(mask)  # (num_windows, N, N)


# ----------------------------- parameter init ------------------------------

def init_linear(key, din, dout):
    kw, kb = jax.random.split(key)
    w = 0.02 * jax.random.normal(kw, (din, dout), jnp.float32)
    b = 0.02 * jax.random.normal(kb, (1, dout), jnp.float32)
    return w, b


def init_attention_params(key, dim, num_heads, window_size):
    ks = jax.random.split(key, 6)
    qw, qb = init_linear(ks[0], dim, dim)
    kw, kb = init_linear(ks[1], dim, dim)
    vw, vb = init_linear(ks[2], dim, dim)
    pw, pb = init_linear(ks[3], dim, dim)
    cpb1_w, cpb1_b = init_linear(ks[4], 2, 512)
    cpb2_w, _ = init_linear(ks[5], 512, num_heads)           # bias=False
    # Precompute relative-position bias (cpb MLP + gather + sigmoid) at init.
    N = window_size[0] * window_size[1]
    table = jnp.maximum(make_rel_coords_table(window_size) @ cpb1_w + cpb1_b, 0.0)
    table = table @ cpb2_w                                   # (L, heads)
    bias = table[make_rel_pos_index(window_size)].reshape(N, N, num_heads)
    bias = 16.0 * jax.nn.sigmoid(bias.transpose(2, 0, 1))    # (heads, N, N)
    return {
        "qkv_w": jnp.concatenate([qw, kw, vw], axis=1),      # (C, 3C) fused QKV
        "qkv_b": jnp.concatenate([qb, kb, vb], axis=1),      # (1, 3C)
        "proj_w": pw, "proj_b": pb,
        "logit_scale": jnp.full((num_heads, 1), math.log(10.0), jnp.float32),
        "rel_bias": bias,
    }


def init_block_params(key, dim, num_heads, window_size, mlp_ratio=4.0):
    k1, k2, k3 = jax.random.split(key, 3)
    hidden = int(dim * mlp_ratio)
    fc1_w, fc1_b = init_linear(k2, dim, hidden)
    fc2_w, fc2_b = init_linear(k3, hidden, dim)
    return {
        "attn": init_attention_params(k1, dim, num_heads, window_size),
        "norm1_g": jnp.ones((1, dim), jnp.float32),
        "norm1_b": jnp.zeros((1, dim), jnp.float32),
        "norm2_g": jnp.ones((1, dim), jnp.float32),
        "norm2_b": jnp.zeros((1, dim), jnp.float32),
        "fc1_w": fc1_w, "fc1_b": fc1_b,
        "fc2_w": fc2_w, "fc2_b": fc2_b,
    }


def init_swin_params(key, config, in_channels=3):
    patch_size = config["patch_size"]
    embed_dim = config["embed_dim"]
    depths = config["depths"]
    num_heads = config["num_heads"]
    window_size = config["window_size"]
    keys = iter(jax.random.split(key, 64))

    params = {}
    pw, pb = init_linear(next(keys), in_channels * patch_size[0] * patch_size[1], embed_dim)
    params["patch_embed"] = {
        "proj_w": pw, "proj_b": pb,
        "norm_g": jnp.ones((1, embed_dim), jnp.float32),
        "norm_b": jnp.zeros((1, embed_dim), jnp.float32),
    }
    stages, merges = [], []
    for i_stage in range(len(depths)):
        dim = embed_dim * (2 ** i_stage)
        blocks = [init_block_params(next(keys), dim, num_heads[i_stage], window_size)
                  for _ in range(depths[i_stage])]
        stages.append(blocks)
        if i_stage < len(depths) - 1:
            mw, _ = init_linear(next(keys), dim * 4, dim * 2)   # Conv2d 2x2/2, bias=False
            merges.append({
                "red_w": mw,
                "red_b": jnp.zeros((1, 2 * dim), jnp.float32),
                "norm_g": jnp.ones((1, 2 * dim), jnp.float32),
                "norm_b": jnp.zeros((1, 2 * dim), jnp.float32),
            })
    params["stages"] = stages
    params["merges"] = merges
    return params


# ------------------------------- forward pass -------------------------------

def swin_attention_forward(p, x, window_size, shift_size, num_heads, norm_g, norm_b):
    B, H, W, C = x.shape
    ws0, ws1 = window_size
    pad_b = (ws0 - H % ws0) % ws0
    pad_r = (ws1 - W % ws1) % ws1
    if pad_b or pad_r:
        x = jnp.pad(x, ((0, 0), (0, pad_b), (0, pad_r), (0, 0)))
    _, pad_H, pad_W, _ = x.shape

    sh = list(shift_size)
    if ws0 >= pad_H:
        sh[0] = 0
    if ws1 >= pad_W:
        sh[1] = 0
    shifted = sum(sh) > 0
    if shifted:
        x = jnp.roll(x, shift=(-sh[0], -sh[1]), axis=(1, 2))

    nHw, nWw = pad_H // ws0, pad_W // ws1
    num_windows = nHw * nWw
    N = ws0 * ws1
    BW = B * num_windows
    xw = x.reshape(B, nHw, ws0, nWw, ws1, C).transpose(0, 1, 3, 2, 4, 5)
    x2 = xw.reshape(BW * N, C)

    hd = C // num_heads
    # fused Q/K/V projection: one (C, 3C) matmul
    qkv = pallas_linear(x2, p["qkv_w"], p["qkv_b"])                      # (BW*N, 3C)
    qkv = qkv.reshape(BW, N, 3, num_heads, hd).transpose(2, 0, 3, 1, 4)
    qkv = qkv.astype(jnp.bfloat16)
    q, k, v = qkv[0], qkv[1], qkv[2]                                     # (BW, H, N, hd)

    scale = jnp.exp(jnp.minimum(p["logit_scale"], math.log(100.0)))      # (heads, 1)
    mask = make_attn_mask(pad_H, pad_W, window_size, sh) if shifted else None

    out = window_attention(q, k, v, p["rel_bias"], scale, mask, num_windows)
    out = out.transpose(0, 2, 1, 3).reshape(BW * N, C)

    # fused output projection + norm1 (LayerNorm is per-token, so it commutes
    # with the window-reverse / roll / crop below)
    out = pallas_linear_ln(out, p["proj_w"], p["proj_b"], norm_g, norm_b, eps=1e-5)

    y = out.reshape(B, nHw, nWw, ws0, ws1, C).transpose(0, 1, 3, 2, 4, 5)
    y = y.reshape(B, pad_H, pad_W, C)
    if shifted:
        y = jnp.roll(y, shift=(sh[0], sh[1]), axis=(1, 2))
    return y[:, :H, :W, :]


def swin_block_forward(p, x, num_heads, window_size, shift_size):
    B, H, W, C = x.shape
    # x + norm1(attn(x)), norm1 fused into the proj kernel
    a = swin_attention_forward(p["attn"], x, window_size, shift_size, num_heads,
                               p["norm1_g"], p["norm1_b"])
    x = x + a
    # x + norm2(mlp(x)), fully fused (fc1 -> GELU -> fc2 -> LN -> +residual)
    m = pallas_mlp_block(x.reshape(-1, C), p["fc1_w"], p["fc1_b"],
                         p["fc2_w"], p["fc2_b"], p["norm2_g"], p["norm2_b"], eps=1e-5)
    return m.reshape(B, H, W, C)


def patch_merging_forward(p, x):
    B, H, W, C = x.shape
    x = jnp.pad(x, ((0, 0), (0, H % 2), (0, W % 2), (0, 0)))
    _, Hp, Wp, _ = x.shape
    Ho, Wo = Hp // 2, Wp // 2
    # Conv2d(C, 2C, 2, 2, bias=False) == space-to-depth (c, di, dj order) + matmul
    # TODO(synk): porting trained torchvision weights needs a red_w permutation.
    xp = x.reshape(B, Ho, 2, Wo, 2, C).transpose(0, 1, 3, 5, 2, 4).reshape(B * Ho * Wo, C * 4)
    y = pallas_linear_ln(xp, p["red_w"], p["red_b"], p["norm_g"], p["norm_b"], eps=1e-5)
    return y.reshape(B, Ho, Wo, 2 * C)


def patch_embed_forward(p, x_nchw, patch_size, embed_dim):
    B, Cin, H, W = x_nchw.shape
    ph, pw = patch_size
    Hp, Wp = H // ph, W // pw
    patches = x_nchw.reshape(B, Cin, Hp, ph, Wp, pw).transpose(0, 2, 4, 1, 3, 5)
    patches = patches.reshape(B * Hp * Wp, Cin * ph * pw)
    y = pallas_linear_ln(patches, p["proj_w"], p["proj_b"], p["norm_g"], p["norm_b"], eps=1e-5)
    return y.reshape(B, Hp, Wp, embed_dim)


def swin_forward(params, x_nchw, config):
    x = patch_embed_forward(params["patch_embed"], x_nchw,
                            config["patch_size"], config["embed_dim"])
    window_size = list(config["window_size"])
    for i_stage, depth in enumerate(config["depths"]):
        for i_layer in range(depth):
            shift = [0 if i_layer % 2 == 0 else w // 2 for w in window_size]
            x = swin_block_forward(params["stages"][i_stage][i_layer], x,
                                   config["num_heads"][i_stage], window_size, shift)
        if i_stage < len(config["depths"]) - 1:
            x = patch_merging_forward(params["merges"][i_stage], x)
    return x


# ----------------------------------- main -----------------------------------

if __name__ == "__main__":
    config = dict(
        patch_size=(4, 4),
        window_size=(2, 2),
        embed_dim=8,
        depths=[2, 2],
        num_heads=[2, 4],
        attention_dropout=0.0,
        dropout=0.0,
        stochastic_depth_prob=0.0,
    )
    key = jax.random.PRNGKey(0)
    kp, kx = jax.random.split(key)
    params = init_swin_params(kp, config, in_channels=3)
    x = jax.random.normal(kx, (2, 3, 16, 16), jnp.float32)  # NCHW, like PyTorch

    fwd = jax.jit(lambda p, xx: swin_forward(p, xx, config))
    out = jax.block_until_ready(fwd(params, x))

    assert out.shape == (2, 2, 2, 16), out.shape
    assert bool(jnp.all(jnp.isfinite(out)))
    print("KERNEL_OK")
</pallas_src>

<mosaic_0001>
module attributes {stable_mosaic.version = 11 : i64} {
  func.func @kern(%arg0: i32, %arg1: memref<32x48xbf16, #tpu.memory_space<vmem>>, %arg2: memref<48x8xbf16, #tpu.memory_space<vmem>>, %arg3: memref<1x8xf32, #tpu.memory_space<vmem>>, %arg4: memref<1x8xf32, #tpu.memory_space<vmem>>, %arg5: memref<1x8xf32, #tpu.memory_space<vmem>>, %arg6: memref<32x8xf32, #tpu.memory_space<vmem>>) attributes {dimension_semantics = [#tpu.dimension_semantics<parallel>], iteration_bounds = array<i64: 1>, scalar_prefetch = 0 : i64, scratch_operands = 0 : i64, tpu.core_type = #tpu.core_type<tc>, window_params = [{transform_indices = @transform_0, window_bounds = array<i64: 32, 48>}, {pipeline_mode = #tpu.pipeline_mode<synchronous>, transform_indices = @transform_1, window_bounds = array<i64: 48, 8>}, {pipeline_mode = #tpu.pipeline_mode<synchronous>, transform_indices = @transform_2, window_bounds = array<i64: 1, 8>}, {pipeline_mode = #tpu.pipeline_mode<synchronous>, transform_indices = @transform_3, window_bounds = array<i64: 1, 8>}, {pipeline_mode = #tpu.pipeline_mode<synchronous>, transform_indices = @transform_4, window_bounds = array<i64: 1, 8>}, {transform_indices = @transform_5, window_bounds = array<i64: 32, 8>}]} {
    %c0 = arith.constant 0 : index
    %c0_0 = arith.constant 0 : index
    %0 = vector.load %arg1[%c0, %c0_0] : memref<32x48xbf16, #tpu.memory_space<vmem>>, vector<32x48xbf16>
    %c0_1 = arith.constant 0 : index
    %c0_2 = arith.constant 0 : index
    %1 = vector.load %arg2[%c0_1, %c0_2] : memref<48x8xbf16, #tpu.memory_space<vmem>>, vector<48x8xbf16>
    %cst = arith.constant dense<0.000000e+00> : vector<32x8xf32>
    %2 = tpu.matmul %0, %1, %cst {dimension_numbers = #tpu.dot_dimension_numbers<[1], [0], [0], [1], [0, 0, 1, 1], [], []>} : vector<32x48xbf16>, vector<48x8xbf16>, vector<32x8xf32> -> vector<32x8xf32>
    %c0_3 = arith.constant 0 : index
    %c0_4 = arith.constant 0 : index
    %3 = vector.load %arg3[%c0_3, %c0_4] : memref<1x8xf32, #tpu.memory_space<vmem>>, vector<1x8xf32>
    %4 = vector.broadcast %3 : vector<1x8xf32> to vector<32x8xf32>
    %5 = arith.addf %2, %4 : vector<32x8xf32>
    %cst_5 = arith.constant dense<0.000000e+00> : vector<32xf32>
    %6 = vector.multi_reduction <add>, %5, %cst_5 [1] : vector<32x8xf32> to vector<32xf32>
    %7 = vector.shape_cast %6 : vector<32xf32> to vector<32x1xf32>
    %cst_6 = arith.constant 8.000000e+00 : f32
    %8 = vector.broadcast %cst_6 : f32 to vector<32x1xf32>
    %9 = arith.divf %7, %8 : vector<32x1xf32>
    %10 = vector.broadcast %9 : vector<32x1xf32> to vector<32x8xf32>
    %11 = arith.subf %5, %10 : vector<32x8xf32>
    %12 = arith.mulf %11, %11 : vector<32x8xf32>
    %cst_7 = arith.constant dense<0.000000e+00> : vector<32xf32>
    %13 = vector.multi_reduction <add>, %12, %cst_7 [1] : vector<32x8xf32> to vector<32xf32>
    %14 = vector.shape_cast %13 : vector<32xf32> to vector<32x1xf32>
    %cst_8 = arith.constant 8.000000e+00 : f32
    %15 = vector.broadcast %cst_8 : f32 to vector<32x1xf32>
    %16 = arith.divf %14, %15 : vector<32x1xf32>
    %17 = vector.broadcast %9 : vector<32x1xf32> to vector<32x8xf32>
    %18 = arith.subf %5, %17 : vector<32x8xf32>
    %cst_9 = arith.constant 9.99999974E-6 : f32
    %19 = vector.broadcast %cst_9 : f32 to vector<32x1xf32>
    %20 = arith.addf %16, %19 : vector<32x1xf32>
    %21 = math.rsqrt %20 : vector<32x1xf32>
    %22 = vector.broadcast %21 : vector<32x1xf32> to vector<32x8xf32>
    %23 = arith.mulf %18, %22 : vector<32x8xf32>
    %c0_10 = arith.constant 0 : index
    %c0_11 = arith.constant 0 : index
    %24 = vector.load %arg4[%c0_10, %c0_11] : memref<1x8xf32, #tpu.memory_space<vmem>>, vector<1x8xf32>
    %25 = vector.broadcast %24 : vector<1x8xf32> to vector<32x8xf32>
    %26 = arith.mulf %23, %25 : vector<32x8xf32>
    %c0_12 = arith.constant 0 : index
    %c0_13 = arith.constant 0 : index
    %27 = vector.load %arg5[%c0_12, %c0_13] : memref<1x8xf32, #tpu.memory_space<vmem>>, vector<1x8xf32>
    %28 = vector.broadcast %27 : vector<1x8xf32> to vector<32x8xf32>
    %29 = arith.addf %26, %28 : vector<32x8xf32>
    %c0_14 = arith.constant 0 : index
    %c0_15 = arith.constant 0 : index
    %30 = vector.load %arg6[%c0_14, %c0_15] : memref<32x8xf32, #tpu.memory_space<vmem>>, vector<32x8xf32>
    tpu.vector_store %arg6[%c0_14, %c0_15], %29 {strides = array<i32>} : memref<32x8xf32, #tpu.memory_space<vmem>>, vector<32x8xf32>,
    return
  }
  func.func @transform_0(%arg0: i32) -> (i32, i32) {
    %c0_i32 = arith.constant 0 : i32
    %c0_i32_0 = arith.constant 0 : i32
    return %arg0, %c0_i32 : i32, i32
  }
  func.func @transform_1(%arg0: i32) -> (i32, i32) {
    %c0_i32 = arith.constant 0 : i32
    %c0_i32_0 = arith.constant 0 : i32
    %c0_i32_1 = arith.constant 0 : i32
    return %c0_i32, %c0_i32_0 : i32, i32
  }
  func.func @transform_2(%arg0: i32) -> (i32, i32) {
    %c0_i32 = arith.constant 0 : i32
    %c0_i32_0 = arith.constant 0 : i32
    %c0_i32_1 = arith.constant 0 : i32
    return %c0_i32, %c0_i32_0 : i32, i32
  }
  func.func @transform_3(%arg0: i32) -> (i32, i32) {
    %c0_i32 = arith.constant 0 : i32
    %c0_i32_0 = arith.constant 0 : i32
    %c0_i32_1 = arith.constant 0 : i32
    return %c0_i32, %c0_i32_0 : i32, i32
  }
  func.func @transform_4(%arg0: i32) -> (i32, i32) {
    %c0_i32 = arith.constant 0 : i32
    %c0_i32_0 = arith.constant 0 : i32
    %c0_i32_1 = arith.constant 0 : i32
    return %c0_i32, %c0_i32_0 : i32, i32
  }
  func.func @transform_5(%arg0: i32) -> (i32, i32) {
    %c0_i32 = arith.constant 0 : i32
    %c0_i32_0 = arith.constant 0 : i32
    return %arg0, %c0_i32 : i32, i32
  }
}

module attributes {stable_mosaic.version = 11 : i64} {
  func.func @_linear_kernel(%arg0: i32, %arg1: memref<32x8xbf16, #tpu.memory_space<vmem>>, %arg2: memref<8x24xbf16, #tpu.memory_space<vmem>>, %arg3: memref<1x24xf32, #tpu.memory_space<vmem>>, %arg4: memref<32x24xf32, #tpu.memory_space<vmem>>) attributes {dimension_semantics = [#tpu.dimension_semantics<parallel>], iteration_bounds = array<i64: 1>, scalar_prefetch = 0 : i64, scratch_operands = 0 : i64, tpu.core_type = #tpu.core_type<tc>, window_params = [{transform_indices = @transform_0, window_bounds = array<i64: 32, 8>}, {pipeline_mode = #tpu.pipeline_mode<synchronous>, transform_indices = @transform_1, window_bounds = array<i64: 8, 24>}, {pipeline_mode = #tpu.pipeline_mode<synchronous>, transform_indices = @transform_2, window_bounds = array<i64: 1, 24>}, {transform_indices = @transform_3, window_bounds = array<i64: 32, 24>}]} {
    %c0 = arith.constant 0 : index
    %c0_0 = arith.constant 0 : index
    %0 = vector.load %arg1[%c0, %c0_0] : memref<32x8xbf16, #tpu.memory_space<vmem>>, vector<32x8xbf16>
    %c0_1 = arith.constant 0 : index
    %c0_2 = arith.constant 0 : index
    %1 = vector.load %arg2[%c0_1, %c0_2] : memref<8x24xbf16, #tpu.memory_space<vmem>>, vector<8x24xbf16>
    %cst = arith.constant dense<0.000000e+00> : vector<32x24xf32>
    %2 = tpu.matmul %0, %1, %cst {dimension_numbers = #tpu.dot_dimension_numbers<[1], [0], [0], [1], [0, 0, 1, 1], [], []>} : vector<32x8xbf16>, vector<8x24xbf16>, vector<32x24xf32> -> vector<32x24xf32>
    %c0_3 = arith.constant 0 : index
    %c0_4 = arith.constant 0 : index
    %3 = vector.load %arg3[%c0_3, %c0_4] : memref<1x24xf32, #tpu.memory_space<vmem>>, vector<1x24xf32>
    %4 = vector.broadcast %3 : vector<1x24xf32> to vector<32x24xf32>
    %5 = arith.addf %2, %4 : vector<32x24xf32>
    %c0_5 = arith.constant 0 : index
    %c0_6 = arith.constant 0 : index
    %6 = vector.load %arg4[%c0_5, %c0_6] : memref<32x24xf32, #tpu.memory_space<vmem>>, vector<32x24xf32>
    tpu.vector_store %arg4[%c0_5, %c0_6], %5 {strides = array<i32>} : memref<32x24xf32, #tpu.memory_space<vmem>>, vector<32x24xf32>,
    return
  }
  func.func @transform_0(%arg0: i32) -> (i32, i32) {
    %c0_i32 = arith.constant 0 : i32
    %c0_i32_0 = arith.constant 0 : i32
    return %arg0, %c0_i32 : i32, i32
  }
  func.func @transform_1(%arg0: i32) -> (i32, i32) {
    %c0_i32 = arith.constant 0 : i32
    %c0_i32_0 = arith.constant 0 : i32
    %c0_i32_1 = arith.constant 0 : i32
    return %c0_i32, %c0_i32_0 : i32, i32
  }
  func.func @transform_2(%arg0: i32) -> (i32, i32) {
    %c0_i32 = arith.constant 0 : i32
    %c0_i32_0 = arith.constant 0 : i32
    %c0_i32_1 = arith.constant 0 : i32
    return %c0_i32, %c0_i32_0 : i32, i32
  }
  func.func @transform_3(%arg0: i32) -> (i32, i32) {
    %c0_i32 = arith.constant 0 : i32
    %c0_i32_0 = arith.constant 0 : i32
    return %arg0, %c0_i32 : i32, i32
  }
}

module attributes {stable_mosaic.version = 11 : i64} {
  func.func @kern(%arg0: i32, %arg1: memref<32x8xbf16, #tpu.memory_space<vmem>>, %arg2: memref<8x8xbf16, #tpu.memory_space<vmem>>, %arg3: memref<1x8xf32, #tpu.memory_space<vmem>>, %arg4: memref<1x8xf32, #tpu.memory_space<vmem>>, %arg5: memref<1x8xf32, #tpu.memory_space<vmem>>, %arg6: memref<32x8xf32, #tpu.memory_space<vmem>>) attributes {dimension_semantics = [#tpu.dimension_semantics<parallel>], iteration_bounds = array<i64: 1>, scalar_prefetch = 0 : i64, scratch_operands = 0 : i64, tpu.core_type = #tpu.core_type<tc>, window_params = [{transform_indices = @transform_0, window_bounds = array<i64: 32, 8>}, {pipeline_mode = #tpu.pipeline_mode<synchronous>, transform_indices = @transform_1, window_bounds = array<i64: 8, 8>}, {pipeline_mode = #tpu.pipeline_mode<synchronous>, transform_indices = @transform_2, window_bounds = array<i64: 1, 8>}, {pipeline_mode = #tpu.pipeline_mode<synchronous>, transform_indices = @transform_3, window_bounds = array<i64: 1, 8>}, {pipeline_mode = #tpu.pipeline_mode<synchronous>, transform_indices = @transform_4, window_bounds = array<i64: 1, 8>}, {transform_indices = @transform_5, window_bounds = array<i64: 32, 8>}]} {
    %c0 = arith.constant 0 : index
    %c0_0 = arith.constant 0 : index
    %0 = vector.load %arg1[%c0, %c0_0] : memref<32x8xbf16, #tpu.memory_space<vmem>>, vector<32x8xbf16>
    %c0_1 = arith.constant 0 : index
    %c0_2 = arith.constant 0 : index
    %1 = vector.load %arg2[%c0_1, %c0_2] : memref<8x8xbf16, #tpu.memory_space<vmem>>, vector<8x8xbf16>
    %cst = arith.constant dense<0.000000e+00> : vector<32x8xf32>
    %2 = tpu.matmul %0, %1, %cst {dimension_numbers = #tpu.dot_dimension_numbers<[1], [0], [0], [1], [0, 0, 1, 1], [], []>} : vector<32x8xbf16>, vector<8x8xbf16>, vector<32x8xf32> -> vector<32x8xf32>
    %c0_3 = arith.constant 0 : index
    %c0_4 = arith.constant 0 : index
    %3 = vector.load %arg3[%c0_3, %c0_4] : memref<1x8xf32, #tpu.memory_space<vmem>>, vector<1x8xf32>
    %4 = vector.broadcast %3 : vector<1x8xf32> to vector<32x8xf32>
    %5 = arith.addf %2, %4 : vector<32x8xf32>
    %cst_5 = arith.constant dense<0.000000e+00> : vector<32xf32>
    %6 = vector.multi_reduction <add>, %5, %cst_5 [1] : vector<32x8xf32> to vector<32xf32>
    %7 = vector.shape_cast %6 : vector<32xf32> to vector<32x1xf32>
    %cst_6 = arith.constant 8.000000e+00 : f32
    %8 = vector.broadcast %cst_6 : f32 to vector<32x1xf32>
    %9 = arith.divf %7, %8 : vector<32x1xf32>
    %10 = vector.broadcast %9 : vector<32x1xf32> to vector<32x8xf32>
    %11 = arith.subf %5, %10 : vector<32x8xf32>
    %12 = arith.mulf %11, %11 : vector<32x8xf32>
    %cst_7 = arith.constant dense<0.000000e+00> : vector<32xf32>
    %13 = vector.multi_reduction <add>, %12, %cst_7 [1] : vector<32x8xf32> to vector<32xf32>
    %14 = vector.shape_cast %13 : vector<32xf32> to vector<32x1xf32>
    %cst_8 = arith.constant 8.000000e+00 : f32
    %15 = vector.broadcast %cst_8 : f32 to vector<32x1xf32>
    %16 = arith.divf %14, %15 : vector<32x1xf32>
    %17 = vector.broadcast %9 : vector<32x1xf32> to vector<32x8xf32>
    %18 = arith.subf %5, %17 : vector<32x8xf32>
    %cst_9 = arith.constant 9.99999974E-6 : f32
    %19 = vector.broadcast %cst_9 : f32 to vector<32x1xf32>
    %20 = arith.addf %16, %19 : vector<32x1xf32>
    %21 = math.rsqrt %20 : vector<32x1xf32>
    %22 = vector.broadcast %21 : vector<32x1xf32> to vector<32x8xf32>
    %23 = arith.mulf %18, %22 : vector<32x8xf32>
    %c0_10 = arith.constant 0 : index
    %c0_11 = arith.constant 0 : index
    %24 = vector.load %arg4[%c0_10, %c0_11] : memref<1x8xf32, #tpu.memory_space<vmem>>, vector<1x8xf32>
    %25 = vector.broadcast %24 : vector<1x8xf32> to vector<32x8xf32>
    %26 = arith.mulf %23, %25 : vector<32x8xf32>
    %c0_12 = arith.constant 0 : index
    %c0_13 = arith.constant 0 : index
    %27 = vector.load %arg5[%c0_12, %c0_13] : memref<1x8xf32, #tpu.memory_space<vmem>>, vector<1x8xf32>
    %28 = vector.broadcast %27 : vector<1x8xf32> to vector<32x8xf32>
    %29 = arith.addf %26, %28 : vector<32x8xf32>
    %c0_14 = arith.constant 0 : index
    %c0_15 = arith.constant 0 : index
    %30 = vector.load %arg6[%c0_14, %c0_15] : memref<32x8xf32, #tpu.memory_space<vmem>>, vector<32x8xf32>
    tpu.vector_store %arg6[%c0_14, %c0_15], %29 {strides = array<i32>} : memref<32x8xf32, #tpu.memory_space<vmem>>, vector<32x8xf32>,
    return
  }
  func.func @transform_0(%arg0: i32) -> (i32, i32) {
    %c0_i32 = arith.constant 0 : i32
    %c0_i32_0 = arith.constant 0 : i32
    return %arg0, %c0_i32 : i32, i32
  }
  func.func @transform_1(%arg0: i32) -> (i32, i32) {
    %c0_i32 = arith.constant 0 : i32
    %c0_i32_0 = arith.constant 0 : i32
    %c0_i32_1 = arith.constant 0 : i32
    return %c0_i32, %c0_i32_0 : i32, i32
  }
  func.func @transform_2(%arg0: i32) -> (i32, i32) {
    %c0_i32 = arith.constant 0 : i32
    %c0_i32_0 = arith.constant 0 : i32
    %c0_i32_1 = arith.constant 0 : i32
    return %c0_i32, %c0_i32_0 : i32, i32
  }
  func.func @transform_3(%arg0: i32) -> (i32, i32) {
    %c0_i32 = arith.constant 0 : i32
    %c0_i32_0 = arith.constant 0 : i32
    %c0_i32_1 = arith.constant 0 : i32
    return %c0_i32, %c0_i32_0 : i32, i32
  }
  func.func @transform_4(%arg0: i32) -> (i32, i32) {
    %c0_i32 = arith.constant 0 : i32
    %c0_i32_0 = arith.constant 0 : i32
    %c0_i32_1 = arith.constant 0 : i32
    return %c0_i32, %c0_i32_0 : i32, i32
  }
  func.func @transform_5(%arg0: i32) -> (i32, i32) {
    %c0_i32 = arith.constant 0 : i32
    %c0_i32_0 = arith.constant 0 : i32
    return %arg0, %c0_i32 : i32, i32
  }
}

module attributes {stable_mosaic.version = 11 : i64} {
  func.func @kern(%arg0: i32, %arg1: memref<4x2x4x4xbf16, #tpu.memory_space<vmem>>, %arg2: memref<4x2x4x4xbf16, #tpu.memory_space<vmem>>, %arg3: memref<4x2x4x4xbf16, #tpu.memory_space<vmem>>, %arg4: memref<2x4x4xf32, #tpu.memory_space<vmem>>, %arg5: memref<2x1xf32, #tpu.memory_space<vmem>>, %arg6: memref<4x2x4x4xf32, #tpu.memory_space<vmem>>) attributes {dimension_semantics = [#tpu.dimension_semantics<parallel>], iteration_bounds = array<i64: 2>, scalar_prefetch = 0 : i64, scratch_operands = 0 : i64, tpu.core_type = #tpu.core_type<tc>, window_params = [{transform_indices = @transform_0, window_bounds = array<i64: 4, 2, 4, 4>}, {transform_indices = @transform_1, window_bounds = array<i64: 4, 2, 4, 4>}, {transform_indices = @transform_2, window_bounds = array<i64: 4, 2, 4, 4>}, {pipeline_mode = #tpu.pipeline_mode<synchronous>, transform_indices = @transform_3, window_bounds = array<i64: 2, 4, 4>}, {pipeline_mode = #tpu.pipeline_mode<synchronous>, transform_indices = @transform_4, window_bounds = array<i64: 2, 1>}, {transform_indices = @transform_5, window_bounds = array<i64: 4, 2, 4, 4>}]} {
    %c0 = arith.constant 0 : index
    %c0_0 = arith.constant 0 : index
    %c0_1 = arith.constant 0 : index
    %c0_2 = arith.constant 0 : index
    %0 = vector.load %arg1[%c0, %c0_0, %c0_1, %c0_2] : memref<4x2x4x4xbf16, #tpu.memory_space<vmem>>, vector<4x2x4x4xbf16>
    %c0_3 = arith.constant 0 : index
    %c0_4 = arith.constant 0 : index
    %c0_5 = arith.constant 0 : index
    %c0_6 = arith.constant 0 : index
    %1 = vector.load %arg2[%c0_3, %c0_4, %c0_5, %c0_6] : memref<4x2x4x4xbf16, #tpu.memory_space<vmem>>, vector<4x2x4x4xbf16>
    %c0_7 = arith.constant 0 : index
    %c0_8 = arith.constant 0 : index
    %c0_9 = arith.constant 0 : index
    %c0_10 = arith.constant 0 : index
    %2 = vector.load %arg3[%c0_7, %c0_8, %c0_9, %c0_10] : memref<4x2x4x4xbf16, #tpu.memory_space<vmem>>, vector<4x2x4x4xbf16>
    %c0_11 = arith.constant 0 : index
    %c0_12 = arith.constant 0 : index
    %c0_13 = arith.constant 0 : index
    %3 = vector.load %arg4[%c0_11, %c0_12, %c0_13] : memref<2x4x4xf32, #tpu.memory_space<vmem>>, vector<2x4x4xf32>
    %c0_14 = arith.constant 0 : index
    %c0_15 = arith.constant 0 : index
    %4 = vector.load %arg5[%c0_14, %c0_15] : memref<2x1xf32, #tpu.memory_space<vmem>>, vector<2x1xf32>
    %5 = vector.extract_strided_slice %0 {offsets = [0, 0, 0, 0], sizes = [4, 1, 4, 4], strides = [1, 1, 1, 1]} : vector<4x2x4x4xbf16> to vector<4x1x4x4xbf16>
    %6 = vector.shape_cast %5 : vector<4x1x4x4xbf16> to vector<4x4x4xbf16>
    %7 = arith.extf %6 : vector<4x4x4xbf16> to vector<4x4x4xf32>
    %8 = vector.extract_strided_slice %1 {offsets = [0, 0, 0, 0], sizes = [4, 1, 4, 4], strides = [1, 1, 1, 1]} : vector<4x2x4x4xbf16> to vector<4x1x4x4xbf16>
    %9 = vector.shape_cast %8 : vector<4x1x4x4xbf16> to vector<4x4x4xbf16>
    %10 = arith.extf %9 : vector<4x4x4xbf16> to vector<4x4x4xf32>
    %11 = arith.mulf %7, %7 : vector<4x4x4xf32>
    %cst = arith.constant dense<0.000000e+00> : vector<4x4xf32>
    %12 = vector.multi_reduction <add>, %11, %cst [2] : vector<4x4x4xf32> to vector<4x4xf32>
    %13 = vector.shape_cast %12 : vector<4x4xf32> to vector<4x4x1xf32>
    %cst_16 = arith.constant 1.000000e-24 : f32
    %14 = vector.broadcast %cst_16 : f32 to vector<4x4x1xf32>
    %15 = arith.maximumf %13, %14 : vector<4x4x1xf32>
    %16 = math.rsqrt %15 : vector<4x4x1xf32>
    %17 = vector.broadcast %16 : vector<4x4x1xf32> to vector<4x4x4xf32>
    %18 = arith.mulf %7, %17 : vector<4x4x4xf32>
    %19 = arith.mulf %10, %10 : vector<4x4x4xf32>
    %cst_17 = arith.constant dense<0.000000e+00> : vector<4x4xf32>
    %20 = vector.multi_reduction <add>, %19, %cst_17 [2] : vector<4x4x4xf32> to vector<4x4xf32>
    %21 = vector.shape_cast %20 : vector<4x4xf32> to vector<4x4x1xf32>
    %cst_18 = arith.constant 1.000000e-24 : f32
    %22 = vector.broadcast %cst_18 : f32 to vector<4x4x1xf32>
    %23 = arith.maximumf %21, %22 : vector<4x4x1xf32>
    %24 = math.rsqrt %23 : vector<4x4x1xf32>
    %25 = vector.broadcast %24 : vector<4x4x1xf32> to vector<4x4x4xf32>
    %26 = arith.mulf %10, %25 : vector<4x4x4xf32>
    %27 = vector.extract_strided_slice %4 {offsets = [0, 0], sizes = [1, 1], strides = [1, 1]} : vector<2x1xf32> to vector<1x1xf32>
    %28 = vector.shape_cast %27 : vector<1x1xf32> to vector<1x1x1xf32>
    %29 = vector.broadcast %28 : vector<1x1x1xf32> to vector<4x4x4xf32>
    %30 = arith.mulf %18, %29 : vector<4x4x4xf32>
    %31 = arith.truncf %30 : vector<4x4x4xf32> to vector<4x4x4xbf16>
    %32 = arith.truncf %26 : vector<4x4x4xf32> to vector<4x4x4xbf16>
    "tpu.trace_start"() <{level = 10 : i32, message = "wnd,wmd->wnm"}> : () -> ()
    %cst_19 = arith.constant dense<0.000000e+00> : vector<4x4x4xf32>
    %33 = tpu.matmul %31, %32, %cst_19 {dimension_numbers = #tpu.dot_dimension_numbers<[2], [2], [1], [1], [0, 0, 0, 1, 1, 1], [0], [0]>} : vector<4x4x4xbf16>, vector<4x4x4xbf16>, vector<4x4x4xf32> -> vector<4x4x4xf32>
    "tpu.trace_stop"() : () -> ()
    %34 = vector.extract_strided_slice %3 {offsets = [0, 0, 0], sizes = [1, 4, 4], strides = [1, 1, 1]} : vector<2x4x4xf32> to vector<1x4x4xf32>
    %35 = vector.shape_cast %34 : vector<1x4x4xf32> to vector<4x4xf32>
    %36 = vector.shape_cast %35 : vector<4x4xf32> to vector<1x4x4xf32>
    %37 = vector.broadcast %36 : vector<1x4x4xf32> to vector<4x4x4xf32>
    %38 = arith.addf %33, %37 : vector<4x4x4xf32>
    %cst_20 = arith.constant dense<0xFF800000> : vector<4x4xf32>
    %39 = vector.multi_reduction <maximumf>, %38, %cst_20 [2] : vector<4x4x4xf32> to vector<4x4xf32>
    %40 = vector.shape_cast %39 : vector<4x4xf32> to vector<4x4x1xf32>
    %41 = vector.broadcast %40 : vector<4x4x1xf32> to vector<4x4x4xf32>
    %42 = arith.subf %38, %41 : vector<4x4x4xf32>
    %43 = math.exp %42 : vector<4x4x4xf32>
    %cst_21 = arith.constant dense<0.000000e+00> : vector<4x4xf32>
    %44 = vector.multi_reduction <add>, %43, %cst_21 [2] : vector<4x4x4xf32> to vector<4x4xf32>
    %45 = vector.shape_cast %44 : vector<4x4xf32> to vector<4x4x1xf32>
    %46 = tpu.reciprocal %45 {approx = true} : vector<4x4x1xf32> -> vector<4x4x1xf32>
    %47 = vector.broadcast %46 : vector<4x4x1xf32> to vector<4x4x4xf32>
    %48 = arith.mulf %43, %47 : vector<4x4x4xf32>
    %49 = arith.truncf %48 : vector<4x4x4xf32> to vector<4x4x4xbf16>
    %50 = vector.extract_strided_slice %2 {offsets = [0, 0, 0, 0], sizes = [4, 1, 4, 4], strides = [1, 1, 1, 1]} : vector<4x2x4x4xbf16> to vector<4x1x4x4xbf16>
    %51 = vector.shape_cast %50 : vector<4x1x4x4xbf16> to vector<4x4x4xbf16>
    "tpu.trace_start"() <{level = 10 : i32, message = "wnm,wmd->wnd"}> : () -> ()
    %cst_22 = arith.constant dense<0.000000e+00> : vector<4x4x4xf32>
    %52 = tpu.matmul %49, %51, %cst_22 {dimension_numbers = #tpu.dot_dimension_numbers<[2], [1], [1], [2], [0, 0, 0, 1, 1, 2], [0], [0]>} : vector<4x4x4xbf16>, vector<4x4x4xbf16>, vector<4x4x4xf32> -> vector<4x4x4xf32>
    "tpu.trace_stop"() : () -> ()
    %c0_23 = arith.constant 0 : index
    %c0_24 = arith.constant 0 : index
    %c0_25 = arith.constant 0 : index
    %c0_26 = arith.constant 0 : index
    %53 = vector.load %arg6[%c0_23, %c0_24, %c0_25, %c0_26] : memref<4x2x4x4xf32, #tpu.memory_space<vmem>>, vector<4x1x4x4xf32>
    %54 = vector.shape_cast %53 : vector<4x1x4x4xf32> to vector<4x4x4xf32>
    %55 = vector.shape_cast %52 : vector<4x4x4xf32> to vector<4x1x4x4xf32>
    tpu.vector_store %arg6[%c0_23, %c0_24, %c0_25, %c0_26], %55 {strides = array<i32>} : memref<4x2x4x4xf32, #tpu.memory_space<vmem>>, vector<4x1x4x4xf32>,
    %56 = vector.extract_strided_slice %0 {offsets = [0, 1, 0, 0], sizes = [4, 1, 4, 4], strides = [1, 1, 1, 1]} : vector<4x2x4x4xbf16> to vector<4x1x4x4xbf16>
    %57 = vector.shape_cast %56 : vector<4x1x4x4xbf16> to vector<4x4x4xbf16>
    %58 = arith.extf %57 : vector<4x4x4xbf16> to vector<4x4x4xf32>
    %59 = vector.extract_strided_slice %1 {offsets = [0, 1, 0, 0], sizes = [4, 1, 4, 4], strides = [1, 1, 1, 1]} : vector<4x2x4x4xbf16> to vector<4x1x4x4xbf16>
    %60 = vector.shape_cast %59 : vector<4x1x4x4xbf16> to vector<4x4x4xbf16>
    %61 = arith.extf %60 : vector<4x4x4xbf16> to vector<4x4x4xf32>
    %62 = arith.mulf %58, %58 : vector<4x4x4xf32>
    %cst_27 = arith.constant dense<0.000000e+00> : vector<4x4xf32>
    %63 = vector.multi_reduction <add>, %62, %cst_27 [2] : vector<4x4x4xf32> to vector<4x4xf32>
    %64 = vector.shape_cast %63 : vector<4x4xf32> to vector<4x4x1xf32>
    %cst_28 = arith.constant 1.000000e-24 : f32
    %65 = vector.broadcast %cst_28 : f32 to vector<4x4x1xf32>
    %66 = arith.maximumf %64, %65 : vector<4x4x1xf32>
    %67 = math.rsqrt %66 : vector<4x4x1xf32>
    %68 = vector.broadcast %67 : vector<4x4x1xf32> to vector<4x4x4xf32>
    %69 = arith.mulf %58, %68 : vector<4x4x4xf32>
    %70 = arith.mulf %61, %61 : vector<4x4x4xf32>
    %cst_29 = arith.constant dense<0.000000e+00> : vector<4x4xf32>
    %71 = vector.multi_reduction <add>, %70, %cst_29 [2] : vector<4x4x4xf32> to vector<4x4xf32>
    %72 = vector.shape_cast %71 : vector<4x4xf32> to vector<4x4x1xf32>
    %cst_30 = arith.constant 1.000000e-24 : f32
    %73 = vector.broadcast %cst_30 : f32 to vector<4x4x1xf32>
    %74 = arith.maximumf %72, %73 : vector<4x4x1xf32>
    %75 = math.rsqrt %74 : vector<4x4x1xf32>
    %76 = vector.broadcast %75 : vector<4x4x1xf32> to vector<4x4x4xf32>
    %77 = arith.mulf %61, %76 : vector<4x4x4xf32>
    %78 = vector.extract_strided_slice %4 {offsets = [1, 0], sizes = [1, 1], strides = [1, 1]} : vector<2x1xf32> to vector<1x1xf32>
    %79 = vector.shape_cast %78 : vector<1x1xf32> to vector<1x1x1xf32>
    %80 = vector.broadcast %79 : vector<1x1x1xf32> to vector<4x4x4xf32>
    %81 = arith.mulf %69, %80 : vector<4x4x4xf32>
    %82 = arith.truncf %81 : vector<4x4x4xf32> to vector<4x4x4xbf16>
    %83 = arith.truncf %77 : vector<4x4x4xf32> to vector<4x4x4xbf16>
    "tpu.trace_start"() <{level = 10 : i32, message = "wnd,wmd->wnm"}> : () -> ()
    %cst_31 = arith.constant dense<0.000000e+00> : vector<4x4x4xf32>
    %84 = tpu.matmul %82, %83, %cst_31 {dimension_numbers = #tpu.dot_dimension_numbers<[2], [2], [1], [1], [0, 0, 0, 1, 1, 1], [0], [0]>} : vector<4x4x4xbf16>, vector<4x4x4xbf16>, vector<4x4x4xf32> -> vector<4x4x4xf32>
    "tpu.trace_stop"() : () -> ()
    %85 = vector.extract_strided_slice %3 {offsets = [1, 0, 0], sizes = [1, 4, 4], strides = [1, 1, 1]} : vector<2x4x4xf32> to vector<1x4x4xf32>
    %86 = vector.shape_cast %85 : vector<1x4x4xf32> to vector<4x4xf32>
    %87 = vector.shape_cast %86 : vector<4x4xf32> to vector<1x4x4xf32>
    %88 = vector.broadcast %87 : vector<1x4x4xf32> to vector<4x4x4xf32>
    %89 = arith.addf %84, %88 : vector<4x4x4xf32>
    %cst_32 = arith.constant dense<0xFF800000> : vector<4x4xf32>
    %90 = vector.multi_reduction <maximumf>, %89, %cst_32 [2] : vector<4x4x4xf32> to vector<4x4xf32>
    %91 = vector.shape_cast %90 : vector<4x4xf32> to vector<4x4x1xf32>
    %92 = vector.broadcast %91 : vector<4x4x1xf32> to vector<4x4x4xf32>
    %93 = arith.subf %89, %92 : vector<4x4x4xf32>
    %94 = math.exp %93 : vector<4x4x4xf32>
    %cst_33 = arith.constant dense<0.000000e+00> : vector<4x4xf32>
    %95 = vector.multi_reduction <add>, %94, %cst_33 [2] : vector<4x4x4xf32> to vector<4x4xf32>
    %96 = vector.shape_cast %95 : vector<4x4xf32> to vector<4x4x1xf32>
    %97 = tpu.reciprocal %96 {approx = true} : vector<4x4x1xf32> -> vector<4x4x1xf32>
    %98 = vector.broadcast %97 : vector<4x4x1xf32> to vector<4x4x4xf32>
    %99 = arith.mulf %94, %98 : vector<4x4x4xf32>
    %100 = arith.truncf %99 : vector<4x4x4xf32> to vector<4x4x4xbf16>
    %101 = vector.extract_strided_slice %2 {offsets = [0, 1, 0, 0], sizes = [4, 1, 4, 4], strides = [1, 1, 1, 1]} : vector<4x2x4x4xbf16> to vector<4x1x4x4xbf16>
    %102 = vector.shape_cast %101 : vector<4x1x4x4xbf16> to vector<4x4x4xbf16>
    "tpu.trace_start"() <{level = 10 : i32, message = "wnm,wmd->wnd"}> : () -> ()
    %cst_34 = arith.constant dense<0.000000e+00> : vector<4x4x4xf32>
    %103 = tpu.matmul %100, %102, %cst_34 {dimension_numbers = #tpu.dot_dimension_numbers<[2], [1], [1], [2], [0, 0, 0, 1, 1, 2], [0], [0]>} : vector<4x4x4xbf16>, vector<4x4x4xbf16>, vector<4x4x4xf32> -> vector<4x4x4xf32>
    "tpu.trace_stop"() : () -> ()
    %c0_35 = arith.constant 0 : index
    %c1 = arith.constant 1 : index
    %c0_36 = arith.constant 0 : index
    %c0_37 = arith.constant 0 : index
    %104 = vector.load %arg6[%c0_35, %c1, %c0_36, %c0_37] : memref<4x2x4x4xf32, #tpu.memory_space<vmem>>, vector<4x1x4x4xf32>
    %105 = vector.shape_cast %104 : vector<4x1x4x4xf32> to vector<4x4x4xf32>
    %106 = vector.shape_cast %103 : vector<4x4x4xf32> to vector<4x1x4x4xf32>
    tpu.vector_store %arg6[%c0_35, %c1, %c0_36, %c0_37], %106 {strides = array<i32>} : memref<4x2x4x4xf32, #tpu.memory_space<vmem>>, vector<4x1x4x4xf32>,
    return
  }
  func.func @transform_0(%arg0: i32) -> (i32, i32, i32, i32) {
    %c0_i32 = arith.constant 0 : i32
    %c0_i32_0 = arith.constant 0 : i32
    %c0_i32_1 = arith.constant 0 : i32
    %c0_i32_2 = arith.constant 0 : i32
    return %arg0, %c0_i32, %c0_i32_0, %c0_i32_1 : i32, i32, i32, i32
  }
  func.func @transform_1(%arg0: i32) -> (i32, i32, i32, i32) {
    %c0_i32 = arith.constant 0 : i32
    %c0_i32_0 = arith.constant 0 : i32
    %c0_i32_1 = arith.constant 0 : i32
    %c0_i32_2 = arith.constant 0 : i32
    return %arg0, %c0_i32, %c0_i32_0, %c0_i32_1 : i32, i32, i32, i32
  }
  func.func @transform_2(%arg0: i32) -> (i32, i32, i32, i32) {
    %c0_i32 = arith.constant 0 : i32
    %c0_i32_0 = arith.constant 0 : i32
    %c0_i32_1 = arith.constant 0 : i32
    %c0_i32_2 = arith.constant 0 : i32
    return %arg0, %c0_i32, %c0_i32_0, %c0_i32_1 : i32, i32, i32, i32
  }
  func.func @transform_3(%arg0: i32) -> (i32, i32, i32) {
    %c0_i32 = arith.constant 0 : i32
    %c0_i32_0 = arith.constant 0 : i32
    %c0_i32_1 = arith.constant 0 : i32
    %c0_i32_2 = arith.constant 0 : i32
    return %c0_i32, %c0_i32_0, %c0_i32_1 : i32, i32, i32
  }
  func.func @transform_4(%arg0: i32) -> (i32, i32) {
    %c0_i32 = arith.constant 0 : i32
    %c0_i32_0 = arith.constant 0 : i32
    %c0_i32_1 = arith.constant 0 : i32
    return %c0_i32, %c0_i32_0 : i32, i32
  }
  func.func @transform_5(%arg0: i32) -> (i32, i32, i32, i32) {
    %c0_i32 = arith.constant 0 : i32
    %c0_i32_0 = arith.constant 0 : i32
    %c0_i32_1 = arith.constant 0 : i32
    %c0_i32_2 = arith.constant 0 : i32
    return %arg0, %c0_i32, %c0_i32_0, %c0_i32_1 : i32, i32, i32, i32
  }
}

module attributes {stable_mosaic.version = 11 : i64} {
  func.func @kern(%arg0: i32, %arg1: memref<32x8xf32, #tpu.memory_space<vmem>>, %arg2: memref<8x32xbf16, #tpu.memory_space<vmem>>, %arg3: memref<1x32xf32, #tpu.memory_space<vmem>>, %arg4: memref<32x8xbf16, #tpu.memory_space<vmem>>, %arg5: memref<1x8xf32, #tpu.memory_space<vmem>>, %arg6: memref<1x8xf32, #tpu.memory_space<vmem>>, %arg7: memref<1x8xf32, #tpu.memory_space<vmem>>, %arg8: memref<32x8xf32, #tpu.memory_space<vmem>>) attributes {dimension_semantics = [#tpu.dimension_semantics<parallel>], iteration_bounds = array<i64: 1>, scalar_prefetch = 0 : i64, scratch_operands = 0 : i64, tpu.core_type = #tpu.core_type<tc>, window_params = [{transform_indices = @transform_0, window_bounds = array<i64: 32, 8>}, {pipeline_mode = #tpu.pipeline_mode<synchronous>, transform_indices = @transform_1, window_bounds = array<i64: 8, 32>}, {pipeline_mode = #tpu.pipeline_mode<synchronous>, transform_indices = @transform_2, window_bounds = array<i64: 1, 32>}, {pipeline_mode = #tpu.pipeline_mode<synchronous>, transform_indices = @transform_3, window_bounds = array<i64: 32, 8>}, {pipeline_mode = #tpu.pipeline_mode<synchronous>, transform_indices = @transform_4, window_bounds = array<i64: 1, 8>}, {pipeline_mode = #tpu.pipeline_mode<synchronous>, transform_indices = @transform_5, window_bounds = array<i64: 1, 8>}, {pipeline_mode = #tpu.pipeline_mode<synchronous>, transform_indices = @transform_6, window_bounds = array<i64: 1, 8>}, {transform_indices = @transform_7, window_bounds = array<i64: 32, 8>}]} {
    %c0 = arith.constant 0 : index
    %c0_0 = arith.constant 0 : index
    %0 = vector.load %arg1[%c0, %c0_0] : memref<32x8xf32, #tpu.memory_space<vmem>>, vector<32x8xf32>
    %1 = arith.truncf %0 : vector<32x8xf32> to vector<32x8xbf16>
    %c0_1 = arith.constant 0 : index
    %c0_2 = arith.constant 0 : index
    %2 = vector.load %arg2[%c0_1, %c0_2] : memref<8x32xbf16, #tpu.memory_space<vmem>>, vector<8x32xbf16>
    %cst = arith.constant dense<0.000000e+00> : vector<32x32xf32>
    %3 = tpu.matmul %1, %2, %cst {dimension_numbers = #tpu.dot_dimension_numbers<[1], [0], [0], [1], [0, 0, 1, 1], [], []>} : vector<32x8xbf16>, vector<8x32xbf16>, vector<32x32xf32> -> vector<32x32xf32>
    %c0_3 = arith.constant 0 : index
    %c0_4 = arith.constant 0 : index
    %4 = vector.load %arg3[%c0_3, %c0_4] : memref<1x32xf32, #tpu.memory_space<vmem>>, vector<1x32xf32>
    %5 = vector.broadcast %4 : vector<1x32xf32> to vector<32x32xf32>
    %6 = arith.addf %3, %5 : vector<32x32xf32>
    %cst_5 = arith.constant 5.000000e-01 : f32
    %7 = vector.broadcast %cst_5 : f32 to vector<32x32xf32>
    %8 = arith.mulf %7, %6 : vector<32x32xf32>
    %cst_6 = arith.constant 4.471500e-02 : f32
    %9 = vector.broadcast %cst_6 : f32 to vector<32x32xf32>
    %10 = arith.mulf %9, %6 : vector<32x32xf32>
    %11 = arith.mulf %10, %6 : vector<32x32xf32>
    %12 = arith.mulf %11, %6 : vector<32x32xf32>
    %13 = arith.addf %6, %12 : vector<32x32xf32>
    %cst_7 = arith.constant 0.797884583 : f32
    %14 = vector.broadcast %cst_7 : f32 to vector<32x32xf32>
    %15 = arith.mulf %14, %13 : vector<32x32xf32>
    %16 = math.tanh %15 : vector<32x32xf32>
    %cst_8 = arith.constant 1.000000e+00 : f32
    %17 = vector.broadcast %cst_8 : f32 to vector<32x32xf32>
    %18 = arith.addf %17, %16 : vector<32x32xf32>
    %19 = arith.mulf %8, %18 : vector<32x32xf32>
    %20 = arith.truncf %19 : vector<32x32xf32> to vector<32x32xbf16>
    %c0_9 = arith.constant 0 : index
    %c0_10 = arith.constant 0 : index
    %21 = vector.load %arg4[%c0_9, %c0_10] : memref<32x8xbf16, #tpu.memory_space<vmem>>, vector<32x8xbf16>
    %cst_11 = arith.constant dense<0.000000e+00> : vector<32x8xf32>
    %22 = tpu.matmul %20, %21, %cst_11 {dimension_numbers = #tpu.dot_dimension_numbers<[1], [0], [0], [1], [0, 0, 1, 1], [], []>} : vector<32x32xbf16>, vector<32x8xbf16>, vector<32x8xf32> -> vector<32x8xf32>
    %c0_12 = arith.constant 0 : index
    %c0_13 = arith.constant 0 : index
    %23 = vector.load %arg5[%c0_12, %c0_13] : memref<1x8xf32, #tpu.memory_space<vmem>>, vector<1x8xf32>
    %24 = vector.broadcast %23 : vector<1x8xf32> to vector<32x8xf32>
    %25 = arith.addf %22, %24 : vector<32x8xf32>
    %cst_14 = arith.constant dense<0.000000e+00> : vector<32xf32>
    %26 = vector.multi_reduction <add>, %25, %cst_14 [1] : vector<32x8xf32> to vector<32xf32>
    %27 = vector.shape_cast %26 : vector<32xf32> to vector<32x1xf32>
    %cst_15 = arith.constant 8.000000e+00 : f32
    %28 = vector.broadcast %cst_15 : f32 to vector<32x1xf32>
    %29 = arith.divf %27, %28 : vector<32x1xf32>
    %30 = vector.broadcast %29 : vector<32x1xf32> to vector<32x8xf32>
    %31 = arith.subf %25, %30 : vector<32x8xf32>
    %32 = arith.mulf %31, %31 : vector<32x8xf32>
    %cst_16 = arith.constant dense<0.000000e+00> : vector<32xf32>
    %33 = vector.multi_reduction <add>, %32, %cst_16 [1] : vector<32x8xf32> to vector<32xf32>
    %34 = vector.shape_cast %33 : vector<32xf32> to vector<32x1xf32>
    %cst_17 = arith.constant 8.000000e+00 : f32
    %35 = vector.broadcast %cst_17 : f32 to vector<32x1xf32>
    %36 = arith.divf %34, %35 : vector<32x1xf32>
    %37 = vector.broadcast %29 : vector<32x1xf32> to vector<32x8xf32>
    %38 = arith.subf %25, %37 : vector<32x8xf32>
    %cst_18 = arith.constant 9.99999974E-6 : f32
    %39 = vector.broadcast %cst_18 : f32 to vector<32x1xf32>
    %40 = arith.addf %36, %39 : vector<32x1xf32>
    %41 = math.rsqrt %40 : vector<32x1xf32>
    %42 = vector.broadcast %41 : vector<32x1xf32> to vector<32x8xf32>
    %43 = arith.mulf %38, %42 : vector<32x8xf32>
    %c0_19 = arith.constant 0 : index
    %c0_20 = arith.constant 0 : index
    %44 = vector.load %arg6[%c0_19, %c0_20] : memref<1x8xf32, #tpu.memory_space<vmem>>, vector<1x8xf32>
    %45 = vector.broadcast %44 : vector<1x8xf32> to vector<32x8xf32>
    %46 = arith.mulf %43, %45 : vector<32x8xf32>
    %c0_21 = arith.constant 0 : index
    %c0_22 = arith.constant 0 : index
    %47 = vector.load %arg7[%c0_21, %c0_22] : memref<1x8xf32, #tpu.memory_space<vmem>>, vector<1x8xf32>
    %48 = vector.broadcast %47 : vector<1x8xf32> to vector<32x8xf32>
    %49 = arith.addf %46, %48 : vector<32x8xf32>
    %50 = arith.addf %0, %49 : vector<32x8xf32>
    %c0_23 = arith.constant 0 : index
    %c0_24 = arith.constant 0 : index
    %51 = vector.load %arg8[%c0_23, %c0_24] : memref<32x8xf32, #tpu.memory_space<vmem>>, vector<32x8xf32>
    tpu.vector_store %arg8[%c0_23, %c0_24], %50 {strides = array<i32>} : memref<32x8xf32, #tpu.memory_space<vmem>>, vector<32x8xf32>,
    return
  }
  func.func @transform_0(%arg0: i32) -> (i32, i32) {
    %c0_i32 = arith.constant 0 : i32
    %c0_i32_0 = arith.constant 0 : i32
    return %arg0, %c0_i32 : i32, i32
  }
  func.func @transform_1(%arg0: i32) -> (i32, i32) {
    %c0_i32 = arith.constant 0 : i32
    %c0_i32_0 = arith.constant 0 : i32
    %c0_i32_1 = arith.constant 0 : i32
    return %c0_i32, %c0_i32_0 : i32, i32
  }
  func.func @transform_2(%arg0: i32) -> (i32, i32) {
    %c0_i32 = arith.constant 0 : i32
    %c0_i32_0 = arith.constant 0 : i32
    %c0_i32_1 = arith.constant 0 : i32
    return %c0_i32, %c0_i32_0 : i32, i32
  }
  func.func @transform_3(%arg0: i32) -> (i32, i32) {
    %c0_i32 = arith.constant 0 : i32
    %c0_i32_0 = arith.constant 0 : i32
    %c0_i32_1 = arith.constant 0 : i32
    return %c0_i32, %c0_i32_0 : i32, i32
  }
  func.func @transform_4(%arg0: i32) -> (i32, i32) {
    %c0_i32 = arith.constant 0 : i32
    %c0_i32_0 = arith.constant 0 : i32
    %c0_i32_1 = arith.constant 0 : i32
    return %c0_i32, %c0_i32_0 : i32, i32
  }
  func.func @transform_5(%arg0: i32) -> (i32, i32) {
    %c0_i32 = arith.constant 0 : i32
    %c0_i32_0 = arith.constant 0 : i32
    %c0_i32_1 = arith.constant 0 : i32
    return %c0_i32, %c0_i32_0 : i32, i32
  }
  func.func @transform_6(%arg0: i32) -> (i32, i32) {
    %c0_i32 = arith.constant 0 : i32
    %c0_i32_0 = arith.constant 0 : i32
    %c0_i32_1 = arith.constant 0 : i32
    return %c0_i32, %c0_i32_0 : i32, i32
  }
  func.func @transform_7(%arg0: i32) -> (i32, i32) {
    %c0_i32 = arith.constant 0 : i32
    %c0_i32_0 = arith.constant 0 : i32
    return %arg0, %c0_i32 : i32, i32
  }
}

module attributes {stable_mosaic.version = 11 : i64} {
  func.func @kern(%arg0: i32, %arg1: memref<8x32xbf16, #tpu.memory_space<vmem>>, %arg2: memref<32x16xbf16, #tpu.memory_space<vmem>>, %arg3: memref<1x16xf32, #tpu.memory_space<vmem>>, %arg4: memref<1x16xf32, #tpu.memory_space<vmem>>, %arg5: memref<1x16xf32, #tpu.memory_space<vmem>>, %arg6: memref<8x16xf32, #tpu.memory_space<vmem>>) attributes {dimension_semantics = [#tpu.dimension_semantics<parallel>], iteration_bounds = array<i64: 1>, scalar_prefetch = 0 : i64, scratch_operands = 0 : i64, tpu.core_type = #tpu.core_type<tc>, window_params = [{transform_indices = @transform_0, window_bounds = array<i64: 8, 32>}, {pipeline_mode = #tpu.pipeline_mode<synchronous>, transform_indices = @transform_1, window_bounds = array<i64: 32, 16>}, {pipeline_mode = #tpu.pipeline_mode<synchronous>, transform_indices = @transform_2, window_bounds = array<i64: 1, 16>}, {pipeline_mode = #tpu.pipeline_mode<synchronous>, transform_indices = @transform_3, window_bounds = array<i64: 1, 16>}, {pipeline_mode = #tpu.pipeline_mode<synchronous>, transform_indices = @transform_4, window_bounds = array<i64: 1, 16>}, {transform_indices = @transform_5, window_bounds = array<i64: 8, 16>}]} {
    %c0 = arith.constant 0 : index
    %c0_0 = arith.constant 0 : index
    %0 = vector.load %arg1[%c0, %c0_0] : memref<8x32xbf16, #tpu.memory_space<vmem>>, vector<8x32xbf16>
    %c0_1 = arith.constant 0 : index
    %c0_2 = arith.constant 0 : index
    %1 = vector.load %arg2[%c0_1, %c0_2] : memref<32x16xbf16, #tpu.memory_space<vmem>>, vector<32x16xbf16>
    %cst = arith.constant dense<0.000000e+00> : vector<8x16xf32>
    %2 = tpu.matmul %0, %1, %cst {dimension_numbers = #tpu.dot_dimension_numbers<[1], [0], [0], [1], [0, 0, 1, 1], [], []>} : vector<8x32xbf16>, vector<32x16xbf16>, vector<8x16xf32> -> vector<8x16xf32>
    %c0_3 = arith.constant 0 : index
    %c0_4 = arith.constant 0 : index
    %3 = vector.load %arg3[%c0_3, %c0_4] : memref<1x16xf32, #tpu.memory_space<vmem>>, vector<1x16xf32>
    %4 = vector.broadcast %3 : vector<1x16xf32> to vector<8x16xf32>
    %5 = arith.addf %2, %4 : vector<8x16xf32>
    %cst_5 = arith.constant dense<0.000000e+00> : vector<8xf32>
    %6 = vector.multi_reduction <add>, %5, %cst_5 [1] : vector<8x16xf32> to vector<8xf32>
    %7 = vector.shape_cast %6 : vector<8xf32> to vector<8x1xf32>
    %cst_6 = arith.constant 1.600000e+01 : f32
    %8 = vector.broadcast %cst_6 : f32 to vector<8x1xf32>
    %9 = arith.divf %7, %8 : vector<8x1xf32>
    %10 = vector.broadcast %9 : vector<8x1xf32> to vector<8x16xf32>
    %11 = arith.subf %5, %10 : vector<8x16xf32>
    %12 = arith.mulf %11, %11 : vector<8x16xf32>
    %cst_7 = arith.constant dense<0.000000e+00> : vector<8xf32>
    %13 = vector.multi_reduction <add>, %12, %cst_7 [1] : vector<8x16xf32> to vector<8xf32>
    %14 = vector.shape_cast %13 : vector<8xf32> to vector<8x1xf32>
    %cst_8 = arith.constant 1.600000e+01 : f32
    %15 = vector.broadcast %cst_8 : f32 to vector<8x1xf32>
    %16 = arith.divf %14, %15 : vector<8x1xf32>
    %17 = vector.broadcast %9 : vector<8x1xf32> to vector<8x16xf32>
    %18 = arith.subf %5, %17 : vector<8x16xf32>
    %cst_9 = arith.constant 9.99999974E-6 : f32
    %19 = vector.broadcast %cst_9 : f32 to vector<8x1xf32>
    %20 = arith.addf %16, %19 : vector<8x1xf32>
    %21 = math.rsqrt %20 : vector<8x1xf32>
    %22 = vector.broadcast %21 : vector<8x1xf32> to vector<8x16xf32>
    %23 = arith.mulf %18, %22 : vector<8x16xf32>
    %c0_10 = arith.constant 0 : index
    %c0_11 = arith.constant 0 : index
    %24 = vector.load %arg4[%c0_10, %c0_11] : memref<1x16xf32, #tpu.memory_space<vmem>>, vector<1x16xf32>
    %25 = vector.broadcast %24 : vector<1x16xf32> to vector<8x16xf32>
    %26 = arith.mulf %23, %25 : vector<8x16xf32>
    %c0_12 = arith.constant 0 : index
    %c0_13 = arith.constant 0 : index
    %27 = vector.load %arg5[%c0_12, %c0_13] : memref<1x16xf32, #tpu.memory_space<vmem>>, vector<1x16xf32>
    %28 = vector.broadcast %27 : vector<1x16xf32> to vector<8x16xf32>
    %29 = arith.addf %26, %28 : vector<8x16xf32>
    %c0_14 = arith.constant 0 : index
    %c0_15 = arith.constant 0 : index
    %30 = vector.load %arg6[%c0_14, %c0_15] : memref<8x16xf32, #tpu.memory_space<vmem>>, vector<8x16xf32>
    tpu.vector_store %arg6[%c0_14, %c0_15], %29 {strides = array<i32>} : memref<8x16xf32, #tpu.memory_space<vmem>>, vector<8x16xf32>,
    return
  }
  func.func @transform_0(%arg0: i32) -> (i32, i32) {
    %c0_i32 = arith.constant 0 : i32
    %c0_i32_0 = arith.constant 0 : i32
    return %arg0, %c0_i32 : i32, i32
  }
  func.func @transform_1(%arg0: i32) -> (i32, i32) {
    %c0_i32 = arith.constant 0 : i32
    %c0_i32_0 = arith.constant 0 : i32
    %c0_i32_1 = arith.constant 0 : i32
    return %c0_i32, %c0_i32_0 : i32, i32
  }
  func.func @transform_2(%arg0: i32) -> (i32, i32) {
    %c0_i32 = arith.constant 0 : i32
    %c0_i32_0 = arith.constant 0 : i32
    %c0_i32_1 = arith.constant 0 : i32
    return %c0_i32, %c0_i32_0 : i32, i32
  }
  func.func @transform_3(%arg0: i32) -> (i32, i32) {
    %c0_i32 = arith.constant 0 : i32
    %c0_i32_0 = arith.constant 0 : i32
    %c0_i32_1 = arith.constant 0 : i32
    return %c0_i32, %c0_i32_0 : i32, i32
  }
  func.func @transform_4(%arg0: i32) -> (i32, i32) {
    %c0_i32 = arith.constant 0 : i32
    %c0_i32_0 = arith.constant 0 : i32
    %c0_i32_1 = arith.constant 0 : i32
    return %c0_i32, %c0_i32_0 : i32, i32
  }
  func.func @transform_5(%arg0: i32) -> (i32, i32) {
    %c0_i32 = arith.constant 0 : i32
    %c0_i32_0 = arith.constant 0 : i32
    return %arg0, %c0_i32 : i32, i32
  }
}

module attributes {stable_mosaic.version = 11 : i64} {
  func.func @_linear_kernel(%arg0: i32, %arg1: memref<8x16xbf16, #tpu.memory_space<vmem>>, %arg2: memref<16x48xbf16, #tpu.memory_space<vmem>>, %arg3: memref<1x48xf32, #tpu.memory_space<vmem>>, %arg4: memref<8x48xf32, #tpu.memory_space<vmem>>) attributes {dimension_semantics = [#tpu.dimension_semantics<parallel>], iteration_bounds = array<i64: 1>, scalar_prefetch = 0 : i64, scratch_operands = 0 : i64, tpu.core_type = #tpu.core_type<tc>, window_params = [{transform_indices = @transform_0, window_bounds = array<i64: 8, 16>}, {pipeline_mode = #tpu.pipeline_mode<synchronous>, transform_indices = @transform_1, window_bounds = array<i64: 16, 48>}, {pipeline_mode = #tpu.pipeline_mode<synchronous>, transform_indices = @transform_2, window_bounds = array<i64: 1, 48>}, {transform_indices = @transform_3, window_bounds = array<i64: 8, 48>}]} {
    %c0 = arith.constant 0 : index
    %c0_0 = arith.constant 0 : index
    %0 = vector.load %arg1[%c0, %c0_0] : memref<8x16xbf16, #tpu.memory_space<vmem>>, vector<8x16xbf16>
    %c0_1 = arith.constant 0 : index
    %c0_2 = arith.constant 0 : index
    %1 = vector.load %arg2[%c0_1, %c0_2] : memref<16x48xbf16, #tpu.memory_space<vmem>>, vector<16x48xbf16>
    %cst = arith.constant dense<0.000000e+00> : vector<8x48xf32>
    %2 = tpu.matmul %0, %1, %cst {dimension_numbers = #tpu.dot_dimension_numbers<[1], [0], [0], [1], [0, 0, 1, 1], [], []>} : vector<8x16xbf16>, vector<16x48xbf16>, vector<8x48xf32> -> vector<8x48xf32>
    %c0_3 = arith.constant 0 : index
    %c0_4 = arith.constant 0 : index
    %3 = vector.load %arg3[%c0_3, %c0_4] : memref<1x48xf32, #tpu.memory_space<vmem>>, vector<1x48xf32>
    %4 = vector.broadcast %3 : vector<1x48xf32> to vector<8x48xf32>
    %5 = arith.addf %2, %4 : vector<8x48xf32>
    %c0_5 = arith.constant 0 : index
    %c0_6 = arith.constant 0 : index
    %6 = vector.load %arg4[%c0_5, %c0_6] : memref<8x48xf32, #tpu.memory_space<vmem>>, vector<8x48xf32>
    tpu.vector_store %arg4[%c0_5, %c0_6], %5 {strides = array<i32>} : memref<8x48xf32, #tpu.memory_space<vmem>>, vector<8x48xf32>,
    return
  }
  func.func @transform_0(%arg0: i32) -> (i32, i32) {
    %c0_i32 = arith.constant 0 : i32
    %c0_i32_0 = arith.constant 0 : i32
    return %arg0, %c0_i32 : i32, i32
  }
  func.func @transform_1(%arg0: i32) -> (i32, i32) {
    %c0_i32 = arith.constant 0 : i32
    %c0_i32_0 = arith.constant 0 : i32
    %c0_i32_1 = arith.constant 0 : i32
    return %c0_i32, %c0_i32_0 : i32, i32
  }
  func.func @transform_2(%arg0: i32) -> (i32, i32) {
    %c0_i32 = arith.constant 0 : i32
    %c0_i32_0 = arith.constant 0 : i32
    %c0_i32_1 = arith.constant 0 : i32
    return %c0_i32, %c0_i32_0 : i32, i32
  }
  func.func @transform_3(%arg0: i32) -> (i32, i32) {
    %c0_i32 = arith.constant 0 : i32
    %c0_i32_0 = arith.constant 0 : i32
    return %arg0, %c0_i32 : i32, i32
  }
}

module attributes {stable_mosaic.version = 11 : i64} {
  func.func @kern(%arg0: i32, %arg1: memref<1x4x4x4xbf16, #tpu.memory_space<vmem>>, %arg2: memref<1x4x4x4xbf16, #tpu.memory_space<vmem>>, %arg3: memref<1x4x4x4xbf16, #tpu.memory_space<vmem>>, %arg4: memref<4x4x4xf32, #tpu.memory_space<vmem>>, %arg5: memref<4x1xf32, #tpu.memory_space<vmem>>, %arg6: memref<1x4x4x4xf32, #tpu.memory_space<vmem>>) attributes {dimension_semantics = [#tpu.dimension_semantics<parallel>], iteration_bounds = array<i64: 2>, scalar_prefetch = 0 : i64, scratch_operands = 0 : i64, tpu.core_type = #tpu.core_type<tc>, window_params = [{transform_indices = @transform_0, window_bounds = array<i64: 1, 4, 4, 4>}, {transform_indices = @transform_1, window_bounds = array<i64: 1, 4, 4, 4>}, {transform_indices = @transform_2, window_bounds = array<i64: 1, 4, 4, 4>}, {pipeline_mode = #tpu.pipeline_mode<synchronous>, transform_indices = @transform_3, window_bounds = array<i64: 4, 4, 4>}, {pipeline_mode = #tpu.pipeline_mode<synchronous>, transform_indices = @transform_4, window_bounds = array<i64: 4, 1>}, {transform_indices = @transform_5, window_bounds = array<i64: 1, 4, 4, 4>}]} {
    %c0 = arith.constant 0 : index
    %c0_0 = arith.constant 0 : index
    %c0_1 = arith.constant 0 : index
    %c0_2 = arith.constant 0 : index
    %0 = vector.load %arg1[%c0, %c0_0, %c0_1, %c0_2] : memref<1x4x4x4xbf16, #tpu.memory_space<vmem>>, vector<1x4x4x4xbf16>
    %c0_3 = arith.constant 0 : index
    %c0_4 = arith.constant 0 : index
    %c0_5 = arith.constant 0 : index
    %c0_6 = arith.constant 0 : index
    %1 = vector.load %arg2[%c0_3, %c0_4, %c0_5, %c0_6] : memref<1x4x4x4xbf16, #tpu.memory_space<vmem>>, vector<1x4x4x4xbf16>
    %c0_7 = arith.constant 0 : index
    %c0_8 = arith.constant 0 : index
    %c0_9 = arith.constant 0 : index
    %c0_10 = arith.constant 0 : index
    %2 = vector.load %arg3[%c0_7, %c0_8, %c0_9, %c0_10] : memref<1x4x4x4xbf16, #tpu.memory_space<vmem>>, vector<1x4x4x4xbf16>
    %c0_11 = arith.constant 0 : index
    %c0_12 = arith.constant 0 : index
    %c0_13 = arith.constant 0 : index
    %3 = vector.load %arg4[%c0_11, %c0_12, %c0_13] : memref<4x4x4xf32, #tpu.memory_space<vmem>>, vector<4x4x4xf32>
    %c0_14 = arith.constant 0 : index
    %c0_15 = arith.constant 0 : index
    %4 = vector.load %arg5[%c0_14, %c0_15] : memref<4x1xf32, #tpu.memory_space<vmem>>, vector<4x1xf32>
    %5 = vector.extract_strided_slice %0 {offsets = [0, 0, 0, 0], sizes = [1, 1, 4, 4], strides = [1, 1, 1, 1]} : vector<1x4x4x4xbf16> to vector<1x1x4x4xbf16>
    %6 = vector.shape_cast %5 : vector<1x1x4x4xbf16> to vector<1x4x4xbf16>
    %7 = arith.extf %6 : vector<1x4x4xbf16> to vector<1x4x4xf32>
    %8 = vector.extract_strided_slice %1 {offsets = [0, 0, 0, 0], sizes = [1, 1, 4, 4], strides = [1, 1, 1, 1]} : vector<1x4x4x4xbf16> to vector<1x1x4x4xbf16>
    %9 = vector.shape_cast %8 : vector<1x1x4x4xbf16> to vector<1x4x4xbf16>
    %10 = arith.extf %9 : vector<1x4x4xbf16> to vector<1x4x4xf32>
    %11 = arith.mulf %7, %7 : vector<1x4x4xf32>
    %cst = arith.constant dense<0.000000e+00> : vector<1x4xf32>
    %12 = vector.multi_reduction <add>, %11, %cst [2] : vector<1x4x4xf32> to vector<1x4xf32>
    %13 = vector.shape_cast %12 : vector<1x4xf32> to vector<1x4x1xf32>
    %cst_16 = arith.constant 1.000000e-24 : f32
    %14 = vector.broadcast %cst_16 : f32 to vector<1x4x1xf32>
    %15 = arith.maximumf %13, %14 : vector<1x4x1xf32>
    %16 = math.rsqrt %15 : vector<1x4x1xf32>
    %17 = vector.broadcast %16 : vector<1x4x1xf32> to vector<1x4x4xf32>
    %18 = arith.mulf %7, %17 : vector<1x4x4xf32>
    %19 = arith.mulf %10, %10 : vector<1x4x4xf32>
    %cst_17 = arith.constant dense<0.000000e+00> : vector<1x4xf32>
    %20 = vector.multi_reduction <add>, %19, %cst_17 [2] : vector<1x4x4xf32> to vector<1x4xf32>
    %21 = vector.shape_cast %20 : vector<1x4xf32> to vector<1x4x1xf32>
    %cst_18 = arith.constant 1.000000e-24 : f32
    %22 = vector.broadcast %cst_18 : f32 to vector<1x4x1xf32>
    %23 = arith.maximumf %21, %22 : vector<1x4x1xf32>
    %24 = math.rsqrt %23 : vector<1x4x1xf32>
    %25 = vector.broadcast %24 : vector<1x4x1xf32> to vector<1x4x4xf32>
    %26 = arith.mulf %10, %25 : vector<1x4x4xf32>
    %27 = vector.extract_strided_slice %4 {offsets = [0, 0], sizes = [1, 1], strides = [1, 1]} : vector<4x1xf32> to vector<1x1xf32>
    %28 = vector.shape_cast %27 : vector<1x1xf32> to vector<1x1x1xf32>
    %29 = vector.broadcast %28 : vector<1x1x1xf32> to vector<1x4x4xf32>
    %30 = arith.mulf %18, %29 : vector<1x4x4xf32>
    %31 = arith.truncf %30 : vector<1x4x4xf32> to vector<1x4x4xbf16>
    %32 = arith.truncf %26 : vector<1x4x4xf32> to vector<1x4x4xbf16>
    "tpu.trace_start"() <{level = 10 : i32, message = "wnd,wmd->wnm"}> : () -> ()
    %cst_19 = arith.constant dense<0.000000e+00> : vector<1x4x4xf32>
    %33 = tpu.matmul %31, %32, %cst_19 {dimension_numbers = #tpu.dot_dimension_numbers<[2], [2], [1], [1], [0, 0, 0, 1, 1, 1], [0], [0]>} : vector<1x4x4xbf16>, vector<1x4x4xbf16>, vector<1x4x4xf32> -> vector<1x4x4xf32>
    "tpu.trace_stop"() : () -> ()
    %34 = vector.extract_strided_slice %3 {offsets = [0, 0, 0], sizes = [1, 4, 4], strides = [1, 1, 1]} : vector<4x4x4xf32> to vector<1x4x4xf32>
    %35 = vector.shape_cast %34 : vector<1x4x4xf32> to vector<4x4xf32>
    %36 = vector.shape_cast %35 : vector<4x4xf32> to vector<1x4x4xf32>
    %37 = arith.addf %33, %36 : vector<1x4x4xf32>
    %cst_20 = arith.constant dense<0xFF800000> : vector<1x4xf32>
    %38 = vector.multi_reduction <maximumf>, %37, %cst_20 [2] : vector<1x4x4xf32> to vector<1x4xf32>
    %39 = vector.shape_cast %38 : vector<1x4xf32> to vector<1x4x1xf32>
    %40 = vector.broadcast %39 : vector<1x4x1xf32> to vector<1x4x4xf32>
    %41 = arith.subf %37, %40 : vector<1x4x4xf32>
    %42 = math.exp %41 : vector<1x4x4xf32>
    %cst_21 = arith.constant dense<0.000000e+00> : vector<1x4xf32>
    %43 = vector.multi_reduction <add>, %42, %cst_21 [2] : vector<1x4x4xf32> to vector<1x4xf32>
    %44 = vector.shape_cast %43 : vector<1x4xf32> to vector<1x4x1xf32>
    %45 = tpu.reciprocal %44 {approx = true} : vector<1x4x1xf32> -> vector<1x4x1xf32>
    %46 = vector.broadcast %45 : vector<1x4x1xf32> to vector<1x4x4xf32>
    %47 = arith.mulf %42, %46 : vector<1x4x4xf32>
    %48 = arith.truncf %47 : vector<1x4x4xf32> to vector<1x4x4xbf16>
    %49 = vector.extract_strided_slice %2 {offsets = [0, 0, 0, 0], sizes = [1, 1, 4, 4], strides = [1, 1, 1, 1]} : vector<1x4x4x4xbf16> to vector<1x1x4x4xbf16>
    %50 = vector.shape_cast %49 : vector<1x1x4x4xbf16> to vector<1x4x4xbf16>
    "tpu.trace_start"() <{level = 10 : i32, message = "wnm,wmd->wnd"}> : () -> ()
    %cst_22 = arith.constant dense<0.000000e+00> : vector<1x4x4xf32>
    %51 = tpu.matmul %48, %50, %cst_22 {dimension_numbers = #tpu.dot_dimension_numbers<[2], [1], [1], [2], [0, 0, 0, 1, 1, 2], [0], [0]>} : vector<1x4x4xbf16>, vector<1x4x4xbf16>, vector<1x4x4xf32> -> vector<1x4x4xf32>
    "tpu.trace_stop"() : () -> ()
    %c0_23 = arith.constant 0 : index
    %c0_24 = arith.constant 0 : index
    %c0_25 = arith.constant 0 : index
    %c0_26 = arith.constant 0 : index
    %52 = vector.load %arg6[%c0_23, %c0_24, %c0_25, %c0_26] : memref<1x4x4x4xf32, #tpu.memory_space<vmem>>, vector<1x1x4x4xf32>
    %53 = vector.shape_cast %52 : vector<1x1x4x4xf32> to vector<1x4x4xf32>
    %54 = vector.shape_cast %51 : vector<1x4x4xf32> to vector<1x1x4x4xf32>
    tpu.vector_store %arg6[%c0_23, %c0_24, %c0_25, %c0_26], %54 {strides = array<i32>} : memref<1x4x4x4xf32, #tpu.memory_space<vmem>>, vector<1x1x4x4xf32>,
    %55 = vector.extract_strided_slice %0 {offsets = [0, 1, 0, 0], sizes = [1, 1, 4, 4], strides = [1, 1, 1, 1]} : vector<1x4x4x4xbf16> to vector<1x1x4x4xbf16>
    %56 = vector.shape_cast %55 : vector<1x1x4x4xbf16> to vector<1x4x4xbf16>
    %57 = arith.extf %56 : vector<1x4x4xbf16> to vector<1x4x4xf32>
    %58 = vector.extract_strided_slice %1 {offsets = [0, 1, 0, 0], sizes = [1, 1, 4, 4], strides = [1, 1, 1, 1]} : vector<1x4x4x4xbf16> to vector<1x1x4x4xbf16>
    %59 = vector.shape_cast %58 : vector<1x1x4x4xbf16> to vector<1x4x4xbf16>
    %60 = arith.extf %59 : vector<1x4x4xbf16> to vector<1x4x4xf32>
    %61 = arith.mulf %57, %57 : vector<1x4x4xf32>
    %cst_27 = arith.constant dense<0.000000e+00> : vector<1x4xf32>
    %62 = vector.multi_reduction <add>, %61, %cst_27 [2] : vector<1x4x4xf32> to vector<1x4xf32>
    %63 = vector.shape_cast %62 : vector<1x4xf32> to vector<1x4x1xf32>
    %cst_28 = arith.constant 1.000000e-24 : f32
    %64 = vector.broadcast %cst_28 : f32 to vector<1x4x1xf32>
    %65 = arith.maximumf %63, %64 : vector<1x4x1xf32>
    %66 = math.rsqrt %65 : vector<1x4x1xf32>
    %67 = vector.broadcast %66 : vector<1x4x1xf32> to vector<1x4x4xf32>
    %68 = arith.mulf %57, %67 : vector<1x4x4xf32>
    %69 = arith.mulf %60, %60 : vector<1x4x4xf32>
    %cst_29 = arith.constant dense<0.000000e+00> : vector<1x4xf32>
    %70 = vector.multi_reduction <add>, %69, %cst_29 [2] : vector<1x4x4xf32> to vector<1x4xf32>
    %71 = vector.shape_cast %70 : vector<1x4xf32> to vector<1x4x1xf32>
    %cst_30 = arith.constant 1.000000e-24 : f32
    %72 = vector.broadcast %cst_30 : f32 to vector<1x4x1xf32>
    %73 = arith.maximumf %71, %72 : vector<1x4x1xf32>
    %74 = math.rsqrt %73 : vector<1x4x1xf32>
    %75 = vector.broadcast %74 : vector<1x4x1xf32> to vector<1x4x4xf32>
    %76 = arith.mulf %60, %75 : vector<1x4x4xf32>
    %77 = vector.extract_strided_slice %4 {offsets = [1, 0], sizes = [1, 1], strides = [1, 1]} : vector<4x1xf32> to vector<1x1xf32>
    %78 = vector.shape_cast %77 : vector<1x1xf32> to vector<1x1x1xf32>
    %79 = vector.broadcast %78 : vector<1x1x1xf32> to vector<1x4x4xf32>
    %80 = arith.mulf %68, %79 : vector<1x4x4xf32>
    %81 = arith.truncf %80 : vector<1x4x4xf32> to vector<1x4x4xbf16>
    %82 = arith.truncf %76 : vector<1x4x4xf32> to vector<1x4x4xbf16>
    "tpu.trace_start"() <{level = 10 : i32, message = "wnd,wmd->wnm"}> : () -> ()
    %cst_31 = arith.constant dense<0.000000e+00> : vector<1x4x4xf32>
    %83 = tpu.matmul %81, %82, %cst_31 {dimension_numbers = #tpu.dot_dimension_numbers<[2], [2], [1], [1], [0, 0, 0, 1, 1, 1], [0], [0]>} : vector<1x4x4xbf16>, vector<1x4x4xbf16>, vector<1x4x4xf32> -> vector<1x4x4xf32>
    "tpu.trace_stop"() : () -> ()
    %84 = vector.extract_strided_slice %3 {offsets = [1, 0, 0], sizes = [1, 4, 4], strides = [1, 1, 1]} : vector<4x4x4xf32> to vector<1x4x4xf32>
    %85 = vector.shape_cast %84 : vector<1x4x4xf32> to vector<4x4xf32>
    %86 = vector.shape_cast %85 : vector<4x4xf32> to vector<1x4x4xf32>
    %87 = arith.addf %83, %86 : vector<1x4x4xf32>
    %cst_32 = arith.constant dense<0xFF800000> : vector<1x4xf32>
    %88 = vector.multi_reduction <maximumf>, %87, %cst_32 [2] : vector<1x4x4xf32> to vector<1x4xf32>
    %89 = vector.shape_cast %88 : vector<1x4xf32> to vector<1x4x1xf32>
    %90 = vector.broadcast %89 : vector<1x4x1xf32> to vector<1x4x4xf32>
    %91 = arith.subf %87, %90 : vector<1x4x4xf32>
    %92 = math.exp %91 : vector<1x4x4xf32>
    %cst_33 = arith.constant dense<0.000000e+00> : vector<1x4xf32>
    %93 = vector.multi_reduction <add>, %92, %cst_33 [2] : vector<1x4x4xf32> to vector<1x4xf32>
    %94 = vector.shape_cast %93 : vector<1x4xf32> to vector<1x4x1xf32>
    %95 = tpu.reciprocal %94 {approx = true} : vector<1x4x1xf32> -> vector<1x4x1xf32>
    %96 = vector.broadcast %95 : vector<1x4x1xf32> to vector<1x4x4xf32>
    %97 = arith.mulf %92, %96 : vector<1x4x4xf32>
    %98 = arith.truncf %97 : vector<1x4x4xf32> to vector<1x4x4xbf16>
    %99 = vector.extract_strided_slice %2 {offsets = [0, 1, 0, 0], sizes = [1, 1, 4, 4], strides = [1, 1, 1, 1]} : vector<1x4x4x4xbf16> to vector<1x1x4x4xbf16>
    %100 = vector.shape_cast %99 : vector<1x1x4x4xbf16> to vector<1x4x4xbf16>
    "tpu.trace_start"() <{level = 10 : i32, message = "wnm,wmd->wnd"}> : () -> ()
    %cst_34 = arith.constant dense<0.000000e+00> : vector<1x4x4xf32>
    %101 = tpu.matmul %98, %100, %cst_34 {dimension_numbers = #tpu.dot_dimension_numbers<[2], [1], [1], [2], [0, 0, 0, 1, 1, 2], [0], [0]>} : vector<1x4x4xbf16>, vector<1x4x4xbf16>, vector<1x4x4xf32> -> vector<1x4x4xf32>
    "tpu.trace_stop"() : () -> ()
    %c0_35 = arith.constant 0 : index
    %c1 = arith.constant 1 : index
    %c0_36 = arith.constant 0 : index
    %c0_37 = arith.constant 0 : index
    %102 = vector.load %arg6[%c0_35, %c1, %c0_36, %c0_37] : memref<1x4x4x4xf32, #tpu.memory_space<vmem>>, vector<1x1x4x4xf32>
    %103 = vector.shape_cast %102 : vector<1x1x4x4xf32> to vector<1x4x4xf32>
    %104 = vector.shape_cast %101 : vector<1x4x4xf32> to vector<1x1x4x4xf32>
    tpu.vector_store %arg6[%c0_35, %c1, %c0_36, %c0_37], %104 {strides = array<i32>} : memref<1x4x4x4xf32, #tpu.memory_space<vmem>>, vector<1x1x4x4xf32>,
    %105 = vector.extract_strided_slice %0 {offsets = [0, 2, 0, 0], sizes = [1, 1, 4, 4], strides = [1, 1, 1, 1]} : vector<1x4x4x4xbf16> to vector<1x1x4x4xbf16>
    %106 = vector.shape_cast %105 : vector<1x1x4x4xbf16> to vector<1x4x4xbf16>
    %107 = arith.extf %106 : vector<1x4x4xbf16> to vector<1x4x4xf32>
    %108 = vector.extract_strided_slice %1 {offsets = [0, 2, 0, 0], sizes = [1, 1, 4, 4], strides = [1, 1, 1, 1]} : vector<1x4x4x4xbf16> to vector<1x1x4x4xbf16>
    %109 = vector.shape_cast %108 : vector<1x1x4x4xbf16> to vector<1x4x4xbf16>
    %110 = arith.extf %109 : vector<1x4x4xbf16> to vector<1x4x4xf32>
    %111 = arith.mulf %107, %107 : vector<1x4x4xf32>
    %cst_38 = arith.constant dense<0.000000e+00> : vector<1x4xf32>
    %112 = vector.multi_reduction <add>, %111, %cst_38 [2] : vector<1x4x4xf32> to vector<1x4xf32>
    %113 = vector.shape_cast %112 : vector<1x4xf32> to vector<1x4x1xf32>
    %cst_39 = arith.constant 1.000000e-24 : f32
    %114 = vector.broadcast %cst_39 : f32 to vector<1x4x1xf32>
    %115 = arith.maximumf %113, %114 : vector<1x4x1xf32>
    %116 = math.rsqrt %115 : vector<1x4x1xf32>
    %117 = vector.broadcast %116 : vector<1x4x1xf32> to vector<1x4x4xf32>
    %118 = arith.mulf %107, %117 : vector<1x4x4xf32>
    %119 = arith.mulf %110, %110 : vector<1x4x4xf32>
    %cst_40 = arith.constant dense<0.000000e+00> : vector<1x4xf32>
    %120 = vector.multi_reduction <add>, %119, %cst_40 [2] : vector<1x4x4xf32> to vector<1x4xf32>
    %121 = vector.shape_cast %120 : vector<1x4xf32> to vector<1x4x1xf32>
    %cst_41 = arith.constant 1.000000e-24 : f32
    %122 = vector.broadcast %cst_41 : f32 to vector<1x4x1xf32>
    %123 = arith.maximumf %121, %122 : vector<1x4x1xf32>
    %124 = math.rsqrt %123 : vector<1x4x1xf32>
    %125 = vector.broadcast %124 : vector<1x4x1xf32> to vector<1x4x4xf32>
    %126 = arith.mulf %110, %125 : vector<1x4x4xf32>
    %127 = vector.extract_strided_slice %4 {offsets = [2, 0], sizes = [1, 1], strides = [1, 1]} : vector<4x1xf32> to vector<1x1xf32>
    %128 = vector.shape_cast %127 : vector<1x1xf32> to vector<1x1x1xf32>
    %129 = vector.broadcast %128 : vector<1x1x1xf32> to vector<1x4x4xf32>
    %130 = arith.mulf %118, %129 : vector<1x4x4xf32>
    %131 = arith.truncf %130 : vector<1x4x4xf32> to vector<1x4x4xbf16>
    %132 = arith.truncf %126 : vector<1x4x4xf32> to vector<1x4x4xbf16>
    "tpu.trace_start"() <{level = 10 : i32, message = "wnd,wmd->wnm"}> : () -> ()
    %cst_42 = arith.constant dense<0.000000e+00> : vector<1x4x4xf32>
    %133 = tpu.matmul %131, %132, %cst_42 {dimension_numbers = #tpu.dot_dimension_numbers<[2], [2], [1], [1], [0, 0, 0, 1, 1, 1], [0], [0]>} : vector<1x4x4xbf16>, vector<1x4x4xbf16>, vector<1x4x4xf32> -> vector<1x4x4xf32>
    "tpu.trace_stop"() : () -> ()
    %134 = vector.extract_strided_slice %3 {offsets = [2, 0, 0], sizes = [1, 4, 4], strides = [1, 1, 1]} : vector<4x4x4xf32> to vector<1x4x4xf32>
    %135 = vector.shape_cast %134 : vector<1x4x4xf32> to vector<4x4xf32>
    %136 = vector.shape_cast %135 : vector<4x4xf32> to vector<1x4x4xf32>
    %137 = arith.addf %133, %136 : vector<1x4x4xf32>
    %cst_43 = arith.constant dense<0xFF800000> : vector<1x4xf32>
    %138 = vector.multi_reduction <maximumf>, %137, %cst_43 [2] : vector<1x4x4xf32> to vector<1x4xf32>
    %139 = vector.shape_cast %138 : vector<1x4xf32> to vector<1x4x1xf32>
    %140 = vector.broadcast %139 : vector<1x4x1xf32> to vector<1x4x4xf32>
    %141 = arith.subf %137, %140 : vector<1x4x4xf32>
    %142 = math.exp %141 : vector<1x4x4xf32>
    %cst_44 = arith.constant dense<0.000000e+00> : vector<1x4xf32>
    %143 = vector.multi_reduction <add>, %142, %cst_44 [2] : vector<1x4x4xf32> to vector<1x4xf32>
    %144 = vector.shape_cast %143 : vector<1x4xf32> to vector<1x4x1xf32>
    %145 = tpu.reciprocal %144 {approx = true} : vector<1x4x1xf32> -> vector<1x4x1xf32>
    %146 = vector.broadcast %145 : vector<1x4x1xf32> to vector<1x4x4xf32>
    %147 = arith.mulf %142, %146 : vector<1x4x4xf32>
    %148 = arith.truncf %147 : vector<1x4x4xf32> to vector<1x4x4xbf16>
    %149 = vector.extract_strided_slice %2 {offsets = [0, 2, 0, 0], sizes = [1, 1, 4, 4], strides = [1, 1, 1, 1]} : vector<1x4x4x4xbf16> to vector<1x1x4x4xbf16>
    %150 = vector.shape_cast %149 : vector<1x1x4x4xbf16> to vector<1x4x4xbf16>
    "tpu.trace_start"() <{level = 10 : i32, message = "wnm,wmd->wnd"}> : () -> ()
    %cst_45 = arith.constant dense<0.000000e+00> : vector<1x4x4xf32>
    %151 = tpu.matmul %148, %150, %cst_45 {dimension_numbers = #tpu.dot_dimension_numbers<[2], [1], [1], [2], [0, 0, 0, 1, 1, 2], [0], [0]>} : vector<1x4x4xbf16>, vector<1x4x4xbf16>, vector<1x4x4xf32> -> vector<1x4x4xf32>
    "tpu.trace_stop"() : () -> ()
    %c0_46 = arith.constant 0 : index
    %c2 = arith.constant 2 : index
    %c0_47 = arith.constant 0 : index
    %c0_48 = arith.constant 0 : index
    %152 = vector.load %arg6[%c0_46, %c2, %c0_47, %c0_48] : memref<1x4x4x4xf32, #tpu.memory_space<vmem>>, vector<1x1x4x4xf32>
    %153 = vector.shape_cast %152 : vector<1x1x4x4xf32> to vector<1x4x4xf32>
    %154 = vector.shape_cast %151 : vector<1x4x4xf32> to vector<1x1x4x4xf32>
    tpu.vector_store %arg6[%c0_46, %c2, %c0_47, %c0_48], %154 {strides = array<i32>} : memref<1x4x4x4xf32, #tpu.memory_space<vmem>>, vector<1x1x4x4xf32>,
    %155 = vector.extract_strided_slice %0 {offsets = [0, 3, 0, 0], sizes = [1, 1, 4, 4], strides = [1, 1, 1, 1]} : vector<1x4x4x4xbf16> to vector<1x1x4x4xbf16>
    %156 = vector.shape_cast %155 : vector<1x1x4x4xbf16> to vector<1x4x4xbf16>
    %157 = arith.extf %156 : vector<1x4x4xbf16> to vector<1x4x4xf32>
    %158 = vector.extract_strided_slice %1 {offsets = [0, 3, 0, 0], sizes = [1, 1, 4, 4], strides = [1, 1, 1, 1]} : vector<1x4x4x4xbf16> to vector<1x1x4x4xbf16>
    %159 = vector.shape_cast %158 : vector<1x1x4x4xbf16> to vector<1x4x4xbf16>
    %160 = arith.extf %159 : vector<1x4x4xbf16> to vector<1x4x4xf32>
    %161 = arith.mulf %157, %157 : vector<1x4x4xf32>
    %cst_49 = arith.constant dense<0.000000e+00> : vector<1x4xf32>
    %162 = vector.multi_reduction <add>, %161, %cst_49 [2] : vector<1x4x4xf32> to vector<1x4xf32>
    %163 = vector.shape_cast %162 : vector<1x4xf32> to vector<1x4x1xf32>
    %cst_50 = arith.constant 1.000000e-24 : f32
    %164 = vector.broadcast %cst_50 : f32 to vector<1x4x1xf32>
    %165 = arith.maximumf %163, %164 : vector<1x4x1xf32>
    %166 = math.rsqrt %165 : vector<1x4x1xf32>
    %167 = vector.broadcast %166 : vector<1x4x1xf32> to vector<1x4x4xf32>
    %168 = arith.mulf %157, %167 : vector<1x4x4xf32>
    %169 = arith.mulf %160, %160 : vector<1x4x4xf32>
    %cst_51 = arith.constant dense<0.000000e+00> : vector<1x4xf32>
    %170 = vector.multi_reduction <add>, %169, %cst_51 [2] : vector<1x4x4xf32> to vector<1x4xf32>
    %171 = vector.shape_cast %170 : vector<1x4xf32> to vector<1x4x1xf32>
    %cst_52 = arith.constant 1.000000e-24 : f32
    %172 = vector.broadcast %cst_52 : f32 to vector<1x4x1xf32>
    %173 = arith.maximumf %171, %172 : vector<1x4x1xf32>
    %174 = math.rsqrt %173 : vector<1x4x1xf32>
    %175 = vector.broadcast %174 : vector<1x4x1xf32> to vector<1x4x4xf32>
    %176 = arith.mulf %160, %175 : vector<1x4x4xf32>
    %177 = vector.extract_strided_slice %4 {offsets = [3, 0], sizes = [1, 1], strides = [1, 1]} : vector<4x1xf32> to vector<1x1xf32>
    %178 = vector.shape_cast %177 : vector<1x1xf32> to vector<1x1x1xf32>
    %179 = vector.broadcast %178 : vector<1x1x1xf32> to vector<1x4x4xf32>
    %180 = arith.mulf %168, %179 : vector<1x4x4xf32>
    %181 = arith.truncf %180 : vector<1x4x4xf32> to vector<1x4x4xbf16>
    %182 = arith.truncf %176 : vector<1x4x4xf32> to vector<1x4x4xbf16>
    "tpu.trace_start"() <{level = 10 : i32, message = "wnd,wmd->wnm"}> : () -> ()
    %cst_53 = arith.constant dense<0.000000e+00> : vector<1x4x4xf32>
    %183 = tpu.matmul %181, %182, %cst_53 {dimension_numbers = #tpu.dot_dimension_numbers<[2], [2], [1], [1], [0, 0, 0, 1, 1, 1], [0], [0]>} : vector<1x4x4xbf16>, vector<1x4x4xbf16>, vector<1x4x4xf32> -> vector<1x4x4xf32>
    "tpu.trace_stop"() : () -> ()
    %184 = vector.extract_strided_slice %3 {offsets = [3, 0, 0], sizes = [1, 4, 4], strides = [1, 1, 1]} : vector<4x4x4xf32> to vector<1x4x4xf32>
    %185 = vector.shape_cast %184 : vector<1x4x4xf32> to vector<4x4xf32>
    %186 = vector.shape_cast %185 : vector<4x4xf32> to vector<1x4x4xf32>
    %187 = arith.addf %183, %186 : vector<1x4x4xf32>
    %cst_54 = arith.constant dense<0xFF800000> : vector<1x4xf32>
    %188 = vector.multi_reduction <maximumf>, %187, %cst_54 [2] : vector<1x4x4xf32> to vector<1x4xf32>
    %189 = vector.shape_cast %188 : vector<1x4xf32> to vector<1x4x1xf32>
    %190 = vector.broadcast %189 : vector<1x4x1xf32> to vector<1x4x4xf32>
    %191 = arith.subf %187, %190 : vector<1x4x4xf32>
    %192 = math.exp %191 : vector<1x4x4xf32>
    %cst_55 = arith.constant dense<0.000000e+00> : vector<1x4xf32>
    %193 = vector.multi_reduction <add>, %192, %cst_55 [2] : vector<1x4x4xf32> to vector<1x4xf32>
    %194 = vector.shape_cast %193 : vector<1x4xf32> to vector<1x4x1xf32>
    %195 = tpu.reciprocal %194 {approx = true} : vector<1x4x1xf32> -> vector<1x4x1xf32>
    %196 = vector.broadcast %195 : vector<1x4x1xf32> to vector<1x4x4xf32>
    %197 = arith.mulf %192, %196 : vector<1x4x4xf32>
    %198 = arith.truncf %197 : vector<1x4x4xf32> to vector<1x4x4xbf16>
    %199 = vector.extract_strided_slice %2 {offsets = [0, 3, 0, 0], sizes = [1, 1, 4, 4], strides = [1, 1, 1, 1]} : vector<1x4x4x4xbf16> to vector<1x1x4x4xbf16>
    %200 = vector.shape_cast %199 : vector<1x1x4x4xbf16> to vector<1x4x4xbf16>
    "tpu.trace_start"() <{level = 10 : i32, message = "wnm,wmd->wnd"}> : () -> ()
    %cst_56 = arith.constant dense<0.000000e+00> : vector<1x4x4xf32>
    %201 = tpu.matmul %198, %200, %cst_56 {dimension_numbers = #tpu.dot_dimension_numbers<[2], [1], [1], [2], [0, 0, 0, 1, 1, 2], [0], [0]>} : vector<1x4x4xbf16>, vector<1x4x4xbf16>, vector<1x4x4xf32> -> vector<1x4x4xf32>
    "tpu.trace_stop"() : () -> ()
    %c0_57 = arith.constant 0 : index
    %c3 = arith.constant 3 : index
    %c0_58 = arith.constant 0 : index
    %c0_59 = arith.constant 0 : index
    %202 = vector.load %arg6[%c0_57, %c3, %c0_58, %c0_59] : memref<1x4x4x4xf32, #tpu.memory_space<vmem>>, vector<1x1x4x4xf32>
    %203 = vector.shape_cast %202 : vector<1x1x4x4xf32> to vector<1x4x4xf32>
    %204 = vector.shape_cast %201 : vector<1x4x4xf32> to vector<1x1x4x4xf32>
    tpu.vector_store %arg6[%c0_57, %c3, %c0_58, %c0_59], %204 {strides = array<i32>} : memref<1x4x4x4xf32, #tpu.memory_space<vmem>>, vector<1x1x4x4xf32>,
    return
  }
  func.func @transform_0(%arg0: i32) -> (i32, i32, i32, i32) {
    %c0_i32 = arith.constant 0 : i32
    %c0_i32_0 = arith.constant 0 : i32
    %c0_i32_1 = arith.constant 0 : i32
    %c0_i32_2 = arith.constant 0 : i32
    return %arg0, %c0_i32, %c0_i32_0, %c0_i32_1 : i32, i32, i32, i32
  }
  func.func @transform_1(%arg0: i32) -> (i32, i32, i32, i32) {
    %c0_i32 = arith.constant 0 : i32
    %c0_i32_0 = arith.constant 0 : i32
    %c0_i32_1 = arith.constant 0 : i32
    %c0_i32_2 = arith.constant 0 : i32
    return %arg0, %c0_i32, %c0_i32_0, %c0_i32_1 : i32, i32, i32, i32
  }
  func.func @transform_2(%arg0: i32) -> (i32, i32, i32, i32) {
    %c0_i32 = arith.constant 0 : i32
    %c0_i32_0 = arith.constant 0 : i32
    %c0_i32_1 = arith.constant 0 : i32
    %c0_i32_2 = arith.constant 0 : i32
    return %arg0, %c0_i32, %c0_i32_0, %c0_i32_1 : i32, i32, i32, i32
  }
  func.func @transform_3(%arg0: i32) -> (i32, i32, i32) {
    %c0_i32 = arith.constant 0 : i32
    %c0_i32_0 = arith.constant 0 : i32
    %c0_i32_1 = arith.constant 0 : i32
    %c0_i32_2 = arith.constant 0 : i32
    return %c0_i32, %c0_i32_0, %c0_i32_1 : i32, i32, i32
  }
  func.func @transform_4(%arg0: i32) -> (i32, i32) {
    %c0_i32 = arith.constant 0 : i32
    %c0_i32_0 = arith.constant 0 : i32
    %c0_i32_1 = arith.constant 0 : i32
    return %c0_i32, %c0_i32_0 : i32, i32
  }
  func.func @transform_5(%arg0: i32) -> (i32, i32, i32, i32) {
    %c0_i32 = arith.constant 0 : i32
    %c0_i32_0 = arith.constant 0 : i32
    %c0_i32_1 = arith.constant 0 : i32
    %c0_i32_2 = arith.constant 0 : i32
    return %arg0, %c0_i32, %c0_i32_0, %c0_i32_1 : i32, i32, i32, i32
  }
}

module attributes {stable_mosaic.version = 11 : i64} {
  func.func @kern(%arg0: i32, %arg1: memref<4x2x4x4xbf16, #tpu.memory_space<vmem>>, %arg2: memref<4x2x4x4xbf16, #tpu.memory_space<vmem>>, %arg3: memref<4x2x4x4xbf16, #tpu.memory_space<vmem>>, %arg4: memref<2x4x4xf32, #tpu.memory_space<vmem>>, %arg5: memref<2x1xf32, #tpu.memory_space<vmem>>, %arg6: memref<4x4x4xf32, #tpu.memory_space<vmem>>, %arg7: memref<4x2x4x4xf32, #tpu.memory_space<vmem>>) attributes {dimension_semantics = [#tpu.dimension_semantics<parallel>], iteration_bounds = array<i64: 2>, scalar_prefetch = 0 : i64, scratch_operands = 0 : i64, tpu.core_type = #tpu.core_type<tc>, window_params = [{transform_indices = @transform_0, window_bounds = array<i64: 4, 2, 4, 4>}, {transform_indices = @transform_1, window_bounds = array<i64: 4, 2, 4, 4>}, {transform_indices = @transform_2, window_bounds = array<i64: 4, 2, 4, 4>}, {pipeline_mode = #tpu.pipeline_mode<synchronous>, transform_indices = @transform_3, window_bounds = array<i64: 2, 4, 4>}, {pipeline_mode = #tpu.pipeline_mode<synchronous>, transform_indices = @transform_4, window_bounds = array<i64: 2, 1>}, {pipeline_mode = #tpu.pipeline_mode<synchronous>, transform_indices = @transform_5, window_bounds = array<i64: 4, 4, 4>}, {transform_indices = @transform_6, window_bounds = array<i64: 4, 2, 4, 4>}]} {
    %c0 = arith.constant 0 : index
    %c0_0 = arith.constant 0 : index
    %c0_1 = arith.constant 0 : index
    %c0_2 = arith.constant 0 : index
    %0 = vector.load %arg1[%c0, %c0_0, %c0_1, %c0_2] : memref<4x2x4x4xbf16, #tpu.memory_space<vmem>>, vector<4x2x4x4xbf16>
    %c0_3 = arith.constant 0 : index
    %c0_4 = arith.constant 0 : index
    %c0_5 = arith.constant 0 : index
    %c0_6 = arith.constant 0 : index
    %1 = vector.load %arg2[%c0_3, %c0_4, %c0_5, %c0_6] : memref<4x2x4x4xbf16, #tpu.memory_space<vmem>>, vector<4x2x4x4xbf16>
    %c0_7 = arith.constant 0 : index
    %c0_8 = arith.constant 0 : index
    %c0_9 = arith.constant 0 : index
    %c0_10 = arith.constant 0 : index
    %2 = vector.load %arg3[%c0_7, %c0_8, %c0_9, %c0_10] : memref<4x2x4x4xbf16, #tpu.memory_space<vmem>>, vector<4x2x4x4xbf16>
    %c0_11 = arith.constant 0 : index
    %c0_12 = arith.constant 0 : index
    %c0_13 = arith.constant 0 : index
    %3 = vector.load %arg4[%c0_11, %c0_12, %c0_13] : memref<2x4x4xf32, #tpu.memory_space<vmem>>, vector<2x4x4xf32>
    %c0_14 = arith.constant 0 : index
    %c0_15 = arith.constant 0 : index
    %4 = vector.load %arg5[%c0_14, %c0_15] : memref<2x1xf32, #tpu.memory_space<vmem>>, vector<2x1xf32>
    %c0_16 = arith.constant 0 : index
    %c0_17 = arith.constant 0 : index
    %c0_18 = arith.constant 0 : index
    %5 = vector.load %arg6[%c0_16, %c0_17, %c0_18] : memref<4x4x4xf32, #tpu.memory_space<vmem>>, vector<4x4x4xf32>
    %6 = vector.extract_strided_slice %0 {offsets = [0, 0, 0, 0], sizes = [4, 1, 4, 4], strides = [1, 1, 1, 1]} : vector<4x2x4x4xbf16> to vector<4x1x4x4xbf16>
    %7 = vector.shape_cast %6 : vector<4x1x4x4xbf16> to vector<4x4x4xbf16>
    %8 = arith.extf %7 : vector<4x4x4xbf16> to vector<4x4x4xf32>
    %9 = vector.extract_strided_slice %1 {offsets = [0, 0, 0, 0], sizes = [4, 1, 4, 4], strides = [1, 1, 1, 1]} : vector<4x2x4x4xbf16> to vector<4x1x4x4xbf16>
    %10 = vector.shape_cast %9 : vector<4x1x4x4xbf16> to vector<4x4x4xbf16>
    %11 = arith.extf %10 : vector<4x4x4xbf16> to vector<4x4x4xf32>
    %12 = arith.mulf %8, %8 : vector<4x4x4xf32>
    %cst = arith.constant dense<0.000000e+00> : vector<4x4xf32>
    %13 = vector.multi_reduction <add>, %12, %cst [2] : vector<4x4x4xf32> to vector<4x4xf32>
    %14 = vector.shape_cast %13 : vector<4x4xf32> to vector<4x4x1xf32>
    %cst_19 = arith.constant 1.000000e-24 : f32
    %15 = vector.broadcast %cst_19 : f32 to vector<4x4x1xf32>
    %16 = arith.maximumf %14, %15 : vector<4x4x1xf32>
    %17 = math.rsqrt %16 : vector<4x4x1xf32>
    %18 = vector.broadcast %17 : vector<4x4x1xf32> to vector<4x4x4xf32>
    %19 = arith.mulf %8, %18 : vector<4x4x4xf32>
    %20 = arith.mulf %11, %11 : vector<4x4x4xf32>
    %cst_20 = arith.constant dense<0.000000e+00> : vector<4x4xf32>
    %21 = vector.multi_reduction <add>, %20, %cst_20 [2] : vector<4x4x4xf32> to vector<4x4xf32>
    %22 = vector.shape_cast %21 : vector<4x4xf32> to vector<4x4x1xf32>
    %cst_21 = arith.constant 1.000000e-24 : f32
    %23 = vector.broadcast %cst_21 : f32 to vector<4x4x1xf32>
    %24 = arith.maximumf %22, %23 : vector<4x4x1xf32>
    %25 = math.rsqrt %24 : vector<4x4x1xf32>
    %26 = vector.broadcast %25 : vector<4x4x1xf32> to vector<4x4x4xf32>
    %27 = arith.mulf %11, %26 : vector<4x4x4xf32>
    %28 = vector.extract_strided_slice %4 {offsets = [0, 0], sizes = [1, 1], strides = [1, 1]} : vector<2x1xf32> to vector<1x1xf32>
    %29 = vector.shape_cast %28 : vector<1x1xf32> to vector<1x1x1xf32>
    %30 = vector.broadcast %29 : vector<1x1x1xf32> to vector<4x4x4xf32>
    %31 = arith.mulf %19, %30 : vector<4x4x4xf32>
    %32 = arith.truncf %31 : vector<4x4x4xf32> to vector<4x4x4xbf16>
    %33 = arith.truncf %27 : vector<4x4x4xf32> to vector<4x4x4xbf16>
    "tpu.trace_start"() <{level = 10 : i32, message = "wnd,wmd->wnm"}> : () -> ()
    %cst_22 = arith.constant dense<0.000000e+00> : vector<4x4x4xf32>
    %34 = tpu.matmul %32, %33, %cst_22 {dimension_numbers = #tpu.dot_dimension_numbers<[2], [2], [1], [1], [0, 0, 0, 1, 1, 1], [0], [0]>} : vector<4x4x4xbf16>, vector<4x4x4xbf16>, vector<4x4x4xf32> -> vector<4x4x4xf32>
    "tpu.trace_stop"() : () -> ()
    %35 = vector.extract_strided_slice %3 {offsets = [0, 0, 0], sizes = [1, 4, 4], strides = [1, 1, 1]} : vector<2x4x4xf32> to vector<1x4x4xf32>
    %36 = vector.shape_cast %35 : vector<1x4x4xf32> to vector<4x4xf32>
    %37 = vector.shape_cast %36 : vector<4x4xf32> to vector<1x4x4xf32>
    %38 = vector.broadcast %37 : vector<1x4x4xf32> to vector<4x4x4xf32>
    %39 = arith.addf %34, %38 : vector<4x4x4xf32>
    %40 = arith.addf %39, %5 : vector<4x4x4xf32>
    %cst_23 = arith.constant dense<0xFF800000> : vector<4x4xf32>
    %41 = vector.multi_reduction <maximumf>, %40, %cst_23 [2] : vector<4x4x4xf32> to vector<4x4xf32>
    %42 = vector.shape_cast %41 : vector<4x4xf32> to vector<4x4x1xf32>
    %43 = vector.broadcast %42 : vector<4x4x1xf32> to vector<4x4x4xf32>
    %44 = arith.subf %40, %43 : vector<4x4x4xf32>
    %45 = math.exp %44 : vector<4x4x4xf32>
    %cst_24 = arith.constant dense<0.000000e+00> : vector<4x4xf32>
    %46 = vector.multi_reduction <add>, %45, %cst_24 [2] : vector<4x4x4xf32> to vector<4x4xf32>
    %47 = vector.shape_cast %46 : vector<4x4xf32> to vector<4x4x1xf32>
    %48 = tpu.reciprocal %47 {approx = true} : vector<4x4x1xf32> -> vector<4x4x1xf32>
    %49 = vector.broadcast %48 : vector<4x4x1xf32> to vector<4x4x4xf32>
    %50 = arith.mulf %45, %49 : vector<4x4x4xf32>
    %51 = arith.truncf %50 : vector<4x4x4xf32> to vector<4x4x4xbf16>
    %52 = vector.extract_strided_slice %2 {offsets = [0, 0, 0, 0], sizes = [4, 1, 4, 4], strides = [1, 1, 1, 1]} : vector<4x2x4x4xbf16> to vector<4x1x4x4xbf16>
    %53 = vector.shape_cast %52 : vector<4x1x4x4xbf16> to vector<4x4x4xbf16>
    "tpu.trace_start"() <{level = 10 : i32, message = "wnm,wmd->wnd"}> : () -> ()
    %cst_25 = arith.constant dense<0.000000e+00> : vector<4x4x4xf32>
    %54 = tpu.matmul %51, %53, %cst_25 {dimension_numbers = #tpu.dot_dimension_numbers<[2], [1], [1], [2], [0, 0, 0, 1, 1, 2], [0], [0]>} : vector<4x4x4xbf16>, vector<4x4x4xbf16>, vector<4x4x4xf32> -> vector<4x4x4xf32>
    "tpu.trace_stop"() : () -> ()
    %c0_26 = arith.constant 0 : index
    %c0_27 = arith.constant 0 : index
    %c0_28 = arith.constant 0 : index
    %c0_29 = arith.constant 0 : index
    %55 = vector.load %arg7[%c0_26, %c0_27, %c0_28, %c0_29] : memref<4x2x4x4xf32, #tpu.memory_space<vmem>>, vector<4x1x4x4xf32>
    %56 = vector.shape_cast %55 : vector<4x1x4x4xf32> to vector<4x4x4xf32>
    %57 = vector.shape_cast %54 : vector<4x4x4xf32> to vector<4x1x4x4xf32>
    tpu.vector_store %arg7[%c0_26, %c0_27, %c0_28, %c0_29], %57 {strides = array<i32>} : memref<4x2x4x4xf32, #tpu.memory_space<vmem>>, vector<4x1x4x4xf32>,
    %58 = vector.extract_strided_slice %0 {offsets = [0, 1, 0, 0], sizes = [4, 1, 4, 4], strides = [1, 1, 1, 1]} : vector<4x2x4x4xbf16> to vector<4x1x4x4xbf16>
    %59 = vector.shape_cast %58 : vector<4x1x4x4xbf16> to vector<4x4x4xbf16>
    %60 = arith.extf %59 : vector<4x4x4xbf16> to vector<4x4x4xf32>
    %61 = vector.extract_strided_slice %1 {offsets = [0, 1, 0, 0], sizes = [4, 1, 4, 4], strides = [1, 1, 1, 1]} : vector<4x2x4x4xbf16> to vector<4x1x4x4xbf16>
    %62 = vector.shape_cast %61 : vector<4x1x4x4xbf16> to vector<4x4x4xbf16>
    %63 = arith.extf %62 : vector<4x4x4xbf16> to vector<4x4x4xf32>
    %64 = arith.mulf %60, %60 : vector<4x4x4xf32>
    %cst_30 = arith.constant dense<0.000000e+00> : vector<4x4xf32>
    %65 = vector.multi_reduction <add>, %64, %cst_30 [2] : vector<4x4x4xf32> to vector<4x4xf32>
    %66 = vector.shape_cast %65 : vector<4x4xf32> to vector<4x4x1xf32>
    %cst_31 = arith.constant 1.000000e-24 : f32
    %67 = vector.broadcast %cst_31 : f32 to vector<4x4x1xf32>
    %68 = arith.maximumf %66, %67 : vector<4x4x1xf32>
    %69 = math.rsqrt %68 : vector<4x4x1xf32>
    %70 = vector.broadcast %69 : vector<4x4x1xf32> to vector<4x4x4xf32>
    %71 = arith.mulf %60, %70 : vector<4x4x4xf32>
    %72 = arith.mulf %63, %63 : vector<4x4x4xf32>
    %cst_32 = arith.constant dense<0.000000e+00> : vector<4x4xf32>
    %73 = vector.multi_reduction <add>, %72, %cst_32 [2] : vector<4x4x4xf32> to vector<4x4xf32>
    %74 = vector.shape_cast %73 : vector<4x4xf32> to vector<4x4x1xf32>
    %cst_33 = arith.constant 1.000000e-24 : f32
    %75 = vector.broadcast %cst_33 : f32 to vector<4x4x1xf32>
    %76 = arith.maximumf %74, %75 : vector<4x4x1xf32>
    %77 = math.rsqrt %76 : vector<4x4x1xf32>
    %78 = vector.broadcast %77 : vector<4x4x1xf32> to vector<4x4x4xf32>
    %79 = arith.mulf %63, %78 : vector<4x4x4xf32>
    %80 = vector.extract_strided_slice %4 {offsets = [1, 0], sizes = [1, 1], strides = [1, 1]} : vector<2x1xf32> to vector<1x1xf32>
    %81 = vector.shape_cast %80 : vector<1x1xf32> to vector<1x1x1xf32>
    %82 = vector.broadcast %81 : vector<1x1x1xf32> to vector<4x4x4xf32>
    %83 = arith.mulf %71, %82 : vector<4x4x4xf32>
    %84 = arith.truncf %83 : vector<4x4x4xf32> to vector<4x4x4xbf16>
    %85 = arith.truncf %79 : vector<4x4x4xf32> to vector<4x4x4xbf16>
    "tpu.trace_start"() <{level = 10 : i32, message = "wnd,wmd->wnm"}> : () -> ()
    %cst_34 = arith.constant dense<0.000000e+00> : vector<4x4x4xf32>
    %86 = tpu.matmul %84, %85, %cst_34 {dimension_numbers = #tpu.dot_dimension_numbers<[2], [2], [1], [1], [0, 0, 0, 1, 1, 1], [0], [0]>} : vector<4x4x4xbf16>, vector<4x4x4xbf16>, vector<4x4x4xf32> -> vector<4x4x4xf32>
    "tpu.trace_stop"() : () -> ()
    %87 = vector.extract_strided_slice %3 {offsets = [1, 0, 0], sizes = [1, 4, 4], strides = [1, 1, 1]} : vector<2x4x4xf32> to vector<1x4x4xf32>
    %88 = vector.shape_cast %87 : vector<1x4x4xf32> to vector<4x4xf32>
    %89 = vector.shape_cast %88 : vector<4x4xf32> to vector<1x4x4xf32>
    %90 = vector.broadcast %89 : vector<1x4x4xf32> to vector<4x4x4xf32>
    %91 = arith.addf %86, %90 : vector<4x4x4xf32>
    %92 = arith.addf %91, %5 : vector<4x4x4xf32>
    %cst_35 = arith.constant dense<0xFF800000> : vector<4x4xf32>
    %93 = vector.multi_reduction <maximumf>, %92, %cst_35 [2] : vector<4x4x4xf32> to vector<4x4xf32>
    %94 = vector.shape_cast %93 : vector<4x4xf32> to vector<4x4x1xf32>
    %95 = vector.broadcast %94 : vector<4x4x1xf32> to vector<4x4x4xf32>
    %96 = arith.subf %92, %95 : vector<4x4x4xf32>
    %97 = math.exp %96 : vector<4x4x4xf32>
    %cst_36 = arith.constant dense<0.000000e+00> : vector<4x4xf32>
    %98 = vector.multi_reduction <add>, %97, %cst_36 [2] : vector<4x4x4xf32> to vector<4x4xf32>
    %99 = vector.shape_cast %98 : vector<4x4xf32> to vector<4x4x1xf32>
    %100 = tpu.reciprocal %99 {approx = true} : vector<4x4x1xf32> -> vector<4x4x1xf32>
    %101 = vector.broadcast %100 : vector<4x4x1xf32> to vector<4x4x4xf32>
    %102 = arith.mulf %97, %101 : vector<4x4x4xf32>
    %103 = arith.truncf %102 : vector<4x4x4xf32> to vector<4x4x4xbf16>
    %104 = vector.extract_strided_slice %2 {offsets = [0, 1, 0, 0], sizes = [4, 1, 4, 4], strides = [1, 1, 1, 1]} : vector<4x2x4x4xbf16> to vector<4x1x4x4xbf16>
    %105 = vector.shape_cast %104 : vector<4x1x4x4xbf16> to vector<4x4x4xbf16>
    "tpu.trace_start"() <{level = 10 : i32, message = "wnm,wmd->wnd"}> : () -> ()
    %cst_37 = arith.constant dense<0.000000e+00> : vector<4x4x4xf32>
    %106 = tpu.matmul %103, %105, %cst_37 {dimension_numbers = #tpu.dot_dimension_numbers<[2], [1], [1], [2], [0, 0, 0, 1, 1, 2], [0], [0]>} : vector<4x4x4xbf16>, vector<4x4x4xbf16>, vector<4x4x4xf32> -> vector<4x4x4xf32>
    "tpu.trace_stop"() : () -> ()
    %c0_38 = arith.constant 0 : index
    %c1 = arith.constant 1 : index
    %c0_39 = arith.constant 0 : index
    %c0_40 = arith.constant 0 : index
    %107 = vector.load %arg7[%c0_38, %c1, %c0_39, %c0_40] : memref<4x2x4x4xf32, #tpu.memory_space<vmem>>, vector<4x1x4x4xf32>
    %108 = vector.shape_cast %107 : vector<4x1x4x4xf32> to vector<4x4x4xf32>
    %109 = vector.shape_cast %106 : vector<4x4x4xf32> to vector<4x1x4x4xf32>
    tpu.vector_store %arg7[%c0_38, %c1, %c0_39, %c0_40], %109 {strides = array<i32>} : memref<4x2x4x4xf32, #tpu.memory_space<vmem>>, vector<4x1x4x4xf32>,
    return
  }
  func.func @transform_0(%arg0: i32) -> (i32, i32, i32, i32) {
    %c0_i32 = arith.constant 0 : i32
    %c0_i32_0 = arith.constant 0 : i32
    %c0_i32_1 = arith.constant 0 : i32
    %c0_i32_2 = arith.constant 0 : i32
    return %arg0, %c0_i32, %c0_i32_0, %c0_i32_1 : i32, i32, i32, i32
  }
  func.func @transform_1(%arg0: i32) -> (i32, i32, i32, i32) {
    %c0_i32 = arith.constant 0 : i32
    %c0_i32_0 = arith.constant 0 : i32
    %c0_i32_1 = arith.constant 0 : i32
    %c0_i32_2 = arith.constant 0 : i32
    return %arg0, %c0_i32, %c0_i32_0, %c0_i32_1 : i32, i32, i32, i32
  }
  func.func @transform_2(%arg0: i32) -> (i32, i32, i32, i32) {
    %c0_i32 = arith.constant 0 : i32
    %c0_i32_0 = arith.constant 0 : i32
    %c0_i32_1 = arith.constant 0 : i32
    %c0_i32_2 = arith.constant 0 : i32
    return %arg0, %c0_i32, %c0_i32_0, %c0_i32_1 : i32, i32, i32, i32
  }
  func.func @transform_3(%arg0: i32) -> (i32, i32, i32) {
    %c0_i32 = arith.constant 0 : i32
    %c0_i32_0 = arith.constant 0 : i32
    %c0_i32_1 = arith.constant 0 : i32
    %c0_i32_2 = arith.constant 0 : i32
    return %c0_i32, %c0_i32_0, %c0_i32_1 : i32, i32, i32
  }
  func.func @transform_4(%arg0: i32) -> (i32, i32) {
    %c0_i32 = arith.constant 0 : i32
    %c0_i32_0 = arith.constant 0 : i32
    %c0_i32_1 = arith.constant 0 : i32
    return %c0_i32, %c0_i32_0 : i32, i32
  }
  func.func @transform_5(%arg0: i32) -> (i32, i32, i32) {
    %c0_i32 = arith.constant 0 : i32
    %c0_i32_0 = arith.constant 0 : i32
    %c0_i32_1 = arith.constant 0 : i32
    %c0_i32_2 = arith.constant 0 : i32
    return %c0_i32, %c0_i32_0, %c0_i32_1 : i32, i32, i32
  }
  func.func @transform_6(%arg0: i32) -> (i32, i32, i32, i32) {
    %c0_i32 = arith.constant 0 : i32
    %c0_i32_0 = arith.constant 0 : i32
    %c0_i32_1 = arith.constant 0 : i32
    %c0_i32_2 = arith.constant 0 : i32
    return %arg0, %c0_i32, %c0_i32_0, %c0_i32_1 : i32, i32, i32, i32
  }
}

module attributes {stable_mosaic.version = 11 : i64} {
  func.func @kern(%arg0: i32, %arg1: memref<8x16xbf16, #tpu.memory_space<vmem>>, %arg2: memref<16x16xbf16, #tpu.memory_space<vmem>>, %arg3: memref<1x16xf32, #tpu.memory_space<vmem>>, %arg4: memref<1x16xf32, #tpu.memory_space<vmem>>, %arg5: memref<1x16xf32, #tpu.memory_space<vmem>>, %arg6: memref<8x16xf32, #tpu.memory_space<vmem>>) attributes {dimension_semantics = [#tpu.dimension_semantics<parallel>], iteration_bounds = array<i64: 1>, scalar_prefetch = 0 : i64, scratch_operands = 0 : i64, tpu.core_type = #tpu.core_type<tc>, window_params = [{transform_indices = @transform_0, window_bounds = array<i64: 8, 16>}, {pipeline_mode = #tpu.pipeline_mode<synchronous>, transform_indices = @transform_1, window_bounds = array<i64: 16, 16>}, {pipeline_mode = #tpu.pipeline_mode<synchronous>, transform_indices = @transform_2, window_bounds = array<i64: 1, 16>}, {pipeline_mode = #tpu.pipeline_mode<synchronous>, transform_indices = @transform_3, window_bounds = array<i64: 1, 16>}, {pipeline_mode = #tpu.pipeline_mode<synchronous>, transform_indices = @transform_4, window_bounds = array<i64: 1, 16>}, {transform_indices = @transform_5, window_bounds = array<i64: 8, 16>}]} {
    %c0 = arith.constant 0 : index
    %c0_0 = arith.constant 0 : index
    %0 = vector.load %arg1[%c0, %c0_0] : memref<8x16xbf16, #tpu.memory_space<vmem>>, vector<8x16xbf16>
    %c0_1 = arith.constant 0 : index
    %c0_2 = arith.constant 0 : index
    %1 = vector.load %arg2[%c0_1, %c0_2] : memref<16x16xbf16, #tpu.memory_space<vmem>>, vector<16x16xbf16>
    %cst = arith.constant dense<0.000000e+00> : vector<8x16xf32>
    %2 = tpu.matmul %0, %1, %cst {dimension_numbers = #tpu.dot_dimension_numbers<[1], [0], [0], [1], [0, 0, 1, 1], [], []>} : vector<8x16xbf16>, vector<16x16xbf16>, vector<8x16xf32> -> vector<8x16xf32>
    %c0_3 = arith.constant 0 : index
    %c0_4 = arith.constant 0 : index
    %3 = vector.load %arg3[%c0_3, %c0_4] : memref<1x16xf32, #tpu.memory_space<vmem>>, vector<1x16xf32>
    %4 = vector.broadcast %3 : vector<1x16xf32> to vector<8x16xf32>
    %5 = arith.addf %2, %4 : vector<8x16xf32>
    %cst_5 = arith.constant dense<0.000000e+00> : vector<8xf32>
    %6 = vector.multi_reduction <add>, %5, %cst_5 [1] : vector<8x16xf32> to vector<8xf32>
    %7 = vector.shape_cast %6 : vector<8xf32> to vector<8x1xf32>
    %cst_6 = arith.constant 1.600000e+01 : f32
    %8 = vector.broadcast %cst_6 : f32 to vector<8x1xf32>
    %9 = arith.divf %7, %8 : vector<8x1xf32>
    %10 = vector.broadcast %9 : vector<8x1xf32> to vector<8x16xf32>
    %11 = arith.subf %5, %10 : vector<8x16xf32>
    %12 = arith.mulf %11, %11 : vector<8x16xf32>
    %cst_7 = arith.constant dense<0.000000e+00> : vector<8xf32>
    %13 = vector.multi_reduction <add>, %12, %cst_7 [1] : vector<8x16xf32> to vector<8xf32>
    %14 = vector.shape_cast %13 : vector<8xf32> to vector<8x1xf32>
    %cst_8 = arith.constant 1.600000e+01 : f32
    %15 = vector.broadcast %cst_8 : f32 to vector<8x1xf32>
    %16 = arith.divf %14, %15 : vector<8x1xf32>
    %17 = vector.broadcast %9 : vector<8x1xf32> to vector<8x16xf32>
    %18 = arith.subf %5, %17 : vector<8x16xf32>
    %cst_9 = arith.constant 9.99999974E-6 : f32
    %19 = vector.broadcast %cst_9 : f32 to vector<8x1xf32>
    %20 = arith.addf %16, %19 : vector<8x1xf32>
    %21 = math.rsqrt %20 : vector<8x1xf32>
    %22 = vector.broadcast %21 : vector<8x1xf32> to vector<8x16xf32>
    %23 = arith.mulf %18, %22 : vector<8x16xf32>
    %c0_10 = arith.constant 0 : index
    %c0_11 = arith.constant 0 : index
    %24 = vector.load %arg4[%c0_10, %c0_11] : memref<1x16xf32, #tpu.memory_space<vmem>>, vector<1x16xf32>
    %25 = vector.broadcast %24 : vector<1x16xf32> to vector<8x16xf32>
    %26 = arith.mulf %23, %25 : vector<8x16xf32>
    %c0_12 = arith.constant 0 : index
    %c0_13 = arith.constant 0 : index
    %27 = vector.load %arg5[%c0_12, %c0_13] : memref<1x16xf32, #tpu.memory_space<vmem>>, vector<1x16xf32>
    %28 = vector.broadcast %27 : vector<1x16xf32> to vector<8x16xf32>
    %29 = arith.addf %26, %28 : vector<8x16xf32>
    %c0_14 = arith.constant 0 : index
    %c0_15 = arith.constant 0 : index
    %30 = vector.load %arg6[%c0_14, %c0_15] : memref<8x16xf32, #tpu.memory_space<vmem>>, vector<8x16xf32>
    tpu.vector_store %arg6[%c0_14, %c0_15], %29 {strides = array<i32>} : memref<8x16xf32, #tpu.memory_space<vmem>>, vector<8x16xf32>,
    return
  }
  func.func @transform_0(%arg0: i32) -> (i32, i32) {
    %c0_i32 = arith.constant 0 : i32
    %c0_i32_0 = arith.constant 0 : i32
    return %arg0, %c0_i32 : i32, i32
  }
  func.func @transform_1(%arg0: i32) -> (i32, i32) {
    %c0_i32 = arith.constant 0 : i32
    %c0_i32_0 = arith.constant 0 : i32
    %c0_i32_1 = arith.constant 0 : i32
    return %c0_i32, %c0_i32_0 : i32, i32
  }
  func.func @transform_2(%arg0: i32) -> (i32, i32) {
    %c0_i32 = arith.constant 0 : i32
    %c0_i32_0 = arith.constant 0 : i32
    %c0_i32_1 = arith.constant 0 : i32
    return %c0_i32, %c0_i32_0 : i32, i32
  }
  func.func @transform_3(%arg0: i32) -> (i32, i32) {
    %c0_i32 = arith.constant 0 : i32
    %c0_i32_0 = arith.constant 0 : i32
    %c0_i32_1 = arith.constant 0 : i32
    return %c0_i32, %c0_i32_0 : i32, i32
  }
  func.func @transform_4(%arg0: i32) -> (i32, i32) {
    %c0_i32 = arith.constant 0 : i32
    %c0_i32_0 = arith.constant 0 : i32
    %c0_i32_1 = arith.constant 0 : i32
    return %c0_i32, %c0_i32_0 : i32, i32
  }
  func.func @transform_5(%arg0: i32) -> (i32, i32) {
    %c0_i32 = arith.constant 0 : i32
    %c0_i32_0 = arith.constant 0 : i32
    return %arg0, %c0_i32 : i32, i32
  }
}

module attributes {stable_mosaic.version = 11 : i64} {
  func.func @kern(%arg0: i32, %arg1: memref<8x16xf32, #tpu.memory_space<vmem>>, %arg2: memref<16x64xbf16, #tpu.memory_space<vmem>>, %arg3: memref<1x64xf32, #tpu.memory_space<vmem>>, %arg4: memref<64x16xbf16, #tpu.memory_space<vmem>>, %arg5: memref<1x16xf32, #tpu.memory_space<vmem>>, %arg6: memref<1x16xf32, #tpu.memory_space<vmem>>, %arg7: memref<1x16xf32, #tpu.memory_space<vmem>>, %arg8: memref<8x16xf32, #tpu.memory_space<vmem>>) attributes {dimension_semantics = [#tpu.dimension_semantics<parallel>], iteration_bounds = array<i64: 1>, scalar_prefetch = 0 : i64, scratch_operands = 0 : i64, tpu.core_type = #tpu.core_type<tc>, window_params = [{transform_indices = @transform_0, window_bounds = array<i64: 8, 16>}, {pipeline_mode = #tpu.pipeline_mode<synchronous>, transform_indices = @transform_1, window_bounds = array<i64: 16, 64>}, {pipeline_mode = #tpu.pipeline_mode<synchronous>, transform_indices = @transform_2, window_bounds = array<i64: 1, 64>}, {pipeline_mode = #tpu.pipeline_mode<synchronous>, transform_indices = @transform_3, window_bounds = array<i64: 64, 16>}, {pipeline_mode = #tpu.pipeline_mode<synchronous>, transform_indices = @transform_4, window_bounds = array<i64: 1, 16>}, {pipeline_mode = #tpu.pipeline_mode<synchronous>, transform_indices = @transform_5, window_bounds = array<i64: 1, 16>}, {pipeline_mode = #tpu.pipeline_mode<synchronous>, transform_indices = @transform_6, window_bounds = array<i64: 1, 16>}, {transform_indices = @transform_7, window_bounds = array<i64: 8, 16>}]} {
    %c0 = arith.constant 0 : index
    %c0_0 = arith.constant 0 : index
    %0 = vector.load %arg1[%c0, %c0_0] : memref<8x16xf32, #tpu.memory_space<vmem>>, vector<8x16xf32>
    %1 = arith.truncf %0 : vector<8x16xf32> to vector<8x16xbf16>
    %c0_1 = arith.constant 0 : index
    %c0_2 = arith.constant 0 : index
    %2 = vector.load %arg2[%c0_1, %c0_2] : memref<16x64xbf16, #tpu.memory_space<vmem>>, vector<16x64xbf16>
    %cst = arith.constant dense<0.000000e+00> : vector<8x64xf32>
    %3 = tpu.matmul %1, %2, %cst {dimension_numbers = #tpu.dot_dimension_numbers<[1], [0], [0], [1], [0, 0, 1, 1], [], []>} : vector<8x16xbf16>, vector<16x64xbf16>, vector<8x64xf32> -> vector<8x64xf32>
    %c0_3 = arith.constant 0 : index
    %c0_4 = arith.constant 0 : index
    %4 = vector.load %arg3[%c0_3, %c0_4] : memref<1x64xf32, #tpu.memory_space<vmem>>, vector<1x64xf32>
    %5 = vector.broadcast %4 : vector<1x64xf32> to vector<8x64xf32>
    %6 = arith.addf %3, %5 : vector<8x64xf32>
    %cst_5 = arith.constant 5.000000e-01 : f32
    %7 = vector.broadcast %cst_5 : f32 to vector<8x64xf32>
    %8 = arith.mulf %7, %6 : vector<8x64xf32>
    %cst_6 = arith.constant 4.471500e-02 : f32
    %9 = vector.broadcast %cst_6 : f32 to vector<8x64xf32>
    %10 = arith.mulf %9, %6 : vector<8x64xf32>
    %11 = arith.mulf %10, %6 : vector<8x64xf32>
    %12 = arith.mulf %11, %6 : vector<8x64xf32>
    %13 = arith.addf %6, %12 : vector<8x64xf32>
    %cst_7 = arith.constant 0.797884583 : f32
    %14 = vector.broadcast %cst_7 : f32 to vector<8x64xf32>
    %15 = arith.mulf %14, %13 : vector<8x64xf32>
    %16 = math.tanh %15 : vector<8x64xf32>
    %cst_8 = arith.constant 1.000000e+00 : f32
    %17 = vector.broadcast %cst_8 : f32 to vector<8x64xf32>
    %18 = arith.addf %17, %16 : vector<8x64xf32>
    %19 = arith.mulf %8, %18 : vector<8x64xf32>
    %20 = arith.truncf %19 : vector<8x64xf32> to vector<8x64xbf16>
    %c0_9 = arith.constant 0 : index
    %c0_10 = arith.constant 0 : index
    %21 = vector.load %arg4[%c0_9, %c0_10] : memref<64x16xbf16, #tpu.memory_space<vmem>>, vector<64x16xbf16>
    %cst_11 = arith.constant dense<0.000000e+00> : vector<8x16xf32>
    %22 = tpu.matmul %20, %21, %cst_11 {dimension_numbers = #tpu.dot_dimension_numbers<[1], [0], [0], [1], [0, 0, 1, 1], [], []>} : vector<8x64xbf16>, vector<64x16xbf16>, vector<8x16xf32> -> vector<8x16xf32>
    %c0_12 = arith.constant 0 : index
    %c0_13 = arith.constant 0 : index
    %23 = vector.load %arg5[%c0_12, %c0_13] : memref<1x16xf32, #tpu.memory_space<vmem>>, vector<1x16xf32>
    %24 = vector.broadcast %23 : vector<1x16xf32> to vector<8x16xf32>
    %25 = arith.addf %22, %24 : vector<8x16xf32>
    %cst_14 = arith.constant dense<0.000000e+00> : vector<8xf32>
    %26 = vector.multi_reduction <add>, %25, %cst_14 [1] : vector<8x16xf32> to vector<8xf32>
    %27 = vector.shape_cast %26 : vector<8xf32> to vector<8x1xf32>
    %cst_15 = arith.constant 1.600000e+01 : f32
    %28 = vector.broadcast %cst_15 : f32 to vector<8x1xf32>
    %29 = arith.divf %27, %28 : vector<8x1xf32>
    %30 = vector.broadcast %29 : vector<8x1xf32> to vector<8x16xf32>
    %31 = arith.subf %25, %30 : vector<8x16xf32>
    %32 = arith.mulf %31, %31 : vector<8x16xf32>
    %cst_16 = arith.constant dense<0.000000e+00> : vector<8xf32>
    %33 = vector.multi_reduction <add>, %32, %cst_16 [1] : vector<8x16xf32> to vector<8xf32>
    %34 = vector.shape_cast %33 : vector<8xf32> to vector<8x1xf32>
    %cst_17 = arith.constant 1.600000e+01 : f32
    %35 = vector.broadcast %cst_17 : f32 to vector<8x1xf32>
    %36 = arith.divf %34, %35 : vector<8x1xf32>
    %37 = vector.broadcast %29 : vector<8x1xf32> to vector<8x16xf32>
    %38 = arith.subf %25, %37 : vector<8x16xf32>
    %cst_18 = arith.constant 9.99999974E-6 : f32
    %39 = vector.broadcast %cst_18 : f32 to vector<8x1xf32>
    %40 = arith.addf %36, %39 : vector<8x1xf32>
    %41 = math.rsqrt %40 : vector<8x1xf32>
    %42 = vector.broadcast %41 : vector<8x1xf32> to vector<8x16xf32>
    %43 = arith.mulf %38, %42 : vector<8x16xf32>
    %c0_19 = arith.constant 0 : index
    %c0_20 = arith.constant 0 : index
    %44 = vector.load %arg6[%c0_19, %c0_20] : memref<1x16xf32, #tpu.memory_space<vmem>>, vector<1x16xf32>
    %45 = vector.broadcast %44 : vector<1x16xf32> to vector<8x16xf32>
    %46 = arith.mulf %43, %45 : vector<8x16xf32>
    %c0_21 = arith.constant 0 : index
    %c0_22 = arith.constant 0 : index
    %47 = vector.load %arg7[%c0_21, %c0_22] : memref<1x16xf32, #tpu.memory_space<vmem>>, vector<1x16xf32>
    %48 = vector.broadcast %47 : vector<1x16xf32> to vector<8x16xf32>
    %49 = arith.addf %46, %48 : vector<8x16xf32>
    %50 = arith.addf %0, %49 : vector<8x16xf32>
    %c0_23 = arith.constant 0 : index
    %c0_24 = arith.constant 0 : index
    %51 = vector.load %arg8[%c0_23, %c0_24] : memref<8x16xf32, #tpu.memory_space<vmem>>, vector<8x16xf32>
    tpu.vector_store %arg8[%c0_23, %c0_24], %50 {strides = array<i32>} : memref<8x16xf32, #tpu.memory_space<vmem>>, vector<8x16xf32>,
    return
  }
  func.func @transform_0(%arg0: i32) -> (i32, i32) {
    %c0_i32 = arith.constant 0 : i32
    %c0_i32_0 = arith.constant 0 : i32
    return %arg0, %c0_i32 : i32, i32
  }
  func.func @transform_1(%arg0: i32) -> (i32, i32) {
    %c0_i32 = arith.constant 0 : i32
    %c0_i32_0 = arith.constant 0 : i32
    %c0_i32_1 = arith.constant 0 : i32
    return %c0_i32, %c0_i32_0 : i32, i32
  }
  func.func @transform_2(%arg0: i32) -> (i32, i32) {
    %c0_i32 = arith.constant 0 : i32
    %c0_i32_0 = arith.constant 0 : i32
    %c0_i32_1 = arith.constant 0 : i32
    return %c0_i32, %c0_i32_0 : i32, i32
  }
  func.func @transform_3(%arg0: i32) -> (i32, i32) {
    %c0_i32 = arith.constant 0 : i32
    %c0_i32_0 = arith.constant 0 : i32
    %c0_i32_1 = arith.constant 0 : i32
    return %c0_i32, %c0_i32_0 : i32, i32
  }
  func.func @transform_4(%arg0: i32) -> (i32, i32) {
    %c0_i32 = arith.constant 0 : i32
    %c0_i32_0 = arith.constant 0 : i32
    %c0_i32_1 = arith.constant 0 : i32
    return %c0_i32, %c0_i32_0 : i32, i32
  }
  func.func @transform_5(%arg0: i32) -> (i32, i32) {
    %c0_i32 = arith.constant 0 : i32
    %c0_i32_0 = arith.constant 0 : i32
    %c0_i32_1 = arith.constant 0 : i32
    return %c0_i32, %c0_i32_0 : i32, i32
  }
  func.func @transform_6(%arg0: i32) -> (i32, i32) {
    %c0_i32 = arith.constant 0 : i32
    %c0_i32_0 = arith.constant 0 : i32
    %c0_i32_1 = arith.constant 0 : i32
    return %c0_i32, %c0_i32_0 : i32, i32
  }
  func.func @transform_7(%arg0: i32) -> (i32, i32) {
    %c0_i32 = arith.constant 0 : i32
    %c0_i32_0 = arith.constant 0 : i32
    return %arg0, %c0_i32 : i32, i32
  }
}

module attributes {stable_mosaic.version = 11 : i64} {
  func.func @kern(%arg0: i32, %arg1: memref<8x16xf32, #tpu.memory_space<vmem>>, %arg2: memref<16x64xbf16, #tpu.memory_space<vmem>>, %arg3: memref<1x64xf32, #tpu.memory_space<vmem>>, %arg4: memref<64x16xbf16, #tpu.memory_space<vmem>>, %arg5: memref<1x16xf32, #tpu.memory_space<vmem>>, %arg6: memref<1x16xf32, #tpu.memory_space<vmem>>, %arg7: memref<1x16xf32, #tpu.memory_space<vmem>>, %arg8: memref<8x16xf32, #tpu.memory_space<vmem>>) attributes {dimension_semantics = [#tpu.dimension_semantics<parallel>], iteration_bounds = array<i64: 1>, scalar_prefetch = 0 : i64, scratch_operands = 0 : i64, tpu.core_type = #tpu.core_type<tc>, window_params = [{transform_indices = @transform_0, window_bounds = array<i64: 8, 16>}, {pipeline_mode = #tpu.pipeline_mode<synchronous>, transform_indices = @transform_1, window_bounds = array<i64: 16, 64>}, {pipeline_mode = #tpu.pipeline_mode<synchronous>, transform_indices = @transform_2, window_bounds = array<i64: 1, 64>}, {pipeline_mode = #tpu.pipeline_mode<synchronous>, transform_indices = @transform_3, window_bounds = array<i64: 64, 16>}, {pipeline_mode = #tpu.pipeline_mode<synchronous>, transform_indices = @transform_4, window_bounds = array<i64: 1, 16>}, {pipeline_mode = #tpu.pipeline_mode<synchronous>, transform_indices = @transform_5, window_bounds = array<i64: 1, 16>}, {pipeline_mode = #tpu.pipeline_mode<synchronous>, transform_indices = @transform_6, window_bounds = array<i64: 1, 16>}, {transform_indices = @transform_7, window_bounds = array<i64: 8, 16>}]} {
    %c0 = arith.constant 0 : index
    %c0_0 = arith.constant 0 : index
    %0 = vector.load %arg1[%c0, %c0_0] : memref<8x16xf32, #tpu.memory_space<vmem>>, vector<8x16xf32>
    %1 = arith.truncf %0 : vector<8x16xf32> to vector<8x16xbf16>
    %c0_1 = arith.constant 0 : index
    %c0_2 = arith.constant 0 : index
    %2 = vector.load %arg2[%c0_1, %c0_2] : memref<16x64xbf16, #tpu.memory_space<vmem>>, vector<16x64xbf16>
    %cst = arith.constant dense<0.000000e+00> : vector<8x64xf32>
    %3 = tpu.matmul %1, %2, %cst {dimension_numbers = #tpu.dot_dimension_numbers<[1], [0], [0], [1], [0, 0, 1, 1], [], []>} : vector<8x16xbf16>, vector<16x64xbf16>, vector<8x64xf32> -> vector<8x64xf32>
    %c0_3 = arith.constant 0 : index
    %c0_4 = arith.constant 0 : index
    %4 = vector.load %arg3[%c0_3, %c0_4] : memref<1x64xf32, #tpu.memory_space<vmem>>, vector<1x64xf32>
    %5 = vector.broadcast %4 : vector<1x64xf32> to vector<8x64xf32>
    %6 = arith.addf %3, %5 : vector<8x64xf32>
    %cst_5 = arith.constant 5.000000e-01 : f32
    %7 = vector.broadcast %cst_5 : f32 to vector<8x64xf32>
    %8 = arith.mulf %7, %6 : vector<8x64xf32>
    %cst_6 = arith.constant 4.471500e-02 : f32
    %9 = vector.broadcast %cst_6 : f32 to vector<8x64xf32>
    %10 = arith.mulf %9, %6 : vector<8x64xf32>
    %11 = arith.mulf %10, %6 : vector<8x64xf32>
    %12 = arith.mulf %11, %6 : vector<8x64xf32>
    %13 = arith.addf %6, %12 : vector<8x64xf32>
    %cst_7 = arith.constant 0.797884583 : f32
    %14 = vector.broadcast %cst_7 : f32 to vector<8x64xf32>
    %15 = arith.mulf %14, %13 : vector<8x64xf32>
    %16 = math.tanh %15 : vector<8x64xf32>
    %cst_8 = arith.constant 1.000000e+00 : f32
    %17 = vector.broadcast %cst_8 : f32 to vector<8x64xf32>
    %18 = arith.addf %17, %16 : vector<8x64xf32>
    %19 = arith.mulf %8, %18 : vector<8x64xf32>
    %20 = arith.truncf %19 : vector<8x64xf32> to vector<8x64xbf16>
    %c0_9 = arith.constant 0 : index
    %c0_10 = arith.constant 0 : index
    %21 = vector.load %arg4[%c0_9, %c0_10] : memref<64x16xbf16, #tpu.memory_space<vmem>>, vector<64x16xbf16>
    %cst_11 = arith.constant dense<0.000000e+00> : vector<8x16xf32>
    %22 = tpu.matmul %20, %21, %cst_11 {dimension_numbers = #tpu.dot_dimension_numbers<[1], [0], [0], [1], [0, 0, 1, 1], [], []>} : vector<8x64xbf16>, vector<64x16xbf16>, vector<8x16xf32> -> vector<8x16xf32>
    %c0_12 = arith.constant 0 : index
    %c0_13 = arith.constant 0 : index
    %23 = vector.load %arg5[%c0_12, %c0_13] : memref<1x16xf32, #tpu.memory_space<vmem>>, vector<1x16xf32>
    %24 = vector.broadcast %23 : vector<1x16xf32> to vector<8x16xf32>
    %25 = arith.addf %22, %24 : vector<8x16xf32>
    %cst_14 = arith.constant dense<0.000000e+00> : vector<8xf32>
    %26 = vector.multi_reduction <add>, %25, %cst_14 [1] : vector<8x16xf32> to vector<8xf32>
    %27 = vector.shape_cast %26 : vector<8xf32> to vector<8x1xf32>
    %cst_15 = arith.constant 1.600000e+01 : f32
    %28 = vector.broadcast %cst_15 : f32 to vector<8x1xf32>
    %29 = arith.divf %27, %28 : vector<8x1xf32>
    %30 = vector.broadcast %29 : vector<8x1xf32> to vector<8x16xf32>
    %31 = arith.subf %25, %30 : vector<8x16xf32>
    %32 = arith.mulf %31, %31 : vector<8x16xf32>
    %cst_16 = arith.constant dense<0.000000e+00> : vector<8xf32>
    %33 = vector.multi_reduction <add>, %32, %cst_16 [1] : vector<8x16xf32> to vector<8xf32>
    %34 = vector.shape_cast %33 : vector<8xf32> to vector<8x1xf32>
    %cst_17 = arith.constant 1.600000e+01 : f32
    %35 = vector.broadcast %cst_17 : f32 to vector<8x1xf32>
    %36 = arith.divf %34, %35 : vector<8x1xf32>
    %37 = vector.broadcast %29 : vector<8x1xf32> to vector<8x16xf32>
    %38 = arith.subf %25, %37 : vector<8x16xf32>
    %cst_18 = arith.constant 9.99999974E-6 : f32
    %39 = vector.broadcast %cst_18 : f32 to vector<8x1xf32>
    %40 = arith.addf %36, %39 : vector<8x1xf32>
    %41 = math.rsqrt %40 : vector<8x1xf32>
    %42 = vector.broadcast %41 : vector<8x1xf32> to vector<8x16xf32>
    %43 = arith.mulf %38, %42 : vector<8x16xf32>
    %c0_19 = arith.constant 0 : index
    %c0_20 = arith.constant 0 : index
    %44 = vector.load %arg6[%c0_19, %c0_20] : memref<1x16xf32, #tpu.memory_space<vmem>>, vector<1x16xf32>
    %45 = vector.broadcast %44 : vector<1x16xf32> to vector<8x16xf32>
    %46 = arith.mulf %43, %45 : vector<8x16xf32>
    %c0_21 = arith.constant 0 : index
    %c0_22 = arith.constant 0 : index
    %47 = vector.load %arg7[%c0_21, %c0_22] : memref<1x16xf32, #tpu.memory_space<vmem>>, vector<1x16xf32>
    %48 = vector.broadcast %47 : vector<1x16xf32> to vector<8x16xf32>
    %49 = arith.addf %46, %48 : vector<8x16xf32>
    %50 = arith.addf %0, %49 : vector<8x16xf32>
    %c0_23 = arith.constant 0 : index
    %c0_24 = arith.constant 0 : index
    %51 = vector.load %arg8[%c0_23, %c0_24] : memref<8x16xf32, #tpu.memory_space<vmem>>, vector<8x16xf32>
    tpu.vector_store %arg8[%c0_23, %c0_24], %50 {strides = array<i32>} : memref<8x16xf32, #tpu.memory_space<vmem>>, vector<8x16xf32>,
    return
  }
  func.func @transform_0(%arg0: i32) -> (i32, i32) {
    %c0_i32 = arith.constant 0 : i32
    %c0_i32_0 = arith.constant 0 : i32
    return %arg0, %c0_i32 : i32, i32
  }
  func.func @transform_1(%arg0: i32) -> (i32, i32) {
    %c0_i32 = arith.constant 0 : i32
    %c0_i32_0 = arith.constant 0 : i32
    %c0_i32_1 = arith.constant 0 : i32
    return %c0_i32, %c0_i32_0 : i32, i32
  }
  func.func @transform_2(%arg0: i32) -> (i32, i32) {
    %c0_i32 = arith.constant 0 : i32
    %c0_i32_0 = arith.constant 0 : i32
    %c0_i32_1 = arith.constant 0 : i32
    return %c0_i32, %c0_i32_0 : i32, i32
  }
  func.func @transform_3(%arg0: i32) -> (i32, i32) {
    %c0_i32 = arith.constant 0 : i32
    %c0_i32_0 = arith.constant 0 : i32
    %c0_i32_1 = arith.constant 0 : i32
    return %c0_i32, %c0_i32_0 : i32, i32
  }
  func.func @transform_4(%arg0: i32) -> (i32, i32) {
    %c0_i32 = arith.constant 0 : i32
    %c0_i32_0 = arith.constant 0 : i32
    %c0_i32_1 = arith.constant 0 : i32
    return %c0_i32, %c0_i32_0 : i32, i32
  }
  func.func @transform_5(%arg0: i32) -> (i32, i32) {
    %c0_i32 = arith.constant 0 : i32
    %c0_i32_0 = arith.constant 0 : i32
    %c0_i32_1 = arith.constant 0 : i32
    return %c0_i32, %c0_i32_0 : i32, i32
  }
  func.func @transform_6(%arg0: i32) -> (i32, i32) {
    %c0_i32 = arith.constant 0 : i32
    %c0_i32_0 = arith.constant 0 : i32
    %c0_i32_1 = arith.constant 0 : i32
    return %c0_i32, %c0_i32_0 : i32, i32
  }
  func.func @transform_7(%arg0: i32) -> (i32, i32) {
    %c0_i32 = arith.constant 0 : i32
    %c0_i32_0 = arith.constant 0 : i32
    return %arg0, %c0_i32 : i32, i32
  }
}

</mosaic_0001>

<llo_original>
// kernel: _lambda_.18
$region0: #{_lambda_.18}
  #allocation0 [shape = 'u32[]', space=smem, size = 0x4, offset = 0x4, fixed_abs, tag = 'smem constant byte address 0x4 - core index']
  #allocation1 [shape = 'u32[72,128]{1,0:T(1,128)}', space=vmem, size = 0x9000, scoped, tag = 'internal scratch']
  %s0 = inlined_call_operand.vmem [shape: bf16[32,48], index: 0, kind: input, shape index: {}]
  %s1 = inlined_call_operand.vmem [shape: bf16[48,8], index: 1, kind: input, shape index: {}]
  %s2 = inlined_call_operand.vmem [shape: f32[1,8], index: 2, kind: input, shape index: {}]
  %s3 = inlined_call_operand.vmem [shape: f32[1,8], index: 3, kind: input, shape index: {}]
  %s4 = inlined_call_operand.vmem [shape: f32[1,8], index: 4, kind: input, shape index: {}]
  %s5 = inlined_call_operand.vmem [shape: f32[32,8], index: 5, kind: output, shape index: {}]
  %s6 = sld [smem:[#allocation0]]
  $region30: #{_lambda_.18} parent=0
    _
  %s8 = ssub.s32 1, %s6
  %s9 = scalar_select 0, %s8, %s6
  // Predicated region
  $region2: #{_lambda_.18} parent=0 // pred_check
    _
  $region3: #{_lambda_.18} parent=0 // pred_check_branch
    %11 = sbr.rel (0) target = $region5
  $region4: #{_lambda_.18} parent=0 // pred_region
    _
  $region5: #{_lambda_.18} parent=0 // pred_fallthru
    _
  // Predicated region
  $region6: #{_lambda_.18} parent=0 // pred_check
    _
  $region7: #{_lambda_.18} parent=0 // pred_check_branch
    %13 = sbr.rel (0) target = $region9
  $region8: #{_lambda_.18} parent=0 // pred_region
    _
  $region9: #{_lambda_.18} parent=0 // pred_fallthru
    _
  // Predicated region
  $region10: #{_lambda_.18} parent=0 // pred_check
    _
  $region11: #{_lambda_.18} parent=0 // pred_check_branch
    %15 = sbr.rel (0) target = $region13
  $region12: #{_lambda_.18} parent=0 // pred_region
    _
  $region13: #{_lambda_.18} parent=0 // pred_fallthru
    _
  // Predicated region
  $region14: #{_lambda_.18} parent=0 // pred_check
    _
  $region15: #{_lambda_.18} parent=0 // pred_check_branch
    %17 = sbr.rel (0) target = $region17
  $region16: #{_lambda_.18} parent=0 // pred_region
    _
  $region17: #{_lambda_.18} parent=0 // pred_fallthru
    _
  // Predicated region
  $region18: #{_lambda_.18} parent=0 // pred_check
    _
  $region19: #{_lambda_.18} parent=0 // pred_check_branch
    %19 = sbr.rel (0) target = $region21
  $region20: #{_lambda_.18} parent=0 // pred_region
    _
  $region21: #{_lambda_.18} parent=0 // pred_fallthru
    _
  %v21 = vld [vmem:[%s0] sm:$0xf]
  %v22 = vld [vmem:[%s0 + $0x4] sm:$0xf]
  %v23 = vld [vmem:[%s0 + $0x8] sm:$0xf]
  %v24 = vld [vmem:[%s0 + $0xc] sm:$0xf]
  %v25 = vld [vmem:[%s1] sm:$0xf]
  %v26 = vld [vmem:[%s1 + $0x4] sm:$0xf]
  %v27 = vld [vmem:[%s1 + $0x8] sm:$0xf]
  %v28 = vld [vmem:[%s1 + $0xc] sm:$0xf]
  %v29 = vld [vmem:[%s1 + $0x10] sm:$0xf]
  %v30 = vld [vmem:[%s1 + $0x14] sm:$0xf]
  %v31 = vld [vmem:[%s2] sm:$0x1]
  %v33 = vperm.slane %v31, 0
  %v39 = vunpack.c.l.b16 %v21
  %v40 = vunpack.c.l.b16 %v22
  %v41 = vunpack.c.l.b16 %v23
  %v42 = vunpack.c.l.b16 %v24
  %v43 = vpack.c.b16 %v40, %v39
  %v44 = vpack.c.b16 %v42, %v41
  %v51 = vunpack.c.l.b16 %v25
  %v52 = vunpack.c.l.b16 %v26
  %v53 = vunpack.c.l.b16 %v27
  %v54 = vunpack.c.l.b16 %v28
  %v55 = vunpack.c.l.b16 %v29
  %v56 = vunpack.c.l.b16 %v30
  %v57 = vpack.c.b16 %v52, %v51
  %v58 = vpack.c.b16 %v54, %v53
  %v59 = vpack.c.b16 %v56, %v55
  %vm63 = vcmask 392192
  %v65 = vsel %vm63, %v43, 0
  %v68 = vsel %vm63, %v44, 0
  %70 = vmatpush.bf16.msra.mxu0 0
  %71 = vmatpush.bf16.msra.mxu0 0
  %72 = vmatpush.bf16.msra.mxu0 0
  %73 = vmatpush.bf16.msra.mxu0 0
  %74 = vmatpush.bf16.msra.mxu0 0
  %75 = vmatpush.bf16.msra.mxu0 %v59
  %76 = vmatpush.bf16.msra.mxu0 %v58
  %77 = vmatpush.bf16.msra.mxu0 %v57
  %78 = vmatmul.bf16.gmra.mxu0 %v65
  %v79 = vpop.f32.mrf.mxu0
  %v80 = vadd.f32 %v33, %v79
  %v81 = vpop.f32.mrf.mxu0
  %v82 = vadd.f32 %v33, %v81
  %83 = vmatmul.bf16.gmra.mxu0 %v68
  %v84 = vpop.f32.mrf.mxu0
  %v85 = vadd.f32 %v33, %v84
  %v86 = vpop.f32.mrf.mxu0
  %v87 = vadd.f32 %v33, %v86
  %88 = vdwg.mxu0
  %vm89 = vcmask 64512
  %v90 = vsel %vm89, %v80, 0.0
  %91 = vadd.xlane.f32.xlu0 %v90
  %v92 = vpop.xlane.xlu0 %91
  %v93 = vsel %vm89, %v82, 0.0
  %94 = vadd.xlane.f32.xlu0 %v93
  %v95 = vpop.xlane.xlu0 %94
  %v96 = vsel %vm89, %v85, 0.0
  %97 = vadd.xlane.f32.xlu0 %v96
  %v98 = vpop.xlane.xlu0 %97
  %v99 = vsel %vm89, %v87, 0.0
  %100 = vadd.xlane.f32.xlu0 %v99
  %v101 = vpop.xlane.xlu0 %100
  %v102 = vrcp.pop 8.0
  %v103 = vmul.f32 8.0, %v102
  %v104 = vsub.f32 1.0, %v103
  %v105 = vmul.f32 %v102, %v104
  %v106 = vadd.f32 %v102, %v105
  %vm107 = vweird.f32 %v102
  %v108 = vsel %vm107, %v102, %v106
  %v109 = vmul.f32 %v92, %v108
  %v110 = vmul.f32 %v95, %v108
  %v111 = vmul.f32 %v98, %v108
  %v112 = vmul.f32 %v101, %v108
  %v113 = vsub.f32 %v80, %v109
  %v114 = vsub.f32 %v82, %v110
  %v115 = vsub.f32 %v85, %v111
  %v116 = vsub.f32 %v87, %v112
  %v117 = vmul.f32 %v113, %v113
  %v118 = vmul.f32 %v114, %v114
  %v119 = vmul.f32 %v115, %v115
  %v120 = vmul.f32 %v116, %v116
  %v121 = vsel %vm89, %v117, 0.0
  %122 = vadd.xlane.f32.xlu0 %v121
  %v123 = vpop.xlane.xlu0 %122
  %v124 = vsel %vm89, %v118, 0.0
  %125 = vadd.xlane.f32.xlu0 %v124
  %v126 = vpop.xlane.xlu0 %125
  %v127 = vsel %vm89, %v119, 0.0
  %128 = vadd.xlane.f32.xlu0 %v127
  %v129 = vpop.xlane.xlu0 %128
  %v130 = vsel %vm89, %v120, 0.0
  %131 = vadd.xlane.f32.xlu0 %v130
  %v132 = vpop.xlane.xlu0 %131
  %v133 = vmul.f32 %v123, %v108
  %v134 = vmul.f32 %v126, %v108
  %v135 = vmul.f32 %v129, %v108
  %v136 = vmul.f32 %v132, %v108
  %v137 = vadd.f32 %v133, 1e-05
  %v138 = vadd.f32 %v134, 1e-05
  %v139 = vadd.f32 %v135, 1e-05
  %v140 = vadd.f32 %v136, 1e-05
  %v141 = vrsqrt.pop %v137
  %v142 = vmul.f32 %v141, %v137
  %v143 = vmul.f32 %v142, %v141
  %v144 = vmul.f32 0.5, %v143
  %v145 = vsub.f32 1.5, %v144
  %v146 = vmul.f32 %v141, %v145
  %vm147 = vweird.f32 %v137
  %vm148 = vweird.f32 %v141
  %vm149 = vmor %vm147, %vm148
  %v150 = vsel %vm149, %v141, %v146
  %v151 = vrsqrt.pop %v138
  %v152 = vmul.f32 %v151, %v138
  %v153 = vmul.f32 %v152, %v151
  %v154 = vmul.f32 0.5, %v153
  %v155 = vsub.f32 1.5, %v154
  %v156 = vmul.f32 %v151, %v155
  %vm157 = vweird.f32 %v138
  %vm158 = vweird.f32 %v151
  %vm159 = vmor %vm157, %vm158
  %v160 = vsel %vm159, %v151, %v156
  %v161 = vrsqrt.pop %v139
  %v162 = vmul.f32 %v161, %v139
  %v163 = vmul.f32 %v162, %v161
  %v164 = vmul.f32 0.5, %v163
  %v165 = vsub.f32 1.5, %v164
  %v166 = vmul.f32 %v161, %v165
  %vm167 = vweird.f32 %v139
  %vm168 = vweird.f32 %v161
  %vm169 = vmor %vm167, %vm168
  %v170 = vsel %vm169, %v161, %v166
  %v171 = vrsqrt.pop %v140
  %v172 = vmul.f32 %v171, %v140
  %v173 = vmul.f32 %v172, %v171
  %v174 = vmul.f32 0.5, %v173
  %v175 = vsub.f32 1.5, %v174
  %v176 = vmul.f32 %v171, %v175
  %vm177 = vweird.f32 %v140
  %vm178 = vweird.f32 %v171
  %vm179 = vmor %vm177, %vm178
  %v180 = vsel %vm179, %v171, %v176
  %v181 = vmul.f32 %v113, %v150
  %v182 = vmul.f32 %v114, %v160
  %v183 = vmul.f32 %v115, %v170
  %v184 = vmul.f32 %v116, %v180
  %v185 = vld [vmem:[%s3] sm:$0x1]
  %v187 = vperm.slane %v185, 0
  %v189 = vmul.f32 %v181, %v187
  %v190 = vmul.f32 %v182, %v187
  %v191 = vmul.f32 %v183, %v187
  %v192 = vmul.f32 %v184, %v187
  %v193 = vld [vmem:[%s4] sm:$0x1]
  %v195 = vperm.slane %v193, 0
  %v197 = vadd.f32 %v189, %v195
  %v198 = vadd.f32 %v190, %v195
  %v199 = vadd.f32 %v191, %v195
  %v200 = vadd.f32 %v192, %v195
  %201 = vst.msk [vmem:[%s5] sm:$0xff] %vm89, %v197
  %202 = vst.msk [vmem:[%s5 + $0x8] sm:$0xff] %vm89, %v198
  %203 = vst.msk [vmem:[%s5 + $0x10] sm:$0xff] %vm89, %v199
  %204 = vst.msk [vmem:[%s5 + $0x18] sm:$0xff] %vm89, %v200
  // Predicated region
  $region22: #{_lambda_.18} parent=0 // pred_check
    _
  $region23: #{_lambda_.18} parent=0 // pred_check_branch
    %206 = sbr.rel (0) target = $region25
  $region24: #{_lambda_.18} parent=0 // pred_region
    _
  $region25: #{_lambda_.18} parent=0 // pred_fallthru
    _
  // Predicated region
  $region26: #{_lambda_.18} parent=0 // pred_check
    _
  $region27: #{_lambda_.18} parent=0 // pred_check_branch
    %208 = sbr.rel (0) target = $region29
  $region28: #{_lambda_.18} parent=0 // pred_region
    _
  $region29: #{_lambda_.18} parent=0 // pred_fallthru
    _

// kernel: _lambda_.21
$region0: #{_lambda_.21}
  #allocation0 [shape = 'u32[]', space=smem, size = 0x4, offset = 0x4, fixed_abs, tag = 'smem constant byte address 0x4 - core index']
  #allocation1 [shape = 'u32[72,128]{1,0:T(1,128)}', space=vmem, size = 0x9000, scoped, tag = 'internal scratch']
  %s0 = inlined_call_operand.vmem [shape: bf16[32,8], index: 0, kind: input, shape index: {}]
  %s1 = inlined_call_operand.vmem [shape: bf16[8,8], index: 1, kind: input, shape index: {}]
  %s2 = inlined_call_operand.vmem [shape: f32[1,8], index: 2, kind: input, shape index: {}]
  %s3 = inlined_call_operand.vmem [shape: f32[1,8], index: 3, kind: input, shape index: {}]
  %s4 = inlined_call_operand.vmem [shape: f32[1,8], index: 4, kind: input, shape index: {}]
  %s5 = inlined_call_operand.vmem [shape: f32[32,8], index: 5, kind: output, shape index: {}]
  %s6 = sld [smem:[#allocation0]]
  $region30: #{_lambda_.21} parent=0
    _
  %s8 = ssub.s32 1, %s6
  %s9 = scalar_select 0, %s8, %s6
  // Predicated region
  $region2: #{_lambda_.21} parent=0 // pred_check
    _
  $region3: #{_lambda_.21} parent=0 // pred_check_branch
    %11 = sbr.rel (0) target = $region5
  $region4: #{_lambda_.21} parent=0 // pred_region
    _
  $region5: #{_lambda_.21} parent=0 // pred_fallthru
    _
  // Predicated region
  $region6: #{_lambda_.21} parent=0 // pred_check
    _
  $region7: #{_lambda_.21} parent=0 // pred_check_branch
    %13 = sbr.rel (0) target = $region9
  $region8: #{_lambda_.21} parent=0 // pred_region
    _
  $region9: #{_lambda_.21} parent=0 // pred_fallthru
    _
  // Predicated region
  $region10: #{_lambda_.21} parent=0 // pred_check
    _
  $region11: #{_lambda_.21} parent=0 // pred_check_branch
    %15 = sbr.rel (0) target = $region13
  $region12: #{_lambda_.21} parent=0 // pred_region
    _
  $region13: #{_lambda_.21} parent=0 // pred_fallthru
    _
  // Predicated region
  $region14: #{_lambda_.21} parent=0 // pred_check
    _
  $region15: #{_lambda_.21} parent=0 // pred_check_branch
    %17 = sbr.rel (0) target = $region17
  $region16: #{_lambda_.21} parent=0 // pred_region
    _
  $region17: #{_lambda_.21} parent=0 // pred_fallthru
    _
  // Predicated region
  $region18: #{_lambda_.21} parent=0 // pred_check
    _
  $region19: #{_lambda_.21} parent=0 // pred_check_branch
    %19 = sbr.rel (0) target = $region21
  $region20: #{_lambda_.21} parent=0 // pred_region
    _
  $region21: #{_lambda_.21} parent=0 // pred_fallthru
    _
  %v21 = vld [vmem:[%s0] sm:$0xf]
  %v22 = vld [vmem:[%s0 + $0x4] sm:$0xf]
  %v23 = vld [vmem:[%s0 + $0x8] sm:$0xf]
  %v24 = vld [vmem:[%s0 + $0xc] sm:$0xf]
  %v25 = vld [vmem:[%s1] sm:$0xf]
  %v26 = vld [vmem:[%s2] sm:$0x1]
  %v28 = vperm.slane %v26, 0
  %v34 = vunpack.c.l.b16 %v21
  %v35 = vunpack.c.l.b16 %v22
  %v36 = vunpack.c.l.b16 %v23
  %v37 = vunpack.c.l.b16 %v24
  %v38 = vpack.c.b16 %v35, %v34
  %v39 = vpack.c.b16 %v37, %v36
  %vm40 = vcmask 64512
  %v42 = vsel %vm40, %v38, 0
  %v45 = vsel %vm40, %v39, 0
  %vm47 = vcmask 1043456
  %v49 = vsel %vm47, %v25, 0
  %51 = vmatpush.bf16.msra.mxu0 0
  %52 = vmatpush.bf16.msra.mxu0 0
  %53 = vmatpush.bf16.msra.mxu0 0
  %54 = vmatpush.bf16.msra.mxu0 0
  %55 = vmatpush.bf16.msra.mxu0 0
  %56 = vmatpush.bf16.msra.mxu0 0
  %57 = vmatpush.bf16.msra.mxu0 0
  %58 = vmatpush.bf16.msra.mxu0 %v49
  %59 = vmatmul.bf16.gmra.mxu0 %v42
  %v60 = vpop.f32.mrf.mxu0
  %v61 = vadd.f32 %v28, %v60
  %v62 = vpop.f32.mrf.mxu0
  %v63 = vadd.f32 %v28, %v62
  %64 = vmatmul.bf16.gmra.mxu0 %v45
  %v65 = vpop.f32.mrf.mxu0
  %v66 = vadd.f32 %v28, %v65
  %v67 = vpop.f32.mrf.mxu0
  %v68 = vadd.f32 %v28, %v67
  %69 = vdwg.mxu0
  %v70 = vsel %vm40, %v61, 0.0
  %71 = vadd.xlane.f32.xlu0 %v70
  %v72 = vpop.xlane.xlu0 %71
  %v73 = vsel %vm40, %v63, 0.0
  %74 = vadd.xlane.f32.xlu0 %v73
  %v75 = vpop.xlane.xlu0 %74
  %v76 = vsel %vm40, %v66, 0.0
  %77 = vadd.xlane.f32.xlu0 %v76
  %v78 = vpop.xlane.xlu0 %77
  %v79 = vsel %vm40, %v68, 0.0
  %80 = vadd.xlane.f32.xlu0 %v79
  %v81 = vpop.xlane.xlu0 %80
  %v82 = vrcp.pop 8.0
  %v83 = vmul.f32 8.0, %v82
  %v84 = vsub.f32 1.0, %v83
  %v85 = vmul.f32 %v82, %v84
  %v86 = vadd.f32 %v82, %v85
  %vm87 = vweird.f32 %v82
  %v88 = vsel %vm87, %v82, %v86
  %v89 = vmul.f32 %v72, %v88
  %v90 = vmul.f32 %v75, %v88
  %v91 = vmul.f32 %v78, %v88
  %v92 = vmul.f32 %v81, %v88
  %v93 = vsub.f32 %v61, %v89
  %v94 = vsub.f32 %v63, %v90
  %v95 = vsub.f32 %v66, %v91
  %v96 = vsub.f32 %v68, %v92
  %v97 = vmul.f32 %v93, %v93
  %v98 = vmul.f32 %v94, %v94
  %v99 = vmul.f32 %v95, %v95
  %v100 = vmul.f32 %v96, %v96
  %v101 = vsel %vm40, %v97, 0.0
  %102 = vadd.xlane.f32.xlu0 %v101
  %v103 = vpop.xlane.xlu0 %102
  %v104 = vsel %vm40, %v98, 0.0
  %105 = vadd.xlane.f32.xlu0 %v104
  %v106 = vpop.xlane.xlu0 %105
  %v107 = vsel %vm40, %v99, 0.0
  %108 = vadd.xlane.f32.xlu0 %v107
  %v109 = vpop.xlane.xlu0 %108
  %v110 = vsel %vm40, %v100, 0.0
  %111 = vadd.xlane.f32.xlu0 %v110
  %v112 = vpop.xlane.xlu0 %111
  %v113 = vmul.f32 %v103, %v88
  %v114 = vmul.f32 %v106, %v88
  %v115 = vmul.f32 %v109, %v88
  %v116 = vmul.f32 %v112, %v88
  %v117 = vadd.f32 %v113, 1e-05
  %v118 = vadd.f32 %v114, 1e-05
  %v119 = vadd.f32 %v115, 1e-05
  %v120 = vadd.f32 %v116, 1e-05
  %v121 = vrsqrt.pop %v117
  %v122 = vmul.f32 %v121, %v117
  %v123 = vmul.f32 %v122, %v121
  %v124 = vmul.f32 0.5, %v123
  %v125 = vsub.f32 1.5, %v124
  %v126 = vmul.f32 %v121, %v125
  %vm127 = vweird.f32 %v117
  %vm128 = vweird.f32 %v121
  %vm129 = vmor %vm127, %vm128
  %v130 = vsel %vm129, %v121, %v126
  %v131 = vrsqrt.pop %v118
  %v132 = vmul.f32 %v131, %v118
  %v133 = vmul.f32 %v132, %v131
  %v134 = vmul.f32 0.5, %v133
  %v135 = vsub.f32 1.5, %v134
  %v136 = vmul.f32 %v131, %v135
  %vm137 = vweird.f32 %v118
  %vm138 = vweird.f32 %v131
  %vm139 = vmor %vm137, %vm138
  %v140 = vsel %vm139, %v131, %v136
  %v141 = vrsqrt.pop %v119
  %v142 = vmul.f32 %v141, %v119
  %v143 = vmul.f32 %v142, %v141
  %v144 = vmul.f32 0.5, %v143
  %v145 = vsub.f32 1.5, %v144
  %v146 = vmul.f32 %v141, %v145
  %vm147 = vweird.f32 %v119
  %vm148 = vweird.f32 %v141
  %vm149 = vmor %vm147, %vm148
  %v150 = vsel %vm149, %v141, %v146
  %v151 = vrsqrt.pop %v120
  %v152 = vmul.f32 %v151, %v120
  %v153 = vmul.f32 %v152, %v151
  %v154 = vmul.f32 0.5, %v153
  %v155 = vsub.f32 1.5, %v154
  %v156 = vmul.f32 %v151, %v155
  %vm157 = vweird.f32 %v120
  %vm158 = vweird.f32 %v151
  %vm159 = vmor %vm157, %vm158
  %v160 = vsel %vm159, %v151, %v156
  %v161 = vmul.f32 %v93, %v130
  %v162 = vmul.f32 %v94, %v140
  %v163 = vmul.f32 %v95, %v150
  %v164 = vmul.f32 %v96, %v160
  %v165 = vld [vmem:[%s3] sm:$0x1]
  %v167 = vperm.slane %v165, 0
  %v169 = vmul.f32 %v161, %v167
  %v170 = vmul.f32 %v162, %v167
  %v171 = vmul.f32 %v163, %v167
  %v172 = vmul.f32 %v164, %v167
  %v173 = vld [vmem:[%s4] sm:$0x1]
  %v175 = vperm.slane %v173, 0
  %v177 = vadd.f32 %v169, %v175
  %v178 = vadd.f32 %v170, %v175
  %v179 = vadd.f32 %v171, %v175
  %v180 = vadd.f32 %v172, %v175
  %181 = vst.msk [vmem:[%s5] sm:$0xff] %vm40, %v177
  %182 = vst.msk [vmem:[%s5 + $0x8] sm:$0xff] %vm40, %v178
  %183 = vst.msk [vmem:[%s5 + $0x10] sm:$0xff] %vm40, %v179
  %184 = vst.msk [vmem:[%s5 + $0x18] sm:$0xff] %vm40, %v180
  // Predicated region
  $region22: #{_lambda_.21} parent=0 // pred_check
    _
  $region23: #{_lambda_.21} parent=0 // pred_check_branch
    %186 = sbr.rel (0) target = $region25
  $region24: #{_lambda_.21} parent=0 // pred_region
    _
  $region25: #{_lambda_.21} parent=0 // pred_fallthru
    _
  // Predicated region
  $region26: #{_lambda_.21} parent=0 // pred_check
    _
  $region27: #{_lambda_.21} parent=0 // pred_check_branch
    %188 = sbr.rel (0) target = $region29
  $region28: #{_lambda_.21} parent=0 // pred_region
    _
  $region29: #{_lambda_.21} parent=0 // pred_fallthru
    _

// kernel: _lambda_.19
$region0: #{_lambda_.19}
  #allocation0 [shape = 'u32[]', space=smem, size = 0x4, offset = 0x4, fixed_abs, tag = 'smem constant byte address 0x4 - core index']
  #allocation1 [shape = 'u32[72,128]{1,0:T(1,128)}', space=vmem, size = 0x9000, scoped, tag = 'internal scratch']
  %s0 = inlined_call_operand.vmem [shape: bf16[32,8], index: 0, kind: input, shape index: {}]
  %s1 = inlined_call_operand.vmem [shape: bf16[8,24], index: 1, kind: input, shape index: {}]
  %s2 = inlined_call_operand.vmem [shape: f32[1,24], index: 2, kind: input, shape index: {}]
  %s3 = inlined_call_operand.vmem [shape: f32[32,24], index: 3, kind: output, shape index: {}]
  %s4 = sld [smem:[#allocation0]]
  $region22: #{_lambda_.19} parent=0
    _
  %s6 = ssub.s32 1, %s4
  %s7 = scalar_select 0, %s6, %s4
  // Predicated region
  $region2: #{_lambda_.19} parent=0 // pred_check
    _
  $region3: #{_lambda_.19} parent=0 // pred_check_branch
    %9 = sbr.rel (0) target = $region5
  $region4: #{_lambda_.19} parent=0 // pred_region
    _
  $region5: #{_lambda_.19} parent=0 // pred_fallthru
    _
  // Predicated region
  $region6: #{_lambda_.19} parent=0 // pred_check
    _
  $region7: #{_lambda_.19} parent=0 // pred_check_branch
    %11 = sbr.rel (0) target = $region9
  $region8: #{_lambda_.19} parent=0 // pred_region
    _
  $region9: #{_lambda_.19} parent=0 // pred_fallthru
    _
  // Predicated region
  $region10: #{_lambda_.19} parent=0 // pred_check
    _
  $region11: #{_lambda_.19} parent=0 // pred_check_branch
    %13 = sbr.rel (0) target = $region13
  $region12: #{_lambda_.19} parent=0 // pred_region
    _
  $region13: #{_lambda_.19} parent=0 // pred_fallthru
    _
  %v15 = vld [vmem:[%s0] sm:$0xf]
  %v16 = vld [vmem:[%s0 + $0x4] sm:$0xf]
  %v17 = vld [vmem:[%s0 + $0x8] sm:$0xf]
  %v18 = vld [vmem:[%s0 + $0xc] sm:$0xf]
  %v19 = vld [vmem:[%s1] sm:$0xf]
  %v20 = vld [vmem:[%s2] sm:$0x1]
  %v22 = vperm.slane %v20, 0
  %v28 = vunpack.c.l.b16 %v15
  %v29 = vunpack.c.l.b16 %v16
  %v30 = vunpack.c.l.b16 %v17
  %v31 = vunpack.c.l.b16 %v18
  %v32 = vpack.c.b16 %v29, %v28
  %v33 = vpack.c.b16 %v31, %v30
  %vm34 = vcmask 64512
  %v36 = vsel %vm34, %v32, 0
  %v39 = vsel %vm34, %v33, 0
  %vm41 = vcmask 1043456
  %v43 = vsel %vm41, %v19, 0
  %45 = vmatpush.bf16.msra.mxu0 0
  %46 = vmatpush.bf16.msra.mxu0 0
  %47 = vmatpush.bf16.msra.mxu0 0
  %48 = vmatpush.bf16.msra.mxu0 0
  %49 = vmatpush.bf16.msra.mxu0 0
  %50 = vmatpush.bf16.msra.mxu0 0
  %51 = vmatpush.bf16.msra.mxu0 0
  %52 = vmatpush.bf16.msra.mxu0 %v43
  %53 = vmatmul.bf16.gmra.mxu0 %v36
  %v54 = vpop.f32.mrf.mxu0
  %v55 = vadd.f32 %v22, %v54
  %v56 = vpop.f32.mrf.mxu0
  %v57 = vadd.f32 %v22, %v56
  %58 = vmatmul.bf16.gmra.mxu0 %v39
  %v59 = vpop.f32.mrf.mxu0
  %v60 = vadd.f32 %v22, %v59
  %v61 = vpop.f32.mrf.mxu0
  %v62 = vadd.f32 %v22, %v61
  %63 = vdwg.mxu0
  %vm64 = vcmask 195584
  %65 = vst.msk [vmem:[%s3] sm:$0xff] %vm64, %v55
  %66 = vst.msk [vmem:[%s3 + $0x8] sm:$0xff] %vm64, %v57
  %67 = vst.msk [vmem:[%s3 + $0x10] sm:$0xff] %vm64, %v60
  %68 = vst.msk [vmem:[%s3 + $0x18] sm:$0xff] %vm64, %v62
  // Predicated region
  $region14: #{_lambda_.19} parent=0 // pred_check
    _
  $region15: #{_lambda_.19} parent=0 // pred_check_branch
    %70 = sbr.rel (0) target = $region17
  $region16: #{_lambda_.19} parent=0 // pred_region
    _
  $region17: #{_lambda_.19} parent=0 // pred_fallthru
    _
  // Predicated region
  $region18: #{_lambda_.19} parent=0 // pred_check
    _
  $region19: #{_lambda_.19} parent=0 // pred_check_branch
    %72 = sbr.rel (0) target = $region21
  $region20: #{_lambda_.19} parent=0 // pred_region
    _
  $region21: #{_lambda_.19} parent=0 // pred_fallthru
    _

// kernel: _lambda_.20
$region0: #{_lambda_.20}
  #allocation0 [shape = 'u32[]', space=smem, size = 0x4, offset = 0x4, fixed_abs, tag = 'smem constant byte address 0x4 - core index']
  #allocation1 [shape = 'u32[72,128]{1,0:T(1,128)}', space=vmem, size = 0x9000, scoped, tag = 'internal scratch']
  %s0 = inlined_call_operand.vmem [shape: bf16[8,2,4,4], index: 0, kind: input, shape index: {}]
  %s1 = inlined_call_operand.vmem [shape: bf16[8,2,4,4], index: 1, kind: input, shape index: {}]
  %s2 = inlined_call_operand.vmem [shape: bf16[8,2,4,4], index: 2, kind: input, shape index: {}]
  %s3 = inlined_call_operand.vmem [shape: f32[2,4,4], index: 3, kind: input, shape index: {}]
  %s4 = inlined_call_operand.vmem [shape: f32[2,1], index: 4, kind: input, shape index: {}]
  %s5 = inlined_call_operand.vmem [shape: f32[8,2,4,4], index: 5, kind: output, shape index: {}]
  %s6 = sld [smem:[#allocation0]]
  $region53: #{_lambda_.20} parent=0
    _
  %s8 = ssub.s32 1, %s6
  %s9 = scalar_select 0, %s8, %s6
  loop: start=0, step=1, limit=4
  $region2: #{_lambda_.20} parent=0 // loop_pre_header
    _
  $region3: #{_lambda_.20} parent=0 // loop_header
    %s11 = sphi 0, %s15
    %p12 = scmp.ge.s32.totalorder %s11, 4
    %s21 = sphi 0, %s23
    %s24 = sphi 0, %s21
    %s25 = sphi 0, %s24
    %s41 = sphi 0, %s25
    %s47 = sphi 0, %s49
    %s50 = sphi 0, %s47
    %s51 = sphi 0, %s50
    %s67 = sphi 0, %s51
    %s73 = sphi 0, %s75
    %s76 = sphi 0, %s73
    %s77 = sphi 0, %s76
    %s93 = sphi 0, %s77
    %s97 = sphi 0, %s97
    %s99 = sphi 0, %s97
    %s100 = sphi 0, %s99
    %s114 = sphi 0, %s100
    %s118 = sphi 0, %s118
    %s120 = sphi 0, %s118
    %s121 = sphi 0, %s120
    %s135 = sphi 0, %s121
    %s141 = sphi 0, %s143
    %s144 = sphi 0, %s141
    %s145 = sphi 0, %s144
    %s161 = sphi 0, %s145
  $region4: #{_lambda_.20} parent=0 // loop_header_branch
    %14 = sbr.rel (%p12) target = $region8
  $region5: #{_lambda_.20} parent=0 // loop_body
    %s16 = ssub.s32 %s11, 1
    %s17 = ssub.s32 %s11, 2
    %s18 = sadd.s32 %s11, 1
    %s19 = ssub.s32 %s11, %s18
    %p20 = scmp.eq.s32.totalorder %s19, 0
    %s22 = sadd.s32 %s21, 1
    %s23 = scalar_select %p20, %s21, %s22
    %p26 = pneg %p20
    %p27 = scmp.eq.s32.totalorder %s11, 1
    %p28 = por %p26, %p27
    %p29 = scmp.ne.s32.totalorder %s21, %s24
    %p30 = scmp.eq.s32.totalorder %s11, 0
    %p31 = por %p29, %p30
    %p32 = scmp.ne.s32.totalorder %s21, %s24
    %p33 = scmp.eq.s32.totalorder %s16, 1
    %p34 = por %p32, %p33
    %p35 = scmp.ne.s32.totalorder %s24, %s25
    %p36 = scmp.eq.s32.totalorder %s16, 0
    %p37 = por %p35, %p36
    %p38 = scmp.ne.s32.totalorder %s24, %s25
    %p39 = scmp.eq.s32.totalorder %s17, 1
    %p40 = por %p38, %p39
    %p42 = scmp.ne.s32.totalorder %s25, %s41
    %p43 = scmp.eq.s32.totalorder %s17, 0
    %p44 = por %p42, %p43
    %s45 = ssub.s32 %s11, %s18
    %p46 = scmp.eq.s32.totalorder %s45, 0
    %s48 = sadd.s32 %s47, 1
    %s49 = scalar_select %p46, %s47, %s48
    %p52 = pneg %p46
    %p53 = scmp.eq.s32.totalorder %s11, 1
    %p54 = por %p52, %p53
    %p55 = scmp.ne.s32.totalorder %s47, %s50
    %p56 = scmp.eq.s32.totalorder %s11, 0
    %p57 = por %p55, %p56
    %p58 = scmp.ne.s32.totalorder %s47, %s50
    %p59 = scmp.eq.s32.totalorder %s16, 1
    %p60 = por %p58, %p59
    %p61 = scmp.ne.s32.totalorder %s50, %s51
    %p62 = scmp.eq.s32.totalorder %s16, 0
    %p63 = por %p61, %p62
    %p64 = scmp.ne.s32.totalorder %s50, %s51
    %p65 = scmp.eq.s32.totalorder %s17, 1
    %p66 = por %p64, %p65
    %p68 = scmp.ne.s32.totalorder %s51, %s67
    %p69 = scmp.eq.s32.totalorder %s17, 0
    %p70 = por %p68, %p69
    %s71 = ssub.s32 %s11, %s18
    %p72 = scmp.eq.s32.totalorder %s71, 0
    %s74 = sadd.s32 %s73, 1
    %s75 = scalar_select %p72, %s73, %s74
    %p78 = pneg %p72
    %p79 = scmp.eq.s32.totalorder %s11, 1
    %p80 = por %p78, %p79
    %p81 = scmp.ne.s32.totalorder %s73, %s76
    %p82 = scmp.eq.s32.totalorder %s11, 0
    %p83 = por %p81, %p82
    %p84 = scmp.ne.s32.totalorder %s73, %s76
    %p85 = scmp.eq.s32.totalorder %s16, 1
    %p86 = por %p84, %p85
    %p87 = scmp.ne.s32.totalorder %s76, %s77
    %p88 = scmp.eq.s32.totalorder %s16, 0
    %p89 = por %p87, %p88
    %p90 = scmp.ne.s32.totalorder %s76, %s77
    %p91 = scmp.eq.s32.totalorder %s17, 1
    %p92 = por %p90, %p91
    %p94 = scmp.ne.s32.totalorder %s77, %s93
    %p95 = scmp.eq.s32.totalorder %s17, 0
    %p96 = por %p94, %p95
    %s98 = sadd.s32 %s97, 1
    %p101 = scmp.eq.s32.totalorder %s11, 1
    %p102 = scmp.ne.s32.totalorder %s97, %s99
    %p103 = scmp.eq.s32.totalorder %s11, 0
    %p104 = por %p102, %p103
    %p105 = scmp.ne.s32.totalorder %s97, %s99
    %p106 = scmp.eq.s32.totalorder %s16, 1
    %p107 = por %p105, %p106
    %p108 = scmp.ne.s32.totalorder %s99, %s100
    %p109 = scmp.eq.s32.totalorder %s16, 0
    %p110 = por %p108, %p109
    %p111 = scmp.ne.s32.totalorder %s99, %s100
    %p112 = scmp.eq.s32.totalorder %s17, 1
    %p113 = por %p111, %p112
    %p115 = scmp.ne.s32.totalorder %s100, %s114
    %p116 = scmp.eq.s32.totalorder %s17, 0
    %p117 = por %p115, %p116
    %s119 = sadd.s32 %s118, 1
    %p122 = scmp.eq.s32.totalorder %s11, 1
    %p123 = scmp.ne.s32.totalorder %s118, %s120
    %p124 = scmp.eq.s32.totalorder %s11, 0
    %p125 = por %p123, %p124
    %p126 = scmp.ne.s32.totalorder %s118, %s120
    %p127 = scmp.eq.s32.totalorder %s16, 1
    %p128 = por %p126, %p127
    %p129 = scmp.ne.s32.totalorder %s120, %s121
    %p130 = scmp.eq.s32.totalorder %s16, 0
    %p131 = por %p129, %p130
    %p132 = scmp.ne.s32.totalorder %s120, %s121
    %p133 = scmp.eq.s32.totalorder %s17, 1
    %p134 = por %p132, %p133
    %p136 = scmp.ne.s32.totalorder %s121, %s135
    %p137 = scmp.eq.s32.totalorder %s17, 0
    %p138 = por %p136, %p137
    %s139 = ssub.s32 %s11, %s18
    %p140 = scmp.eq.s32.totalorder %s139, 0
    %s142 = sadd.s32 %s141, 1
    %s143 = scalar_select %p140, %s141, %s142
    %p146 = pneg %p140
    %p147 = scmp.eq.s32.totalorder %s11, 1
    %p148 = por %p146, %p147
    %p149 = scmp.ne.s32.totalorder %s141, %s144
    %p150 = scmp.eq.s32.totalorder %s11, 0
    %p151 = por %p149, %p150
    %p152 = scmp.ne.s32.totalorder %s141, %s144
    %p153 = scmp.eq.s32.totalorder %s16, 1
    %p154 = por %p152, %p153
    %p155 = scmp.ne.s32.totalorder %s144, %s145
    %p156 = scmp.eq.s32.totalorder %s16, 0
    %p157 = por %p155, %p156
    %p158 = scmp.ne.s32.totalorder %s144, %s145
    %p159 = scmp.eq.s32.totalorder %s17, 1
    %p160 = por %p158, %p159
    %p162 = scmp.ne.s32.totalorder %s145, %s161
    %p163 = scmp.eq.s32.totalorder %s17, 0
    %p164 = por %p162, %p163
    %p165 = scmp.le.s32.totalorder 1, %s11
    %p166 = scmp.lt.s32.totalorder %s11, 3
    %p167 = pnand %p165, %p166
    %p168 = pneg %p167
    // Predicated region
    $region9: #{_lambda_.20} parent=5 // pred_check
      _
    $region10: #{_lambda_.20} parent=5 // pred_check_branch
      %170 = sbr.rel (%p167) target = $region12
    $region11: #{_lambda_.20} parent=5 // pred_region
      %s171 = ssub.s32 %s11, 1
      // Predicated region
      $region13: #{_lambda_.20} parent=11 // pred_check
        %p172 = pneg %p110
      $region14: #{_lambda_.20} parent=11 // pred_check_branch
        %174 = sbr.rel (%p172) target = $region16
      $region15: #{_lambda_.20} parent=11 // pred_region
        _
      $region16: #{_lambda_.20} parent=11 // pred_fallthru
        _
      // Predicated region
      $region17: #{_lambda_.20} parent=11 // pred_check
        %p175 = pneg %p131
      $region18: #{_lambda_.20} parent=11 // pred_check_branch
        %177 = sbr.rel (%p175) target = $region20
      $region19: #{_lambda_.20} parent=11 // pred_region
        _
      $region20: #{_lambda_.20} parent=11 // pred_fallthru
        _
    $region12: #{_lambda_.20} parent=5 // pred_fallthru
      _
    %p178 = scmp.lt.s32.totalorder %s11, 2
    // Predicated region
    $region21: #{_lambda_.20} parent=5 // pred_check
      %p179 = pneg %p178
    $region22: #{_lambda_.20} parent=5 // pred_check_branch
      %181 = sbr.rel (%p179) target = $region24
    $region23: #{_lambda_.20} parent=5 // pred_region
      // Predicated region
      $region25: #{_lambda_.20} parent=23 // pred_check
        %p182 = pneg %p31
      $region26: #{_lambda_.20} parent=23 // pred_check_branch
        %184 = sbr.rel (%p182) target = $region28
      $region27: #{_lambda_.20} parent=23 // pred_region
        %s185 = smul.u32 4, %s11
        %p186 = scmp.lt.s32.totalorder %s185, 7
        %s187 = scalar_select %p186, %s185, 7
        %s188 = smul.addr %s187, 2
        %s189 = smul.addr %s188, 2
        %s190 = scalar_lea.vmem %s0, %s189
        %s191 = smul.u32 4, %s11
      $region28: #{_lambda_.20} parent=23 // pred_fallthru
        _
      // Predicated region
      $region29: #{_lambda_.20} parent=23 // pred_check
        %p192 = pneg %p57
      $region30: #{_lambda_.20} parent=23 // pred_check_branch
        %194 = sbr.rel (%p192) target = $region32
      $region31: #{_lambda_.20} parent=23 // pred_region
        %s195 = smul.u32 4, %s11
        %p196 = scmp.lt.s32.totalorder %s195, 7
        %s197 = scalar_select %p196, %s195, 7
        %s198 = smul.addr %s197, 2
        %s199 = smul.addr %s198, 2
        %s200 = scalar_lea.vmem %s1, %s199
        %s201 = smul.u32 4, %s11
      $region32: #{_lambda_.20} parent=23 // pred_fallthru
        _
      // Predicated region
      $region33: #{_lambda_.20} parent=23 // pred_check
        %p202 = pneg %p83
      $region34: #{_lambda_.20} parent=23 // pred_check_branch
        %204 = sbr.rel (%p202) target = $region36
      $region35: #{_lambda_.20} parent=23 // pred_region
        %s205 = smul.u32 4, %s11
        %p206 = scmp.lt.s32.totalorder %s205, 7
        %s207 = scalar_select %p206, %s205, 7
        %s208 = smul.addr %s207, 2
        %s209 = smul.addr %s208, 2
        %s210 = scalar_lea.vmem %s2, %s209
        %s211 = smul.u32 4, %s11
      $region36: #{_lambda_.20} parent=23 // pred_fallthru
        _
    $region24: #{_lambda_.20} parent=5 // pred_fallthru
      _
    %p212 = scmp.le.s32.totalorder 1, %s11
    %p213 = scmp.lt.s32.totalorder %s11, 3
    %p214 = pnand %p212, %p213
    %p215 = pneg %p214
    // Predicated region
    $region37: #{_lambda_.20} parent=5 // pred_check
      _
    $region38: #{_lambda_.20} parent=5 // pred_check_branch
      %217 = sbr.rel (%p214) target = $region40
    $region39: #{_lambda_.20} parent=5 // pred_region
      %s218 = ssub.s32 %s11, 1
      %s219 = smul.u32 4, %s16
      %p220 = scmp.lt.s32.totalorder %s219, 7
      %s221 = scalar_select %p220, %s219, 7
      %s222 = smul.addr %s221, 2
      %s223 = smul.addr %s222, 2
      %s224 = scalar_lea.vmem %s0, %s223
      %p225 = pneg %p37
      %p226 = pneg %p34
      %s227 = smul.u32 4, %s16
      %p228 = scmp.lt.s32.totalorder %s227, 7
      %s229 = scalar_select %p228, %s227, 7
      %s230 = smul.addr %s229, 2
      %s231 = smul.addr %s230, 2
      %s232 = scalar_lea.vmem %s1, %s231
      %p233 = pneg %p63
      %p234 = pneg %p60
      %s235 = smul.u32 4, %s16
      %p236 = scmp.lt.s32.totalorder %s235, 7
      %s237 = scalar_select %p236, %s235, 7
      %s238 = smul.addr %s237, 2
      %s239 = smul.addr %s238, 2
      %s240 = scalar_lea.vmem %s2, %s239
      %p241 = pneg %p89
      %p242 = pneg %p86
      %p243 = pneg %p110
      %p244 = pneg %p107
      %p245 = pneg %p131
      %p246 = pneg %p128
      %p247 = pneg %p157
      %p248 = pneg %p154
      %s249 = smul.u32 4, %s16
      %p250 = scmp.lt.s32.totalorder %s249, 7
      %s251 = scalar_select %p250, %s249, 7
      %s252 = smul.addr %s251, 2
      %s253 = smul.addr %s252, 4
      %s254 = scalar_lea.vmem %s5, %s253
      %s255 = smul.u32 4, %s16
      %p256 = scmp.lt.s32.totalorder %s255, 7
      %s257 = scalar_select %p256, %s255, 7
      %s258 = smul.addr %s257, 2
      %s259 = smul.addr %s258, 2
      %s260 = scalar_lea.vmem %s0, %s259
      %s261 = smul.u32 4, %s16
      %s262 = smul.u32 4, %s16
      %p263 = scmp.lt.s32.totalorder %s262, 7
      %s264 = scalar_select %p263, %s262, 7
      %s265 = smul.addr %s264, 2
      %s266 = smul.addr %s265, 2
      %s267 = scalar_lea.vmem %s1, %s266
      %s268 = smul.u32 4, %s16
      %s269 = smul.u32 4, %s16
      %p270 = scmp.lt.s32.totalorder %s269, 7
      %s271 = scalar_select %p270, %s269, 7
      %s272 = smul.addr %s271, 2
      %s273 = smul.addr %s272, 2
      %s274 = scalar_lea.vmem %s2, %s273
      %s275 = smul.u32 4, %s16
      %s276 = smul.u32 4, %s16
      %p277 = scmp.lt.s32.totalorder %s276, 7
      %s278 = scalar_select %p277, %s276, 7
      %s279 = smul.addr %s278, 2
      %s280 = smul.addr %s279, 4
      %s281 = scalar_lea.vmem %s5, %s280
      %s282 = smul.u32 4, %s16
      %v284 = vld [vmem:[%s260] sm:$0x3]
      %v285 = vld [vmem:[%s260 + $0x2] sm:$0x3]
      %v286 = vld [vmem:[%s260 + $0x4] sm:$0x3]
      %v287 = vld [vmem:[%s260 + $0x6] sm:$0x3]
      %v288 = vld [vmem:[%s260 + $0x8] sm:$0x3]
      %v289 = vld [vmem:[%s260 + $0xa] sm:$0x3]
      %v290 = vld [vmem:[%s260 + $0xc] sm:$0x3]
      %v291 = vld [vmem:[%s260 + $0xe] sm:$0x3]
      %v292 = vld [vmem:[%s267] sm:$0x3]
      %v293 = vld [vmem:[%s267 + $0x2] sm:$0x3]
      %v294 = vld [vmem:[%s267 + $0x4] sm:$0x3]
      %v295 = vld [vmem:[%s267 + $0x6] sm:$0x3]
      %v296 = vld [vmem:[%s267 + $0x8] sm:$0x3]
      %v297 = vld [vmem:[%s267 + $0xa] sm:$0x3]
      %v298 = vld [vmem:[%s267 + $0xc] sm:$0x3]
      %v299 = vld [vmem:[%s267 + $0xe] sm:$0x3]
      %v300 = vld [vmem:[%s274] sm:$0x3]
      %v301 = vld [vmem:[%s274 + $0x2] sm:$0x3]
      %v302 = vld [vmem:[%s274 + $0x4] sm:$0x3]
      %v303 = vld [vmem:[%s274 + $0x6] sm:$0x3]
      %v304 = vld [vmem:[%s274 + $0x8] sm:$0x3]
      %v305 = vld [vmem:[%s274 + $0xa] sm:$0x3]
      %v306 = vld [vmem:[%s274 + $0xc] sm:$0x3]
      %v307 = vld [vmem:[%s274 + $0xe] sm:$0x3]
      %v308 = vld [vmem:[%s3] sm:$0xf]
      %v309 = vld [vmem:[%s3 + $0x4] sm:$0xf]
      %v310 = vld [vmem:[%s4] sm:$0x3]
      %v311 = vunpack.c.l.bf16 %v284
      %v312 = vunpack.c.l.bf16 %v286
      %v313 = vunpack.c.l.bf16 %v288
      %v314 = vunpack.c.l.bf16 %v290
      %v315 = vunpack.c.l.bf16 %v292
      %v316 = vunpack.c.l.bf16 %v294
      %v317 = vunpack.c.l.bf16 %v296
      %v318 = vunpack.c.l.bf16 %v298
      %v319 = vmul.f32 %v311, %v311
      %v320 = vmul.f32 %v312, %v312
      %v321 = vmul.f32 %v313, %v313
      %v322 = vmul.f32 %v314, %v314
      %vm323 = vcmask 27648
      %v324 = vsel %vm323, %v319, 0.0
      %325 = vadd.xlane.f32.xlu0 %v324
      %v326 = vpop.xlane.xlu0 %325
      %v327 = vsel %vm323, %v320, 0.0
      %328 = vadd.xlane.f32.xlu0 %v327
      %v329 = vpop.xlane.xlu0 %328
      %v330 = vsel %vm323, %v321, 0.0
      %331 = vadd.xlane.f32.xlu0 %v330
      %v332 = vpop.xlane.xlu0 %331
      %v333 = vsel %vm323, %v322, 0.0
      %334 = vadd.xlane.f32.xlu0 %v333
      %v335 = vpop.xlane.xlu0 %334
      %v336 = vmax.f32 %v326, 1e-24
      %v337 = vmax.f32 %v329, 1e-24
      %v338 = vmax.f32 %v332, 1e-24
      %v339 = vmax.f32 %v335, 1e-24
      %v340 = vrsqrt.pop %v336
      %v341 = vmul.f32 %v340, %v336
      %v342 = vmul.f32 %v341, %v340
      %v343 = vmul.f32 0.5, %v342
      %v344 = vsub.f32 1.5, %v343
      %v345 = vmul.f32 %v340, %v344
      %vm346 = vweird.f32 %v336
      %vm347 = vweird.f32 %v340
      %vm348 = vmor %vm346, %vm347
      %v349 = vsel %vm348, %v340, %v345
      %v350 = vrsqrt.pop %v337
      %v351 = vmul.f32 %v350, %v337
      %v352 = vmul.f32 %v351, %v350
      %v353 = vmul.f32 0.5, %v352
      %v354 = vsub.f32 1.5, %v353
      %v355 = vmul.f32 %v350, %v354
      %vm356 = vweird.f32 %v337
      %vm357 = vweird.f32 %v350
      %vm358 = vmor %vm356, %vm357
      %v359 = vsel %vm358, %v350, %v355
      %v360 = vrsqrt.pop %v338
      %v361 = vmul.f32 %v360, %v338
      %v362 = vmul.f32 %v361, %v360
      %v363 = vmul.f32 0.5, %v362
      %v364 = vsub.f32 1.5, %v363
      %v365 = vmul.f32 %v360, %v364
      %vm366 = vweird.f32 %v338
      %vm367 = vweird.f32 %v360
      %vm368 = vmor %vm366, %vm367
      %v369 = vsel %vm368, %v360, %v365
      %v370 = vrsqrt.pop %v339
      %v371 = vmul.f32 %v370, %v339
      %v372 = vmul.f32 %v371, %v370
      %v373 = vmul.f32 0.5, %v372
      %v374 = vsub.f32 1.5, %v373
      %v375 = vmul.f32 %v370, %v374
      %vm376 = vweird.f32 %v339
      %vm377 = vweird.f32 %v370
      %vm378 = vmor %vm376, %vm377
      %v379 = vsel %vm378, %v370, %v375
      %v380 = vmul.f32 %v311, %v349
      %v381 = vmul.f32 %v312, %v359
      %v382 = vmul.f32 %v313, %v369
      %v383 = vmul.f32 %v314, %v379
      %v384 = vmul.f32 %v315, %v315
      %v385 = vmul.f32 %v316, %v316
      %v386 = vmul.f32 %v317, %v317
      %v387 = vmul.f32 %v318, %v318
      %v388 = vsel %vm323, %v384, 0.0
      %389 = vadd.xlane.f32.xlu0 %v388
      %v390 = vpop.xlane.xlu0 %389
      %v391 = vsel %vm323, %v385, 0.0
      %392 = vadd.xlane.f32.xlu0 %v391
      %v393 = vpop.xlane.xlu0 %392
      %v394 = vsel %vm323, %v386, 0.0
      %395 = vadd.xlane.f32.xlu0 %v394
      %v396 = vpop.xlane.xlu0 %395
      %v397 = vsel %vm323, %v387, 0.0
      %398 = vadd.xlane.f32.xlu0 %v397
      %v399 = vpop.xlane.xlu0 %398
      %v400 = vmax.f32 %v390, 1e-24
      %v401 = vmax.f32 %v393, 1e-24
      %v402 = vmax.f32 %v396, 1e-24
      %v403 = vmax.f32 %v399, 1e-24
      %v404 = vrsqrt.pop %v400
      %v405 = vmul.f32 %v404, %v400
      %v406 = vmul.f32 %v405, %v404
      %v407 = vmul.f32 0.5, %v406
      %v408 = vsub.f32 1.5, %v407
      %v409 = vmul.f32 %v404, %v408
      %vm410 = vweird.f32 %v400
      %vm411 = vweird.f32 %v404
      %vm412 = vmor %vm410, %vm411
      %v413 = vsel %vm412, %v404, %v409
      %v414 = vrsqrt.pop %v401
      %v415 = vmul.f32 %v414, %v401
      %v416 = vmul.f32 %v415, %v414
      %v417 = vmul.f32 0.5, %v416
      %v418 = vsub.f32 1.5, %v417
      %v419 = vmul.f32 %v414, %v418
      %vm420 = vweird.f32 %v401
      %vm421 = vweird.f32 %v414
      %vm422 = vmor %vm420, %vm421
      %v423 = vsel %vm422, %v414, %v419
      %v424 = vrsqrt.pop %v402
      %v425 = vmul.f32 %v424, %v402
      %v426 = vmul.f32 %v425, %v424
      %v427 = vmul.f32 0.5, %v426
      %v428 = vsub.f32 1.5, %v427
      %v429 = vmul.f32 %v424, %v428
      %vm430 = vweird.f32 %v402
      %vm431 = vweird.f32 %v424
      %vm432 = vmor %vm430, %vm431
      %v433 = vsel %vm432, %v424, %v429
      %v434 = vrsqrt.pop %v403
      %v435 = vmul.f32 %v434, %v403
      %v436 = vmul.f32 %v435, %v434
      %v437 = vmul.f32 0.5, %v436
      %v438 = vsub.f32 1.5, %v437
      %v439 = vmul.f32 %v434, %v438
      %vm440 = vweird.f32 %v403
      %vm441 = vweird.f32 %v434
      %vm442 = vmor %vm440, %vm441
      %v443 = vsel %vm442, %v434, %v439
      %v444 = vmul.f32 %v315, %v413
      %v445 = vmul.f32 %v316, %v423
      %v446 = vmul.f32 %v317, %v433
      %v447 = vmul.f32 %v318, %v443
      %s449 = vtos %v310
      %v450 = vstv %s449
      %v452 = vmul.f32 %v380, %v450
      %v453 = vmul.f32 %v381, %v450
      %v454 = vmul.f32 %v382, %v450
      %v455 = vmul.f32 %v383, %v450
      %v456 = vpack.c.bf16 %v452, %v452
      %v457 = vpack.c.bf16 %v453, %v453
      %v458 = vpack.c.bf16 %v454, %v454
      %v459 = vpack.c.bf16 %v455, %v455
      %v460 = vpack.c.bf16 %v444, %v444
      %v461 = vpack.c.bf16 %v445, %v445
      %v462 = vpack.c.bf16 %v446, %v446
      %v463 = vpack.c.bf16 %v447, %v447
      %vm464 = vcmask 31744
      %v466 = vsel %vm464, %v456, 0
      %v469 = vsel %vm464, %v460, 0
      %471 = vmatpush.bf16.xpose.msra.mxu0 0
      %472 = vmatpush.bf16.xpose.msra.mxu0 0
      %473 = vmatpush.bf16.xpose.msra.mxu0 0
      %474 = vmatpush.bf16.xpose.msra.mxu0 0
      %475 = vmatpush.bf16.xpose.msra.mxu0 0
      %476 = vmatpush.bf16.xpose.msra.mxu0 0
      %477 = vmatpush.bf16.xpose.msra.mxu0 0
      %478 = vmatpush.bf16.xpose.msra.mxu0 %v469
      %479 = vmatmul.bf16.gmra.mxu0 %v466
      %v480 = vpop.f32.mrf.mxu0
      %v481 = vadd.f32 %v308, %v480
      %v482 = vpop.f32.mrf.mxu0
      %483 = vdwg.mxu0
      %v485 = vsel %vm464, %v457, 0
      %v488 = vsel %vm464, %v461, 0
      %490 = vmatpush.bf16.xpose.msra.mxu0 0
      %491 = vmatpush.bf16.xpose.msra.mxu0 0
      %492 = vmatpush.bf16.xpose.msra.mxu0 0
      %493 = vmatpush.bf16.xpose.msra.mxu0 0
      %494 = vmatpush.bf16.xpose.msra.mxu0 0
      %495 = vmatpush.bf16.xpose.msra.mxu0 0
      %496 = vmatpush.bf16.xpose.msra.mxu0 0
      %497 = vmatpush.bf16.xpose.msra.mxu0 %v488
      %498 = vmatmul.bf16.gmra.mxu0 %v485
      %v499 = vpop.f32.mrf.mxu0
      %v500 = vadd.f32 %v308, %v499
      %v501 = vpop.f32.mrf.mxu0
      %502 = vdwg.mxu0
      %v504 = vsel %vm464, %v458, 0
      %v507 = vsel %vm464, %v462, 0
      %509 = vmatpush.bf16.xpose.msra.mxu0 0
      %510 = vmatpush.bf16.xpose.msra.mxu0 0
      %511 = vmatpush.bf16.xpose.msra.mxu0 0
      %512 = vmatpush.bf16.xpose.msra.mxu0 0
      %513 = vmatpush.bf16.xpose.msra.mxu0 0
      %514 = vmatpush.bf16.xpose.msra.mxu0 0
      %515 = vmatpush.bf16.xpose.msra.mxu0 0
      %516 = vmatpush.bf16.xpose.msra.mxu0 %v507
      %517 = vmatmul.bf16.gmra.mxu0 %v504
      %v518 = vpop.f32.mrf.mxu0
      %v519 = vadd.f32 %v308, %v518
      %v520 = vpop.f32.mrf.mxu0
      %521 = vdwg.mxu0
      %v523 = vsel %vm464, %v459, 0
      %v526 = vsel %vm464, %v463, 0
      %528 = vmatpush.bf16.xpose.msra.mxu0 0
      %529 = vmatpush.bf16.xpose.msra.mxu0 0
      %530 = vmatpush.bf16.xpose.msra.mxu0 0
      %531 = vmatpush.bf16.xpose.msra.mxu0 0
      %532 = vmatpush.bf16.xpose.msra.mxu0 0
      %533 = vmatpush.bf16.xpose.msra.mxu0 0
      %534 = vmatpush.bf16.xpose.msra.mxu0 0
      %535 = vmatpush.bf16.xpose.msra.mxu0 %v526
      %536 = vmatmul.bf16.gmra.mxu0 %v523
      %v537 = vpop.f32.mrf.mxu0
      %v538 = vadd.f32 %v308, %v537
      %v539 = vpop.f32.mrf.mxu0
      %540 = vdwg.mxu0
      %v541 = vsel %vm323, %v481, -inf
      %542 = vmax.xlane.f32.xlu0 %v541
      %v543 = vpop.xlane.xlu0 %542
      %v544 = vsel %vm323, %v500, -inf
      %545 = vmax.xlane.f32.xlu0 %v544
      %v546 = vpop.xlane.xlu0 %545
      %v547 = vsel %vm323, %v519, -inf
      %548 = vmax.xlane.f32.xlu0 %v547
      %v549 = vpop.xlane.xlu0 %548
      %v550 = vsel %vm323, %v538, -inf
      %551 = vmax.xlane.f32.xlu0 %v550
      %v552 = vpop.xlane.xlu0 %551
      %v553 = vsub.f32 %v481, %v543
      %v554 = vsub.f32 %v500, %v546
      %v555 = vsub.f32 %v519, %v549
      %v556 = vsub.f32 %v538, %v552
      %v557 = vmul.f32 %v553, 1.442695
      %v558 = vpow.pop %v557
      %v559 = vmul.f32 %v554, 1.442695
      %v560 = vpow.pop %v559
      %v561 = vmul.f32 %v555, 1.442695
      %v562 = vpow.pop %v561
      %v563 = vmul.f32 %v556, 1.442695
      %v564 = vpow.pop %v563
      %v565 = vsel %vm323, %v558, 0.0
      %566 = vadd.xlane.f32.xlu0 %v565
      %v567 = vpop.xlane.xlu0 %566
      %v568 = vsel %vm323, %v560, 0.0
      %569 = vadd.xlane.f32.xlu0 %v568
      %v570 = vpop.xlane.xlu0 %569
      %v571 = vsel %vm323, %v562, 0.0
      %572 = vadd.xlane.f32.xlu0 %v571
      %v573 = vpop.xlane.xlu0 %572
      %v574 = vsel %vm323, %v564, 0.0
      %575 = vadd.xlane.f32.xlu0 %v574
      %v576 = vpop.xlane.xlu0 %575
      %v577 = vrcp.pop %v567
      %v578 = vrcp.pop %v570
      %v579 = vrcp.pop %v573
      %v580 = vrcp.pop %v576
      %v581 = vmul.f32 %v558, %v577
      %v582 = vmul.f32 %v560, %v578
      %v583 = vmul.f32 %v562, %v579
      %v584 = vmul.f32 %v564, %v580
      %v585 = vpack.c.bf16 %v581, %v581
      %v586 = vpack.c.bf16 %v582, %v582
      %v587 = vpack.c.bf16 %v583, %v583
      %v588 = vpack.c.bf16 %v584, %v584
      %v590 = vsel %vm464, %v585, 0
      %vm592 = vcmask 1041408
      %v594 = vsel %vm592, %v300, 0
      %596 = vmatpush.bf16.msra.mxu0 0
      %597 = vmatpush.bf16.msra.mxu0 0
      %598 = vmatpush.bf16.msra.mxu0 0
      %599 = vmatpush.bf16.msra.mxu0 0
      %600 = vmatpush.bf16.msra.mxu0 0
      %601 = vmatpush.bf16.msra.mxu0 0
      %602 = vmatpush.bf16.msra.mxu0 0
      %603 = vmatpush.bf16.msra.mxu0 %v594
      %604 = vmatmul.bf16.gmra.mxu0 %v590
      %v605 = vpop.f32.mrf.mxu0
      %v606 = vadd.f32 0.0, %v605
      %v607 = vpop.f32.mrf.mxu0
      %608 = vdwg.mxu0
      %v610 = vsel %vm464, %v586, 0
      %v613 = vsel %vm592, %v302, 0
      %615 = vmatpush.bf16.msra.mxu0 0
      %616 = vmatpush.bf16.msra.mxu0 0
      %617 = vmatpush.bf16.msra.mxu0 0
      %618 = vmatpush.bf16.msra.mxu0 0
      %619 = vmatpush.bf16.msra.mxu0 0
      %620 = vmatpush.bf16.msra.mxu0 0
      %621 = vmatpush.bf16.msra.mxu0 0
      %622 = vmatpush.bf16.msra.mxu0 %v613
      %623 = vmatmul.bf16.gmra.mxu0 %v610
      %v624 = vpop.f32.mrf.mxu0
      %v625 = vadd.f32 0.0, %v624
      %v626 = vpop.f32.mrf.mxu0
      %627 = vdwg.mxu0
      %v629 = vsel %vm464, %v587, 0
      %v632 = vsel %vm592, %v304, 0
      %634 = vmatpush.bf16.msra.mxu0 0
      %635 = vmatpush.bf16.msra.mxu0 0
      %636 = vmatpush.bf16.msra.mxu0 0
      %637 = vmatpush.bf16.msra.mxu0 0
      %638 = vmatpush.bf16.msra.mxu0 0
      %639 = vmatpush.bf16.msra.mxu0 0
      %640 = vmatpush.bf16.msra.mxu0 0
      %641 = vmatpush.bf16.msra.mxu0 %v632
      %642 = vmatmul.bf16.gmra.mxu0 %v629
      %v643 = vpop.f32.mrf.mxu0
      %v644 = vadd.f32 0.0, %v643
      %v645 = vpop.f32.mrf.mxu0
      %646 = vdwg.mxu0
      %v648 = vsel %vm464, %v588, 0
      %v651 = vsel %vm592, %v306, 0
      %653 = vmatpush.bf16.msra.mxu0 0
      %654 = vmatpush.bf16.msra.mxu0 0
      %655 = vmatpush.bf16.msra.mxu0 0
      %656 = vmatpush.bf16.msra.mxu0 0
      %657 = vmatpush.bf16.msra.mxu0 0
      %658 = vmatpush.bf16.msra.mxu0 0
      %659 = vmatpush.bf16.msra.mxu0 0
      %660 = vmatpush.bf16.msra.mxu0 %v651
      %661 = vmatmul.bf16.gmra.mxu0 %v648
      %v662 = vpop.f32.mrf.mxu0
      %v663 = vadd.f32 0.0, %v662
      %v664 = vpop.f32.mrf.mxu0
      %665 = vdwg.mxu0
      %666 = vst.msk [vmem:[%s281] sm:$0xf] %vm323, %v606
      %667 = vst.msk [vmem:[%s281 + $0x8] sm:$0xf] %vm323, %v625
      %668 = vst.msk [vmem:[%s281 + $0x10] sm:$0xf] %vm323, %v644
      %669 = vst.msk [vmem:[%s281 + $0x18] sm:$0xf] %vm323, %v663
      %v670 = vunpack.c.l.bf16 %v285
      %v671 = vunpack.c.l.bf16 %v287
      %v672 = vunpack.c.l.bf16 %v289
      %v673 = vunpack.c.l.bf16 %v291
      %v674 = vunpack.c.l.bf16 %v293
      %v675 = vunpack.c.l.bf16 %v295
      %v676 = vunpack.c.l.bf16 %v297
      %v677 = vunpack.c.l.bf16 %v299
      %v678 = vmul.f32 %v670, %v670
      %v679 = vmul.f32 %v671, %v671
      %v680 = vmul.f32 %v672, %v672
      %v681 = vmul.f32 %v673, %v673
      %v682 = vsel %vm323, %v678, 0.0
      %683 = vadd.xlane.f32.xlu0 %v682
      %v684 = vpop.xlane.xlu0 %683
      %v685 = vsel %vm323, %v679, 0.0
      %686 = vadd.xlane.f32.xlu0 %v685
      %v687 = vpop.xlane.xlu0 %686
      %v688 = vsel %vm323, %v680, 0.0
      %689 = vadd.xlane.f32.xlu0 %v688
      %v690 = vpop.xlane.xlu0 %689
      %v691 = vsel %vm323, %v681, 0.0
      %692 = vadd.xlane.f32.xlu0 %v691
      %v693 = vpop.xlane.xlu0 %692
      %v694 = vmax.f32 %v684, 1e-24
      %v695 = vmax.f32 %v687, 1e-24
      %v696 = vmax.f32 %v690, 1e-24
      %v697 = vmax.f32 %v693, 1e-24
      %v698 = vrsqrt.pop %v694
      %v699 = vmul.f32 %v698, %v694
      %v700 = vmul.f32 %v699, %v698
      %v701 = vmul.f32 0.5, %v700
      %v702 = vsub.f32 1.5, %v701
      %v703 = vmul.f32 %v698, %v702
      %vm704 = vweird.f32 %v694
      %vm705 = vweird.f32 %v698
      %vm706 = vmor %vm704, %vm705
      %v707 = vsel %vm706, %v698, %v703
      %v708 = vrsqrt.pop %v695
      %v709 = vmul.f32 %v708, %v695
      %v710 = vmul.f32 %v709, %v708
      %v711 = vmul.f32 0.5, %v710
      %v712 = vsub.f32 1.5, %v711
      %v713 = vmul.f32 %v708, %v712
      %vm714 = vweird.f32 %v695
      %vm715 = vweird.f32 %v708
      %vm716 = vmor %vm714, %vm715
      %v717 = vsel %vm716, %v708, %v713
      %v718 = vrsqrt.pop %v696
      %v719 = vmul.f32 %v718, %v696
      %v720 = vmul.f32 %v719, %v718
      %v721 = vmul.f32 0.5, %v720
      %v722 = vsub.f32 1.5, %v721
      %v723 = vmul.f32 %v718, %v722
      %vm724 = vweird.f32 %v696
      %vm725 = vweird.f32 %v718
      %vm726 = vmor %vm724, %vm725
      %v727 = vsel %vm726, %v718, %v723
      %v728 = vrsqrt.pop %v697
      %v729 = vmul.f32 %v728, %v697
      %v730 = vmul.f32 %v729, %v728
      %v731 = vmul.f32 0.5, %v730
      %v732 = vsub.f32 1.5, %v731
      %v733 = vmul.f32 %v728, %v732
      %vm734 = vweird.f32 %v697
      %vm735 = vweird.f32 %v728
      %vm736 = vmor %vm734, %vm735
      %v737 = vsel %vm736, %v728, %v733
      %v738 = vmul.f32 %v670, %v707
      %v739 = vmul.f32 %v671, %v717
      %v740 = vmul.f32 %v672, %v727
      %v741 = vmul.f32 %v673, %v737
      %v742 = vmul.f32 %v674, %v674
      %v743 = vmul.f32 %v675, %v675
      %v744 = vmul.f32 %v676, %v676
      %v745 = vmul.f32 %v677, %v677
      %v746 = vsel %vm323, %v742, 0.0
      %747 = vadd.xlane.f32.xlu0 %v746
      %v748 = vpop.xlane.xlu0 %747
      %v749 = vsel %vm323, %v743, 0.0
      %750 = vadd.xlane.f32.xlu0 %v749
      %v751 = vpop.xlane.xlu0 %750
      %v752 = vsel %vm323, %v744, 0.0
      %753 = vadd.xlane.f32.xlu0 %v752
      %v754 = vpop.xlane.xlu0 %753
      %v755 = vsel %vm323, %v745, 0.0
      %756 = vadd.xlane.f32.xlu0 %v755
      %v757 = vpop.xlane.xlu0 %756
      %v758 = vmax.f32 %v748, 1e-24
      %v759 = vmax.f32 %v751, 1e-24
      %v760 = vmax.f32 %v754, 1e-24
      %v761 = vmax.f32 %v757, 1e-24
      %v762 = vrsqrt.pop %v758
      %v763 = vmul.f32 %v762, %v758
      %v764 = vmul.f32 %v763, %v762
      %v765 = vmul.f32 0.5, %v764
      %v766 = vsub.f32 1.5, %v765
      %v767 = vmul.f32 %v762, %v766
      %vm768 = vweird.f32 %v758
      %vm769 = vweird.f32 %v762
      %vm770 = vmor %vm768, %vm769
      %v771 = vsel %vm770, %v762, %v767
      %v772 = vrsqrt.pop %v759
      %v773 = vmul.f32 %v772, %v759
      %v774 = vmul.f32 %v773, %v772
      %v775 = vmul.f32 0.5, %v774
      %v776 = vsub.f32 1.5, %v775
      %v777 = vmul.f32 %v772, %v776
      %vm778 = vweird.f32 %v759
      %vm779 = vweird.f32 %v772
      %vm780 = vmor %vm778, %vm779
      %v781 = vsel %vm780, %v772, %v777
      %v782 = vrsqrt.pop %v760
      %v783 = vmul.f32 %v782, %v760
      %v784 = vmul.f32 %v783, %v782
      %v785 = vmul.f32 0.5, %v784
      %v786 = vsub.f32 1.5, %v785
      %v787 = vmul.f32 %v782, %v786
      %vm788 = vweird.f32 %v760
      %vm789 = vweird.f32 %v782
      %vm790 = vmor %vm788, %vm789
      %v791 = vsel %vm790, %v782, %v787
      %v792 = vrsqrt.pop %v761
      %v793 = vmul.f32 %v792, %v761
      %v794 = vmul.f32 %v793, %v792
      %v795 = vmul.f32 0.5, %v794
      %v796 = vsub.f32 1.5, %v795
      %v797 = vmul.f32 %v792, %v796
      %vm798 = vweird.f32 %v761
      %vm799 = vweird.f32 %v792
      %vm800 = vmor %vm798, %vm799
      %v801 = vsel %vm800, %v792, %v797
      %v802 = vmul.f32 %v674, %v771
      %v803 = vmul.f32 %v675, %v781
      %v804 = vmul.f32 %v676, %v791
      %v805 = vmul.f32 %v677, %v801
      %v806 = vrot.slane %v310, 1
      %s807 = vtos %v806
      %v808 = vstv %s807
      %v810 = vmul.f32 %v738, %v808
      %v811 = vmul.f32 %v739, %v808
      %v812 = vmul.f32 %v740, %v808
      %v813 = vmul.f32 %v741, %v808
      %v814 = vpack.c.bf16 %v810, %v810
      %v815 = vpack.c.bf16 %v811, %v811
      %v816 = vpack.c.bf16 %v812, %v812
      %v817 = vpack.c.bf16 %v813, %v813
      %v818 = vpack.c.bf16 %v802, %v802
      %v819 = vpack.c.bf16 %v803, %v803
      %v820 = vpack.c.bf16 %v804, %v804
      %v821 = vpack.c.bf16 %v805, %v805
      %v823 = vsel %vm464, %v814, 0
      %v826 = vsel %vm464, %v818, 0
      %828 = vmatpush.bf16.xpose.msra.mxu0 0
      %829 = vmatpush.bf16.xpose.msra.mxu0 0
      %830 = vmatpush.bf16.xpose.msra.mxu0 0
      %831 = vmatpush.bf16.xpose.msra.mxu0 0
      %832 = vmatpush.bf16.xpose.msra.mxu0 0
      %833 = vmatpush.bf16.xpose.msra.mxu0 0
      %834 = vmatpush.bf16.xpose.msra.mxu0 0
      %835 = vmatpush.bf16.xpose.msra.mxu0 %v826
      %836 = vmatmul.bf16.gmra.mxu0 %v823
      %v837 = vpop.f32.mrf.mxu0
      %v838 = vadd.f32 %v309, %v837
      %v839 = vpop.f32.mrf.mxu0
      %840 = vdwg.mxu0
      %v842 = vsel %vm464, %v815, 0
      %v845 = vsel %vm464, %v819, 0
      %847 = vmatpush.bf16.xpose.msra.mxu0 0
      %848 = vmatpush.bf16.xpose.msra.mxu0 0
      %849 = vmatpush.bf16.xpose.msra.mxu0 0
      %850 = vmatpush.bf16.xpose.msra.mxu0 0
      %851 = vmatpush.bf16.xpose.msra.mxu0 0
      %852 = vmatpush.bf16.xpose.msra.mxu0 0
      %853 = vmatpush.bf16.xpose.msra.mxu0 0
      %854 = vmatpush.bf16.xpose.msra.mxu0 %v845
      %855 = vmatmul.bf16.gmra.mxu0 %v842
      %v856 = vpop.f32.mrf.mxu0
      %v857 = vadd.f32 %v309, %v856
      %v858 = vpop.f32.mrf.mxu0
      %859 = vdwg.mxu0
      %v861 = vsel %vm464, %v816, 0
      %v864 = vsel %vm464, %v820, 0
      %866 = vmatpush.bf16.xpose.msra.mxu0 0
      %867 = vmatpush.bf16.xpose.msra.mxu0 0
      %868 = vmatpush.bf16.xpose.msra.mxu0 0
      %869 = vmatpush.bf16.xpose.msra.mxu0 0
      %870 = vmatpush.bf16.xpose.msra.mxu0 0
      %871 = vmatpush.bf16.xpose.msra.mxu0 0
      %872 = vmatpush.bf16.xpose.msra.mxu0 0
      %873 = vmatpush.bf16.xpose.msra.mxu0 %v864
      %874 = vmatmul.bf16.gmra.mxu0 %v861
      %v875 = vpop.f32.mrf.mxu0
      %v876 = vadd.f32 %v309, %v875
      %v877 = vpop.f32.mrf.mxu0
      %878 = vdwg.mxu0
      %v880 = vsel %vm464, %v817, 0
      %v883 = vsel %vm464, %v821, 0
      %885 = vmatpush.bf16.xpose.msra.mxu0 0
      %886 = vmatpush.bf16.xpose.msra.mxu0 0
      %887 = vmatpush.bf16.xpose.msra.mxu0 0
      %888 = vmatpush.bf16.xpose.msra.mxu0 0
      %889 = vmatpush.bf16.xpose.msra.mxu0 0
      %890 = vmatpush.bf16.xpose.msra.mxu0 0
      %891 = vmatpush.bf16.xpose.msra.mxu0 0
      %892 = vmatpush.bf16.xpose.msra.mxu0 %v883
      %893 = vmatmul.bf16.gmra.mxu0 %v880
      %v894 = vpop.f32.mrf.mxu0
      %v895 = vadd.f32 %v309, %v894
      %v896 = vpop.f32.mrf.mxu0
      %897 = vdwg.mxu0
      %v898 = vsel %vm323, %v838, -inf
      %899 = vmax.xlane.f32.xlu0 %v898
      %v900 = vpop.xlane.xlu0 %899
      %v901 = vsel %vm323, %v857, -inf
      %902 = vmax.xlane.f32.xlu0 %v901
      %v903 = vpop.xlane.xlu0 %902
      %v904 = vsel %vm323, %v876, -inf
      %905 = vmax.xlane.f32.xlu0 %v904
      %v906 = vpop.xlane.xlu0 %905
      %v907 = vsel %vm323, %v895, -inf
      %908 = vmax.xlane.f32.xlu0 %v907
      %v909 = vpop.xlane.xlu0 %908
      %v910 = vsub.f32 %v838, %v900
      %v911 = vsub.f32 %v857, %v903
      %v912 = vsub.f32 %v876, %v906
      %v913 = vsub.f32 %v895, %v909
      %v914 = vmul.f32 %v910, 1.442695
      %v915 = vpow.pop %v914
      %v916 = vmul.f32 %v911, 1.442695
      %v917 = vpow.pop %v916
      %v918 = vmul.f32 %v912, 1.442695
      %v919 = vpow.pop %v918
      %v920 = vmul.f32 %v913, 1.442695
      %v921 = vpow.pop %v920
      %v922 = vsel %vm323, %v915, 0.0
      %923 = vadd.xlane.f32.xlu0 %v922
      %v924 = vpop.xlane.xlu0 %923
      %v925 = vsel %vm323, %v917, 0.0
      %926 = vadd.xlane.f32.xlu0 %v925
      %v927 = vpop.xlane.xlu0 %926
      %v928 = vsel %vm323, %v919, 0.0
      %929 = vadd.xlane.f32.xlu0 %v928
      %v930 = vpop.xlane.xlu0 %929
      %v931 = vsel %vm323, %v921, 0.0
      %932 = vadd.xlane.f32.xlu0 %v931
      %v933 = vpop.xlane.xlu0 %932
      %v934 = vrcp.pop %v924
      %v935 = vrcp.pop %v927
      %v936 = vrcp.pop %v930
      %v937 = vrcp.pop %v933
      %v938 = vmul.f32 %v915, %v934
      %v939 = vmul.f32 %v917, %v935
      %v940 = vmul.f32 %v919, %v936
      %v941 = vmul.f32 %v921, %v937
      %v942 = vpack.c.bf16 %v938, %v938
      %v943 = vpack.c.bf16 %v939, %v939
      %v944 = vpack.c.bf16 %v940, %v940
      %v945 = vpack.c.bf16 %v941, %v941
      %v947 = vsel %vm464, %v942, 0
      %v950 = vsel %vm592, %v301, 0
      %952 = vmatpush.bf16.msra.mxu0 0
      %953 = vmatpush.bf16.msra.mxu0 0
      %954 = vmatpush.bf16.msra.mxu0 0
      %955 = vmatpush.bf16.msra.mxu0 0
      %956 = vmatpush.bf16.msra.mxu0 0
      %957 = vmatpush.bf16.msra.mxu0 0
      %958 = vmatpush.bf16.msra.mxu0 0
      %959 = vmatpush.bf16.msra.mxu0 %v950
      %960 = vmatmul.bf16.gmra.mxu0 %v947
      %v961 = vpop.f32.mrf.mxu0
      %v962 = vadd.f32 0.0, %v961
      %v963 = vpop.f32.mrf.mxu0
      %964 = vdwg.mxu0
      %v966 = vsel %vm464, %v943, 0
      %v969 = vsel %vm592, %v303, 0
      %971 = vmatpush.bf16.msra.mxu0 0
      %972 = vmatpush.bf16.msra.mxu0 0
      %973 = vmatpush.bf16.msra.mxu0 0
      %974 = vmatpush.bf16.msra.mxu0 0
      %975 = vmatpush.bf16.msra.mxu0 0
      %976 = vmatpush.bf16.msra.mxu0 0
      %977 = vmatpush.bf16.msra.mxu0 0
      %978 = vmatpush.bf16.msra.mxu0 %v969
      %979 = vmatmul.bf16.gmra.mxu0 %v966
      %v980 = vpop.f32.mrf.mxu0
      %v981 = vadd.f32 0.0, %v980
      %v982 = vpop.f32.mrf.mxu0
      %983 = vdwg.mxu0
      %v985 = vsel %vm464, %v944, 0
      %v988 = vsel %vm592, %v305, 0
      %990 = vmatpush.bf16.msra.mxu0 0
      %991 = vmatpush.bf16.msra.mxu0 0
      %992 = vmatpush.bf16.msra.mxu0 0
      %993 = vmatpush.bf16.msra.mxu0 0
      %994 = vmatpush.bf16.msra.mxu0 0
      %995 = vmatpush.bf16.msra.mxu0 0
      %996 = vmatpush.bf16.msra.mxu0 0
      %997 = vmatpush.bf16.msra.mxu0 %v988
      %998 = vmatmul.bf16.gmra.mxu0 %v985
      %v999 = vpop.f32.mrf.mxu0
      %v1000 = vadd.f32 0.0, %v999
      %v1001 = vpop.f32.mrf.mxu0
      %1002 = vdwg.mxu0
      %v1004 = vsel %vm464, %v945, 0
      %v1007 = vsel %vm592, %v307, 0
      %1009 = vmatpush.bf16.msra.mxu0 0
      %1010 = vmatpush.bf16.msra.mxu0 0
      %1011 = vmatpush.bf16.msra.mxu0 0
      %1012 = vmatpush.bf16.msra.mxu0 0
      %1013 = vmatpush.bf16.msra.mxu0 0
      %1014 = vmatpush.bf16.msra.mxu0 0
      %1015 = vmatpush.bf16.msra.mxu0 0
      %1016 = vmatpush.bf16.msra.mxu0 %v1007
      %1017 = vmatmul.bf16.gmra.mxu0 %v1004
      %v1018 = vpop.f32.mrf.mxu0
      %v1019 = vadd.f32 0.0, %v1018
      %v1020 = vpop.f32.mrf.mxu0
      %1021 = vdwg.mxu0
      %s1022 = scalar_lea.vmem %s281, 4
      %1023 = vst.msk [vmem:[%s1022] sm:$0xf] %vm323, %v962
      %1024 = vst.msk [vmem:[%s1022 + $0x8] sm:$0xf] %vm323, %v981
      %1025 = vst.msk [vmem:[%s1022 + $0x10] sm:$0xf] %vm323, %v1000
      %1026 = vst.msk [vmem:[%s1022 + $0x18] sm:$0xf] %vm323, %v1019
      %s1027 = smul.u32 4, %s16
      %p1028 = scmp.lt.s32.totalorder %s1027, 7
      %s1029 = scalar_select %p1028, %s1027, 7
      %s1030 = smul.addr %s1029, 2
      %s1031 = smul.addr %s1030, 4
      %s1032 = scalar_lea.vmem %s5, %s1031
      // Predicated region
      $region41: #{_lambda_.20} parent=39 // pred_check
        %p1033 = pneg %p154
      $region42: #{_lambda_.20} parent=39 // pred_check_branch
        %1035 = sbr.rel (%p1033) target = $region44
      $region43: #{_lambda_.20} parent=39 // pred_region
        %s1036 = smul.u32 4, %s16
      $region44: #{_lambda_.20} parent=39 // pred_fallthru
        _
    $region40: #{_lambda_.20} parent=5 // pred_fallthru
      _
    %p1037 = scmp.le.s32.totalorder 2, %s11
    // Predicated region
    $region45: #{_lambda_.20} parent=5 // pred_check
      %p1038 = pneg %p1037
    $region46: #{_lambda_.20} parent=5 // pred_check_branch
      %1040 = sbr.rel (%p1038) target = $region48
    $region47: #{_lambda_.20} parent=5 // pred_region
      %s1041 = ssub.s32 %s11, 2
      // Predicated region
      $region49: #{_lambda_.20} parent=47 // pred_check
        %p1042 = pneg %p160
      $region50: #{_lambda_.20} parent=47 // pred_check_branch
        %1044 = sbr.rel (%p1042) target = $region52
      $region51: #{_lambda_.20} parent=47 // pred_region
        %s1045 = smul.u32 4, %s17
        %p1046 = scmp.lt.s32.totalorder %s1045, 7
        %s1047 = scalar_select %p1046, %s1045, 7
        %s1048 = smul.addr %s1047, 2
        %s1049 = smul.addr %s1048, 4
        %s1050 = scalar_lea.vmem %s5, %s1049
      $region52: #{_lambda_.20} parent=47 // pred_fallthru
        _
    $region48: #{_lambda_.20} parent=5 // pred_fallthru
      _
  $region6: #{_lambda_.20} parent=0 // loop_footer
    %s15 = sadd.s32 1, %s11
  $region7: #{_lambda_.20} parent=0 // loop_footer_branch
    %10 = sbr.rel target = $region3
  $region8: #{_lambda_.20} parent=0 // loop_exit
    _

// kernel: _lambda_.22
$region0: #{_lambda_.22}
  #allocation0 [shape = 'u32[]', space=smem, size = 0x4, offset = 0x4, fixed_abs, tag = 'smem constant byte address 0x4 - core index']
  #allocation1 [shape = 'u32[72,128]{1,0:T(1,128)}', space=vmem, size = 0x9000, scoped, tag = 'internal scratch']
  %s0 = inlined_call_operand.vmem [shape: f32[32,8], index: 0, kind: input, shape index: {}]
  %s1 = inlined_call_operand.vmem [shape: bf16[8,32], index: 1, kind: input, shape index: {}]
  %s2 = inlined_call_operand.vmem [shape: f32[1,32], index: 2, kind: input, shape index: {}]
  %s3 = inlined_call_operand.vmem [shape: bf16[32,8], index: 3, kind: input, shape index: {}]
  %s4 = inlined_call_operand.vmem [shape: f32[1,8], index: 4, kind: input, shape index: {}]
  %s5 = inlined_call_operand.vmem [shape: f32[1,8], index: 5, kind: input, shape index: {}]
  %s6 = inlined_call_operand.vmem [shape: f32[1,8], index: 6, kind: input, shape index: {}]
  %s7 = inlined_call_operand.vmem [shape: f32[32,8], index: 7, kind: output, shape index: {}]
  %s8 = sld [smem:[#allocation0]]
  $region38: #{_lambda_.22} parent=0
    _
  %s10 = ssub.s32 1, %s8
  %s11 = scalar_select 0, %s10, %s8
  // Predicated region
  $region2: #{_lambda_.22} parent=0 // pred_check
    _
  $region3: #{_lambda_.22} parent=0 // pred_check_branch
    %13 = sbr.rel (0) target = $region5
  $region4: #{_lambda_.22} parent=0 // pred_region
    _
  $region5: #{_lambda_.22} parent=0 // pred_fallthru
    _
  // Predicated region
  $region6: #{_lambda_.22} parent=0 // pred_check
    _
  $region7: #{_lambda_.22} parent=0 // pred_check_branch
    %15 = sbr.rel (0) target = $region9
  $region8: #{_lambda_.22} parent=0 // pred_region
    _
  $region9: #{_lambda_.22} parent=0 // pred_fallthru
    _
  // Predicated region
  $region10: #{_lambda_.22} parent=0 // pred_check
    _
  $region11: #{_lambda_.22} parent=0 // pred_check_branch
    %17 = sbr.rel (0) target = $region13
  $region12: #{_lambda_.22} parent=0 // pred_region
    _
  $region13: #{_lambda_.22} parent=0 // pred_fallthru
    _
  // Predicated region
  $region14: #{_lambda_.22} parent=0 // pred_check
    _
  $region15: #{_lambda_.22} parent=0 // pred_check_branch
    %19 = sbr.rel (0) target = $region17
  $region16: #{_lambda_.22} parent=0 // pred_region
    _
  $region17: #{_lambda_.22} parent=0 // pred_fallthru
    _
  // Predicated region
  $region18: #{_lambda_.22} parent=0 // pred_check
    _
  $region19: #{_lambda_.22} parent=0 // pred_check_branch
    %21 = sbr.rel (0) target = $region21
  $region20: #{_lambda_.22} parent=0 // pred_region
    _
  $region21: #{_lambda_.22} parent=0 // pred_fallthru
    _
  // Predicated region
  $region22: #{_lambda_.22} parent=0 // pred_check
    _
  $region23: #{_lambda_.22} parent=0 // pred_check_branch
    %23 = sbr.rel (0) target = $region25
  $region24: #{_lambda_.22} parent=0 // pred_region
    _
  $region25: #{_lambda_.22} parent=0 // pred_fallthru
    _
  // Predicated region
  $region26: #{_lambda_.22} parent=0 // pred_check
    _
  $region27: #{_lambda_.22} parent=0 // pred_check_branch
    %25 = sbr.rel (0) target = $region29
  $region28: #{_lambda_.22} parent=0 // pred_region
    _
  $region29: #{_lambda_.22} parent=0 // pred_fallthru
    _
  %v27 = vld [vmem:[%s0] sm:$0xff]
  %v28 = vld [vmem:[%s0 + $0x8] sm:$0xff]
  %v29 = vld [vmem:[%s0 + $0x10] sm:$0xff]
  %v30 = vld [vmem:[%s0 + $0x18] sm:$0xff]
  %v31 = vpack.c.bf16 %v28, %v27
  %v32 = vpack.c.bf16 %v30, %v29
  %v33 = vld [vmem:[%s1] sm:$0xf]
  %v34 = vld [vmem:[%s2] sm:$0x1]
  %v36 = vperm.slane %v34, 0
  %vm38 = vcmask 64512
  %v40 = vsel %vm38, %v31, 0
  %v43 = vsel %vm38, %v32, 0
  %vm45 = vcmask 1043456
  %v47 = vsel %vm45, %v33, 0
  %49 = vmatpush.bf16.msra.mxu0 0
  %50 = vmatpush.bf16.msra.mxu0 0
  %51 = vmatpush.bf16.msra.mxu0 0
  %52 = vmatpush.bf16.msra.mxu0 0
  %53 = vmatpush.bf16.msra.mxu0 0
  %54 = vmatpush.bf16.msra.mxu0 0
  %55 = vmatpush.bf16.msra.mxu0 0
  %56 = vmatpush.bf16.msra.mxu0 %v47
  %57 = vmatmul.bf16.gmra.mxu0 %v40
  %v58 = vpop.f32.mrf.mxu0
  %v59 = vadd.f32 %v36, %v58
  %v60 = vpop.f32.mrf.mxu0
  %v61 = vadd.f32 %v36, %v60
  %62 = vmatmul.bf16.gmra.mxu0 %v43
  %v63 = vpop.f32.mrf.mxu0
  %v64 = vadd.f32 %v36, %v63
  %v65 = vpop.f32.mrf.mxu0
  %v66 = vadd.f32 %v36, %v65
  %67 = vdwg.mxu0
  %v68 = vmul.f32 %v59, 0.5
  %v69 = vmul.f32 %v61, 0.5
  %v70 = vmul.f32 %v64, 0.5
  %v71 = vmul.f32 %v66, 0.5
  %v72 = vmul.f32 %v59, 0.044715
  %v73 = vmul.f32 %v61, 0.044715
  %v74 = vmul.f32 %v64, 0.044715
  %v75 = vmul.f32 %v66, 0.044715
  %v76 = vmul.f32 %v72, %v59
  %v77 = vmul.f32 %v73, %v61
  %v78 = vmul.f32 %v74, %v64
  %v79 = vmul.f32 %v75, %v66
  %v80 = vmul.f32 %v76, %v59
  %v81 = vmul.f32 %v77, %v61
  %v82 = vmul.f32 %v78, %v64
  %v83 = vmul.f32 %v79, %v66
  %v84 = vadd.f32 %v59, %v80
  %v85 = vadd.f32 %v61, %v81
  %v86 = vadd.f32 %v64, %v82
  %v87 = vadd.f32 %v66, %v83
  %v88 = vmul.f32 %v84, 0.7978846
  %v89 = vmul.f32 %v85, 0.7978846
  %v90 = vmul.f32 %v86, 0.7978846
  %v91 = vmul.f32 %v87, 0.7978846
  %v92 = vtanh.pop %v88
  %v93 = vtanh.pop %v89
  %v94 = vtanh.pop %v90
  %v95 = vtanh.pop %v91
  %v96 = vadd.f32 %v92, 1.0
  %v97 = vadd.f32 %v93, 1.0
  %v98 = vadd.f32 %v94, 1.0
  %v99 = vadd.f32 %v95, 1.0
  %v100 = vmul.f32 %v68, %v96
  %v101 = vmul.f32 %v69, %v97
  %v102 = vmul.f32 %v70, %v98
  %v103 = vmul.f32 %v71, %v99
  %v104 = vpack.c.bf16 %v101, %v100
  %v105 = vpack.c.bf16 %v103, %v102
  %v106 = vld [vmem:[%s3] sm:$0xf]
  %v107 = vld [vmem:[%s3 + $0x4] sm:$0xf]
  %v108 = vld [vmem:[%s3 + $0x8] sm:$0xf]
  %v109 = vld [vmem:[%s3 + $0xc] sm:$0xf]
  %v110 = vld [vmem:[%s4] sm:$0x1]
  %v112 = vperm.slane %v110, 0
  %v118 = vunpack.c.l.b16 %v106
  %v119 = vunpack.c.l.b16 %v107
  %v120 = vunpack.c.l.b16 %v108
  %v121 = vunpack.c.l.b16 %v109
  %v122 = vpack.c.b16 %v119, %v118
  %v123 = vpack.c.b16 %v121, %v120
  %vm126 = vcmask 261120
  %v128 = vsel %vm126, %v104, 0
  %v131 = vsel %vm126, %v105, 0
  %133 = vmatpush.bf16.msra.mxu0 0
  %134 = vmatpush.bf16.msra.mxu0 0
  %135 = vmatpush.bf16.msra.mxu0 0
  %136 = vmatpush.bf16.msra.mxu0 0
  %137 = vmatpush.bf16.msra.mxu0 0
  %138 = vmatpush.bf16.msra.mxu0 0
  %139 = vmatpush.bf16.msra.mxu0 %v123
  %140 = vmatpush.bf16.msra.mxu0 %v122
  %141 = vmatmul.bf16.gmra.mxu0 %v128
  %v142 = vpop.f32.mrf.mxu0
  %v143 = vadd.f32 %v112, %v142
  %v144 = vpop.f32.mrf.mxu0
  %v145 = vadd.f32 %v112, %v144
  %146 = vmatmul.bf16.gmra.mxu0 %v131
  %v147 = vpop.f32.mrf.mxu0
  %v148 = vadd.f32 %v112, %v147
  %v149 = vpop.f32.mrf.mxu0
  %v150 = vadd.f32 %v112, %v149
  %151 = vdwg.mxu0
  %v152 = vsel %vm38, %v143, 0.0
  %153 = vadd.xlane.f32.xlu0 %v152
  %v154 = vpop.xlane.xlu0 %153
  %v155 = vsel %vm38, %v145, 0.0
  %156 = vadd.xlane.f32.xlu0 %v155
  %v157 = vpop.xlane.xlu0 %156
  %v158 = vsel %vm38, %v148, 0.0
  %159 = vadd.xlane.f32.xlu0 %v158
  %v160 = vpop.xlane.xlu0 %159
  %v161 = vsel %vm38, %v150, 0.0
  %162 = vadd.xlane.f32.xlu0 %v161
  %v163 = vpop.xlane.xlu0 %162
  %v164 = vrcp.pop 8.0
  %v165 = vmul.f32 8.0, %v164
  %v166 = vsub.f32 1.0, %v165
  %v167 = vmul.f32 %v164, %v166
  %v168 = vadd.f32 %v164, %v167
  %vm169 = vweird.f32 %v164
  %v170 = vsel %vm169, %v164, %v168
  %v171 = vmul.f32 %v154, %v170
  %v172 = vmul.f32 %v157, %v170
  %v173 = vmul.f32 %v160, %v170
  %v174 = vmul.f32 %v163, %v170
  %v175 = vsub.f32 %v143, %v171
  %v176 = vsub.f32 %v145, %v172
  %v177 = vsub.f32 %v148, %v173
  %v178 = vsub.f32 %v150, %v174
  %v179 = vmul.f32 %v175, %v175
  %v180 = vmul.f32 %v176, %v176
  %v181 = vmul.f32 %v177, %v177
  %v182 = vmul.f32 %v178, %v178
  %v183 = vsel %vm38, %v179, 0.0
  %184 = vadd.xlane.f32.xlu0 %v183
  %v185 = vpop.xlane.xlu0 %184
  %v186 = vsel %vm38, %v180, 0.0
  %187 = vadd.xlane.f32.xlu0 %v186
  %v188 = vpop.xlane.xlu0 %187
  %v189 = vsel %vm38, %v181, 0.0
  %190 = vadd.xlane.f32.xlu0 %v189
  %v191 = vpop.xlane.xlu0 %190
  %v192 = vsel %vm38, %v182, 0.0
  %193 = vadd.xlane.f32.xlu0 %v192
  %v194 = vpop.xlane.xlu0 %193
  %v195 = vmul.f32 %v185, %v170
  %v196 = vmul.f32 %v188, %v170
  %v197 = vmul.f32 %v191, %v170
  %v198 = vmul.f32 %v194, %v170
  %v199 = vadd.f32 %v195, 1e-05
  %v200 = vadd.f32 %v196, 1e-05
  %v201 = vadd.f32 %v197, 1e-05
  %v202 = vadd.f32 %v198, 1e-05
  %v203 = vrsqrt.pop %v199
  %v204 = vmul.f32 %v203, %v199
  %v205 = vmul.f32 %v204, %v203
  %v206 = vmul.f32 0.5, %v205
  %v207 = vsub.f32 1.5, %v206
  %v208 = vmul.f32 %v203, %v207
  %vm209 = vweird.f32 %v199
  %vm210 = vweird.f32 %v203
  %vm211 = vmor %vm209, %vm210
  %v212 = vsel %vm211, %v203, %v208
  %v213 = vrsqrt.pop %v200
  %v214 = vmul.f32 %v213, %v200
  %v215 = vmul.f32 %v214, %v213
  %v216 = vmul.f32 0.5, %v215
  %v217 = vsub.f32 1.5, %v216
  %v218 = vmul.f32 %v213, %v217
  %vm219 = vweird.f32 %v200
  %vm220 = vweird.f32 %v213
  %vm221 = vmor %vm219, %vm220
  %v222 = vsel %vm221, %v213, %v218
  %v223 = vrsqrt.pop %v201
  %v224 = vmul.f32 %v223, %v201
  %v225 = vmul.f32 %v224, %v223
  %v226 = vmul.f32 0.5, %v225
  %v227 = vsub.f32 1.5, %v226
  %v228 = vmul.f32 %v223, %v227
  %vm229 = vweird.f32 %v201
  %vm230 = vweird.f32 %v223
  %vm231 = vmor %vm229, %vm230
  %v232 = vsel %vm231, %v223, %v228
  %v233 = vrsqrt.pop %v202
  %v234 = vmul.f32 %v233, %v202
  %v235 = vmul.f32 %v234, %v233
  %v236 = vmul.f32 0.5, %v235
  %v237 = vsub.f32 1.5, %v236
  %v238 = vmul.f32 %v233, %v237
  %vm239 = vweird.f32 %v202
  %vm240 = vweird.f32 %v233
  %vm241 = vmor %vm239, %vm240
  %v242 = vsel %vm241, %v233, %v238
  %v243 = vmul.f32 %v175, %v212
  %v244 = vmul.f32 %v176, %v222
  %v245 = vmul.f32 %v177, %v232
  %v246 = vmul.f32 %v178, %v242
  %v247 = vld [vmem:[%s5] sm:$0x1]
  %v249 = vperm.slane %v247, 0
  %v251 = vmul.f32 %v243, %v249
  %v252 = vmul.f32 %v244, %v249
  %v253 = vmul.f32 %v245, %v249
  %v254 = vmul.f32 %v246, %v249
  %v255 = vld [vmem:[%s6] sm:$0x1]
  %v257 = vperm.slane %v255, 0
  %v259 = vadd.f32 %v251, %v257
  %v260 = vadd.f32 %v252, %v257
  %v261 = vadd.f32 %v253, %v257
  %v262 = vadd.f32 %v254, %v257
  %v263 = vadd.f32 %v27, %v259
  %v264 = vadd.f32 %v28, %v260
  %v265 = vadd.f32 %v29, %v261
  %v266 = vadd.f32 %v30, %v262
  %267 = vst.msk [vmem:[%s7] sm:$0xff] %vm38, %v263
  %268 = vst.msk [vmem:[%s7 + $0x8] sm:$0xff] %vm38, %v264
  %269 = vst.msk [vmem:[%s7 + $0x10] sm:$0xff] %vm38, %v265
  %270 = vst.msk [vmem:[%s7 + $0x18] sm:$0xff] %vm38, %v266
  // Predicated region
  $region30: #{_lambda_.22} parent=0 // pred_check
    _
  $region31: #{_lambda_.22} parent=0 // pred_check_branch
    %272 = sbr.rel (0) target = $region33
  $region32: #{_lambda_.22} parent=0 // pred_region
    _
  $region33: #{_lambda_.22} parent=0 // pred_fallthru
    _
  // Predicated region
  $region34: #{_lambda_.22} parent=0 // pred_check
    _
  $region35: #{_lambda_.22} parent=0 // pred_check_branch
    %274 = sbr.rel (0) target = $region37
  $region36: #{_lambda_.22} parent=0 // pred_region
    _
  $region37: #{_lambda_.22} parent=0 // pred_fallthru
    _

// kernel: _lambda_.27
$region0: #{_lambda_.27}
  #allocation0 [shape = 'u32[]', space=smem, size = 0x4, offset = 0x4, fixed_abs, tag = 'smem constant byte address 0x4 - core index']
  #allocation1 [shape = 'u32[72,128]{1,0:T(1,128)}', space=vmem, size = 0x9000, scoped, tag = 'internal scratch']
  %s0 = inlined_call_operand.vmem [shape: bf16[8,32], index: 0, kind: input, shape index: {}]
  %s1 = inlined_call_operand.vmem [shape: bf16[32,16], index: 1, kind: input, shape index: {}]
  %s2 = inlined_call_operand.vmem [shape: f32[1,16], index: 2, kind: input, shape index: {}]
  %s3 = inlined_call_operand.vmem [shape: f32[1,16], index: 3, kind: input, shape index: {}]
  %s4 = inlined_call_operand.vmem [shape: f32[1,16], index: 4, kind: input, shape index: {}]
  %s5 = inlined_call_operand.vmem [shape: f32[8,16], index: 5, kind: output, shape index: {}]
  %s6 = sld [smem:[#allocation0]]
  $region30: #{_lambda_.27} parent=0
    _
  %s8 = ssub.s32 1, %s6
  %s9 = scalar_select 0, %s8, %s6
  // Predicated region
  $region2: #{_lambda_.27} parent=0 // pred_check
    _
  $region3: #{_lambda_.27} parent=0 // pred_check_branch
    %11 = sbr.rel (0) target = $region5
  $region4: #{_lambda_.27} parent=0 // pred_region
    _
  $region5: #{_lambda_.27} parent=0 // pred_fallthru
    _
  // Predicated region
  $region6: #{_lambda_.27} parent=0 // pred_check
    _
  $region7: #{_lambda_.27} parent=0 // pred_check_branch
    %13 = sbr.rel (0) target = $region9
  $region8: #{_lambda_.27} parent=0 // pred_region
    _
  $region9: #{_lambda_.27} parent=0 // pred_fallthru
    _
  // Predicated region
  $region10: #{_lambda_.27} parent=0 // pred_check
    _
  $region11: #{_lambda_.27} parent=0 // pred_check_branch
    %15 = sbr.rel (0) target = $region13
  $region12: #{_lambda_.27} parent=0 // pred_region
    _
  $region13: #{_lambda_.27} parent=0 // pred_fallthru
    _
  // Predicated region
  $region14: #{_lambda_.27} parent=0 // pred_check
    _
  $region15: #{_lambda_.27} parent=0 // pred_check_branch
    %17 = sbr.rel (0) target = $region17
  $region16: #{_lambda_.27} parent=0 // pred_region
    _
  $region17: #{_lambda_.27} parent=0 // pred_fallthru
    _
  // Predicated region
  $region18: #{_lambda_.27} parent=0 // pred_check
    _
  $region19: #{_lambda_.27} parent=0 // pred_check_branch
    %19 = sbr.rel (0) target = $region21
  $region20: #{_lambda_.27} parent=0 // pred_region
    _
  $region21: #{_lambda_.27} parent=0 // pred_fallthru
    _
  %v21 = vld [vmem:[%s0] sm:$0xf]
  %v22 = vld [vmem:[%s1] sm:$0xf]
  %v23 = vld [vmem:[%s1 + $0x4] sm:$0xf]
  %v24 = vld [vmem:[%s1 + $0x8] sm:$0xf]
  %v25 = vld [vmem:[%s1 + $0xc] sm:$0xf]
  %v26 = vld [vmem:[%s2] sm:$0x1]
  %v28 = vperm.slane %v26, 0
  %v34 = vunpack.c.l.b16 %v22
  %v35 = vunpack.c.l.b16 %v23
  %v36 = vunpack.c.l.b16 %v24
  %v37 = vunpack.c.l.b16 %v25
  %v38 = vpack.c.b16 %v35, %v34
  %v39 = vpack.c.b16 %v37, %v36
  %vm42 = vcmask 261120
  %v44 = vsel %vm42, %v21, 0
  %46 = vmatpush.bf16.msra.mxu0 0
  %47 = vmatpush.bf16.msra.mxu0 0
  %48 = vmatpush.bf16.msra.mxu0 0
  %49 = vmatpush.bf16.msra.mxu0 0
  %50 = vmatpush.bf16.msra.mxu0 0
  %51 = vmatpush.bf16.msra.mxu0 0
  %52 = vmatpush.bf16.msra.mxu0 %v39
  %53 = vmatpush.bf16.msra.mxu0 %v38
  %54 = vmatmul.bf16.gmra.mxu0 %v44
  %v55 = vpop.f32.mrf.mxu0
  %v56 = vadd.f32 %v28, %v55
  %v57 = vpop.f32.mrf.mxu0
  %58 = vdwg.mxu0
  %vm59 = vcmask 130048
  %v60 = vsel %vm59, %v56, 0.0
  %61 = vadd.xlane.f32.xlu0 %v60
  %v62 = vpop.xlane.xlu0 %61
  %v63 = vrcp.pop 16.0
  %v64 = vmul.f32 16.0, %v63
  %v65 = vsub.f32 1.0, %v64
  %v66 = vmul.f32 %v63, %v65
  %v67 = vadd.f32 %v63, %v66
  %vm68 = vweird.f32 %v63
  %v69 = vsel %vm68, %v63, %v67
  %v70 = vmul.f32 %v62, %v69
  %v71 = vsub.f32 %v56, %v70
  %v72 = vmul.f32 %v71, %v71
  %v73 = vsel %vm59, %v72, 0.0
  %74 = vadd.xlane.f32.xlu0 %v73
  %v75 = vpop.xlane.xlu0 %74
  %v76 = vmul.f32 %v75, %v69
  %v77 = vadd.f32 %v76, 1e-05
  %v78 = vrsqrt.pop %v77
  %v79 = vmul.f32 %v78, %v77
  %v80 = vmul.f32 %v79, %v78
  %v81 = vmul.f32 0.5, %v80
  %v82 = vsub.f32 1.5, %v81
  %v83 = vmul.f32 %v78, %v82
  %vm84 = vweird.f32 %v77
  %vm85 = vweird.f32 %v78
  %vm86 = vmor %vm84, %vm85
  %v87 = vsel %vm86, %v78, %v83
  %v88 = vmul.f32 %v71, %v87
  %v89 = vld [vmem:[%s3] sm:$0x1]
  %v91 = vperm.slane %v89, 0
  %v93 = vmul.f32 %v88, %v91
  %v94 = vld [vmem:[%s4] sm:$0x1]
  %v96 = vperm.slane %v94, 0
  %v98 = vadd.f32 %v93, %v96
  %99 = vst.msk [vmem:[%s5] sm:$0xff] %vm59, %v98
  // Predicated region
  $region22: #{_lambda_.27} parent=0 // pred_check
    _
  $region23: #{_lambda_.27} parent=0 // pred_check_branch
    %101 = sbr.rel (0) target = $region25
  $region24: #{_lambda_.27} parent=0 // pred_region
    _
  $region25: #{_lambda_.27} parent=0 // pred_fallthru
    _
  // Predicated region
  $region26: #{_lambda_.27} parent=0 // pred_check
    _
  $region27: #{_lambda_.27} parent=0 // pred_check_branch
    %103 = sbr.rel (0) target = $region29
  $region28: #{_lambda_.27} parent=0 // pred_region
    _
  $region29: #{_lambda_.27} parent=0 // pred_fallthru
    _

// kernel: _lambda_.28
$region0: #{_lambda_.28}
  #allocation0 [shape = 'u32[]', space=smem, size = 0x4, offset = 0x4, fixed_abs, tag = 'smem constant byte address 0x4 - core index']
  #allocation1 [shape = 'u32[72,128]{1,0:T(1,128)}', space=vmem, size = 0x9000, scoped, tag = 'internal scratch']
  %s0 = inlined_call_operand.vmem [shape: bf16[8,16], index: 0, kind: input, shape index: {}]
  %s1 = inlined_call_operand.vmem [shape: bf16[16,48], index: 1, kind: input, shape index: {}]
  %s2 = inlined_call_operand.vmem [shape: f32[1,48], index: 2, kind: input, shape index: {}]
  %s3 = inlined_call_operand.vmem [shape: f32[8,48], index: 3, kind: output, shape index: {}]
  %s4 = sld [smem:[#allocation0]]
  $region22: #{_lambda_.28} parent=0
    _
  %s6 = ssub.s32 1, %s4
  %s7 = scalar_select 0, %s6, %s4
  // Predicated region
  $region2: #{_lambda_.28} parent=0 // pred_check
    _
  $region3: #{_lambda_.28} parent=0 // pred_check_branch
    %9 = sbr.rel (0) target = $region5
  $region4: #{_lambda_.28} parent=0 // pred_region
    _
  $region5: #{_lambda_.28} parent=0 // pred_fallthru
    _
  // Predicated region
  $region6: #{_lambda_.28} parent=0 // pred_check
    _
  $region7: #{_lambda_.28} parent=0 // pred_check_branch
    %11 = sbr.rel (0) target = $region9
  $region8: #{_lambda_.28} parent=0 // pred_region
    _
  $region9: #{_lambda_.28} parent=0 // pred_fallthru
    _
  // Predicated region
  $region10: #{_lambda_.28} parent=0 // pred_check
    _
  $region11: #{_lambda_.28} parent=0 // pred_check_branch
    %13 = sbr.rel (0) target = $region13
  $region12: #{_lambda_.28} parent=0 // pred_region
    _
  $region13: #{_lambda_.28} parent=0 // pred_fallthru
    _
  %v15 = vld [vmem:[%s0] sm:$0xf]
  %v16 = vld [vmem:[%s1] sm:$0xf]
  %v17 = vld [vmem:[%s1 + $0x4] sm:$0xf]
  %v18 = vld [vmem:[%s2] sm:$0x1]
  %v20 = vperm.slane %v18, 0
  %v24 = vunpack.c.l.b16 %v16
  %v25 = vunpack.c.l.b16 %v17
  %v26 = vpack.c.b16 %v25, %v24
  %vm28 = vcmask 130048
  %v30 = vsel %vm28, %v15, 0
  %32 = vmatpush.bf16.msra.mxu0 0
  %33 = vmatpush.bf16.msra.mxu0 0
  %34 = vmatpush.bf16.msra.mxu0 0
  %35 = vmatpush.bf16.msra.mxu0 0
  %36 = vmatpush.bf16.msra.mxu0 0
  %37 = vmatpush.bf16.msra.mxu0 0
  %38 = vmatpush.bf16.msra.mxu0 0
  %39 = vmatpush.bf16.msra.mxu0 %v26
  %40 = vmatmul.bf16.gmra.mxu0 %v30
  %v41 = vpop.f32.mrf.mxu0
  %v42 = vadd.f32 %v20, %v41
  %v43 = vpop.f32.mrf.mxu0
  %44 = vdwg.mxu0
  %vm45 = vcmask 392192
  %46 = vst.msk [vmem:[%s3] sm:$0xff] %vm45, %v42
  // Predicated region
  $region14: #{_lambda_.28} parent=0 // pred_check
    _
  $region15: #{_lambda_.28} parent=0 // pred_check_branch
    %48 = sbr.rel (0) target = $region17
  $region16: #{_lambda_.28} parent=0 // pred_region
    _
  $region17: #{_lambda_.28} parent=0 // pred_fallthru
    _
  // Predicated region
  $region18: #{_lambda_.28} parent=0 // pred_check
    _
  $region19: #{_lambda_.28} parent=0 // pred_check_branch
    %50 = sbr.rel (0) target = $region21
  $region20: #{_lambda_.28} parent=0 // pred_region
    _
  $region21: #{_lambda_.28} parent=0 // pred_fallthru
    _

// kernel: _lambda_.24
$region0: #{_lambda_.24}
  #allocation0 [shape = 'u32[]', space=smem, size = 0x4, offset = 0x4, fixed_abs, tag = 'smem constant byte address 0x4 - core index']
  #allocation1 [shape = 'u32[72,128]{1,0:T(1,128)}', space=vmem, size = 0x9000, scoped, tag = 'internal scratch']
  %s0 = inlined_call_operand.vmem [shape: bf16[8,2,4,4], index: 0, kind: input, shape index: {}]
  %s1 = inlined_call_operand.vmem [shape: bf16[8,2,4,4], index: 1, kind: input, shape index: {}]
  %s2 = inlined_call_operand.vmem [shape: bf16[8,2,4,4], index: 2, kind: input, shape index: {}]
  %s3 = inlined_call_operand.vmem [shape: f32[2,4,4], index: 3, kind: input, shape index: {}]
  %s4 = inlined_call_operand.vmem [shape: f32[2,1], index: 4, kind: input, shape index: {}]
  %s5 = inlined_call_operand.vmem [shape: f32[4,4,4], index: 5, kind: input, shape index: {}]
  %s6 = inlined_call_operand.vmem [shape: f32[8,2,4,4], index: 6, kind: output, shape index: {}]
  %s7 = sld [smem:[#allocation0]]
  $region57: #{_lambda_.24} parent=0
    _
  %s9 = ssub.s32 1, %s7
  %s10 = scalar_select 0, %s9, %s7
  loop: start=0, step=1, limit=4
  $region2: #{_lambda_.24} parent=0 // loop_pre_header
    _
  $region3: #{_lambda_.24} parent=0 // loop_header
    %s12 = sphi 0, %s16
    %p13 = scmp.ge.s32.totalorder %s12, 4
    %s22 = sphi 0, %s24
    %s25 = sphi 0, %s22
    %s26 = sphi 0, %s25
    %s42 = sphi 0, %s26
    %s48 = sphi 0, %s50
    %s51 = sphi 0, %s48
    %s52 = sphi 0, %s51
    %s68 = sphi 0, %s52
    %s74 = sphi 0, %s76
    %s77 = sphi 0, %s74
    %s78 = sphi 0, %s77
    %s94 = sphi 0, %s78
    %s98 = sphi 0, %s98
    %s100 = sphi 0, %s98
    %s101 = sphi 0, %s100
    %s115 = sphi 0, %s101
    %s119 = sphi 0, %s119
    %s121 = sphi 0, %s119
    %s122 = sphi 0, %s121
    %s136 = sphi 0, %s122
    %s140 = sphi 0, %s140
    %s142 = sphi 0, %s140
    %s143 = sphi 0, %s142
    %s157 = sphi 0, %s143
    %s163 = sphi 0, %s165
    %s166 = sphi 0, %s163
    %s167 = sphi 0, %s166
    %s183 = sphi 0, %s167
  $region4: #{_lambda_.24} parent=0 // loop_header_branch
    %15 = sbr.rel (%p13) target = $region8
  $region5: #{_lambda_.24} parent=0 // loop_body
    %s17 = ssub.s32 %s12, 1
    %s18 = ssub.s32 %s12, 2
    %s19 = sadd.s32 %s12, 1
    %s20 = ssub.s32 %s12, %s19
    %p21 = scmp.eq.s32.totalorder %s20, 0
    %s23 = sadd.s32 %s22, 1
    %s24 = scalar_select %p21, %s22, %s23
    %p27 = pneg %p21
    %p28 = scmp.eq.s32.totalorder %s12, 1
    %p29 = por %p27, %p28
    %p30 = scmp.ne.s32.totalorder %s22, %s25
    %p31 = scmp.eq.s32.totalorder %s12, 0
    %p32 = por %p30, %p31
    %p33 = scmp.ne.s32.totalorder %s22, %s25
    %p34 = scmp.eq.s32.totalorder %s17, 1
    %p35 = por %p33, %p34
    %p36 = scmp.ne.s32.totalorder %s25, %s26
    %p37 = scmp.eq.s32.totalorder %s17, 0
    %p38 = por %p36, %p37
    %p39 = scmp.ne.s32.totalorder %s25, %s26
    %p40 = scmp.eq.s32.totalorder %s18, 1
    %p41 = por %p39, %p40
    %p43 = scmp.ne.s32.totalorder %s26, %s42
    %p44 = scmp.eq.s32.totalorder %s18, 0
    %p45 = por %p43, %p44
    %s46 = ssub.s32 %s12, %s19
    %p47 = scmp.eq.s32.totalorder %s46, 0
    %s49 = sadd.s32 %s48, 1
    %s50 = scalar_select %p47, %s48, %s49
    %p53 = pneg %p47
    %p54 = scmp.eq.s32.totalorder %s12, 1
    %p55 = por %p53, %p54
    %p56 = scmp.ne.s32.totalorder %s48, %s51
    %p57 = scmp.eq.s32.totalorder %s12, 0
    %p58 = por %p56, %p57
    %p59 = scmp.ne.s32.totalorder %s48, %s51
    %p60 = scmp.eq.s32.totalorder %s17, 1
    %p61 = por %p59, %p60
    %p62 = scmp.ne.s32.totalorder %s51, %s52
    %p63 = scmp.eq.s32.totalorder %s17, 0
    %p64 = por %p62, %p63
    %p65 = scmp.ne.s32.totalorder %s51, %s52
    %p66 = scmp.eq.s32.totalorder %s18, 1
    %p67 = por %p65, %p66
    %p69 = scmp.ne.s32.totalorder %s52, %s68
    %p70 = scmp.eq.s32.totalorder %s18, 0
    %p71 = por %p69, %p70
    %s72 = ssub.s32 %s12, %s19
    %p73 = scmp.eq.s32.totalorder %s72, 0
    %s75 = sadd.s32 %s74, 1
    %s76 = scalar_select %p73, %s74, %s75
    %p79 = pneg %p73
    %p80 = scmp.eq.s32.totalorder %s12, 1
    %p81 = por %p79, %p80
    %p82 = scmp.ne.s32.totalorder %s74, %s77
    %p83 = scmp.eq.s32.totalorder %s12, 0
    %p84 = por %p82, %p83
    %p85 = scmp.ne.s32.totalorder %s74, %s77
    %p86 = scmp.eq.s32.totalorder %s17, 1
    %p87 = por %p85, %p86
    %p88 = scmp.ne.s32.totalorder %s77, %s78
    %p89 = scmp.eq.s32.totalorder %s17, 0
    %p90 = por %p88, %p89
    %p91 = scmp.ne.s32.totalorder %s77, %s78
    %p92 = scmp.eq.s32.totalorder %s18, 1
    %p93 = por %p91, %p92
    %p95 = scmp.ne.s32.totalorder %s78, %s94
    %p96 = scmp.eq.s32.totalorder %s18, 0
    %p97 = por %p95, %p96
    %s99 = sadd.s32 %s98, 1
    %p102 = scmp.eq.s32.totalorder %s12, 1
    %p103 = scmp.ne.s32.totalorder %s98, %s100
    %p104 = scmp.eq.s32.totalorder %s12, 0
    %p105 = por %p103, %p104
    %p106 = scmp.ne.s32.totalorder %s98, %s100
    %p107 = scmp.eq.s32.totalorder %s17, 1
    %p108 = por %p106, %p107
    %p109 = scmp.ne.s32.totalorder %s100, %s101
    %p110 = scmp.eq.s32.totalorder %s17, 0
    %p111 = por %p109, %p110
    %p112 = scmp.ne.s32.totalorder %s100, %s101
    %p113 = scmp.eq.s32.totalorder %s18, 1
    %p114 = por %p112, %p113
    %p116 = scmp.ne.s32.totalorder %s101, %s115
    %p117 = scmp.eq.s32.totalorder %s18, 0
    %p118 = por %p116, %p117
    %s120 = sadd.s32 %s119, 1
    %p123 = scmp.eq.s32.totalorder %s12, 1
    %p124 = scmp.ne.s32.totalorder %s119, %s121
    %p125 = scmp.eq.s32.totalorder %s12, 0
    %p126 = por %p124, %p125
    %p127 = scmp.ne.s32.totalorder %s119, %s121
    %p128 = scmp.eq.s32.totalorder %s17, 1
    %p129 = por %p127, %p128
    %p130 = scmp.ne.s32.totalorder %s121, %s122
    %p131 = scmp.eq.s32.totalorder %s17, 0
    %p132 = por %p130, %p131
    %p133 = scmp.ne.s32.totalorder %s121, %s122
    %p134 = scmp.eq.s32.totalorder %s18, 1
    %p135 = por %p133, %p134
    %p137 = scmp.ne.s32.totalorder %s122, %s136
    %p138 = scmp.eq.s32.totalorder %s18, 0
    %p139 = por %p137, %p138
    %s141 = sadd.s32 %s140, 1
    %p144 = scmp.eq.s32.totalorder %s12, 1
    %p145 = scmp.ne.s32.totalorder %s140, %s142
    %p146 = scmp.eq.s32.totalorder %s12, 0
    %p147 = por %p145, %p146
    %p148 = scmp.ne.s32.totalorder %s140, %s142
    %p149 = scmp.eq.s32.totalorder %s17, 1
    %p150 = por %p148, %p149
    %p151 = scmp.ne.s32.totalorder %s142, %s143
    %p152 = scmp.eq.s32.totalorder %s17, 0
    %p153 = por %p151, %p152
    %p154 = scmp.ne.s32.totalorder %s142, %s143
    %p155 = scmp.eq.s32.totalorder %s18, 1
    %p156 = por %p154, %p155
    %p158 = scmp.ne.s32.totalorder %s143, %s157
    %p159 = scmp.eq.s32.totalorder %s18, 0
    %p160 = por %p158, %p159
    %s161 = ssub.s32 %s12, %s19
    %p162 = scmp.eq.s32.totalorder %s161, 0
    %s164 = sadd.s32 %s163, 1
    %s165 = scalar_select %p162, %s163, %s164
    %p168 = pneg %p162
    %p169 = scmp.eq.s32.totalorder %s12, 1
    %p170 = por %p168, %p169
    %p171 = scmp.ne.s32.totalorder %s163, %s166
    %p172 = scmp.eq.s32.totalorder %s12, 0
    %p173 = por %p171, %p172
    %p174 = scmp.ne.s32.totalorder %s163, %s166
    %p175 = scmp.eq.s32.totalorder %s17, 1
    %p176 = por %p174, %p175
    %p177 = scmp.ne.s32.totalorder %s166, %s167
    %p178 = scmp.eq.s32.totalorder %s17, 0
    %p179 = por %p177, %p178
    %p180 = scmp.ne.s32.totalorder %s166, %s167
    %p181 = scmp.eq.s32.totalorder %s18, 1
    %p182 = por %p180, %p181
    %p184 = scmp.ne.s32.totalorder %s167, %s183
    %p185 = scmp.eq.s32.totalorder %s18, 0
    %p186 = por %p184, %p185
    %p187 = scmp.le.s32.totalorder 1, %s12
    %p188 = scmp.lt.s32.totalorder %s12, 3
    %p189 = pnand %p187, %p188
    %p190 = pneg %p189
    // Predicated region
    $region9: #{_lambda_.24} parent=5 // pred_check
      _
    $region10: #{_lambda_.24} parent=5 // pred_check_branch
      %192 = sbr.rel (%p189) target = $region12
    $region11: #{_lambda_.24} parent=5 // pred_region
      %s193 = ssub.s32 %s12, 1
      // Predicated region
      $region13: #{_lambda_.24} parent=11 // pred_check
        %p194 = pneg %p111
      $region14: #{_lambda_.24} parent=11 // pred_check_branch
        %196 = sbr.rel (%p194) target = $region16
      $region15: #{_lambda_.24} parent=11 // pred_region
        _
      $region16: #{_lambda_.24} parent=11 // pred_fallthru
        _
      // Predicated region
      $region17: #{_lambda_.24} parent=11 // pred_check
        %p197 = pneg %p132
      $region18: #{_lambda_.24} parent=11 // pred_check_branch
        %199 = sbr.rel (%p197) target = $region20
      $region19: #{_lambda_.24} parent=11 // pred_region
        _
      $region20: #{_lambda_.24} parent=11 // pred_fallthru
        _
      // Predicated region
      $region21: #{_lambda_.24} parent=11 // pred_check
        %p200 = pneg %p153
      $region22: #{_lambda_.24} parent=11 // pred_check_branch
        %202 = sbr.rel (%p200) target = $region24
      $region23: #{_lambda_.24} parent=11 // pred_region
        _
      $region24: #{_lambda_.24} parent=11 // pred_fallthru
        _
    $region12: #{_lambda_.24} parent=5 // pred_fallthru
      _
    %p203 = scmp.lt.s32.totalorder %s12, 2
    // Predicated region
    $region25: #{_lambda_.24} parent=5 // pred_check
      %p204 = pneg %p203
    $region26: #{_lambda_.24} parent=5 // pred_check_branch
      %206 = sbr.rel (%p204) target = $region28
    $region27: #{_lambda_.24} parent=5 // pred_region
      // Predicated region
      $region29: #{_lambda_.24} parent=27 // pred_check
        %p207 = pneg %p32
      $region30: #{_lambda_.24} parent=27 // pred_check_branch
        %209 = sbr.rel (%p207) target = $region32
      $region31: #{_lambda_.24} parent=27 // pred_region
        %s210 = smul.u32 4, %s12
        %p211 = scmp.lt.s32.totalorder %s210, 7
        %s212 = scalar_select %p211, %s210, 7
        %s213 = smul.addr %s212, 2
        %s214 = smul.addr %s213, 2
        %s215 = scalar_lea.vmem %s0, %s214
        %s216 = smul.u32 4, %s12
      $region32: #{_lambda_.24} parent=27 // pred_fallthru
        _
      // Predicated region
      $region33: #{_lambda_.24} parent=27 // pred_check
        %p217 = pneg %p58
      $region34: #{_lambda_.24} parent=27 // pred_check_branch
        %219 = sbr.rel (%p217) target = $region36
      $region35: #{_lambda_.24} parent=27 // pred_region
        %s220 = smul.u32 4, %s12
        %p221 = scmp.lt.s32.totalorder %s220, 7
        %s222 = scalar_select %p221, %s220, 7
        %s223 = smul.addr %s222, 2
        %s224 = smul.addr %s223, 2
        %s225 = scalar_lea.vmem %s1, %s224
        %s226 = smul.u32 4, %s12
      $region36: #{_lambda_.24} parent=27 // pred_fallthru
        _
      // Predicated region
      $region37: #{_lambda_.24} parent=27 // pred_check
        %p227 = pneg %p84
      $region38: #{_lambda_.24} parent=27 // pred_check_branch
        %229 = sbr.rel (%p227) target = $region40
      $region39: #{_lambda_.24} parent=27 // pred_region
        %s230 = smul.u32 4, %s12
        %p231 = scmp.lt.s32.totalorder %s230, 7
        %s232 = scalar_select %p231, %s230, 7
        %s233 = smul.addr %s232, 2
        %s234 = smul.addr %s233, 2
        %s235 = scalar_lea.vmem %s2, %s234
        %s236 = smul.u32 4, %s12
      $region40: #{_lambda_.24} parent=27 // pred_fallthru
        _
    $region28: #{_lambda_.24} parent=5 // pred_fallthru
      _
    %p237 = scmp.le.s32.totalorder 1, %s12
    %p238 = scmp.lt.s32.totalorder %s12, 3
    %p239 = pnand %p237, %p238
    %p240 = pneg %p239
    // Predicated region
    $region41: #{_lambda_.24} parent=5 // pred_check
      _
    $region42: #{_lambda_.24} parent=5 // pred_check_branch
      %242 = sbr.rel (%p239) target = $region44
    $region43: #{_lambda_.24} parent=5 // pred_region
      %s243 = ssub.s32 %s12, 1
      %s244 = smul.u32 4, %s17
      %p245 = scmp.lt.s32.totalorder %s244, 7
      %s246 = scalar_select %p245, %s244, 7
      %s247 = smul.addr %s246, 2
      %s248 = smul.addr %s247, 2
      %s249 = scalar_lea.vmem %s0, %s248
      %p250 = pneg %p38
      %p251 = pneg %p35
      %s252 = smul.u32 4, %s17
      %p253 = scmp.lt.s32.totalorder %s252, 7
      %s254 = scalar_select %p253, %s252, 7
      %s255 = smul.addr %s254, 2
      %s256 = smul.addr %s255, 2
      %s257 = scalar_lea.vmem %s1, %s256
      %p258 = pneg %p64
      %p259 = pneg %p61
      %s260 = smul.u32 4, %s17
      %p261 = scmp.lt.s32.totalorder %s260, 7
      %s262 = scalar_select %p261, %s260, 7
      %s263 = smul.addr %s262, 2
      %s264 = smul.addr %s263, 2
      %s265 = scalar_lea.vmem %s2, %s264
      %p266 = pneg %p90
      %p267 = pneg %p87
      %p268 = pneg %p111
      %p269 = pneg %p108
      %p270 = pneg %p132
      %p271 = pneg %p129
      %p272 = pneg %p153
      %p273 = pneg %p150
      %p274 = pneg %p179
      %p275 = pneg %p176
      %s276 = smul.u32 4, %s17
      %p277 = scmp.lt.s32.totalorder %s276, 7
      %s278 = scalar_select %p277, %s276, 7
      %s279 = smul.addr %s278, 2
      %s280 = smul.addr %s279, 4
      %s281 = scalar_lea.vmem %s6, %s280
      %s282 = smul.u32 4, %s17
      %p283 = scmp.lt.s32.totalorder %s282, 7
      %s284 = scalar_select %p283, %s282, 7
      %s285 = smul.addr %s284, 2
      %s286 = smul.addr %s285, 2
      %s287 = scalar_lea.vmem %s0, %s286
      %s288 = smul.u32 4, %s17
      %s289 = smul.u32 4, %s17
      %p290 = scmp.lt.s32.totalorder %s289, 7
      %s291 = scalar_select %p290, %s289, 7
      %s292 = smul.addr %s291, 2
      %s293 = smul.addr %s292, 2
      %s294 = scalar_lea.vmem %s1, %s293
      %s295 = smul.u32 4, %s17
      %s296 = smul.u32 4, %s17
      %p297 = scmp.lt.s32.totalorder %s296, 7
      %s298 = scalar_select %p297, %s296, 7
      %s299 = smul.addr %s298, 2
      %s300 = smul.addr %s299, 2
      %s301 = scalar_lea.vmem %s2, %s300
      %s302 = smul.u32 4, %s17
      %s303 = smul.u32 4, %s17
      %p304 = scmp.lt.s32.totalorder %s303, 7
      %s305 = scalar_select %p304, %s303, 7
      %s306 = smul.addr %s305, 2
      %s307 = smul.addr %s306, 4
      %s308 = scalar_lea.vmem %s6, %s307
      %s309 = smul.u32 4, %s17
      %v311 = vld [vmem:[%s287] sm:$0x3]
      %v312 = vld [vmem:[%s287 + $0x2] sm:$0x3]
      %v313 = vld [vmem:[%s287 + $0x4] sm:$0x3]
      %v314 = vld [vmem:[%s287 + $0x6] sm:$0x3]
      %v315 = vld [vmem:[%s287 + $0x8] sm:$0x3]
      %v316 = vld [vmem:[%s287 + $0xa] sm:$0x3]
      %v317 = vld [vmem:[%s287 + $0xc] sm:$0x3]
      %v318 = vld [vmem:[%s287 + $0xe] sm:$0x3]
      %v319 = vld [vmem:[%s294] sm:$0x3]
      %v320 = vld [vmem:[%s294 + $0x2] sm:$0x3]
      %v321 = vld [vmem:[%s294 + $0x4] sm:$0x3]
      %v322 = vld [vmem:[%s294 + $0x6] sm:$0x3]
      %v323 = vld [vmem:[%s294 + $0x8] sm:$0x3]
      %v324 = vld [vmem:[%s294 + $0xa] sm:$0x3]
      %v325 = vld [vmem:[%s294 + $0xc] sm:$0x3]
      %v326 = vld [vmem:[%s294 + $0xe] sm:$0x3]
      %v327 = vld [vmem:[%s301] sm:$0x3]
      %v328 = vld [vmem:[%s301 + $0x2] sm:$0x3]
      %v329 = vld [vmem:[%s301 + $0x4] sm:$0x3]
      %v330 = vld [vmem:[%s301 + $0x6] sm:$0x3]
      %v331 = vld [vmem:[%s301 + $0x8] sm:$0x3]
      %v332 = vld [vmem:[%s301 + $0xa] sm:$0x3]
      %v333 = vld [vmem:[%s301 + $0xc] sm:$0x3]
      %v334 = vld [vmem:[%s301 + $0xe] sm:$0x3]
      %v335 = vld [vmem:[%s3] sm:$0xf]
      %v336 = vld [vmem:[%s3 + $0x4] sm:$0xf]
      %v337 = vld [vmem:[%s4] sm:$0x3]
      %v338 = vld [vmem:[%s5] sm:$0xf]
      %v339 = vld [vmem:[%s5 + $0x4] sm:$0xf]
      %v340 = vld [vmem:[%s5 + $0x8] sm:$0xf]
      %v341 = vld [vmem:[%s5 + $0xc] sm:$0xf]
      %v342 = vunpack.c.l.bf16 %v311
      %v343 = vunpack.c.l.bf16 %v313
      %v344 = vunpack.c.l.bf16 %v315
      %v345 = vunpack.c.l.bf16 %v317
      %v346 = vunpack.c.l.bf16 %v319
      %v347 = vunpack.c.l.bf16 %v321
      %v348 = vunpack.c.l.bf16 %v323
      %v349 = vunpack.c.l.bf16 %v325
      %v350 = vmul.f32 %v342, %v342
      %v351 = vmul.f32 %v343, %v343
      %v352 = vmul.f32 %v344, %v344
      %v353 = vmul.f32 %v345, %v345
      %vm354 = vcmask 27648
      %v355 = vsel %vm354, %v350, 0.0
      %356 = vadd.xlane.f32.xlu0 %v355
      %v357 = vpop.xlane.xlu0 %356
      %v358 = vsel %vm354, %v351, 0.0
      %359 = vadd.xlane.f32.xlu0 %v358
      %v360 = vpop.xlane.xlu0 %359
      %v361 = vsel %vm354, %v352, 0.0
      %362 = vadd.xlane.f32.xlu0 %v361
      %v363 = vpop.xlane.xlu0 %362
      %v364 = vsel %vm354, %v353, 0.0
      %365 = vadd.xlane.f32.xlu0 %v364
      %v366 = vpop.xlane.xlu0 %365
      %v367 = vmax.f32 %v357, 1e-24
      %v368 = vmax.f32 %v360, 1e-24
      %v369 = vmax.f32 %v363, 1e-24
      %v370 = vmax.f32 %v366, 1e-24
      %v371 = vrsqrt.pop %v367
      %v372 = vmul.f32 %v371, %v367
      %v373 = vmul.f32 %v372, %v371
      %v374 = vmul.f32 0.5, %v373
      %v375 = vsub.f32 1.5, %v374
      %v376 = vmul.f32 %v371, %v375
      %vm377 = vweird.f32 %v367
      %vm378 = vweird.f32 %v371
      %vm379 = vmor %vm377, %vm378
      %v380 = vsel %vm379, %v371, %v376
      %v381 = vrsqrt.pop %v368
      %v382 = vmul.f32 %v381, %v368
      %v383 = vmul.f32 %v382, %v381
      %v384 = vmul.f32 0.5, %v383
      %v385 = vsub.f32 1.5, %v384
      %v386 = vmul.f32 %v381, %v385
      %vm387 = vweird.f32 %v368
      %vm388 = vweird.f32 %v381
      %vm389 = vmor %vm387, %vm388
      %v390 = vsel %vm389, %v381, %v386
      %v391 = vrsqrt.pop %v369
      %v392 = vmul.f32 %v391, %v369
      %v393 = vmul.f32 %v392, %v391
      %v394 = vmul.f32 0.5, %v393
      %v395 = vsub.f32 1.5, %v394
      %v396 = vmul.f32 %v391, %v395
      %vm397 = vweird.f32 %v369
      %vm398 = vweird.f32 %v391
      %vm399 = vmor %vm397, %vm398
      %v400 = vsel %vm399, %v391, %v396
      %v401 = vrsqrt.pop %v370
      %v402 = vmul.f32 %v401, %v370
      %v403 = vmul.f32 %v402, %v401
      %v404 = vmul.f32 0.5, %v403
      %v405 = vsub.f32 1.5, %v404
      %v406 = vmul.f32 %v401, %v405
      %vm407 = vweird.f32 %v370
      %vm408 = vweird.f32 %v401
      %vm409 = vmor %vm407, %vm408
      %v410 = vsel %vm409, %v401, %v406
      %v411 = vmul.f32 %v342, %v380
      %v412 = vmul.f32 %v343, %v390
      %v413 = vmul.f32 %v344, %v400
      %v414 = vmul.f32 %v345, %v410
      %v415 = vmul.f32 %v346, %v346
      %v416 = vmul.f32 %v347, %v347
      %v417 = vmul.f32 %v348, %v348
      %v418 = vmul.f32 %v349, %v349
      %v419 = vsel %vm354, %v415, 0.0
      %420 = vadd.xlane.f32.xlu0 %v419
      %v421 = vpop.xlane.xlu0 %420
      %v422 = vsel %vm354, %v416, 0.0
      %423 = vadd.xlane.f32.xlu0 %v422
      %v424 = vpop.xlane.xlu0 %423
      %v425 = vsel %vm354, %v417, 0.0
      %426 = vadd.xlane.f32.xlu0 %v425
      %v427 = vpop.xlane.xlu0 %426
      %v428 = vsel %vm354, %v418, 0.0
      %429 = vadd.xlane.f32.xlu0 %v428
      %v430 = vpop.xlane.xlu0 %429
      %v431 = vmax.f32 %v421, 1e-24
      %v432 = vmax.f32 %v424, 1e-24
      %v433 = vmax.f32 %v427, 1e-24
      %v434 = vmax.f32 %v430, 1e-24
      %v435 = vrsqrt.pop %v431
      %v436 = vmul.f32 %v435, %v431
      %v437 = vmul.f32 %v436, %v435
      %v438 = vmul.f32 0.5, %v437
      %v439 = vsub.f32 1.5, %v438
      %v440 = vmul.f32 %v435, %v439
      %vm441 = vweird.f32 %v431
      %vm442 = vweird.f32 %v435
      %vm443 = vmor %vm441, %vm442
      %v444 = vsel %vm443, %v435, %v440
      %v445 = vrsqrt.pop %v432
      %v446 = vmul.f32 %v445, %v432
      %v447 = vmul.f32 %v446, %v445
      %v448 = vmul.f32 0.5, %v447
      %v449 = vsub.f32 1.5, %v448
      %v450 = vmul.f32 %v445, %v449
      %vm451 = vweird.f32 %v432
      %vm452 = vweird.f32 %v445
      %vm453 = vmor %vm451, %vm452
      %v454 = vsel %vm453, %v445, %v450
      %v455 = vrsqrt.pop %v433
      %v456 = vmul.f32 %v455, %v433
      %v457 = vmul.f32 %v456, %v455
      %v458 = vmul.f32 0.5, %v457
      %v459 = vsub.f32 1.5, %v458
      %v460 = vmul.f32 %v455, %v459
      %vm461 = vweird.f32 %v433
      %vm462 = vweird.f32 %v455
      %vm463 = vmor %vm461, %vm462
      %v464 = vsel %vm463, %v455, %v460
      %v465 = vrsqrt.pop %v434
      %v466 = vmul.f32 %v465, %v434
      %v467 = vmul.f32 %v466, %v465
      %v468 = vmul.f32 0.5, %v467
      %v469 = vsub.f32 1.5, %v468
      %v470 = vmul.f32 %v465, %v469
      %vm471 = vweird.f32 %v434
      %vm472 = vweird.f32 %v465
      %vm473 = vmor %vm471, %vm472
      %v474 = vsel %vm473, %v465, %v470
      %v475 = vmul.f32 %v346, %v444
      %v476 = vmul.f32 %v347, %v454
      %v477 = vmul.f32 %v348, %v464
      %v478 = vmul.f32 %v349, %v474
      %s480 = vtos %v337
      %v481 = vstv %s480
      %v483 = vmul.f32 %v411, %v481
      %v484 = vmul.f32 %v412, %v481
      %v485 = vmul.f32 %v413, %v481
      %v486 = vmul.f32 %v414, %v481
      %v487 = vpack.c.bf16 %v483, %v483
      %v488 = vpack.c.bf16 %v484, %v484
      %v489 = vpack.c.bf16 %v485, %v485
      %v490 = vpack.c.bf16 %v486, %v486
      %v491 = vpack.c.bf16 %v475, %v475
      %v492 = vpack.c.bf16 %v476, %v476
      %v493 = vpack.c.bf16 %v477, %v477
      %v494 = vpack.c.bf16 %v478, %v478
      %vm495 = vcmask 31744
      %v497 = vsel %vm495, %v487, 0
      %v500 = vsel %vm495, %v491, 0
      %502 = vmatpush.bf16.xpose.msra.mxu0 0
      %503 = vmatpush.bf16.xpose.msra.mxu0 0
      %504 = vmatpush.bf16.xpose.msra.mxu0 0
      %505 = vmatpush.bf16.xpose.msra.mxu0 0
      %506 = vmatpush.bf16.xpose.msra.mxu0 0
      %507 = vmatpush.bf16.xpose.msra.mxu0 0
      %508 = vmatpush.bf16.xpose.msra.mxu0 0
      %509 = vmatpush.bf16.xpose.msra.mxu0 %v500
      %510 = vmatmul.bf16.gmra.mxu0 %v497
      %v511 = vpop.f32.mrf.mxu0
      %v512 = vadd.f32 %v335, %v511
      %v513 = vpop.f32.mrf.mxu0
      %514 = vdwg.mxu0
      %v516 = vsel %vm495, %v488, 0
      %v519 = vsel %vm495, %v492, 0
      %521 = vmatpush.bf16.xpose.msra.mxu0 0
      %522 = vmatpush.bf16.xpose.msra.mxu0 0
      %523 = vmatpush.bf16.xpose.msra.mxu0 0
      %524 = vmatpush.bf16.xpose.msra.mxu0 0
      %525 = vmatpush.bf16.xpose.msra.mxu0 0
      %526 = vmatpush.bf16.xpose.msra.mxu0 0
      %527 = vmatpush.bf16.xpose.msra.mxu0 0
      %528 = vmatpush.bf16.xpose.msra.mxu0 %v519
      %529 = vmatmul.bf16.gmra.mxu0 %v516
      %v530 = vpop.f32.mrf.mxu0
      %v531 = vadd.f32 %v335, %v530
      %v532 = vpop.f32.mrf.mxu0
      %533 = vdwg.mxu0
      %v535 = vsel %vm495, %v489, 0
      %v538 = vsel %vm495, %v493, 0
      %540 = vmatpush.bf16.xpose.msra.mxu0 0
      %541 = vmatpush.bf16.xpose.msra.mxu0 0
      %542 = vmatpush.bf16.xpose.msra.mxu0 0
      %543 = vmatpush.bf16.xpose.msra.mxu0 0
      %544 = vmatpush.bf16.xpose.msra.mxu0 0
      %545 = vmatpush.bf16.xpose.msra.mxu0 0
      %546 = vmatpush.bf16.xpose.msra.mxu0 0
      %547 = vmatpush.bf16.xpose.msra.mxu0 %v538
      %548 = vmatmul.bf16.gmra.mxu0 %v535
      %v549 = vpop.f32.mrf.mxu0
      %v550 = vadd.f32 %v335, %v549
      %v551 = vpop.f32.mrf.mxu0
      %552 = vdwg.mxu0
      %v554 = vsel %vm495, %v490, 0
      %v557 = vsel %vm495, %v494, 0
      %559 = vmatpush.bf16.xpose.msra.mxu0 0
      %560 = vmatpush.bf16.xpose.msra.mxu0 0
      %561 = vmatpush.bf16.xpose.msra.mxu0 0
      %562 = vmatpush.bf16.xpose.msra.mxu0 0
      %563 = vmatpush.bf16.xpose.msra.mxu0 0
      %564 = vmatpush.bf16.xpose.msra.mxu0 0
      %565 = vmatpush.bf16.xpose.msra.mxu0 0
      %566 = vmatpush.bf16.xpose.msra.mxu0 %v557
      %567 = vmatmul.bf16.gmra.mxu0 %v554
      %v568 = vpop.f32.mrf.mxu0
      %v569 = vadd.f32 %v335, %v568
      %v570 = vpop.f32.mrf.mxu0
      %571 = vdwg.mxu0
      %v572 = vadd.f32 %v512, %v338
      %v573 = vadd.f32 %v531, %v339
      %v574 = vadd.f32 %v550, %v340
      %v575 = vadd.f32 %v569, %v341
      %v576 = vsel %vm354, %v572, -inf
      %577 = vmax.xlane.f32.xlu0 %v576
      %v578 = vpop.xlane.xlu0 %577
      %v579 = vsel %vm354, %v573, -inf
      %580 = vmax.xlane.f32.xlu0 %v579
      %v581 = vpop.xlane.xlu0 %580
      %v582 = vsel %vm354, %v574, -inf
      %583 = vmax.xlane.f32.xlu0 %v582
      %v584 = vpop.xlane.xlu0 %583
      %v585 = vsel %vm354, %v575, -inf
      %586 = vmax.xlane.f32.xlu0 %v585
      %v587 = vpop.xlane.xlu0 %586
      %v588 = vsub.f32 %v572, %v578
      %v589 = vsub.f32 %v573, %v581
      %v590 = vsub.f32 %v574, %v584
      %v591 = vsub.f32 %v575, %v587
      %v592 = vmul.f32 %v588, 1.442695
      %v593 = vpow.pop %v592
      %v594 = vmul.f32 %v589, 1.442695
      %v595 = vpow.pop %v594
      %v596 = vmul.f32 %v590, 1.442695
      %v597 = vpow.pop %v596
      %v598 = vmul.f32 %v591, 1.442695
      %v599 = vpow.pop %v598
      %v600 = vsel %vm354, %v593, 0.0
      %601 = vadd.xlane.f32.xlu0 %v600
      %v602 = vpop.xlane.xlu0 %601
      %v603 = vsel %vm354, %v595, 0.0
      %604 = vadd.xlane.f32.xlu0 %v603
      %v605 = vpop.xlane.xlu0 %604
      %v606 = vsel %vm354, %v597, 0.0
      %607 = vadd.xlane.f32.xlu0 %v606
      %v608 = vpop.xlane.xlu0 %607
      %v609 = vsel %vm354, %v599, 0.0
      %610 = vadd.xlane.f32.xlu0 %v609
      %v611 = vpop.xlane.xlu0 %610
      %v612 = vrcp.pop %v602
      %v613 = vrcp.pop %v605
      %v614 = vrcp.pop %v608
      %v615 = vrcp.pop %v611
      %v616 = vmul.f32 %v593, %v612
      %v617 = vmul.f32 %v595, %v613
      %v618 = vmul.f32 %v597, %v614
      %v619 = vmul.f32 %v599, %v615
      %v620 = vpack.c.bf16 %v616, %v616
      %v621 = vpack.c.bf16 %v617, %v617
      %v622 = vpack.c.bf16 %v618, %v618
      %v623 = vpack.c.bf16 %v619, %v619
      %v625 = vsel %vm495, %v620, 0
      %vm627 = vcmask 1041408
      %v629 = vsel %vm627, %v327, 0
      %631 = vmatpush.bf16.msra.mxu0 0
      %632 = vmatpush.bf16.msra.mxu0 0
      %633 = vmatpush.bf16.msra.mxu0 0
      %634 = vmatpush.bf16.msra.mxu0 0
      %635 = vmatpush.bf16.msra.mxu0 0
      %636 = vmatpush.bf16.msra.mxu0 0
      %637 = vmatpush.bf16.msra.mxu0 0
      %638 = vmatpush.bf16.msra.mxu0 %v629
      %639 = vmatmul.bf16.gmra.mxu0 %v625
      %v640 = vpop.f32.mrf.mxu0
      %v641 = vadd.f32 0.0, %v640
      %v642 = vpop.f32.mrf.mxu0
      %643 = vdwg.mxu0
      %v645 = vsel %vm495, %v621, 0
      %v648 = vsel %vm627, %v329, 0
      %650 = vmatpush.bf16.msra.mxu0 0
      %651 = vmatpush.bf16.msra.mxu0 0
      %652 = vmatpush.bf16.msra.mxu0 0
      %653 = vmatpush.bf16.msra.mxu0 0
      %654 = vmatpush.bf16.msra.mxu0 0
      %655 = vmatpush.bf16.msra.mxu0 0
      %656 = vmatpush.bf16.msra.mxu0 0
      %657 = vmatpush.bf16.msra.mxu0 %v648
      %658 = vmatmul.bf16.gmra.mxu0 %v645
      %v659 = vpop.f32.mrf.mxu0
      %v660 = vadd.f32 0.0, %v659
      %v661 = vpop.f32.mrf.mxu0
      %662 = vdwg.mxu0
      %v664 = vsel %vm495, %v622, 0
      %v667 = vsel %vm627, %v331, 0
      %669 = vmatpush.bf16.msra.mxu0 0
      %670 = vmatpush.bf16.msra.mxu0 0
      %671 = vmatpush.bf16.msra.mxu0 0
      %672 = vmatpush.bf16.msra.mxu0 0
      %673 = vmatpush.bf16.msra.mxu0 0
      %674 = vmatpush.bf16.msra.mxu0 0
      %675 = vmatpush.bf16.msra.mxu0 0
      %676 = vmatpush.bf16.msra.mxu0 %v667
      %677 = vmatmul.bf16.gmra.mxu0 %v664
      %v678 = vpop.f32.mrf.mxu0
      %v679 = vadd.f32 0.0, %v678
      %v680 = vpop.f32.mrf.mxu0
      %681 = vdwg.mxu0
      %v683 = vsel %vm495, %v623, 0
      %v686 = vsel %vm627, %v333, 0
      %688 = vmatpush.bf16.msra.mxu0 0
      %689 = vmatpush.bf16.msra.mxu0 0
      %690 = vmatpush.bf16.msra.mxu0 0
      %691 = vmatpush.bf16.msra.mxu0 0
      %692 = vmatpush.bf16.msra.mxu0 0
      %693 = vmatpush.bf16.msra.mxu0 0
      %694 = vmatpush.bf16.msra.mxu0 0
      %695 = vmatpush.bf16.msra.mxu0 %v686
      %696 = vmatmul.bf16.gmra.mxu0 %v683
      %v697 = vpop.f32.mrf.mxu0
      %v698 = vadd.f32 0.0, %v697
      %v699 = vpop.f32.mrf.mxu0
      %700 = vdwg.mxu0
      %701 = vst.msk [vmem:[%s308] sm:$0xf] %vm354, %v641
      %702 = vst.msk [vmem:[%s308 + $0x8] sm:$0xf] %vm354, %v660
      %703 = vst.msk [vmem:[%s308 + $0x10] sm:$0xf] %vm354, %v679
      %704 = vst.msk [vmem:[%s308 + $0x18] sm:$0xf] %vm354, %v698
      %v705 = vunpack.c.l.bf16 %v312
      %v706 = vunpack.c.l.bf16 %v314
      %v707 = vunpack.c.l.bf16 %v316
      %v708 = vunpack.c.l.bf16 %v318
      %v709 = vunpack.c.l.bf16 %v320
      %v710 = vunpack.c.l.bf16 %v322
      %v711 = vunpack.c.l.bf16 %v324
      %v712 = vunpack.c.l.bf16 %v326
      %v713 = vmul.f32 %v705, %v705
      %v714 = vmul.f32 %v706, %v706
      %v715 = vmul.f32 %v707, %v707
      %v716 = vmul.f32 %v708, %v708
      %v717 = vsel %vm354, %v713, 0.0
      %718 = vadd.xlane.f32.xlu0 %v717
      %v719 = vpop.xlane.xlu0 %718
      %v720 = vsel %vm354, %v714, 0.0
      %721 = vadd.xlane.f32.xlu0 %v720
      %v722 = vpop.xlane.xlu0 %721
      %v723 = vsel %vm354, %v715, 0.0
      %724 = vadd.xlane.f32.xlu0 %v723
      %v725 = vpop.xlane.xlu0 %724
      %v726 = vsel %vm354, %v716, 0.0
      %727 = vadd.xlane.f32.xlu0 %v726
      %v728 = vpop.xlane.xlu0 %727
      %v729 = vmax.f32 %v719, 1e-24
      %v730 = vmax.f32 %v722, 1e-24
      %v731 = vmax.f32 %v725, 1e-24
      %v732 = vmax.f32 %v728, 1e-24
      %v733 = vrsqrt.pop %v729
      %v734 = vmul.f32 %v733, %v729
      %v735 = vmul.f32 %v734, %v733
      %v736 = vmul.f32 0.5, %v735
      %v737 = vsub.f32 1.5, %v736
      %v738 = vmul.f32 %v733, %v737
      %vm739 = vweird.f32 %v729
      %vm740 = vweird.f32 %v733
      %vm741 = vmor %vm739, %vm740
      %v742 = vsel %vm741, %v733, %v738
      %v743 = vrsqrt.pop %v730
      %v744 = vmul.f32 %v743, %v730
      %v745 = vmul.f32 %v744, %v743
      %v746 = vmul.f32 0.5, %v745
      %v747 = vsub.f32 1.5, %v746
      %v748 = vmul.f32 %v743, %v747
      %vm749 = vweird.f32 %v730
      %vm750 = vweird.f32 %v743
      %vm751 = vmor %vm749, %vm750
      %v752 = vsel %vm751, %v743, %v748
      %v753 = vrsqrt.pop %v731
      %v754 = vmul.f32 %v753, %v731
      %v755 = vmul.f32 %v754, %v753
      %v756 = vmul.f32 0.5, %v755
      %v757 = vsub.f32 1.5, %v756
      %v758 = vmul.f32 %v753, %v757
      %vm759 = vweird.f32 %v731
      %vm760 = vweird.f32 %v753
      %vm761 = vmor %vm759, %vm760
      %v762 = vsel %vm761, %v753, %v758
      %v763 = vrsqrt.pop %v732
      %v764 = vmul.f32 %v763, %v732
      %v765 = vmul.f32 %v764, %v763
      %v766 = vmul.f32 0.5, %v765
      %v767 = vsub.f32 1.5, %v766
      %v768 = vmul.f32 %v763, %v767
      %vm769 = vweird.f32 %v732
      %vm770 = vweird.f32 %v763
      %vm771 = vmor %vm769, %vm770
      %v772 = vsel %vm771, %v763, %v768
      %v773 = vmul.f32 %v705, %v742
      %v774 = vmul.f32 %v706, %v752
      %v775 = vmul.f32 %v707, %v762
      %v776 = vmul.f32 %v708, %v772
      %v777 = vmul.f32 %v709, %v709
      %v778 = vmul.f32 %v710, %v710
      %v779 = vmul.f32 %v711, %v711
      %v780 = vmul.f32 %v712, %v712
      %v781 = vsel %vm354, %v777, 0.0
      %782 = vadd.xlane.f32.xlu0 %v781
      %v783 = vpop.xlane.xlu0 %782
      %v784 = vsel %vm354, %v778, 0.0
      %785 = vadd.xlane.f32.xlu0 %v784
      %v786 = vpop.xlane.xlu0 %785
      %v787 = vsel %vm354, %v779, 0.0
      %788 = vadd.xlane.f32.xlu0 %v787
      %v789 = vpop.xlane.xlu0 %788
      %v790 = vsel %vm354, %v780, 0.0
      %791 = vadd.xlane.f32.xlu0 %v790
      %v792 = vpop.xlane.xlu0 %791
      %v793 = vmax.f32 %v783, 1e-24
      %v794 = vmax.f32 %v786, 1e-24
      %v795 = vmax.f32 %v789, 1e-24
      %v796 = vmax.f32 %v792, 1e-24
      %v797 = vrsqrt.pop %v793
      %v798 = vmul.f32 %v797, %v793
      %v799 = vmul.f32 %v798, %v797
      %v800 = vmul.f32 0.5, %v799
      %v801 = vsub.f32 1.5, %v800
      %v802 = vmul.f32 %v797, %v801
      %vm803 = vweird.f32 %v793
      %vm804 = vweird.f32 %v797
      %vm805 = vmor %vm803, %vm804
      %v806 = vsel %vm805, %v797, %v802
      %v807 = vrsqrt.pop %v794
      %v808 = vmul.f32 %v807, %v794
      %v809 = vmul.f32 %v808, %v807
      %v810 = vmul.f32 0.5, %v809
      %v811 = vsub.f32 1.5, %v810
      %v812 = vmul.f32 %v807, %v811
      %vm813 = vweird.f32 %v794
      %vm814 = vweird.f32 %v807
      %vm815 = vmor %vm813, %vm814
      %v816 = vsel %vm815, %v807, %v812
      %v817 = vrsqrt.pop %v795
      %v818 = vmul.f32 %v817, %v795
      %v819 = vmul.f32 %v818, %v817
      %v820 = vmul.f32 0.5, %v819
      %v821 = vsub.f32 1.5, %v820
      %v822 = vmul.f32 %v817, %v821
      %vm823 = vweird.f32 %v795
      %vm824 = vweird.f32 %v817
      %vm825 = vmor %vm823, %vm824
      %v826 = vsel %vm825, %v817, %v822
      %v827 = vrsqrt.pop %v796
      %v828 = vmul.f32 %v827, %v796
      %v829 = vmul.f32 %v828, %v827
      %v830 = vmul.f32 0.5, %v829
      %v831 = vsub.f32 1.5, %v830
      %v832 = vmul.f32 %v827, %v831
      %vm833 = vweird.f32 %v796
      %vm834 = vweird.f32 %v827
      %vm835 = vmor %vm833, %vm834
      %v836 = vsel %vm835, %v827, %v832
      %v837 = vmul.f32 %v709, %v806
      %v838 = vmul.f32 %v710, %v816
      %v839 = vmul.f32 %v711, %v826
      %v840 = vmul.f32 %v712, %v836
      %v841 = vrot.slane %v337, 1
      %s842 = vtos %v841
      %v843 = vstv %s842
      %v845 = vmul.f32 %v773, %v843
      %v846 = vmul.f32 %v774, %v843
      %v847 = vmul.f32 %v775, %v843
      %v848 = vmul.f32 %v776, %v843
      %v849 = vpack.c.bf16 %v845, %v845
      %v850 = vpack.c.bf16 %v846, %v846
      %v851 = vpack.c.bf16 %v847, %v847
      %v852 = vpack.c.bf16 %v848, %v848
      %v853 = vpack.c.bf16 %v837, %v837
      %v854 = vpack.c.bf16 %v838, %v838
      %v855 = vpack.c.bf16 %v839, %v839
      %v856 = vpack.c.bf16 %v840, %v840
      %v858 = vsel %vm495, %v849, 0
      %v861 = vsel %vm495, %v853, 0
      %863 = vmatpush.bf16.xpose.msra.mxu0 0
      %864 = vmatpush.bf16.xpose.msra.mxu0 0
      %865 = vmatpush.bf16.xpose.msra.mxu0 0
      %866 = vmatpush.bf16.xpose.msra.mxu0 0
      %867 = vmatpush.bf16.xpose.msra.mxu0 0
      %868 = vmatpush.bf16.xpose.msra.mxu0 0
      %869 = vmatpush.bf16.xpose.msra.mxu0 0
      %870 = vmatpush.bf16.xpose.msra.mxu0 %v861
      %871 = vmatmul.bf16.gmra.mxu0 %v858
      %v872 = vpop.f32.mrf.mxu0
      %v873 = vadd.f32 %v336, %v872
      %v874 = vpop.f32.mrf.mxu0
      %875 = vdwg.mxu0
      %v877 = vsel %vm495, %v850, 0
      %v880 = vsel %vm495, %v854, 0
      %882 = vmatpush.bf16.xpose.msra.mxu0 0
      %883 = vmatpush.bf16.xpose.msra.mxu0 0
      %884 = vmatpush.bf16.xpose.msra.mxu0 0
      %885 = vmatpush.bf16.xpose.msra.mxu0 0
      %886 = vmatpush.bf16.xpose.msra.mxu0 0
      %887 = vmatpush.bf16.xpose.msra.mxu0 0
      %888 = vmatpush.bf16.xpose.msra.mxu0 0
      %889 = vmatpush.bf16.xpose.msra.mxu0 %v880
      %890 = vmatmul.bf16.gmra.mxu0 %v877
      %v891 = vpop.f32.mrf.mxu0
      %v892 = vadd.f32 %v336, %v891
      %v893 = vpop.f32.mrf.mxu0
      %894 = vdwg.mxu0
      %v896 = vsel %vm495, %v851, 0
      %v899 = vsel %vm495, %v855, 0
      %901 = vmatpush.bf16.xpose.msra.mxu0 0
      %902 = vmatpush.bf16.xpose.msra.mxu0 0
      %903 = vmatpush.bf16.xpose.msra.mxu0 0
      %904 = vmatpush.bf16.xpose.msra.mxu0 0
      %905 = vmatpush.bf16.xpose.msra.mxu0 0
      %906 = vmatpush.bf16.xpose.msra.mxu0 0
      %907 = vmatpush.bf16.xpose.msra.mxu0 0
      %908 = vmatpush.bf16.xpose.msra.mxu0 %v899
      %909 = vmatmul.bf16.gmra.mxu0 %v896
      %v910 = vpop.f32.mrf.mxu0
      %v911 = vadd.f32 %v336, %v910
      %v912 = vpop.f32.mrf.mxu0
      %913 = vdwg.mxu0
      %v915 = vsel %vm495, %v852, 0
      %v918 = vsel %vm495, %v856, 0
      %920 = vmatpush.bf16.xpose.msra.mxu0 0
      %921 = vmatpush.bf16.xpose.msra.mxu0 0
      %922 = vmatpush.bf16.xpose.msra.mxu0 0
      %923 = vmatpush.bf16.xpose.msra.mxu0 0
      %924 = vmatpush.bf16.xpose.msra.mxu0 0
      %925 = vmatpush.bf16.xpose.msra.mxu0 0
      %926 = vmatpush.bf16.xpose.msra.mxu0 0
      %927 = vmatpush.bf16.xpose.msra.mxu0 %v918
      %928 = vmatmul.bf16.gmra.mxu0 %v915
      %v929 = vpop.f32.mrf.mxu0
      %v930 = vadd.f32 %v336, %v929
      %v931 = vpop.f32.mrf.mxu0
      %932 = vdwg.mxu0
      %v933 = vadd.f32 %v873, %v338
      %v934 = vadd.f32 %v892, %v339
      %v935 = vadd.f32 %v911, %v340
      %v936 = vadd.f32 %v930, %v341
      %v937 = vsel %vm354, %v933, -inf
      %938 = vmax.xlane.f32.xlu0 %v937
      %v939 = vpop.xlane.xlu0 %938
      %v940 = vsel %vm354, %v934, -inf
      %941 = vmax.xlane.f32.xlu0 %v940
      %v942 = vpop.xlane.xlu0 %941
      %v943 = vsel %vm354, %v935, -inf
      %944 = vmax.xlane.f32.xlu0 %v943
      %v945 = vpop.xlane.xlu0 %944
      %v946 = vsel %vm354, %v936, -inf
      %947 = vmax.xlane.f32.xlu0 %v946
      %v948 = vpop.xlane.xlu0 %947
      %v949 = vsub.f32 %v933, %v939
      %v950 = vsub.f32 %v934, %v942
      %v951 = vsub.f32 %v935, %v945
      %v952 = vsub.f32 %v936, %v948
      %v953 = vmul.f32 %v949, 1.442695
      %v954 = vpow.pop %v953
      %v955 = vmul.f32 %v950, 1.442695
      %v956 = vpow.pop %v955
      %v957 = vmul.f32 %v951, 1.442695
      %v958 = vpow.pop %v957
      %v959 = vmul.f32 %v952, 1.442695
      %v960 = vpow.pop %v959
      %v961 = vsel %vm354, %v954, 0.0
      %962 = vadd.xlane.f32.xlu0 %v961
      %v963 = vpop.xlane.xlu0 %962
      %v964 = vsel %vm354, %v956, 0.0
      %965 = vadd.xlane.f32.xlu0 %v964
      %v966 = vpop.xlane.xlu0 %965
      %v967 = vsel %vm354, %v958, 0.0
      %968 = vadd.xlane.f32.xlu0 %v967
      %v969 = vpop.xlane.xlu0 %968
      %v970 = vsel %vm354, %v960, 0.0
      %971 = vadd.xlane.f32.xlu0 %v970
      %v972 = vpop.xlane.xlu0 %971
      %v973 = vrcp.pop %v963
      %v974 = vrcp.pop %v966
      %v975 = vrcp.pop %v969
      %v976 = vrcp.pop %v972
      %v977 = vmul.f32 %v954, %v973
      %v978 = vmul.f32 %v956, %v974
      %v979 = vmul.f32 %v958, %v975
      %v980 = vmul.f32 %v960, %v976
      %v981 = vpack.c.bf16 %v977, %v977
      %v982 = vpack.c.bf16 %v978, %v978
      %v983 = vpack.c.bf16 %v979, %v979
      %v984 = vpack.c.bf16 %v980, %v980
      %v986 = vsel %vm495, %v981, 0
      %v989 = vsel %vm627, %v328, 0
      %991 = vmatpush.bf16.msra.mxu0 0
      %992 = vmatpush.bf16.msra.mxu0 0
      %993 = vmatpush.bf16.msra.mxu0 0
      %994 = vmatpush.bf16.msra.mxu0 0
      %995 = vmatpush.bf16.msra.mxu0 0
      %996 = vmatpush.bf16.msra.mxu0 0
      %997 = vmatpush.bf16.msra.mxu0 0
      %998 = vmatpush.bf16.msra.mxu0 %v989
      %999 = vmatmul.bf16.gmra.mxu0 %v986
      %v1000 = vpop.f32.mrf.mxu0
      %v1001 = vadd.f32 0.0, %v1000
      %v1002 = vpop.f32.mrf.mxu0
      %1003 = vdwg.mxu0
      %v1005 = vsel %vm495, %v982, 0
      %v1008 = vsel %vm627, %v330, 0
      %1010 = vmatpush.bf16.msra.mxu0 0
      %1011 = vmatpush.bf16.msra.mxu0 0
      %1012 = vmatpush.bf16.msra.mxu0 0
      %1013 = vmatpush.bf16.msra.mxu0 0
      %1014 = vmatpush.bf16.msra.mxu0 0
      %1015 = vmatpush.bf16.msra.mxu0 0
      %1016 = vmatpush.bf16.msra.mxu0 0
      %1017 = vmatpush.bf16.msra.mxu0 %v1008
      %1018 = vmatmul.bf16.gmra.mxu0 %v1005
      %v1019 = vpop.f32.mrf.mxu0
      %v1020 = vadd.f32 0.0, %v1019
      %v1021 = vpop.f32.mrf.mxu0
      %1022 = vdwg.mxu0
      %v1024 = vsel %vm495, %v983, 0
      %v1027 = vsel %vm627, %v332, 0
      %1029 = vmatpush.bf16.msra.mxu0 0
      %1030 = vmatpush.bf16.msra.mxu0 0
      %1031 = vmatpush.bf16.msra.mxu0 0
      %1032 = vmatpush.bf16.msra.mxu0 0
      %1033 = vmatpush.bf16.msra.mxu0 0
      %1034 = vmatpush.bf16.msra.mxu0 0
      %1035 = vmatpush.bf16.msra.mxu0 0
      %1036 = vmatpush.bf16.msra.mxu0 %v1027
      %1037 = vmatmul.bf16.gmra.mxu0 %v1024
      %v1038 = vpop.f32.mrf.mxu0
      %v1039 = vadd.f32 0.0, %v1038
      %v1040 = vpop.f32.mrf.mxu0
      %1041 = vdwg.mxu0
      %v1043 = vsel %vm495, %v984, 0
      %v1046 = vsel %vm627, %v334, 0
      %1048 = vmatpush.bf16.msra.mxu0 0
      %1049 = vmatpush.bf16.msra.mxu0 0
      %1050 = vmatpush.bf16.msra.mxu0 0
      %1051 = vmatpush.bf16.msra.mxu0 0
      %1052 = vmatpush.bf16.msra.mxu0 0
      %1053 = vmatpush.bf16.msra.mxu0 0
      %1054 = vmatpush.bf16.msra.mxu0 0
      %1055 = vmatpush.bf16.msra.mxu0 %v1046
      %1056 = vmatmul.bf16.gmra.mxu0 %v1043
      %v1057 = vpop.f32.mrf.mxu0
      %v1058 = vadd.f32 0.0, %v1057
      %v1059 = vpop.f32.mrf.mxu0
      %1060 = vdwg.mxu0
      %s1061 = scalar_lea.vmem %s308, 4
      %1062 = vst.msk [vmem:[%s1061] sm:$0xf] %vm354, %v1001
      %1063 = vst.msk [vmem:[%s1061 + $0x8] sm:$0xf] %vm354, %v1020
      %1064 = vst.msk [vmem:[%s1061 + $0x10] sm:$0xf] %vm354, %v1039
      %1065 = vst.msk [vmem:[%s1061 + $0x18] sm:$0xf] %vm354, %v1058
      %s1066 = smul.u32 4, %s17
      %p1067 = scmp.lt.s32.totalorder %s1066, 7
      %s1068 = scalar_select %p1067, %s1066, 7
      %s1069 = smul.addr %s1068, 2
      %s1070 = smul.addr %s1069, 4
      %s1071 = scalar_lea.vmem %s6, %s1070
      // Predicated region
      $region45: #{_lambda_.24} parent=43 // pred_check
        %p1072 = pneg %p176
      $region46: #{_lambda_.24} parent=43 // pred_check_branch
        %1074 = sbr.rel (%p1072) target = $region48
      $region47: #{_lambda_.24} parent=43 // pred_region
        %s1075 = smul.u32 4, %s17
      $region48: #{_lambda_.24} parent=43 // pred_fallthru
        _
    $region44: #{_lambda_.24} parent=5 // pred_fallthru
      _
    %p1076 = scmp.le.s32.totalorder 2, %s12
    // Predicated region
    $region49: #{_lambda_.24} parent=5 // pred_check
      %p1077 = pneg %p1076
    $region50: #{_lambda_.24} parent=5 // pred_check_branch
      %1079 = sbr.rel (%p1077) target = $region52
    $region51: #{_lambda_.24} parent=5 // pred_region
      %s1080 = ssub.s32 %s12, 2
      // Predicated region
      $region53: #{_lambda_.24} parent=51 // pred_check
        %p1081 = pneg %p182
      $region54: #{_lambda_.24} parent=51 // pred_check_branch
        %1083 = sbr.rel (%p1081) target = $region56
      $region55: #{_lambda_.24} parent=51 // pred_region
        %s1084 = smul.u32 4, %s18
        %p1085 = scmp.lt.s32.totalorder %s1084, 7
        %s1086 = scalar_select %p1085, %s1084, 7
        %s1087 = smul.addr %s1086, 2
        %s1088 = smul.addr %s1087, 4
        %s1089 = scalar_lea.vmem %s6, %s1088
      $region56: #{_lambda_.24} parent=51 // pred_fallthru
        _
    $region52: #{_lambda_.24} parent=5 // pred_fallthru
      _
  $region6: #{_lambda_.24} parent=0 // loop_footer
    %s16 = sadd.s32 1, %s12
  $region7: #{_lambda_.24} parent=0 // loop_footer_branch
    %11 = sbr.rel target = $region3
  $region8: #{_lambda_.24} parent=0 // loop_exit
    _

// kernel: _lambda_.30
$region0: #{_lambda_.30}
  #allocation0 [shape = 'u32[]', space=smem, size = 0x4, offset = 0x4, fixed_abs, tag = 'smem constant byte address 0x4 - core index']
  #allocation1 [shape = 'u32[72,128]{1,0:T(1,128)}', space=vmem, size = 0x9000, scoped, tag = 'internal scratch']
  %s0 = inlined_call_operand.vmem [shape: bf16[8,16], index: 0, kind: input, shape index: {}]
  %s1 = inlined_call_operand.vmem [shape: bf16[16,16], index: 1, kind: input, shape index: {}]
  %s2 = inlined_call_operand.vmem [shape: f32[1,16], index: 2, kind: input, shape index: {}]
  %s3 = inlined_call_operand.vmem [shape: f32[1,16], index: 3, kind: input, shape index: {}]
  %s4 = inlined_call_operand.vmem [shape: f32[1,16], index: 4, kind: input, shape index: {}]
  %s5 = inlined_call_operand.vmem [shape: f32[8,16], index: 5, kind: output, shape index: {}]
  %s6 = sld [smem:[#allocation0]]
  $region30: #{_lambda_.30} parent=0
    _
  %s8 = ssub.s32 1, %s6
  %s9 = scalar_select 0, %s8, %s6
  // Predicated region
  $region2: #{_lambda_.30} parent=0 // pred_check
    _
  $region3: #{_lambda_.30} parent=0 // pred_check_branch
    %11 = sbr.rel (0) target = $region5
  $region4: #{_lambda_.30} parent=0 // pred_region
    _
  $region5: #{_lambda_.30} parent=0 // pred_fallthru
    _
  // Predicated region
  $region6: #{_lambda_.30} parent=0 // pred_check
    _
  $region7: #{_lambda_.30} parent=0 // pred_check_branch
    %13 = sbr.rel (0) target = $region9
  $region8: #{_lambda_.30} parent=0 // pred_region
    _
  $region9: #{_lambda_.30} parent=0 // pred_fallthru
    _
  // Predicated region
  $region10: #{_lambda_.30} parent=0 // pred_check
    _
  $region11: #{_lambda_.30} parent=0 // pred_check_branch
    %15 = sbr.rel (0) target = $region13
  $region12: #{_lambda_.30} parent=0 // pred_region
    _
  $region13: #{_lambda_.30} parent=0 // pred_fallthru
    _
  // Predicated region
  $region14: #{_lambda_.30} parent=0 // pred_check
    _
  $region15: #{_lambda_.30} parent=0 // pred_check_branch
    %17 = sbr.rel (0) target = $region17
  $region16: #{_lambda_.30} parent=0 // pred_region
    _
  $region17: #{_lambda_.30} parent=0 // pred_fallthru
    _
  // Predicated region
  $region18: #{_lambda_.30} parent=0 // pred_check
    _
  $region19: #{_lambda_.30} parent=0 // pred_check_branch
    %19 = sbr.rel (0) target = $region21
  $region20: #{_lambda_.30} parent=0 // pred_region
    _
  $region21: #{_lambda_.30} parent=0 // pred_fallthru
    _
  %v21 = vld [vmem:[%s0] sm:$0xf]
  %v22 = vld [vmem:[%s1] sm:$0xf]
  %v23 = vld [vmem:[%s1 + $0x4] sm:$0xf]
  %v24 = vld [vmem:[%s2] sm:$0x1]
  %v26 = vperm.slane %v24, 0
  %v30 = vunpack.c.l.b16 %v22
  %v31 = vunpack.c.l.b16 %v23
  %v32 = vpack.c.b16 %v31, %v30
  %vm34 = vcmask 130048
  %v36 = vsel %vm34, %v21, 0
  %38 = vmatpush.bf16.msra.mxu0 0
  %39 = vmatpush.bf16.msra.mxu0 0
  %40 = vmatpush.bf16.msra.mxu0 0
  %41 = vmatpush.bf16.msra.mxu0 0
  %42 = vmatpush.bf16.msra.mxu0 0
  %43 = vmatpush.bf16.msra.mxu0 0
  %44 = vmatpush.bf16.msra.mxu0 0
  %45 = vmatpush.bf16.msra.mxu0 %v32
  %46 = vmatmul.bf16.gmra.mxu0 %v36
  %v47 = vpop.f32.mrf.mxu0
  %v48 = vadd.f32 %v26, %v47
  %v49 = vpop.f32.mrf.mxu0
  %50 = vdwg.mxu0
  %v51 = vsel %vm34, %v48, 0.0
  %52 = vadd.xlane.f32.xlu0 %v51
  %v53 = vpop.xlane.xlu0 %52
  %v54 = vrcp.pop 16.0
  %v55 = vmul.f32 16.0, %v54
  %v56 = vsub.f32 1.0, %v55
  %v57 = vmul.f32 %v54, %v56
  %v58 = vadd.f32 %v54, %v57
  %vm59 = vweird.f32 %v54
  %v60 = vsel %vm59, %v54, %v58
  %v61 = vmul.f32 %v53, %v60
  %v62 = vsub.f32 %v48, %v61
  %v63 = vmul.f32 %v62, %v62
  %v64 = vsel %vm34, %v63, 0.0
  %65 = vadd.xlane.f32.xlu0 %v64
  %v66 = vpop.xlane.xlu0 %65
  %v67 = vmul.f32 %v66, %v60
  %v68 = vadd.f32 %v67, 1e-05
  %v69 = vrsqrt.pop %v68
  %v70 = vmul.f32 %v69, %v68
  %v71 = vmul.f32 %v70, %v69
  %v72 = vmul.f32 0.5, %v71
  %v73 = vsub.f32 1.5, %v72
  %v74 = vmul.f32 %v69, %v73
  %vm75 = vweird.f32 %v68
  %vm76 = vweird.f32 %v69
  %vm77 = vmor %vm75, %vm76
  %v78 = vsel %vm77, %v69, %v74
  %v79 = vmul.f32 %v62, %v78
  %v80 = vld [vmem:[%s3] sm:$0x1]
  %v82 = vperm.slane %v80, 0
  %v84 = vmul.f32 %v79, %v82
  %v85 = vld [vmem:[%s4] sm:$0x1]
  %v87 = vperm.slane %v85, 0
  %v89 = vadd.f32 %v84, %v87
  %90 = vst.msk [vmem:[%s5] sm:$0xff] %vm34, %v89
  // Predicated region
  $region22: #{_lambda_.30} parent=0 // pred_check
    _
  $region23: #{_lambda_.30} parent=0 // pred_check_branch
    %92 = sbr.rel (0) target = $region25
  $region24: #{_lambda_.30} parent=0 // pred_region
    _
  $region25: #{_lambda_.30} parent=0 // pred_fallthru
    _
  // Predicated region
  $region26: #{_lambda_.30} parent=0 // pred_check
    _
  $region27: #{_lambda_.30} parent=0 // pred_check_branch
    %94 = sbr.rel (0) target = $region29
  $region28: #{_lambda_.30} parent=0 // pred_region
    _
  $region29: #{_lambda_.30} parent=0 // pred_fallthru
    _

// kernel: _lambda_.29
$region0: #{_lambda_.29}
  #allocation0 [shape = 'u32[]', space=smem, size = 0x4, offset = 0x4, fixed_abs, tag = 'smem constant byte address 0x4 - core index']
  #allocation1 [shape = 'u32[72,128]{1,0:T(1,128)}', space=vmem, size = 0x9000, scoped, tag = 'internal scratch']
  %s0 = inlined_call_operand.vmem [shape: bf16[2,4,4,4], index: 0, kind: input, shape index: {}]
  %s1 = inlined_call_operand.vmem [shape: bf16[2,4,4,4], index: 1, kind: input, shape index: {}]
  %s2 = inlined_call_operand.vmem [shape: bf16[2,4,4,4], index: 2, kind: input, shape index: {}]
  %s3 = inlined_call_operand.vmem [shape: f32[4,4,4], index: 3, kind: input, shape index: {}]
  %s4 = inlined_call_operand.vmem [shape: f32[4,1], index: 4, kind: input, shape index: {}]
  %s5 = inlined_call_operand.vmem [shape: f32[2,4,4,4], index: 5, kind: output, shape index: {}]
  %s6 = sld [smem:[#allocation0]]
  $region53: #{_lambda_.29} parent=0
    _
  %s8 = ssub.s32 1, %s6
  %s9 = scalar_select 0, %s8, %s6
  loop: start=0, step=1, limit=4
  $region2: #{_lambda_.29} parent=0 // loop_pre_header
    _
  $region3: #{_lambda_.29} parent=0 // loop_header
    %s11 = sphi 0, %s15
    %p12 = scmp.ge.s32.totalorder %s11, 4
    %s21 = sphi 0, %s23
    %s24 = sphi 0, %s21
    %s25 = sphi 0, %s24
    %s41 = sphi 0, %s25
    %s47 = sphi 0, %s49
    %s50 = sphi 0, %s47
    %s51 = sphi 0, %s50
    %s67 = sphi 0, %s51
    %s73 = sphi 0, %s75
    %s76 = sphi 0, %s73
    %s77 = sphi 0, %s76
    %s93 = sphi 0, %s77
    %s97 = sphi 0, %s97
    %s99 = sphi 0, %s97
    %s100 = sphi 0, %s99
    %s114 = sphi 0, %s100
    %s118 = sphi 0, %s118
    %s120 = sphi 0, %s118
    %s121 = sphi 0, %s120
    %s135 = sphi 0, %s121
    %s141 = sphi 0, %s143
    %s144 = sphi 0, %s141
    %s145 = sphi 0, %s144
    %s161 = sphi 0, %s145
  $region4: #{_lambda_.29} parent=0 // loop_header_branch
    %14 = sbr.rel (%p12) target = $region8
  $region5: #{_lambda_.29} parent=0 // loop_body
    %s16 = ssub.s32 %s11, 1
    %s17 = ssub.s32 %s11, 2
    %s18 = sadd.s32 %s11, 1
    %s19 = ssub.s32 %s11, %s18
    %p20 = scmp.eq.s32.totalorder %s19, 0
    %s22 = sadd.s32 %s21, 1
    %s23 = scalar_select %p20, %s21, %s22
    %p26 = pneg %p20
    %p27 = scmp.eq.s32.totalorder %s11, 1
    %p28 = por %p26, %p27
    %p29 = scmp.ne.s32.totalorder %s21, %s24
    %p30 = scmp.eq.s32.totalorder %s11, 0
    %p31 = por %p29, %p30
    %p32 = scmp.ne.s32.totalorder %s21, %s24
    %p33 = scmp.eq.s32.totalorder %s16, 1
    %p34 = por %p32, %p33
    %p35 = scmp.ne.s32.totalorder %s24, %s25
    %p36 = scmp.eq.s32.totalorder %s16, 0
    %p37 = por %p35, %p36
    %p38 = scmp.ne.s32.totalorder %s24, %s25
    %p39 = scmp.eq.s32.totalorder %s17, 1
    %p40 = por %p38, %p39
    %p42 = scmp.ne.s32.totalorder %s25, %s41
    %p43 = scmp.eq.s32.totalorder %s17, 0
    %p44 = por %p42, %p43
    %s45 = ssub.s32 %s11, %s18
    %p46 = scmp.eq.s32.totalorder %s45, 0
    %s48 = sadd.s32 %s47, 1
    %s49 = scalar_select %p46, %s47, %s48
    %p52 = pneg %p46
    %p53 = scmp.eq.s32.totalorder %s11, 1
    %p54 = por %p52, %p53
    %p55 = scmp.ne.s32.totalorder %s47, %s50
    %p56 = scmp.eq.s32.totalorder %s11, 0
    %p57 = por %p55, %p56
    %p58 = scmp.ne.s32.totalorder %s47, %s50
    %p59 = scmp.eq.s32.totalorder %s16, 1
    %p60 = por %p58, %p59
    %p61 = scmp.ne.s32.totalorder %s50, %s51
    %p62 = scmp.eq.s32.totalorder %s16, 0
    %p63 = por %p61, %p62
    %p64 = scmp.ne.s32.totalorder %s50, %s51
    %p65 = scmp.eq.s32.totalorder %s17, 1
    %p66 = por %p64, %p65
    %p68 = scmp.ne.s32.totalorder %s51, %s67
    %p69 = scmp.eq.s32.totalorder %s17, 0
    %p70 = por %p68, %p69
    %s71 = ssub.s32 %s11, %s18
    %p72 = scmp.eq.s32.totalorder %s71, 0
    %s74 = sadd.s32 %s73, 1
    %s75 = scalar_select %p72, %s73, %s74
    %p78 = pneg %p72
    %p79 = scmp.eq.s32.totalorder %s11, 1
    %p80 = por %p78, %p79
    %p81 = scmp.ne.s32.totalorder %s73, %s76
    %p82 = scmp.eq.s32.totalorder %s11, 0
    %p83 = por %p81, %p82
    %p84 = scmp.ne.s32.totalorder %s73, %s76
    %p85 = scmp.eq.s32.totalorder %s16, 1
    %p86 = por %p84, %p85
    %p87 = scmp.ne.s32.totalorder %s76, %s77
    %p88 = scmp.eq.s32.totalorder %s16, 0
    %p89 = por %p87, %p88
    %p90 = scmp.ne.s32.totalorder %s76, %s77
    %p91 = scmp.eq.s32.totalorder %s17, 1
    %p92 = por %p90, %p91
    %p94 = scmp.ne.s32.totalorder %s77, %s93
    %p95 = scmp.eq.s32.totalorder %s17, 0
    %p96 = por %p94, %p95
    %s98 = sadd.s32 %s97, 1
    %p101 = scmp.eq.s32.totalorder %s11, 1
    %p102 = scmp.ne.s32.totalorder %s97, %s99
    %p103 = scmp.eq.s32.totalorder %s11, 0
    %p104 = por %p102, %p103
    %p105 = scmp.ne.s32.totalorder %s97, %s99
    %p106 = scmp.eq.s32.totalorder %s16, 1
    %p107 = por %p105, %p106
    %p108 = scmp.ne.s32.totalorder %s99, %s100
    %p109 = scmp.eq.s32.totalorder %s16, 0
    %p110 = por %p108, %p109
    %p111 = scmp.ne.s32.totalorder %s99, %s100
    %p112 = scmp.eq.s32.totalorder %s17, 1
    %p113 = por %p111, %p112
    %p115 = scmp.ne.s32.totalorder %s100, %s114
    %p116 = scmp.eq.s32.totalorder %s17, 0
    %p117 = por %p115, %p116
    %s119 = sadd.s32 %s118, 1
    %p122 = scmp.eq.s32.totalorder %s11, 1
    %p123 = scmp.ne.s32.totalorder %s118, %s120
    %p124 = scmp.eq.s32.totalorder %s11, 0
    %p125 = por %p123, %p124
    %p126 = scmp.ne.s32.totalorder %s118, %s120
    %p127 = scmp.eq.s32.totalorder %s16, 1
    %p128 = por %p126, %p127
    %p129 = scmp.ne.s32.totalorder %s120, %s121
    %p130 = scmp.eq.s32.totalorder %s16, 0
    %p131 = por %p129, %p130
    %p132 = scmp.ne.s32.totalorder %s120, %s121
    %p133 = scmp.eq.s32.totalorder %s17, 1
    %p134 = por %p132, %p133
    %p136 = scmp.ne.s32.totalorder %s121, %s135
    %p137 = scmp.eq.s32.totalorder %s17, 0
    %p138 = por %p136, %p137
    %s139 = ssub.s32 %s11, %s18
    %p140 = scmp.eq.s32.totalorder %s139, 0
    %s142 = sadd.s32 %s141, 1
    %s143 = scalar_select %p140, %s141, %s142
    %p146 = pneg %p140
    %p147 = scmp.eq.s32.totalorder %s11, 1
    %p148 = por %p146, %p147
    %p149 = scmp.ne.s32.totalorder %s141, %s144
    %p150 = scmp.eq.s32.totalorder %s11, 0
    %p151 = por %p149, %p150
    %p152 = scmp.ne.s32.totalorder %s141, %s144
    %p153 = scmp.eq.s32.totalorder %s16, 1
    %p154 = por %p152, %p153
    %p155 = scmp.ne.s32.totalorder %s144, %s145
    %p156 = scmp.eq.s32.totalorder %s16, 0
    %p157 = por %p155, %p156
    %p158 = scmp.ne.s32.totalorder %s144, %s145
    %p159 = scmp.eq.s32.totalorder %s17, 1
    %p160 = por %p158, %p159
    %p162 = scmp.ne.s32.totalorder %s145, %s161
    %p163 = scmp.eq.s32.totalorder %s17, 0
    %p164 = por %p162, %p163
    %p165 = scmp.le.s32.totalorder 1, %s11
    %p166 = scmp.lt.s32.totalorder %s11, 3
    %p167 = pnand %p165, %p166
    %p168 = pneg %p167
    // Predicated region
    $region9: #{_lambda_.29} parent=5 // pred_check
      _
    $region10: #{_lambda_.29} parent=5 // pred_check_branch
      %170 = sbr.rel (%p167) target = $region12
    $region11: #{_lambda_.29} parent=5 // pred_region
      %s171 = ssub.s32 %s11, 1
      // Predicated region
      $region13: #{_lambda_.29} parent=11 // pred_check
        %p172 = pneg %p110
      $region14: #{_lambda_.29} parent=11 // pred_check_branch
        %174 = sbr.rel (%p172) target = $region16
      $region15: #{_lambda_.29} parent=11 // pred_region
        _
      $region16: #{_lambda_.29} parent=11 // pred_fallthru
        _
      // Predicated region
      $region17: #{_lambda_.29} parent=11 // pred_check
        %p175 = pneg %p131
      $region18: #{_lambda_.29} parent=11 // pred_check_branch
        %177 = sbr.rel (%p175) target = $region20
      $region19: #{_lambda_.29} parent=11 // pred_region
        _
      $region20: #{_lambda_.29} parent=11 // pred_fallthru
        _
    $region12: #{_lambda_.29} parent=5 // pred_fallthru
      _
    %p178 = scmp.lt.s32.totalorder %s11, 2
    // Predicated region
    $region21: #{_lambda_.29} parent=5 // pred_check
      %p179 = pneg %p178
    $region22: #{_lambda_.29} parent=5 // pred_check_branch
      %181 = sbr.rel (%p179) target = $region24
    $region23: #{_lambda_.29} parent=5 // pred_region
      // Predicated region
      $region25: #{_lambda_.29} parent=23 // pred_check
        %p182 = pneg %p31
      $region26: #{_lambda_.29} parent=23 // pred_check_branch
        %184 = sbr.rel (%p182) target = $region28
      $region27: #{_lambda_.29} parent=23 // pred_region
        %p185 = scmp.lt.s32.totalorder %s11, 1
        %s186 = scalar_select %p185, %s11, 1
        %s187 = smul.addr %s186, 4
        %s188 = smul.addr %s187, 2
        %s189 = scalar_lea.vmem %s0, %s188
      $region28: #{_lambda_.29} parent=23 // pred_fallthru
        _
      // Predicated region
      $region29: #{_lambda_.29} parent=23 // pred_check
        %p190 = pneg %p57
      $region30: #{_lambda_.29} parent=23 // pred_check_branch
        %192 = sbr.rel (%p190) target = $region32
      $region31: #{_lambda_.29} parent=23 // pred_region
        %p193 = scmp.lt.s32.totalorder %s11, 1
        %s194 = scalar_select %p193, %s11, 1
        %s195 = smul.addr %s194, 4
        %s196 = smul.addr %s195, 2
        %s197 = scalar_lea.vmem %s1, %s196
      $region32: #{_lambda_.29} parent=23 // pred_fallthru
        _
      // Predicated region
      $region33: #{_lambda_.29} parent=23 // pred_check
        %p198 = pneg %p83
      $region34: #{_lambda_.29} parent=23 // pred_check_branch
        %200 = sbr.rel (%p198) target = $region36
      $region35: #{_lambda_.29} parent=23 // pred_region
        %p201 = scmp.lt.s32.totalorder %s11, 1
        %s202 = scalar_select %p201, %s11, 1
        %s203 = smul.addr %s202, 4
        %s204 = smul.addr %s203, 2
        %s205 = scalar_lea.vmem %s2, %s204
      $region36: #{_lambda_.29} parent=23 // pred_fallthru
        _
    $region24: #{_lambda_.29} parent=5 // pred_fallthru
      _
    %p206 = scmp.le.s32.totalorder 1, %s11
    %p207 = scmp.lt.s32.totalorder %s11, 3
    %p208 = pnand %p206, %p207
    %p209 = pneg %p208
    // Predicated region
    $region37: #{_lambda_.29} parent=5 // pred_check
      _
    $region38: #{_lambda_.29} parent=5 // pred_check_branch
      %211 = sbr.rel (%p208) target = $region40
    $region39: #{_lambda_.29} parent=5 // pred_region
      %s212 = ssub.s32 %s11, 1
      %p213 = scmp.lt.s32.totalorder %s16, 1
      %s214 = scalar_select %p213, %s16, 1
      %s215 = smul.addr %s214, 4
      %s216 = smul.addr %s215, 2
      %s217 = scalar_lea.vmem %s0, %s216
      %p218 = pneg %p37
      %p219 = pneg %p34
      %p220 = scmp.lt.s32.totalorder %s16, 1
      %s221 = scalar_select %p220, %s16, 1
      %s222 = smul.addr %s221, 4
      %s223 = smul.addr %s222, 2
      %s224 = scalar_lea.vmem %s1, %s223
      %p225 = pneg %p63
      %p226 = pneg %p60
      %p227 = scmp.lt.s32.totalorder %s16, 1
      %s228 = scalar_select %p227, %s16, 1
      %s229 = smul.addr %s228, 4
      %s230 = smul.addr %s229, 2
      %s231 = scalar_lea.vmem %s2, %s230
      %p232 = pneg %p89
      %p233 = pneg %p86
      %p234 = pneg %p110
      %p235 = pneg %p107
      %p236 = pneg %p131
      %p237 = pneg %p128
      %p238 = pneg %p157
      %p239 = pneg %p154
      %p240 = scmp.lt.s32.totalorder %s16, 1
      %s241 = scalar_select %p240, %s16, 1
      %s242 = smul.addr %s241, 4
      %s243 = smul.addr %s242, 4
      %s244 = scalar_lea.vmem %s5, %s243
      %p245 = scmp.lt.s32.totalorder %s16, 1
      %s246 = scalar_select %p245, %s16, 1
      %s247 = smul.addr %s246, 4
      %s248 = smul.addr %s247, 2
      %s249 = scalar_lea.vmem %s0, %s248
      %p250 = scmp.lt.s32.totalorder %s16, 1
      %s251 = scalar_select %p250, %s16, 1
      %s252 = smul.addr %s251, 4
      %s253 = smul.addr %s252, 2
      %s254 = scalar_lea.vmem %s1, %s253
      %p255 = scmp.lt.s32.totalorder %s16, 1
      %s256 = scalar_select %p255, %s16, 1
      %s257 = smul.addr %s256, 4
      %s258 = smul.addr %s257, 2
      %s259 = scalar_lea.vmem %s2, %s258
      %p260 = scmp.lt.s32.totalorder %s16, 1
      %s261 = scalar_select %p260, %s16, 1
      %s262 = smul.addr %s261, 4
      %s263 = smul.addr %s262, 4
      %s264 = scalar_lea.vmem %s5, %s263
      %v266 = vld [vmem:[%s249] sm:$0x3]
      %v267 = vld [vmem:[%s249 + $0x2] sm:$0x3]
      %v268 = vld [vmem:[%s249 + $0x4] sm:$0x3]
      %v269 = vld [vmem:[%s249 + $0x6] sm:$0x3]
      %v270 = vld [vmem:[%s254] sm:$0x3]
      %v271 = vld [vmem:[%s254 + $0x2] sm:$0x3]
      %v272 = vld [vmem:[%s254 + $0x4] sm:$0x3]
      %v273 = vld [vmem:[%s254 + $0x6] sm:$0x3]
      %v274 = vld [vmem:[%s259] sm:$0x3]
      %v275 = vld [vmem:[%s259 + $0x2] sm:$0x3]
      %v276 = vld [vmem:[%s259 + $0x4] sm:$0x3]
      %v277 = vld [vmem:[%s259 + $0x6] sm:$0x3]
      %v278 = vld [vmem:[%s3] sm:$0xf]
      %v279 = vld [vmem:[%s3 + $0x4] sm:$0xf]
      %v280 = vld [vmem:[%s3 + $0x8] sm:$0xf]
      %v281 = vld [vmem:[%s3 + $0xc] sm:$0xf]
      %v282 = vld [vmem:[%s4] sm:$0xf]
      %v283 = vunpack.c.l.bf16 %v266
      %v284 = vunpack.c.l.bf16 %v270
      %v285 = vmul.f32 %v283, %v283
      %vm286 = vcmask 27648
      %v287 = vsel %vm286, %v285, 0.0
      %288 = vadd.xlane.f32.xlu0 %v287
      %v289 = vpop.xlane.xlu0 %288
      %v290 = vmax.f32 %v289, 1e-24
      %v291 = vrsqrt.pop %v290
      %v292 = vmul.f32 %v291, %v290
      %v293 = vmul.f32 %v292, %v291
      %v294 = vmul.f32 0.5, %v293
      %v295 = vsub.f32 1.5, %v294
      %v296 = vmul.f32 %v291, %v295
      %vm297 = vweird.f32 %v290
      %vm298 = vweird.f32 %v291
      %vm299 = vmor %vm297, %vm298
      %v300 = vsel %vm299, %v291, %v296
      %v301 = vmul.f32 %v283, %v300
      %v302 = vmul.f32 %v284, %v284
      %v303 = vsel %vm286, %v302, 0.0
      %304 = vadd.xlane.f32.xlu0 %v303
      %v305 = vpop.xlane.xlu0 %304
      %v306 = vmax.f32 %v305, 1e-24
      %v307 = vrsqrt.pop %v306
      %v308 = vmul.f32 %v307, %v306
      %v309 = vmul.f32 %v308, %v307
      %v310 = vmul.f32 0.5, %v309
      %v311 = vsub.f32 1.5, %v310
      %v312 = vmul.f32 %v307, %v311
      %vm313 = vweird.f32 %v306
      %vm314 = vweird.f32 %v307
      %vm315 = vmor %vm313, %vm314
      %v316 = vsel %vm315, %v307, %v312
      %v317 = vmul.f32 %v284, %v316
      %s319 = vtos %v282
      %v320 = vstv %s319
      %v322 = vmul.f32 %v301, %v320
      %v323 = vpack.c.bf16 %v322, %v322
      %v324 = vpack.c.bf16 %v317, %v317
      %vm325 = vcmask 31744
      %v327 = vsel %vm325, %v323, 0
      %v330 = vsel %vm325, %v324, 0
      %332 = vmatpush.bf16.xpose.msra.mxu0 0
      %333 = vmatpush.bf16.xpose.msra.mxu0 0
      %334 = vmatpush.bf16.xpose.msra.mxu0 0
      %335 = vmatpush.bf16.xpose.msra.mxu0 0
      %336 = vmatpush.bf16.xpose.msra.mxu0 0
      %337 = vmatpush.bf16.xpose.msra.mxu0 0
      %338 = vmatpush.bf16.xpose.msra.mxu0 0
      %339 = vmatpush.bf16.xpose.msra.mxu0 %v330
      %340 = vmatmul.bf16.gmra.mxu0 %v327
      %v341 = vpop.f32.mrf.mxu0
      %v342 = vadd.f32 %v278, %v341
      %v343 = vpop.f32.mrf.mxu0
      %344 = vdwg.mxu0
      %v345 = vsel %vm286, %v342, -inf
      %346 = vmax.xlane.f32.xlu0 %v345
      %v347 = vpop.xlane.xlu0 %346
      %v348 = vsub.f32 %v342, %v347
      %v349 = vmul.f32 %v348, 1.442695
      %v350 = vpow.pop %v349
      %v351 = vsel %vm286, %v350, 0.0
      %352 = vadd.xlane.f32.xlu0 %v351
      %v353 = vpop.xlane.xlu0 %352
      %v354 = vrcp.pop %v353
      %v355 = vmul.f32 %v350, %v354
      %v356 = vpack.c.bf16 %v355, %v355
      %v358 = vsel %vm325, %v356, 0
      %vm360 = vcmask 1041408
      %v362 = vsel %vm360, %v274, 0
      %364 = vmatpush.bf16.msra.mxu0 0
      %365 = vmatpush.bf16.msra.mxu0 0
      %366 = vmatpush.bf16.msra.mxu0 0
      %367 = vmatpush.bf16.msra.mxu0 0
      %368 = vmatpush.bf16.msra.mxu0 0
      %369 = vmatpush.bf16.msra.mxu0 0
      %370 = vmatpush.bf16.msra.mxu0 0
      %371 = vmatpush.bf16.msra.mxu0 %v362
      %372 = vmatmul.bf16.gmra.mxu0 %v358
      %v373 = vpop.f32.mrf.mxu0
      %v374 = vadd.f32 0.0, %v373
      %v375 = vpop.f32.mrf.mxu0
      %376 = vdwg.mxu0
      %377 = vst.msk [vmem:[%s264] sm:$0xf] %vm286, %v374
      %v378 = vunpack.c.l.bf16 %v267
      %v379 = vunpack.c.l.bf16 %v271
      %v380 = vmul.f32 %v378, %v378
      %v381 = vsel %vm286, %v380, 0.0
      %382 = vadd.xlane.f32.xlu0 %v381
      %v383 = vpop.xlane.xlu0 %382
      %v384 = vmax.f32 %v383, 1e-24
      %v385 = vrsqrt.pop %v384
      %v386 = vmul.f32 %v385, %v384
      %v387 = vmul.f32 %v386, %v385
      %v388 = vmul.f32 0.5, %v387
      %v389 = vsub.f32 1.5, %v388
      %v390 = vmul.f32 %v385, %v389
      %vm391 = vweird.f32 %v384
      %vm392 = vweird.f32 %v385
      %vm393 = vmor %vm391, %vm392
      %v394 = vsel %vm393, %v385, %v390
      %v395 = vmul.f32 %v378, %v394
      %v396 = vmul.f32 %v379, %v379
      %v397 = vsel %vm286, %v396, 0.0
      %398 = vadd.xlane.f32.xlu0 %v397
      %v399 = vpop.xlane.xlu0 %398
      %v400 = vmax.f32 %v399, 1e-24
      %v401 = vrsqrt.pop %v400
      %v402 = vmul.f32 %v401, %v400
      %v403 = vmul.f32 %v402, %v401
      %v404 = vmul.f32 0.5, %v403
      %v405 = vsub.f32 1.5, %v404
      %v406 = vmul.f32 %v401, %v405
      %vm407 = vweird.f32 %v400
      %vm408 = vweird.f32 %v401
      %vm409 = vmor %vm407, %vm408
      %v410 = vsel %vm409, %v401, %v406
      %v411 = vmul.f32 %v379, %v410
      %v412 = vrot.slane %v282, 1
      %s413 = vtos %v412
      %v414 = vstv %s413
      %v416 = vmul.f32 %v395, %v414
      %v417 = vpack.c.bf16 %v416, %v416
      %v418 = vpack.c.bf16 %v411, %v411
      %v420 = vsel %vm325, %v417, 0
      %v423 = vsel %vm325, %v418, 0
      %425 = vmatpush.bf16.xpose.msra.mxu0 0
      %426 = vmatpush.bf16.xpose.msra.mxu0 0
      %427 = vmatpush.bf16.xpose.msra.mxu0 0
      %428 = vmatpush.bf16.xpose.msra.mxu0 0
      %429 = vmatpush.bf16.xpose.msra.mxu0 0
      %430 = vmatpush.bf16.xpose.msra.mxu0 0
      %431 = vmatpush.bf16.xpose.msra.mxu0 0
      %432 = vmatpush.bf16.xpose.msra.mxu0 %v423
      %433 = vmatmul.bf16.gmra.mxu0 %v420
      %v434 = vpop.f32.mrf.mxu0
      %v435 = vadd.f32 %v279, %v434
      %v436 = vpop.f32.mrf.mxu0
      %437 = vdwg.mxu0
      %v438 = vsel %vm286, %v435, -inf
      %439 = vmax.xlane.f32.xlu0 %v438
      %v440 = vpop.xlane.xlu0 %439
      %v441 = vsub.f32 %v435, %v440
      %v442 = vmul.f32 %v441, 1.442695
      %v443 = vpow.pop %v442
      %v444 = vsel %vm286, %v443, 0.0
      %445 = vadd.xlane.f32.xlu0 %v444
      %v446 = vpop.xlane.xlu0 %445
      %v447 = vrcp.pop %v446
      %v448 = vmul.f32 %v443, %v447
      %v449 = vpack.c.bf16 %v448, %v448
      %v451 = vsel %vm325, %v449, 0
      %v454 = vsel %vm360, %v275, 0
      %456 = vmatpush.bf16.msra.mxu0 0
      %457 = vmatpush.bf16.msra.mxu0 0
      %458 = vmatpush.bf16.msra.mxu0 0
      %459 = vmatpush.bf16.msra.mxu0 0
      %460 = vmatpush.bf16.msra.mxu0 0
      %461 = vmatpush.bf16.msra.mxu0 0
      %462 = vmatpush.bf16.msra.mxu0 0
      %463 = vmatpush.bf16.msra.mxu0 %v454
      %464 = vmatmul.bf16.gmra.mxu0 %v451
      %v465 = vpop.f32.mrf.mxu0
      %v466 = vadd.f32 0.0, %v465
      %v467 = vpop.f32.mrf.mxu0
      %468 = vdwg.mxu0
      %s469 = scalar_lea.vmem %s264, 4
      %470 = vst.msk [vmem:[%s469] sm:$0xf] %vm286, %v466
      %v471 = vunpack.c.l.bf16 %v268
      %v472 = vunpack.c.l.bf16 %v272
      %v473 = vmul.f32 %v471, %v471
      %v474 = vsel %vm286, %v473, 0.0
      %475 = vadd.xlane.f32.xlu0 %v474
      %v476 = vpop.xlane.xlu0 %475
      %v477 = vmax.f32 %v476, 1e-24
      %v478 = vrsqrt.pop %v477
      %v479 = vmul.f32 %v478, %v477
      %v480 = vmul.f32 %v479, %v478
      %v481 = vmul.f32 0.5, %v480
      %v482 = vsub.f32 1.5, %v481
      %v483 = vmul.f32 %v478, %v482
      %vm484 = vweird.f32 %v477
      %vm485 = vweird.f32 %v478
      %vm486 = vmor %vm484, %vm485
      %v487 = vsel %vm486, %v478, %v483
      %v488 = vmul.f32 %v471, %v487
      %v489 = vmul.f32 %v472, %v472
      %v490 = vsel %vm286, %v489, 0.0
      %491 = vadd.xlane.f32.xlu0 %v490
      %v492 = vpop.xlane.xlu0 %491
      %v493 = vmax.f32 %v492, 1e-24
      %v494 = vrsqrt.pop %v493
      %v495 = vmul.f32 %v494, %v493
      %v496 = vmul.f32 %v495, %v494
      %v497 = vmul.f32 0.5, %v496
      %v498 = vsub.f32 1.5, %v497
      %v499 = vmul.f32 %v494, %v498
      %vm500 = vweird.f32 %v493
      %vm501 = vweird.f32 %v494
      %vm502 = vmor %vm500, %vm501
      %v503 = vsel %vm502, %v494, %v499
      %v504 = vmul.f32 %v472, %v503
      %v505 = vrot.slane %v282, 2
      %s506 = vtos %v505
      %v507 = vstv %s506
      %v509 = vmul.f32 %v488, %v507
      %v510 = vpack.c.bf16 %v509, %v509
      %v511 = vpack.c.bf16 %v504, %v504
      %v513 = vsel %vm325, %v510, 0
      %v516 = vsel %vm325, %v511, 0
      %518 = vmatpush.bf16.xpose.msra.mxu0 0
      %519 = vmatpush.bf16.xpose.msra.mxu0 0
      %520 = vmatpush.bf16.xpose.msra.mxu0 0
      %521 = vmatpush.bf16.xpose.msra.mxu0 0
      %522 = vmatpush.bf16.xpose.msra.mxu0 0
      %523 = vmatpush.bf16.xpose.msra.mxu0 0
      %524 = vmatpush.bf16.xpose.msra.mxu0 0
      %525 = vmatpush.bf16.xpose.msra.mxu0 %v516
      %526 = vmatmul.bf16.gmra.mxu0 %v513
      %v527 = vpop.f32.mrf.mxu0
      %v528 = vadd.f32 %v280, %v527
      %v529 = vpop.f32.mrf.mxu0
      %530 = vdwg.mxu0
      %v531 = vsel %vm286, %v528, -inf
      %532 = vmax.xlane.f32.xlu0 %v531
      %v533 = vpop.xlane.xlu0 %532
      %v534 = vsub.f32 %v528, %v533
      %v535 = vmul.f32 %v534, 1.442695
      %v536 = vpow.pop %v535
      %v537 = vsel %vm286, %v536, 0.0
      %538 = vadd.xlane.f32.xlu0 %v537
      %v539 = vpop.xlane.xlu0 %538
      %v540 = vrcp.pop %v539
      %v541 = vmul.f32 %v536, %v540
      %v542 = vpack.c.bf16 %v541, %v541
      %v544 = vsel %vm325, %v542, 0
      %v547 = vsel %vm360, %v276, 0
      %549 = vmatpush.bf16.msra.mxu0 0
      %550 = vmatpush.bf16.msra.mxu0 0
      %551 = vmatpush.bf16.msra.mxu0 0
      %552 = vmatpush.bf16.msra.mxu0 0
      %553 = vmatpush.bf16.msra.mxu0 0
      %554 = vmatpush.bf16.msra.mxu0 0
      %555 = vmatpush.bf16.msra.mxu0 0
      %556 = vmatpush.bf16.msra.mxu0 %v547
      %557 = vmatmul.bf16.gmra.mxu0 %v544
      %v558 = vpop.f32.mrf.mxu0
      %v559 = vadd.f32 0.0, %v558
      %v560 = vpop.f32.mrf.mxu0
      %561 = vdwg.mxu0
      %s562 = scalar_lea.vmem %s264, 8
      %563 = vst.msk [vmem:[%s562] sm:$0xf] %vm286, %v559
      %v564 = vunpack.c.l.bf16 %v269
      %v565 = vunpack.c.l.bf16 %v273
      %v566 = vmul.f32 %v564, %v564
      %v567 = vsel %vm286, %v566, 0.0
      %568 = vadd.xlane.f32.xlu0 %v567
      %v569 = vpop.xlane.xlu0 %568
      %v570 = vmax.f32 %v569, 1e-24
      %v571 = vrsqrt.pop %v570
      %v572 = vmul.f32 %v571, %v570
      %v573 = vmul.f32 %v572, %v571
      %v574 = vmul.f32 0.5, %v573
      %v575 = vsub.f32 1.5, %v574
      %v576 = vmul.f32 %v571, %v575
      %vm577 = vweird.f32 %v570
      %vm578 = vweird.f32 %v571
      %vm579 = vmor %vm577, %vm578
      %v580 = vsel %vm579, %v571, %v576
      %v581 = vmul.f32 %v564, %v580
      %v582 = vmul.f32 %v565, %v565
      %v583 = vsel %vm286, %v582, 0.0
      %584 = vadd.xlane.f32.xlu0 %v583
      %v585 = vpop.xlane.xlu0 %584
      %v586 = vmax.f32 %v585, 1e-24
      %v587 = vrsqrt.pop %v586
      %v588 = vmul.f32 %v587, %v586
      %v589 = vmul.f32 %v588, %v587
      %v590 = vmul.f32 0.5, %v589
      %v591 = vsub.f32 1.5, %v590
      %v592 = vmul.f32 %v587, %v591
      %vm593 = vweird.f32 %v586
      %vm594 = vweird.f32 %v587
      %vm595 = vmor %vm593, %vm594
      %v596 = vsel %vm595, %v587, %v592
      %v597 = vmul.f32 %v565, %v596
      %v598 = vrot.slane %v282, 3
      %s599 = vtos %v598
      %v600 = vstv %s599
      %v602 = vmul.f32 %v581, %v600
      %v603 = vpack.c.bf16 %v602, %v602
      %v604 = vpack.c.bf16 %v597, %v597
      %v606 = vsel %vm325, %v603, 0
      %v609 = vsel %vm325, %v604, 0
      %611 = vmatpush.bf16.xpose.msra.mxu0 0
      %612 = vmatpush.bf16.xpose.msra.mxu0 0
      %613 = vmatpush.bf16.xpose.msra.mxu0 0
      %614 = vmatpush.bf16.xpose.msra.mxu0 0
      %615 = vmatpush.bf16.xpose.msra.mxu0 0
      %616 = vmatpush.bf16.xpose.msra.mxu0 0
      %617 = vmatpush.bf16.xpose.msra.mxu0 0
      %618 = vmatpush.bf16.xpose.msra.mxu0 %v609
      %619 = vmatmul.bf16.gmra.mxu0 %v606
      %v620 = vpop.f32.mrf.mxu0
      %v621 = vadd.f32 %v281, %v620
      %v622 = vpop.f32.mrf.mxu0
      %623 = vdwg.mxu0
      %v624 = vsel %vm286, %v621, -inf
      %625 = vmax.xlane.f32.xlu0 %v624
      %v626 = vpop.xlane.xlu0 %625
      %v627 = vsub.f32 %v621, %v626
      %v628 = vmul.f32 %v627, 1.442695
      %v629 = vpow.pop %v628
      %v630 = vsel %vm286, %v629, 0.0
      %631 = vadd.xlane.f32.xlu0 %v630
      %v632 = vpop.xlane.xlu0 %631
      %v633 = vrcp.pop %v632
      %v634 = vmul.f32 %v629, %v633
      %v635 = vpack.c.bf16 %v634, %v634
      %v637 = vsel %vm325, %v635, 0
      %v640 = vsel %vm360, %v277, 0
      %642 = vmatpush.bf16.msra.mxu0 0
      %643 = vmatpush.bf16.msra.mxu0 0
      %644 = vmatpush.bf16.msra.mxu0 0
      %645 = vmatpush.bf16.msra.mxu0 0
      %646 = vmatpush.bf16.msra.mxu0 0
      %647 = vmatpush.bf16.msra.mxu0 0
      %648 = vmatpush.bf16.msra.mxu0 0
      %649 = vmatpush.bf16.msra.mxu0 %v640
      %650 = vmatmul.bf16.gmra.mxu0 %v637
      %v651 = vpop.f32.mrf.mxu0
      %v652 = vadd.f32 0.0, %v651
      %v653 = vpop.f32.mrf.mxu0
      %654 = vdwg.mxu0
      %s655 = scalar_lea.vmem %s264, 12
      %656 = vst.msk [vmem:[%s655] sm:$0xf] %vm286, %v652
      %p657 = scmp.lt.s32.totalorder %s16, 1
      %s658 = scalar_select %p657, %s16, 1
      %s659 = smul.addr %s658, 4
      %s660 = smul.addr %s659, 4
      %s661 = scalar_lea.vmem %s5, %s660
      // Predicated region
      $region41: #{_lambda_.29} parent=39 // pred_check
        %p662 = pneg %p154
      $region42: #{_lambda_.29} parent=39 // pred_check_branch
        %664 = sbr.rel (%p662) target = $region44
      $region43: #{_lambda_.29} parent=39 // pred_region
        _
      $region44: #{_lambda_.29} parent=39 // pred_fallthru
        _
    $region40: #{_lambda_.29} parent=5 // pred_fallthru
      _
    %p665 = scmp.le.s32.totalorder 2, %s11
    // Predicated region
    $region45: #{_lambda_.29} parent=5 // pred_check
      %p666 = pneg %p665
    $region46: #{_lambda_.29} parent=5 // pred_check_branch
      %668 = sbr.rel (%p666) target = $region48
    $region47: #{_lambda_.29} parent=5 // pred_region
      %s669 = ssub.s32 %s11, 2
      // Predicated region
      $region49: #{_lambda_.29} parent=47 // pred_check
        %p670 = pneg %p160
      $region50: #{_lambda_.29} parent=47 // pred_check_branch
        %672 = sbr.rel (%p670) target = $region52
      $region51: #{_lambda_.29} parent=47 // pred_region
        %p673 = scmp.lt.s32.totalorder %s17, 1
        %s674 = scalar_select %p673, %s17, 1
        %s675 = smul.addr %s674, 4
        %s676 = smul.addr %s675, 4
        %s677 = scalar_lea.vmem %s5, %s676
      $region52: #{_lambda_.29} parent=47 // pred_fallthru
        _
    $region48: #{_lambda_.29} parent=5 // pred_fallthru
      _
  $region6: #{_lambda_.29} parent=0 // loop_footer
    %s15 = sadd.s32 1, %s11
  $region7: #{_lambda_.29} parent=0 // loop_footer_branch
    %10 = sbr.rel target = $region3
  $region8: #{_lambda_.29} parent=0 // loop_exit
    _

// kernel: _lambda_.35
$region0: #{_lambda_.35}
  #allocation0 [shape = 'u32[]', space=smem, size = 0x4, offset = 0x4, fixed_abs, tag = 'smem constant byte address 0x4 - core index']
  #allocation1 [shape = 'u32[72,128]{1,0:T(1,128)}', space=vmem, size = 0x9000, scoped, tag = 'internal scratch']
  %s0 = inlined_call_operand.vmem [shape: f32[8,16], index: 0, kind: input, shape index: {}]
  %s1 = inlined_call_operand.vmem [shape: bf16[16,64], index: 1, kind: input, shape index: {}]
  %s2 = inlined_call_operand.vmem [shape: f32[1,64], index: 2, kind: input, shape index: {}]
  %s3 = inlined_call_operand.vmem [shape: bf16[64,16], index: 3, kind: input, shape index: {}]
  %s4 = inlined_call_operand.vmem [shape: f32[1,16], index: 4, kind: input, shape index: {}]
  %s5 = inlined_call_operand.vmem [shape: f32[1,16], index: 5, kind: input, shape index: {}]
  %s6 = inlined_call_operand.vmem [shape: f32[1,16], index: 6, kind: input, shape index: {}]
  %s7 = inlined_call_operand.hbm [shape: f32[8,16], index: 7, kind: output, shape index: {}]
  %s8 = sld [smem:[#allocation0]]
  $region38: #{_lambda_.35} parent=0
    _
  %s10 = ssub.s32 1, %s8
  %s11 = scalar_select 0, %s10, %s8
  $region1: #{_lambda_.35} parent=0
    #allocation2 [shape = 'u8[4096]{0}', space=vmem, size = 0x1000, scoped, tag = 'output window, operand 0, single buffered']
    #allocation3 [shape = 's32[1]{0}', space=sflag, size = 0x4, scoped, tag = 'scoped memory for _lambda_.35']
    %12 = vsyncpa [#allocation3], 0
    // Predicated region
    $region2: #{_lambda_.35} parent=1 // pred_check
      _
    $region3: #{_lambda_.35} parent=1 // pred_check_branch
      %14 = sbr.rel (0) target = $region5
    $region4: #{_lambda_.35} parent=1 // pred_region
      _
    $region5: #{_lambda_.35} parent=1 // pred_fallthru
      _
    // Predicated region
    $region6: #{_lambda_.35} parent=1 // pred_check
      _
    $region7: #{_lambda_.35} parent=1 // pred_check_branch
      %16 = sbr.rel (0) target = $region9
    $region8: #{_lambda_.35} parent=1 // pred_region
      _
    $region9: #{_lambda_.35} parent=1 // pred_fallthru
      _
    // Predicated region
    $region10: #{_lambda_.35} parent=1 // pred_check
      _
    $region11: #{_lambda_.35} parent=1 // pred_check_branch
      %18 = sbr.rel (0) target = $region13
    $region12: #{_lambda_.35} parent=1 // pred_region
      _
    $region13: #{_lambda_.35} parent=1 // pred_fallthru
      _
    // Predicated region
    $region14: #{_lambda_.35} parent=1 // pred_check
      _
    $region15: #{_lambda_.35} parent=1 // pred_check_branch
      %20 = sbr.rel (0) target = $region17
    $region16: #{_lambda_.35} parent=1 // pred_region
      _
    $region17: #{_lambda_.35} parent=1 // pred_fallthru
      _
    // Predicated region
    $region18: #{_lambda_.35} parent=1 // pred_check
      _
    $region19: #{_lambda_.35} parent=1 // pred_check_branch
      %22 = sbr.rel (0) target = $region21
    $region20: #{_lambda_.35} parent=1 // pred_region
      _
    $region21: #{_lambda_.35} parent=1 // pred_fallthru
      _
    // Predicated region
    $region22: #{_lambda_.35} parent=1 // pred_check
      _
    $region23: #{_lambda_.35} parent=1 // pred_check_branch
      %24 = sbr.rel (0) target = $region25
    $region24: #{_lambda_.35} parent=1 // pred_region
      _
    $region25: #{_lambda_.35} parent=1 // pred_fallthru
      _
    // Predicated region
    $region26: #{_lambda_.35} parent=1 // pred_check
      _
    $region27: #{_lambda_.35} parent=1 // pred_check_branch
      %26 = sbr.rel (0) target = $region29
    $region28: #{_lambda_.35} parent=1 // pred_region
      _
    $region29: #{_lambda_.35} parent=1 // pred_fallthru
      _
    %v28 = vld [vmem:[%s0] sm:$0xff]
    %v29 = vpack.c.bf16 %v28, %v28
    %v30 = vld [vmem:[%s1] sm:$0xf]
    %v31 = vld [vmem:[%s1 + $0x4] sm:$0xf]
    %v32 = vld [vmem:[%s2] sm:$0x1]
    %v34 = vperm.slane %v32, 0
    %v38 = vunpack.c.l.b16 %v30
    %v39 = vunpack.c.l.b16 %v31
    %v40 = vpack.c.b16 %v39, %v38
    %vm42 = vcmask 130048
    %v44 = vsel %vm42, %v29, 0
    %46 = vmatpush.bf16.msra.mxu0 0
    %47 = vmatpush.bf16.msra.mxu0 0
    %48 = vmatpush.bf16.msra.mxu0 0
    %49 = vmatpush.bf16.msra.mxu0 0
    %50 = vmatpush.bf16.msra.mxu0 0
    %51 = vmatpush.bf16.msra.mxu0 0
    %52 = vmatpush.bf16.msra.mxu0 0
    %53 = vmatpush.bf16.msra.mxu0 %v40
    %54 = vmatmul.bf16.gmra.mxu0 %v44
    %v55 = vpop.f32.mrf.mxu0
    %v56 = vadd.f32 %v34, %v55
    %v57 = vpop.f32.mrf.mxu0
    %58 = vdwg.mxu0
    %v59 = vmul.f32 %v56, 0.5
    %v60 = vmul.f32 %v56, 0.044715
    %v61 = vmul.f32 %v60, %v56
    %v62 = vmul.f32 %v61, %v56
    %v63 = vadd.f32 %v56, %v62
    %v64 = vmul.f32 %v63, 0.7978846
    %v65 = vtanh.pop %v64
    %v66 = vadd.f32 %v65, 1.0
    %v67 = vmul.f32 %v59, %v66
    %v68 = vpack.c.bf16 %v67, %v67
    %v69 = vld [vmem:[%s3] sm:$0xf]
    %v70 = vld [vmem:[%s3 + $0x4] sm:$0xf]
    %v71 = vld [vmem:[%s3 + $0x8] sm:$0xf]
    %v72 = vld [vmem:[%s3 + $0xc] sm:$0xf]
    %v73 = vld [vmem:[%s3 + $0x10] sm:$0xf]
    %v74 = vld [vmem:[%s3 + $0x14] sm:$0xf]
    %v75 = vld [vmem:[%s3 + $0x18] sm:$0xf]
    %v76 = vld [vmem:[%s3 + $0x1c] sm:$0xf]
    %v77 = vld [vmem:[%s4] sm:$0x1]
    %v79 = vperm.slane %v77, 0
    %v89 = vunpack.c.l.b16 %v69
    %v90 = vunpack.c.l.b16 %v70
    %v91 = vunpack.c.l.b16 %v71
    %v92 = vunpack.c.l.b16 %v72
    %v93 = vunpack.c.l.b16 %v73
    %v94 = vunpack.c.l.b16 %v74
    %v95 = vunpack.c.l.b16 %v75
    %v96 = vunpack.c.l.b16 %v76
    %v97 = vpack.c.b16 %v90, %v89
    %v98 = vpack.c.b16 %v92, %v91
    %v99 = vpack.c.b16 %v94, %v93
    %v100 = vpack.c.b16 %v96, %v95
    %vm105 = vcmask 523264
    %v107 = vsel %vm105, %v68, 0
    %109 = vmatpush.bf16.msra.mxu0 0
    %110 = vmatpush.bf16.msra.mxu0 0
    %111 = vmatpush.bf16.msra.mxu0 0
    %112 = vmatpush.bf16.msra.mxu0 0
    %113 = vmatpush.bf16.msra.mxu0 %v100
    %114 = vmatpush.bf16.msra.mxu0 %v99
    %115 = vmatpush.bf16.msra.mxu0 %v98
    %116 = vmatpush.bf16.msra.mxu0 %v97
    %117 = vmatmul.bf16.gmra.mxu0 %v107
    %v118 = vpop.f32.mrf.mxu0
    %v119 = vadd.f32 %v79, %v118
    %v120 = vpop.f32.mrf.mxu0
    %121 = vdwg.mxu0
    %v122 = vsel %vm42, %v119, 0.0
    %123 = vadd.xlane.f32.xlu0 %v122
    %v124 = vpop.xlane.xlu0 %123
    %v125 = vrcp.pop 16.0
    %v126 = vmul.f32 16.0, %v125
    %v127 = vsub.f32 1.0, %v126
    %v128 = vmul.f32 %v125, %v127
    %v129 = vadd.f32 %v125, %v128
    %vm130 = vweird.f32 %v125
    %v131 = vsel %vm130, %v125, %v129
    %v132 = vmul.f32 %v124, %v131
    %v133 = vsub.f32 %v119, %v132
    %v134 = vmul.f32 %v133, %v133
    %v135 = vsel %vm42, %v134, 0.0
    %136 = vadd.xlane.f32.xlu0 %v135
    %v137 = vpop.xlane.xlu0 %136
    %v138 = vmul.f32 %v137, %v131
    %v139 = vadd.f32 %v138, 1e-05
    %v140 = vrsqrt.pop %v139
    %v141 = vmul.f32 %v140, %v139
    %v142 = vmul.f32 %v141, %v140
    %v143 = vmul.f32 0.5, %v142
    %v144 = vsub.f32 1.5, %v143
    %v145 = vmul.f32 %v140, %v144
    %vm146 = vweird.f32 %v139
    %vm147 = vweird.f32 %v140
    %vm148 = vmor %vm146, %vm147
    %v149 = vsel %vm148, %v140, %v145
    %v150 = vmul.f32 %v133, %v149
    %v151 = vld [vmem:[%s5] sm:$0x1]
    %v153 = vperm.slane %v151, 0
    %v155 = vmul.f32 %v150, %v153
    %v156 = vld [vmem:[%s6] sm:$0x1]
    %v158 = vperm.slane %v156, 0
    %v160 = vadd.f32 %v155, %v158
    %v161 = vadd.f32 %v28, %v160
    %162 = vst.msk [vmem:[#allocation2] sm:$0xff] %vm42, %v161
    // Predicated region
    $region30: #{_lambda_.35} parent=1 // pred_check
      _
    $region31: #{_lambda_.35} parent=1 // pred_check_branch
      %164 = sbr.rel (0) target = $region33
    $region32: #{_lambda_.35} parent=1 // pred_region
      %166 = vsyncadd [#allocation3], 0
      %s168 = sshll.u32 [#allocation2], 4
      %s169 = int_to_ptr.vmem [resolvable:$true] %s168
      %s170 = sshll.u32 %s7, 4
      %s171 = int_to_ptr.hbm [resolvable:$true] %s170
      %173 = dma.vmem_to_hbm [thread:$0]  %s169, 128, %s171, [#allocation3]
    $region33: #{_lambda_.35} parent=1 // pred_fallthru
      _
    // Predicated region
    $region34: #{_lambda_.35} parent=1 // pred_check
      _
    $region35: #{_lambda_.35} parent=1 // pred_check_branch
      %175 = sbr.rel (0) target = $region37
    $region36: #{_lambda_.35} parent=1 // pred_region
      %177 = dma.done [#allocation3], 128
    $region37: #{_lambda_.35} parent=1 // pred_fallthru
      _
    %178 = vsyncpa [#allocation3], 1

// kernel: _lambda_.31
$region0: #{_lambda_.31}
  #allocation0 [shape = 'u32[]', space=smem, size = 0x4, offset = 0x4, fixed_abs, tag = 'smem constant byte address 0x4 - core index']
  #allocation1 [shape = 'u32[72,128]{1,0:T(1,128)}', space=vmem, size = 0x9000, scoped, tag = 'internal scratch']
  %s0 = inlined_call_operand.vmem [shape: f32[8,16], index: 0, kind: input, shape index: {}]
  %s1 = inlined_call_operand.vmem [shape: bf16[16,64], index: 1, kind: input, shape index: {}]
  %s2 = inlined_call_operand.vmem [shape: f32[1,64], index: 2, kind: input, shape index: {}]
  %s3 = inlined_call_operand.vmem [shape: bf16[64,16], index: 3, kind: input, shape index: {}]
  %s4 = inlined_call_operand.vmem [shape: f32[1,16], index: 4, kind: input, shape index: {}]
  %s5 = inlined_call_operand.vmem [shape: f32[1,16], index: 5, kind: input, shape index: {}]
  %s6 = inlined_call_operand.vmem [shape: f32[1,16], index: 6, kind: input, shape index: {}]
  %s7 = inlined_call_operand.vmem [shape: f32[8,16], index: 7, kind: output, shape index: {}]
  %s8 = sld [smem:[#allocation0]]
  $region38: #{_lambda_.31} parent=0
    _
  %s10 = ssub.s32 1, %s8
  %s11 = scalar_select 0, %s10, %s8
  // Predicated region
  $region2: #{_lambda_.31} parent=0 // pred_check
    _
  $region3: #{_lambda_.31} parent=0 // pred_check_branch
    %13 = sbr.rel (0) target = $region5
  $region4: #{_lambda_.31} parent=0 // pred_region
    _
  $region5: #{_lambda_.31} parent=0 // pred_fallthru
    _
  // Predicated region
  $region6: #{_lambda_.31} parent=0 // pred_check
    _
  $region7: #{_lambda_.31} parent=0 // pred_check_branch
    %15 = sbr.rel (0) target = $region9
  $region8: #{_lambda_.31} parent=0 // pred_region
    _
  $region9: #{_lambda_.31} parent=0 // pred_fallthru
    _
  // Predicated region
  $region10: #{_lambda_.31} parent=0 // pred_check
    _
  $region11: #{_lambda_.31} parent=0 // pred_check_branch
    %17 = sbr.rel (0) target = $region13
  $region12: #{_lambda_.31} parent=0 // pred_region
    _
  $region13: #{_lambda_.31} parent=0 // pred_fallthru
    _
  // Predicated region
  $region14: #{_lambda_.31} parent=0 // pred_check
    _
  $region15: #{_lambda_.31} parent=0 // pred_check_branch
    %19 = sbr.rel (0) target = $region17
  $region16: #{_lambda_.31} parent=0 // pred_region
    _
  $region17: #{_lambda_.31} parent=0 // pred_fallthru
    _
  // Predicated region
  $region18: #{_lambda_.31} parent=0 // pred_check
    _
  $region19: #{_lambda_.31} parent=0 // pred_check_branch
    %21 = sbr.rel (0) target = $region21
  $region20: #{_lambda_.31} parent=0 // pred_region
    _
  $region21: #{_lambda_.31} parent=0 // pred_fallthru
    _
  // Predicated region
  $region22: #{_lambda_.31} parent=0 // pred_check
    _
  $region23: #{_lambda_.31} parent=0 // pred_check_branch
    %23 = sbr.rel (0) target = $region25
  $region24: #{_lambda_.31} parent=0 // pred_region
    _
  $region25: #{_lambda_.31} parent=0 // pred_fallthru
    _
  // Predicated region
  $region26: #{_lambda_.31} parent=0 // pred_check
    _
  $region27: #{_lambda_.31} parent=0 // pred_check_branch
    %25 = sbr.rel (0) target = $region29
  $region28: #{_lambda_.31} parent=0 // pred_region
    _
  $region29: #{_lambda_.31} parent=0 // pred_fallthru
    _
  %v27 = vld [vmem:[%s0] sm:$0xff]
  %v28 = vpack.c.bf16 %v27, %v27
  %v29 = vld [vmem:[%s1] sm:$0xf]
  %v30 = vld [vmem:[%s1 + $0x4] sm:$0xf]
  %v31 = vld [vmem:[%s2] sm:$0x1]
  %v33 = vperm.slane %v31, 0
  %v37 = vunpack.c.l.b16 %v29
  %v38 = vunpack.c.l.b16 %v30
  %v39 = vpack.c.b16 %v38, %v37
  %vm41 = vcmask 130048
  %v43 = vsel %vm41, %v28, 0
  %45 = vmatpush.bf16.msra.mxu0 0
  %46 = vmatpush.bf16.msra.mxu0 0
  %47 = vmatpush.bf16.msra.mxu0 0
  %48 = vmatpush.bf16.msra.mxu0 0
  %49 = vmatpush.bf16.msra.mxu0 0
  %50 = vmatpush.bf16.msra.mxu0 0
  %51 = vmatpush.bf16.msra.mxu0 0
  %52 = vmatpush.bf16.msra.mxu0 %v39
  %53 = vmatmul.bf16.gmra.mxu0 %v43
  %v54 = vpop.f32.mrf.mxu0
  %v55 = vadd.f32 %v33, %v54
  %v56 = vpop.f32.mrf.mxu0
  %57 = vdwg.mxu0
  %v58 = vmul.f32 %v55, 0.5
  %v59 = vmul.f32 %v55, 0.044715
  %v60 = vmul.f32 %v59, %v55
  %v61 = vmul.f32 %v60, %v55
  %v62 = vadd.f32 %v55, %v61
  %v63 = vmul.f32 %v62, 0.7978846
  %v64 = vtanh.pop %v63
  %v65 = vadd.f32 %v64, 1.0
  %v66 = vmul.f32 %v58, %v65
  %v67 = vpack.c.bf16 %v66, %v66
  %v68 = vld [vmem:[%s3] sm:$0xf]
  %v69 = vld [vmem:[%s3 + $0x4] sm:$0xf]
  %v70 = vld [vmem:[%s3 + $0x8] sm:$0xf]
  %v71 = vld [vmem:[%s3 + $0xc] sm:$0xf]
  %v72 = vld [vmem:[%s3 + $0x10] sm:$0xf]
  %v73 = vld [vmem:[%s3 + $0x14] sm:$0xf]
  %v74 = vld [vmem:[%s3 + $0x18] sm:$0xf]
  %v75 = vld [vmem:[%s3 + $0x1c] sm:$0xf]
  %v76 = vld [vmem:[%s4] sm:$0x1]
  %v78 = vperm.slane %v76, 0
  %v88 = vunpack.c.l.b16 %v68
  %v89 = vunpack.c.l.b16 %v69
  %v90 = vunpack.c.l.b16 %v70
  %v91 = vunpack.c.l.b16 %v71
  %v92 = vunpack.c.l.b16 %v72
  %v93 = vunpack.c.l.b16 %v73
  %v94 = vunpack.c.l.b16 %v74
  %v95 = vunpack.c.l.b16 %v75
  %v96 = vpack.c.b16 %v89, %v88
  %v97 = vpack.c.b16 %v91, %v90
  %v98 = vpack.c.b16 %v93, %v92
  %v99 = vpack.c.b16 %v95, %v94
  %vm104 = vcmask 523264
  %v106 = vsel %vm104, %v67, 0
  %108 = vmatpush.bf16.msra.mxu0 0
  %109 = vmatpush.bf16.msra.mxu0 0
  %110 = vmatpush.bf16.msra.mxu0 0
  %111 = vmatpush.bf16.msra.mxu0 0
  %112 = vmatpush.bf16.msra.mxu0 %v99
  %113 = vmatpush.bf16.msra.mxu0 %v98
  %114 = vmatpush.bf16.msra.mxu0 %v97
  %115 = vmatpush.bf16.msra.mxu0 %v96
  %116 = vmatmul.bf16.gmra.mxu0 %v106
  %v117 = vpop.f32.mrf.mxu0
  %v118 = vadd.f32 %v78, %v117
  %v119 = vpop.f32.mrf.mxu0
  %120 = vdwg.mxu0
  %v121 = vsel %vm41, %v118, 0.0
  %122 = vadd.xlane.f32.xlu0 %v121
  %v123 = vpop.xlane.xlu0 %122
  %v124 = vrcp.pop 16.0
  %v125 = vmul.f32 16.0, %v124
  %v126 = vsub.f32 1.0, %v125
  %v127 = vmul.f32 %v124, %v126
  %v128 = vadd.f32 %v124, %v127
  %vm129 = vweird.f32 %v124
  %v130 = vsel %vm129, %v124, %v128
  %v131 = vmul.f32 %v123, %v130
  %v132 = vsub.f32 %v118, %v131
  %v133 = vmul.f32 %v132, %v132
  %v134 = vsel %vm41, %v133, 0.0
  %135 = vadd.xlane.f32.xlu0 %v134
  %v136 = vpop.xlane.xlu0 %135
  %v137 = vmul.f32 %v136, %v130
  %v138 = vadd.f32 %v137, 1e-05
  %v139 = vrsqrt.pop %v138
  %v140 = vmul.f32 %v139, %v138
  %v141 = vmul.f32 %v140, %v139
  %v142 = vmul.f32 0.5, %v141
  %v143 = vsub.f32 1.5, %v142
  %v144 = vmul.f32 %v139, %v143
  %vm145 = vweird.f32 %v138
  %vm146 = vweird.f32 %v139
  %vm147 = vmor %vm145, %vm146
  %v148 = vsel %vm147, %v139, %v144
  %v149 = vmul.f32 %v132, %v148
  %v150 = vld [vmem:[%s5] sm:$0x1]
  %v152 = vperm.slane %v150, 0
  %v154 = vmul.f32 %v149, %v152
  %v155 = vld [vmem:[%s6] sm:$0x1]
  %v157 = vperm.slane %v155, 0
  %v159 = vadd.f32 %v154, %v157
  %v160 = vadd.f32 %v27, %v159
  %161 = vst.msk [vmem:[%s7] sm:$0xff] %vm41, %v160
  // Predicated region
  $region30: #{_lambda_.31} parent=0 // pred_check
    _
  $region31: #{_lambda_.31} parent=0 // pred_check_branch
    %163 = sbr.rel (0) target = $region33
  $region32: #{_lambda_.31} parent=0 // pred_region
    _
  $region33: #{_lambda_.31} parent=0 // pred_fallthru
    _
  // Predicated region
  $region34: #{_lambda_.31} parent=0 // pred_check
    _
  $region35: #{_lambda_.31} parent=0 // pred_check_branch
    %165 = sbr.rel (0) target = $region37
  $region36: #{_lambda_.31} parent=0 // pred_region
    _
  $region37: #{_lambda_.31} parent=0 // pred_fallthru
    _

</llo_original>
